<compile_context>
chip_gen: v6e
topology: v6e:2x2x1
jax: 0.10.0
libtpu: 0.0.40
codegen_flags: <defaults>
</compile_context>

<pallas_src>
import functools
import numpy as np
import jax
import jax.numpy as jnp
from jax import lax
from jax.experimental import pallas as pl
from jax.experimental.pallas import tpu as pltpu


def _round_up(n, m):
    return ((n + m - 1) // m) * m


def _vmem_capacity_bytes():
    try:
        return int(pltpu.get_tpu_info().vmem_capacity_bytes)
    except Exception:
        return 64 << 20          # conservative (v7x per-TensorCore VMEM)


def _decoder_kernel(TS, Bp, Hp, TV, pad_idx,
                    x_ref, z_ref, mask_ref, tgt_ref,
                    wzh_ref, bzh_ref, wih_ref, bih_ref, whh_ref, bhh_ref,
                    wout_ref, bout_ref,
                    h0_ref, loss_ref,
                    gi, hs, m_acc, s_acc, p_acc):
    """Grid axis 0 streams vocab tiles; GRU recurrence runs once at j == 0."""
    f32 = jnp.float32
    bf16 = jnp.bfloat16
    j = pl.program_id(0)
    N = TS * Bp                                  # flattened (timestep, batch) rows

    @pl.when(j == 0)
    def _prologue():
        # Fused input-to-hidden projection for ALL timesteps: one bf16 MXU call,
        # gate order (r, z, n) packed along the 3*Hp lane axis, f32 accumulate.
        gi[...] = (jnp.dot(x_ref[...], wih_ref[...], preferred_element_type=f32)
                   + bih_ref[...])

        # h_0 = z_to_h(z)  (kept f32: tiny op, and h_0 is a returned output)
        h0 = (jnp.dot(z_ref[...], wzh_ref[...], preferred_element_type=f32)
              + bzh_ref[...])
        h0_ref[...] = h0

        whh = whh_ref[...]
        bhh = bhh_ref[...]

        def step(t, h):
            row = pl.multiple_of(t * Bp, Bp)
            git = gi[pl.ds(row, Bp), :]                                   # (Bp, 3Hp)
            # Single fused recurrent matmul per step (serial critical path).
            gh = jnp.dot(h, whh, preferred_element_type=f32) + bhh       # (Bp, 3Hp)
            r = jax.nn.sigmoid(git[:, 0:Hp] + gh[:, 0:Hp])
            u = jax.nn.sigmoid(git[:, Hp:2 * Hp] + gh[:, Hp:2 * Hp])
            n = jnp.tanh(git[:, 2 * Hp:] + r * gh[:, 2 * Hp:])
            h_new = (1.0 - u) * n + u * h
            # packed-sequence semantics: padded timesteps produce zero outputs
            hs[pl.ds(row, Bp), :] = h_new * mask_ref[pl.ds(row, Bp), :]
            return h_new

        # Unroll: the per-step (Bp,Hp)@(Hp,3Hp) matmul is latency-bound; give
        # the scheduler visibility to overlap gi loads / hs stores / EUP work.
        unroll = TS if TS <= 32 else 8
        lax.fori_loop(0, TS, step, h0, unroll=unroll)

        # init online-softmax accumulators
        m_acc[...] = jnp.full(m_acc.shape, -jnp.inf, f32)
        s_acc[...] = jnp.zeros(s_acc.shape, f32)
        p_acc[...] = jnp.zeros(p_acc.shape, f32)

    # ---- streamed vocab tile: bf16 logits matmul + online logsumexp + picked logit.
    # Padded vocab columns carry a -1e30 sentinel via the f32 b_out (W_out pad = 0),
    # so no in-kernel vocab mask is needed.
    lt = (jnp.dot(hs[...].astype(bf16), wout_ref[...], preferred_element_type=f32)
          + bout_ref[...])                                                # (N, TV) f32
    col = lax.broadcasted_iota(jnp.int32, (N, TV), 1) + j * TV
    tgt = tgt_ref[...]                                                    # (N, 1) int32
    m_prev = m_acc[...]
    m_new = jnp.maximum(m_prev, jnp.max(lt, axis=-1, keepdims=True))
    s_acc[...] = (s_acc[...] * jnp.exp(m_prev - m_new)
                  + jnp.sum(jnp.exp(lt - m_new), axis=-1, keepdims=True))
    p_acc[...] = p_acc[...] + jnp.sum(jnp.where(col == tgt, lt, 0.0),
                                      axis=-1, keepdims=True)
    m_acc[...] = m_new

    @pl.when(j == pl.num_programs(0) - 1)
    def _epilogue():
        per_tok = m_acc[...] + jnp.log(s_acc[...]) - p_acc[...]           # (N, 1)
        valid = (tgt_ref[...] != pad_idx).astype(f32)
        denom = jnp.maximum(jnp.sum(valid), 1.0)                          # guard 0/0
        loss_ref[0, 0] = jnp.sum(per_tok * valid) / denom


def prepare_decoder_weights(params):
    """One-time weight layout plumbing (fuse gates, transpose, pad, bf16 cast).

    Hoisted out of decoder_forward so the (V,H) output matrix is not
    transposed / padded / re-written to HBM on every forward call.
    """
    f32, bf16 = jnp.float32, jnp.bfloat16
    E = params["emb"].shape[1]
    L = params["w_zh"].shape[1]
    H = params["w_hh"].shape[1]
    V = params["w_out"].shape[0]
    D = E + L

    Hp = _round_up(H, 128)
    Lp = _round_up(L, 128)
    Dp = _round_up(D, 128)

    # Streamed vocab tile width: as large as the VMEM budget comfortably allows
    # (double-buffered bf16 W_out tile kept under ~1/8 of per-core VMEM).
    cap = _vmem_capacity_bytes()
    vlim = _round_up(V, 128)
    TV = 128
    for cand in (2048, 1024, 512, 256, 128):
        if cand <= vlim and (2 * Hp * cand * 2) <= max(cap // 8, 1 << 20):
            TV = cand
            break
    Vp = _round_up(V, TV)

    def pad2(a, r, c):
        return jnp.pad(a, ((0, r - a.shape[0]), (0, c - a.shape[1])))

    def fuse_gates(w, in_pad):           # w: (3H, in_dim), PyTorch gate order (r, z, n)
        parts = [pad2(w[g * H:(g + 1) * H].T, in_pad, Hp) for g in range(3)]
        return jnp.concatenate(parts, axis=1)                 # (in_pad, 3*Hp)

    def fuse_bias(b):
        parts = [jnp.pad(b[g * H:(g + 1) * H], (0, Hp - H)) for g in range(3)]
        return jnp.concatenate(parts)[None, :].astype(f32)    # (1, 3*Hp)

    w_ih_k = fuse_gates(params["w_ih"], Dp).astype(bf16)      # bf16 MXU path
    w_hh_k = fuse_gates(params["w_hh"], Hp).astype(f32)       # recurrence stays f32
    b_ih_k = fuse_bias(params["b_ih"])
    b_hh_k = fuse_bias(params["b_hh"])
    w_zh_k = pad2(params["w_zh"].T, Lp, Hp).astype(f32)
    b_zh_k = jnp.pad(params["b_zh"], (0, Hp - H))[None, :].astype(f32)
    w_out_k = pad2(params["w_out"].T, Hp, Vp).astype(bf16)    # streamed in bf16
    # -1e30 sentinel on the f32 bias path replaces the in-kernel vocab mask.
    b_out_k = jnp.concatenate(
        [params["b_out"].astype(f32), jnp.full((Vp - V,), -1e30, f32)])[None, :]

    return dict(emb=params["emb"],
                w_zh=w_zh_k, b_zh=b_zh_k, w_ih=w_ih_k, b_ih=b_ih_k,
                w_hh=w_hh_k, b_hh=b_hh_k, w_out=w_out_k, b_out=b_out_k,
                E=E, L=L, H=H, V=V, D=D, Hp=Hp, Lp=Lp, Dp=Dp, TV=TV, Vp=Vp)


def decoder_forward(dec_input_seq, input_len, z, params, pad_idx,
                    prepared=None, length_bucket=8):
    """Returns (h_0, reconstruction cross-entropy loss), like the PyTorch decoder."""
    if prepared is None:
        prepared = prepare_decoder_weights(params)

    f32, bf16 = jnp.float32, jnp.bfloat16
    B, S = dec_input_seq.shape
    input_len_np = np.asarray(input_len)
    T = int(input_len_np.max())          # pad_packed_sequence length
    TS_raw = max(T - 1, 1)               # only outputs 0..T-2 feed the loss
    # Bucket the static timestep count to avoid recompiling for every max-length.
    TS = min(_round_up(TS_raw, max(length_bucket, 1)), S - 1)

    E, L, H, V = prepared["E"], prepared["L"], prepared["H"], prepared["V"]
    D, Hp, Lp, Dp = prepared["D"], prepared["Hp"], prepared["Lp"], prepared["Dp"]
    TV, Vp = prepared["TV"], prepared["Vp"]
    assert z.shape[1] == L

    Bp = _round_up(max(B, 8), 8)
    N = TS * Bp

    # ---- inputs: embed, concat z, time-major, pad, pre-flatten, bf16 ----
    # TODO(synk): emb_dropout modeled in eval mode (identity); PyTorch training
    # dropout RNG cannot be reproduced bit-exactly.
    emb = jnp.take(prepared["emb"], dec_input_seq[:, :TS], axis=0)        # (B, TS, E)
    z0 = jnp.broadcast_to(z[:, None, :], (B, TS, L))
    x = jnp.concatenate([emb, z0], axis=-1)                               # (B, TS, D)
    x = jnp.transpose(x, (1, 0, 2))                                       # (TS, B, D)
    x = jnp.pad(x, ((0, 0), (0, Bp - B), (0, Dp - D)))
    x_flat = x.reshape(N, Dp).astype(bf16)

    z_pad = jnp.pad(z.astype(f32), ((0, Bp - B), (0, Lp - L)))

    lens_b = jnp.asarray(input_len_np, jnp.int32)                         # (B,)
    lens = jnp.pad(lens_b, (0, Bp - B))
    mask = (jnp.arange(TS)[:, None] < lens[None, :]).astype(f32)          # (TS, Bp)
    mask_flat = mask.reshape(N, 1)

    tgt = jnp.transpose(dec_input_seq[:, 1:TS + 1].astype(jnp.int32), (1, 0))  # (TS, B)
    # Force targets past each sequence's length to pad_idx (pack_padded semantics;
    # also makes length-bucketing exactly loss-neutral).
    tgt = jnp.where((jnp.arange(TS)[:, None] + 1) < lens_b[None, :], tgt, pad_idx)
    tgt = jnp.pad(tgt, ((0, 0), (0, Bp - B)), constant_values=pad_idx)
    tgt_flat = tgt.reshape(N, 1)

    # ---- VMEM budget (resident operands + double-buffered streamed tiles) ----
    cap = _vmem_capacity_bytes()
    res = (N * Dp * 2 + N * 3 * Hp * 4 + N * Hp * 4 + 3 * N * 4           # x, gi, hs, accs
           + Dp * 3 * Hp * 2 + Hp * 3 * Hp * 4 + Lp * Hp * 4              # fused weights
           + 2 * (Hp * TV * 2 + TV * 4)                                   # streamed W_out/b_out
           + Bp * Lp * 4 + Bp * Hp * 4 + 2 * N * 4)                       # z, h0, mask, targets
    vmem_limit = int(min(max(2 * res, 32 << 20), cap - (8 << 20)))

    kernel = functools.partial(_decoder_kernel, TS, Bp, Hp, TV, pad_idx)
    operands = (x_flat, z_pad, mask_flat, tgt_flat,
                prepared["w_zh"], prepared["b_zh"],
                prepared["w_ih"], prepared["b_ih"],
                prepared["w_hh"], prepared["b_hh"],
                prepared["w_out"], prepared["b_out"])

    def _call(single_buffer_invariants):
        if single_buffer_invariants:
            # Whole-array VMEM operands: copied in once, not pipelined, hence not
            # double-buffered across the vocab grid (significant VMEM saving).
            def full(shape):
                return pl.BlockSpec(memory_space=pltpu.MemorySpace.VMEM)
        else:
            def full(shape):
                return pl.BlockSpec(shape, lambda j, _n=len(shape): (0,) * _n)

        in_specs = [full((N, Dp)),                               # x (bf16, time-major)
                    full((Bp, Lp)),                              # z
                    full((N, 1)),                                # length mask
                    full((N, 1)),                                # targets (int32)
                    full((Lp, Hp)), full((1, Hp)),               # z_to_h
                    full((Dp, 3 * Hp)), full((1, 3 * Hp)),       # fused W_ih (bf16), b_ih
                    full((Hp, 3 * Hp)), full((1, 3 * Hp)),       # fused W_hh, b_hh
                    pl.BlockSpec((Hp, TV), lambda j: (0, j)),    # streamed W_out tile (bf16)
                    pl.BlockSpec((1, TV), lambda j: (0, j))]     # streamed b_out tile (f32)

        return pl.pallas_call(
            kernel,
            grid=(Vp // TV,),
            out_shape=(jax.ShapeDtypeStruct((Bp, Hp), f32),
                       jax.ShapeDtypeStruct((1, 1), f32)),
            in_specs=in_specs,
            out_specs=(pl.BlockSpec((Bp, Hp), lambda j: (0, 0)),
                       pl.BlockSpec(memory_space=pltpu.MemorySpace.SMEM)),
            scratch_shapes=[
                pltpu.VMEM((N, 3 * Hp), f32),   # fused input-gate projections
                pltpu.VMEM((N, Hp), f32),       # masked GRU outputs
                pltpu.VMEM((N, 1), f32),        # online-softmax running max
                pltpu.VMEM((N, 1), f32),        # online-softmax running sum
                pltpu.VMEM((N, 1), f32),        # picked target logit
            ],
            compiler_params=pltpu.CompilerParams(
                dimension_semantics=("arbitrary",),
                vmem_limit_bytes=vmem_limit,
            ),
        )(*operands)

    try:
        h0_p, loss = _call(True)
        jax.block_until_ready((h0_p, loss))
    except Exception:
        # Fallback: index-mapped full blocks (known-good, double-buffered) in case
        # whole-array VMEM operands are rejected by this compiler version.
        h0_p, loss = _call(False)

    return h0_p[None, :B, :H], loss[0, 0]


def init_params(key, V, E, H, L):
    ks = jax.random.split(key, 9)

    def unif(k, shape, bound):
        return jax.random.uniform(k, shape, jnp.float32, -bound, bound)

    kH = 1.0 / np.sqrt(H)
    kL = 1.0 / np.sqrt(L)
    D = E + L
    return {
        "emb": jax.random.normal(ks[0], (V, E), jnp.float32),
        "w_ih": unif(ks[1], (3 * H, D), kH),   # GRU weight_ih_l0, gate order (r, z, n)
        "w_hh": unif(ks[2], (3 * H, H), kH),   # GRU weight_hh_l0
        "b_ih": unif(ks[3], (3 * H,), kH),
        "b_hh": unif(ks[4], (3 * H,), kH),
        "w_zh": unif(ks[5], (H, L), kL),       # z_to_h
        "b_zh": unif(ks[6], (H,), kL),
        "w_out": unif(ks[7], (V, H), kH),      # output_to_vocab
        "b_out": unif(ks[8], (V,), kH),
    }


def reference_forward(dec_input_seq, input_len, z, p, pad_idx):
    """Pure-JAX reference mirroring the PyTorch decoder forward (for checking)."""
    B, S = dec_input_seq.shape
    T = int(np.asarray(input_len).max())
    H = p["w_hh"].shape[1]
    L = z.shape[1]
    emb = jnp.take(p["emb"], dec_input_seq, axis=0)[:, :T]
    z0 = jnp.broadcast_to(z[:, None, :], (B, T, L))
    x = jnp.concatenate([emb, z0], axis=-1)
    lens = jnp.asarray(np.asarray(input_len), jnp.int32)
    mask = (jnp.arange(T)[None, :] < lens[:, None]).astype(jnp.float32)   # (B, T)

    w_ir, w_iz, w_in = p["w_ih"][:H], p["w_ih"][H:2 * H], p["w_ih"][2 * H:]
    w_hr, w_hz, w_hn = p["w_hh"][:H], p["w_hh"][H:2 * H], p["w_hh"][2 * H:]
    b_ir, b_iz, b_in = p["b_ih"][:H], p["b_ih"][H:2 * H], p["b_ih"][2 * H:]
    b_hr, b_hz, b_hn = p["b_hh"][:H], p["b_hh"][H:2 * H], p["b_hh"][2 * H:]

    h = z @ p["w_zh"].T + p["b_zh"]
    h0 = h[None]
    outs = []
    for t in range(T):
        xt = x[:, t]
        r = jax.nn.sigmoid(xt @ w_ir.T + b_ir + h @ w_hr.T + b_hr)
        u = jax.nn.sigmoid(xt @ w_iz.T + b_iz + h @ w_hz.T + b_hz)
        n = jnp.tanh(xt @ w_in.T + b_in + r * (h @ w_hn.T + b_hn))
        h = (1.0 - u) * n + u * h
        outs.append(h * mask[:, t][:, None])
    out = jnp.stack(outs, axis=1)                    # (B, T, H)
    y = out @ p["w_out"].T + p["b_out"]              # (B, T, V)
    logits = y[:, :-1].reshape(-1, y.shape[-1])
    tgt = dec_input_seq[:, 1:T].reshape(-1)
    lse = jax.scipy.special.logsumexp(logits, axis=-1)
    picked = jnp.take_along_axis(logits, tgt[:, None], axis=-1)[:, 0]
    valid = (tgt != pad_idx).astype(jnp.float32)
    loss = jnp.sum((lse - picked) * valid) / jnp.maximum(jnp.sum(valid), 1.0)
    return h0, loss


if __name__ == "__main__":
    B, S, E, H, L, V = 2, 10, 16, 32, 8, 64
    pad_idx = 0

    key = jax.random.PRNGKey(0)
    kp, kt, kz = jax.random.split(key, 3)
    params = init_params(kp, V, E, H, L)

    input_len = np.array([8, 5], dtype=np.int32)
    toks = jax.random.randint(kt, (B, S), 1, V, dtype=jnp.int32)
    pos = jnp.arange(S)[None, :]
    dec_input_seq = jnp.where(pos < jnp.asarray(input_len)[:, None], toks,
                              pad_idx).astype(jnp.int32)
    z = jax.random.normal(kz, (B, L), jnp.float32)

    prepared = prepare_decoder_weights(params)       # one-time weight layout prep
    h0, loss = decoder_forward(dec_input_seq, input_len, z, params, pad_idx,
                               prepared=prepared)
    jax.block_until_ready((h0, loss))

    h0_ref, loss_ref_v = reference_forward(dec_input_seq, input_len, z, params, pad_idx)
    assert h0.shape == (1, B, H)
    assert np.allclose(np.asarray(h0), np.asarray(h0_ref), rtol=1e-2, atol=1e-2)
    # slightly looser loss tolerance: bf16 MXU inputs for the big matmuls
    assert np.allclose(float(loss), float(loss_ref_v), rtol=2e-2, atol=2e-2)
    print("KERNEL_OK")
</pallas_src>

<mosaic_0001>
module attributes {stable_mosaic.version = 11 : i64} {
  func.func @_decoder_kernel(%arg0: i32, %arg1: memref<64x128xbf16, #tpu.memory_space<vmem>>, %arg2: memref<8x128xf32, #tpu.memory_space<vmem>>, %arg3: memref<64x1xf32, #tpu.memory_space<vmem>>, %arg4: memref<64x1xi32, #tpu.memory_space<vmem>>, %arg5: memref<128x128xf32, #tpu.memory_space<vmem>>, %arg6: memref<1x128xf32, #tpu.memory_space<vmem>>, %arg7: memref<128x384xbf16, #tpu.memory_space<vmem>>, %arg8: memref<1x384xf32, #tpu.memory_space<vmem>>, %arg9: memref<128x384xf32, #tpu.memory_space<vmem>>, %arg10: memref<1x384xf32, #tpu.memory_space<vmem>>, %arg11: memref<128x128xbf16, #tpu.memory_space<vmem>>, %arg12: memref<1x128xf32, #tpu.memory_space<vmem>>, %arg13: memref<8x128xf32, #tpu.memory_space<vmem>>, %arg14: memref<1x1xf32, #tpu.memory_space<smem>>, %arg15: memref<64x384xf32, #tpu.memory_space<vmem>>, %arg16: memref<64x128xf32, #tpu.memory_space<vmem>>, %arg17: memref<64x1xf32, #tpu.memory_space<vmem>>, %arg18: memref<64x1xf32, #tpu.memory_space<vmem>>, %arg19: memref<64x1xf32, #tpu.memory_space<vmem>>) attributes {dimension_semantics = [#tpu.dimension_semantics<arbitrary>], iteration_bounds = array<i64: 1>, scalar_prefetch = 0 : i64, scratch_operands = 5 : i64, tpu.core_type = #tpu.core_type<tc>, window_params = [{pipeline_mode = #tpu.pipeline_mode<synchronous>, transform_indices = @transform_0, window_bounds = array<i64: 64, 128>}, {pipeline_mode = #tpu.pipeline_mode<synchronous>, transform_indices = @transform_1, window_bounds = array<i64: 8, 128>}, {pipeline_mode = #tpu.pipeline_mode<synchronous>, transform_indices = @transform_2, window_bounds = array<i64: 64, 1>}, {pipeline_mode = #tpu.pipeline_mode<synchronous>, transform_indices = @transform_3, window_bounds = array<i64: 64, 1>}, {pipeline_mode = #tpu.pipeline_mode<synchronous>, transform_indices = @transform_4, window_bounds = array<i64: 128, 128>}, {pipeline_mode = #tpu.pipeline_mode<synchronous>, transform_indices = @transform_5, window_bounds = array<i64: 1, 128>}, {pipeline_mode = #tpu.pipeline_mode<synchronous>, transform_indices = @transform_6, window_bounds = array<i64: 128, 384>}, {pipeline_mode = #tpu.pipeline_mode<synchronous>, transform_indices = @transform_7, window_bounds = array<i64: 1, 384>}, {pipeline_mode = #tpu.pipeline_mode<synchronous>, transform_indices = @transform_8, window_bounds = array<i64: 128, 384>}, {pipeline_mode = #tpu.pipeline_mode<synchronous>, transform_indices = @transform_9, window_bounds = array<i64: 1, 384>}, {transform_indices = @transform_10, window_bounds = array<i64: 128, 128>}, {transform_indices = @transform_11, window_bounds = array<i64: 1, 128>}, {pipeline_mode = #tpu.pipeline_mode<synchronous>, transform_indices = @transform_12, window_bounds = array<i64: 8, 128>}, {transform_indices = @transform_13, window_bounds = array<i64: 1, 1>}]} {
    %c0_i32 = arith.constant 0 : i32
    %0 = arith.cmpi eq, %arg0, %c0_i32 : i32
    %1 = arith.extui %0 : i1 to i32
    %c0_i32_0 = arith.constant 0 : i32
    %2 = arith.cmpi ne, %1, %c0_i32_0 : i32
    scf.if %2 {
      %c0_26 = arith.constant 0 : index
      %c0_27 = arith.constant 0 : index
      %43 = vector.load %arg1[%c0_26, %c0_27] : memref<64x128xbf16, #tpu.memory_space<vmem>>, vector<64x128xbf16>
      %c0_28 = arith.constant 0 : index
      %c0_29 = arith.constant 0 : index
      %44 = vector.load %arg7[%c0_28, %c0_29] : memref<128x384xbf16, #tpu.memory_space<vmem>>, vector<128x384xbf16>
      %cst_30 = arith.constant dense<0.000000e+00> : vector<64x384xf32>
      %45 = tpu.matmul %43, %44, %cst_30 {dimension_numbers = #tpu.dot_dimension_numbers<[1], [0], [0], [1], [0, 0, 1, 1], [], []>} : vector<64x128xbf16>, vector<128x384xbf16>, vector<64x384xf32> -> vector<64x384xf32>
      %c0_31 = arith.constant 0 : index
      %c0_32 = arith.constant 0 : index
      %46 = vector.load %arg8[%c0_31, %c0_32] : memref<1x384xf32, #tpu.memory_space<vmem>>, vector<1x384xf32>
      %47 = vector.broadcast %46 : vector<1x384xf32> to vector<64x384xf32>
      %48 = arith.addf %45, %47 : vector<64x384xf32>
      %c0_33 = arith.constant 0 : index
      %c0_34 = arith.constant 0 : index
      %49 = vector.load %arg15[%c0_33, %c0_34] : memref<64x384xf32, #tpu.memory_space<vmem>>, vector<64x384xf32>
      tpu.vector_store %arg15[%c0_33, %c0_34], %48 {strides = array<i32>} : memref<64x384xf32, #tpu.memory_space<vmem>>, vector<64x384xf32>,
      %c0_35 = arith.constant 0 : index
      %c0_36 = arith.constant 0 : index
      %50 = vector.load %arg2[%c0_35, %c0_36] : memref<8x128xf32, #tpu.memory_space<vmem>>, vector<8x128xf32>
      %c0_37 = arith.constant 0 : index
      %c0_38 = arith.constant 0 : index
      %51 = vector.load %arg5[%c0_37, %c0_38] : memref<128x128xf32, #tpu.memory_space<vmem>>, vector<128x128xf32>
      %cst_39 = arith.constant dense<0.000000e+00> : vector<8x128xf32>
      %52 = tpu.matmul %50, %51, %cst_39 {dimension_numbers = #tpu.dot_dimension_numbers<[1], [0], [0], [1], [0, 0, 1, 1], [], []>} : vector<8x128xf32>, vector<128x128xf32>, vector<8x128xf32> -> vector<8x128xf32>
      %c0_40 = arith.constant 0 : index
      %c0_41 = arith.constant 0 : index
      %53 = vector.load %arg6[%c0_40, %c0_41] : memref<1x128xf32, #tpu.memory_space<vmem>>, vector<1x128xf32>
      %54 = vector.broadcast %53 : vector<1x128xf32> to vector<8x128xf32>
      %55 = arith.addf %52, %54 : vector<8x128xf32>
      %c0_42 = arith.constant 0 : index
      %c0_43 = arith.constant 0 : index
      %56 = vector.load %arg13[%c0_42, %c0_43] : memref<8x128xf32, #tpu.memory_space<vmem>>, vector<8x128xf32>
      tpu.vector_store %arg13[%c0_42, %c0_43], %55 {strides = array<i32>} : memref<8x128xf32, #tpu.memory_space<vmem>>, vector<8x128xf32>,
      %c0_44 = arith.constant 0 : index
      %c0_45 = arith.constant 0 : index
      %57 = vector.load %arg9[%c0_44, %c0_45] : memref<128x384xf32, #tpu.memory_space<vmem>>, vector<128x384xf32>
      %c0_46 = arith.constant 0 : index
      %c0_47 = arith.constant 0 : index
      %58 = vector.load %arg10[%c0_46, %c0_47] : memref<1x384xf32, #tpu.memory_space<vmem>>, vector<1x384xf32>
      %c0_i32_48 = arith.constant 0 : i32
      %c8_i32 = arith.constant 8 : i32
      %59 = arith.muli %c0_i32_48, %c8_i32 : i32
      %60 = tpu.assume_multiple %59, 8 : i32
      %61 = arith.index_cast %60 : i32 to index
      %c0_49 = arith.constant 0 : index
      %62 = vector.load %arg15[%61, %c0_49] : memref<64x384xf32, #tpu.memory_space<vmem>>, vector<8x384xf32>
      %cst_50 = arith.constant dense<0.000000e+00> : vector<8x384xf32>
      %63 = tpu.matmul %55, %57, %cst_50 {dimension_numbers = #tpu.dot_dimension_numbers<[1], [0], [0], [1], [0, 0, 1, 1], [], []>} : vector<8x128xf32>, vector<128x384xf32>, vector<8x384xf32> -> vector<8x384xf32>
      %64 = vector.broadcast %58 : vector<1x384xf32> to vector<8x384xf32>
      %65 = arith.addf %63, %64 : vector<8x384xf32>
      %66 = vector.extract_strided_slice %62 {offsets = [0, 0], sizes = [8, 128], strides = [1, 1]} : vector<8x384xf32> to vector<8x128xf32>
      %67 = vector.extract_strided_slice %65 {offsets = [0, 0], sizes = [8, 128], strides = [1, 1]} : vector<8x384xf32> to vector<8x128xf32>
      %68 = arith.addf %66, %67 : vector<8x128xf32>
      %69 = arith.negf %68 : vector<8x128xf32>
      %70 = math.exp %69 : vector<8x128xf32>
      %cst_51 = arith.constant 1.000000e+00 : f32
      %71 = vector.broadcast %cst_51 : f32 to vector<8x128xf32>
      %72 = arith.addf %71, %70 : vector<8x128xf32>
      %73 = arith.divf %71, %72 : vector<8x128xf32>
      %74 = vector.extract_strided_slice %62 {offsets = [0, 128], sizes = [8, 128], strides = [1, 1]} : vector<8x384xf32> to vector<8x128xf32>
      %75 = vector.extract_strided_slice %65 {offsets = [0, 128], sizes = [8, 128], strides = [1, 1]} : vector<8x384xf32> to vector<8x128xf32>
      %76 = arith.addf %74, %75 : vector<8x128xf32>
      %77 = arith.negf %76 : vector<8x128xf32>
      %78 = math.exp %77 : vector<8x128xf32>
      %cst_52 = arith.constant 1.000000e+00 : f32
      %79 = vector.broadcast %cst_52 : f32 to vector<8x128xf32>
      %80 = arith.addf %79, %78 : vector<8x128xf32>
      %81 = arith.divf %79, %80 : vector<8x128xf32>
      %82 = vector.extract_strided_slice %62 {offsets = [0, 256], sizes = [8, 128], strides = [1, 1]} : vector<8x384xf32> to vector<8x128xf32>
      %83 = vector.extract_strided_slice %65 {offsets = [0, 256], sizes = [8, 128], strides = [1, 1]} : vector<8x384xf32> to vector<8x128xf32>
      %84 = arith.mulf %73, %83 : vector<8x128xf32>
      %85 = arith.addf %82, %84 : vector<8x128xf32>
      %86 = math.tanh %85 : vector<8x128xf32>
      %cst_53 = arith.constant 1.000000e+00 : f32
      %87 = vector.broadcast %cst_53 : f32 to vector<8x128xf32>
      %88 = arith.subf %87, %81 : vector<8x128xf32>
      %89 = arith.mulf %88, %86 : vector<8x128xf32>
      %90 = arith.mulf %81, %55 : vector<8x128xf32>
      %91 = arith.addf %89, %90 : vector<8x128xf32>
      %92 = arith.index_cast %60 : i32 to index
      %c0_54 = arith.constant 0 : index
      %93 = vector.load %arg3[%92, %c0_54] : memref<64x1xf32, #tpu.memory_space<vmem>>, vector<8x1xf32>
      %94 = vector.broadcast %93 : vector<8x1xf32> to vector<8x128xf32>
      %95 = arith.mulf %91, %94 : vector<8x128xf32>
      %96 = arith.index_cast %60 : i32 to index
      %c0_55 = arith.constant 0 : index
      %97 = vector.load %arg16[%96, %c0_55] : memref<64x128xf32, #tpu.memory_space<vmem>>, vector<8x128xf32>
      tpu.vector_store %arg16[%96, %c0_55], %95 {strides = array<i32>} : memref<64x128xf32, #tpu.memory_space<vmem>>, vector<8x128xf32>,
      %c1_i32 = arith.constant 1 : i32
      %c8_i32_56 = arith.constant 8 : i32
      %98 = arith.muli %c1_i32, %c8_i32_56 : i32
      %99 = tpu.assume_multiple %98, 8 : i32
      %100 = arith.index_cast %99 : i32 to index
      %c0_57 = arith.constant 0 : index
      %101 = vector.load %arg15[%100, %c0_57] : memref<64x384xf32, #tpu.memory_space<vmem>>, vector<8x384xf32>
      %cst_58 = arith.constant dense<0.000000e+00> : vector<8x384xf32>
      %102 = tpu.matmul %91, %57, %cst_58 {dimension_numbers = #tpu.dot_dimension_numbers<[1], [0], [0], [1], [0, 0, 1, 1], [], []>} : vector<8x128xf32>, vector<128x384xf32>, vector<8x384xf32> -> vector<8x384xf32>
      %103 = vector.broadcast %58 : vector<1x384xf32> to vector<8x384xf32>
      %104 = arith.addf %102, %103 : vector<8x384xf32>
      %105 = vector.extract_strided_slice %101 {offsets = [0, 0], sizes = [8, 128], strides = [1, 1]} : vector<8x384xf32> to vector<8x128xf32>
      %106 = vector.extract_strided_slice %104 {offsets = [0, 0], sizes = [8, 128], strides = [1, 1]} : vector<8x384xf32> to vector<8x128xf32>
      %107 = arith.addf %105, %106 : vector<8x128xf32>
      %108 = arith.negf %107 : vector<8x128xf32>
      %109 = math.exp %108 : vector<8x128xf32>
      %cst_59 = arith.constant 1.000000e+00 : f32
      %110 = vector.broadcast %cst_59 : f32 to vector<8x128xf32>
      %111 = arith.addf %110, %109 : vector<8x128xf32>
      %112 = arith.divf %110, %111 : vector<8x128xf32>
      %113 = vector.extract_strided_slice %101 {offsets = [0, 128], sizes = [8, 128], strides = [1, 1]} : vector<8x384xf32> to vector<8x128xf32>
      %114 = vector.extract_strided_slice %104 {offsets = [0, 128], sizes = [8, 128], strides = [1, 1]} : vector<8x384xf32> to vector<8x128xf32>
      %115 = arith.addf %113, %114 : vector<8x128xf32>
      %116 = arith.negf %115 : vector<8x128xf32>
      %117 = math.exp %116 : vector<8x128xf32>
      %cst_60 = arith.constant 1.000000e+00 : f32
      %118 = vector.broadcast %cst_60 : f32 to vector<8x128xf32>
      %119 = arith.addf %118, %117 : vector<8x128xf32>
      %120 = arith.divf %118, %119 : vector<8x128xf32>
      %121 = vector.extract_strided_slice %101 {offsets = [0, 256], sizes = [8, 128], strides = [1, 1]} : vector<8x384xf32> to vector<8x128xf32>
      %122 = vector.extract_strided_slice %104 {offsets = [0, 256], sizes = [8, 128], strides = [1, 1]} : vector<8x384xf32> to vector<8x128xf32>
      %123 = arith.mulf %112, %122 : vector<8x128xf32>
      %124 = arith.addf %121, %123 : vector<8x128xf32>
      %125 = math.tanh %124 : vector<8x128xf32>
      %cst_61 = arith.constant 1.000000e+00 : f32
      %126 = vector.broadcast %cst_61 : f32 to vector<8x128xf32>
      %127 = arith.subf %126, %120 : vector<8x128xf32>
      %128 = arith.mulf %127, %125 : vector<8x128xf32>
      %129 = arith.mulf %120, %91 : vector<8x128xf32>
      %130 = arith.addf %128, %129 : vector<8x128xf32>
      %131 = arith.index_cast %99 : i32 to index
      %c0_62 = arith.constant 0 : index
      %132 = vector.load %arg3[%131, %c0_62] : memref<64x1xf32, #tpu.memory_space<vmem>>, vector<8x1xf32>
      %133 = vector.broadcast %132 : vector<8x1xf32> to vector<8x128xf32>
      %134 = arith.mulf %130, %133 : vector<8x128xf32>
      %135 = arith.index_cast %99 : i32 to index
      %c0_63 = arith.constant 0 : index
      %136 = vector.load %arg16[%135, %c0_63] : memref<64x128xf32, #tpu.memory_space<vmem>>, vector<8x128xf32>
      tpu.vector_store %arg16[%135, %c0_63], %134 {strides = array<i32>} : memref<64x128xf32, #tpu.memory_space<vmem>>, vector<8x128xf32>,
      %c2_i32 = arith.constant 2 : i32
      %c8_i32_64 = arith.constant 8 : i32
      %137 = arith.muli %c2_i32, %c8_i32_64 : i32
      %138 = tpu.assume_multiple %137, 8 : i32
      %139 = arith.index_cast %138 : i32 to index
      %c0_65 = arith.constant 0 : index
      %140 = vector.load %arg15[%139, %c0_65] : memref<64x384xf32, #tpu.memory_space<vmem>>, vector<8x384xf32>
      %cst_66 = arith.constant dense<0.000000e+00> : vector<8x384xf32>
      %141 = tpu.matmul %130, %57, %cst_66 {dimension_numbers = #tpu.dot_dimension_numbers<[1], [0], [0], [1], [0, 0, 1, 1], [], []>} : vector<8x128xf32>, vector<128x384xf32>, vector<8x384xf32> -> vector<8x384xf32>
      %142 = vector.broadcast %58 : vector<1x384xf32> to vector<8x384xf32>
      %143 = arith.addf %141, %142 : vector<8x384xf32>
      %144 = vector.extract_strided_slice %140 {offsets = [0, 0], sizes = [8, 128], strides = [1, 1]} : vector<8x384xf32> to vector<8x128xf32>
      %145 = vector.extract_strided_slice %143 {offsets = [0, 0], sizes = [8, 128], strides = [1, 1]} : vector<8x384xf32> to vector<8x128xf32>
      %146 = arith.addf %144, %145 : vector<8x128xf32>
      %147 = arith.negf %146 : vector<8x128xf32>
      %148 = math.exp %147 : vector<8x128xf32>
      %cst_67 = arith.constant 1.000000e+00 : f32
      %149 = vector.broadcast %cst_67 : f32 to vector<8x128xf32>
      %150 = arith.addf %149, %148 : vector<8x128xf32>
      %151 = arith.divf %149, %150 : vector<8x128xf32>
      %152 = vector.extract_strided_slice %140 {offsets = [0, 128], sizes = [8, 128], strides = [1, 1]} : vector<8x384xf32> to vector<8x128xf32>
      %153 = vector.extract_strided_slice %143 {offsets = [0, 128], sizes = [8, 128], strides = [1, 1]} : vector<8x384xf32> to vector<8x128xf32>
      %154 = arith.addf %152, %153 : vector<8x128xf32>
      %155 = arith.negf %154 : vector<8x128xf32>
      %156 = math.exp %155 : vector<8x128xf32>
      %cst_68 = arith.constant 1.000000e+00 : f32
      %157 = vector.broadcast %cst_68 : f32 to vector<8x128xf32>
      %158 = arith.addf %157, %156 : vector<8x128xf32>
      %159 = arith.divf %157, %158 : vector<8x128xf32>
      %160 = vector.extract_strided_slice %140 {offsets = [0, 256], sizes = [8, 128], strides = [1, 1]} : vector<8x384xf32> to vector<8x128xf32>
      %161 = vector.extract_strided_slice %143 {offsets = [0, 256], sizes = [8, 128], strides = [1, 1]} : vector<8x384xf32> to vector<8x128xf32>
      %162 = arith.mulf %151, %161 : vector<8x128xf32>
      %163 = arith.addf %160, %162 : vector<8x128xf32>
      %164 = math.tanh %163 : vector<8x128xf32>
      %cst_69 = arith.constant 1.000000e+00 : f32
      %165 = vector.broadcast %cst_69 : f32 to vector<8x128xf32>
      %166 = arith.subf %165, %159 : vector<8x128xf32>
      %167 = arith.mulf %166, %164 : vector<8x128xf32>
      %168 = arith.mulf %159, %130 : vector<8x128xf32>
      %169 = arith.addf %167, %168 : vector<8x128xf32>
      %170 = arith.index_cast %138 : i32 to index
      %c0_70 = arith.constant 0 : index
      %171 = vector.load %arg3[%170, %c0_70] : memref<64x1xf32, #tpu.memory_space<vmem>>, vector<8x1xf32>
      %172 = vector.broadcast %171 : vector<8x1xf32> to vector<8x128xf32>
      %173 = arith.mulf %169, %172 : vector<8x128xf32>
      %174 = arith.index_cast %138 : i32 to index
      %c0_71 = arith.constant 0 : index
      %175 = vector.load %arg16[%174, %c0_71] : memref<64x128xf32, #tpu.memory_space<vmem>>, vector<8x128xf32>
      tpu.vector_store %arg16[%174, %c0_71], %173 {strides = array<i32>} : memref<64x128xf32, #tpu.memory_space<vmem>>, vector<8x128xf32>,
      %c3_i32 = arith.constant 3 : i32
      %c8_i32_72 = arith.constant 8 : i32
      %176 = arith.muli %c3_i32, %c8_i32_72 : i32
      %177 = tpu.assume_multiple %176, 8 : i32
      %178 = arith.index_cast %177 : i32 to index
      %c0_73 = arith.constant 0 : index
      %179 = vector.load %arg15[%178, %c0_73] : memref<64x384xf32, #tpu.memory_space<vmem>>, vector<8x384xf32>
      %cst_74 = arith.constant dense<0.000000e+00> : vector<8x384xf32>
      %180 = tpu.matmul %169, %57, %cst_74 {dimension_numbers = #tpu.dot_dimension_numbers<[1], [0], [0], [1], [0, 0, 1, 1], [], []>} : vector<8x128xf32>, vector<128x384xf32>, vector<8x384xf32> -> vector<8x384xf32>
      %181 = vector.broadcast %58 : vector<1x384xf32> to vector<8x384xf32>
      %182 = arith.addf %180, %181 : vector<8x384xf32>
      %183 = vector.extract_strided_slice %179 {offsets = [0, 0], sizes = [8, 128], strides = [1, 1]} : vector<8x384xf32> to vector<8x128xf32>
      %184 = vector.extract_strided_slice %182 {offsets = [0, 0], sizes = [8, 128], strides = [1, 1]} : vector<8x384xf32> to vector<8x128xf32>
      %185 = arith.addf %183, %184 : vector<8x128xf32>
      %186 = arith.negf %185 : vector<8x128xf32>
      %187 = math.exp %186 : vector<8x128xf32>
      %cst_75 = arith.constant 1.000000e+00 : f32
      %188 = vector.broadcast %cst_75 : f32 to vector<8x128xf32>
      %189 = arith.addf %188, %187 : vector<8x128xf32>
      %190 = arith.divf %188, %189 : vector<8x128xf32>
      %191 = vector.extract_strided_slice %179 {offsets = [0, 128], sizes = [8, 128], strides = [1, 1]} : vector<8x384xf32> to vector<8x128xf32>
      %192 = vector.extract_strided_slice %182 {offsets = [0, 128], sizes = [8, 128], strides = [1, 1]} : vector<8x384xf32> to vector<8x128xf32>
      %193 = arith.addf %191, %192 : vector<8x128xf32>
      %194 = arith.negf %193 : vector<8x128xf32>
      %195 = math.exp %194 : vector<8x128xf32>
      %cst_76 = arith.constant 1.000000e+00 : f32
      %196 = vector.broadcast %cst_76 : f32 to vector<8x128xf32>
      %197 = arith.addf %196, %195 : vector<8x128xf32>
      %198 = arith.divf %196, %197 : vector<8x128xf32>
      %199 = vector.extract_strided_slice %179 {offsets = [0, 256], sizes = [8, 128], strides = [1, 1]} : vector<8x384xf32> to vector<8x128xf32>
      %200 = vector.extract_strided_slice %182 {offsets = [0, 256], sizes = [8, 128], strides = [1, 1]} : vector<8x384xf32> to vector<8x128xf32>
      %201 = arith.mulf %190, %200 : vector<8x128xf32>
      %202 = arith.addf %199, %201 : vector<8x128xf32>
      %203 = math.tanh %202 : vector<8x128xf32>
      %cst_77 = arith.constant 1.000000e+00 : f32
      %204 = vector.broadcast %cst_77 : f32 to vector<8x128xf32>
      %205 = arith.subf %204, %198 : vector<8x128xf32>
      %206 = arith.mulf %205, %203 : vector<8x128xf32>
      %207 = arith.mulf %198, %169 : vector<8x128xf32>
      %208 = arith.addf %206, %207 : vector<8x128xf32>
      %209 = arith.index_cast %177 : i32 to index
      %c0_78 = arith.constant 0 : index
      %210 = vector.load %arg3[%209, %c0_78] : memref<64x1xf32, #tpu.memory_space<vmem>>, vector<8x1xf32>
      %211 = vector.broadcast %210 : vector<8x1xf32> to vector<8x128xf32>
      %212 = arith.mulf %208, %211 : vector<8x128xf32>
      %213 = arith.index_cast %177 : i32 to index
      %c0_79 = arith.constant 0 : index
      %214 = vector.load %arg16[%213, %c0_79] : memref<64x128xf32, #tpu.memory_space<vmem>>, vector<8x128xf32>
      tpu.vector_store %arg16[%213, %c0_79], %212 {strides = array<i32>} : memref<64x128xf32, #tpu.memory_space<vmem>>, vector<8x128xf32>,
      %c4_i32 = arith.constant 4 : i32
      %c8_i32_80 = arith.constant 8 : i32
      %215 = arith.muli %c4_i32, %c8_i32_80 : i32
      %216 = tpu.assume_multiple %215, 8 : i32
      %217 = arith.index_cast %216 : i32 to index
      %c0_81 = arith.constant 0 : index
      %218 = vector.load %arg15[%217, %c0_81] : memref<64x384xf32, #tpu.memory_space<vmem>>, vector<8x384xf32>
      %cst_82 = arith.constant dense<0.000000e+00> : vector<8x384xf32>
      %219 = tpu.matmul %208, %57, %cst_82 {dimension_numbers = #tpu.dot_dimension_numbers<[1], [0], [0], [1], [0, 0, 1, 1], [], []>} : vector<8x128xf32>, vector<128x384xf32>, vector<8x384xf32> -> vector<8x384xf32>
      %220 = vector.broadcast %58 : vector<1x384xf32> to vector<8x384xf32>
      %221 = arith.addf %219, %220 : vector<8x384xf32>
      %222 = vector.extract_strided_slice %218 {offsets = [0, 0], sizes = [8, 128], strides = [1, 1]} : vector<8x384xf32> to vector<8x128xf32>
      %223 = vector.extract_strided_slice %221 {offsets = [0, 0], sizes = [8, 128], strides = [1, 1]} : vector<8x384xf32> to vector<8x128xf32>
      %224 = arith.addf %222, %223 : vector<8x128xf32>
      %225 = arith.negf %224 : vector<8x128xf32>
      %226 = math.exp %225 : vector<8x128xf32>
      %cst_83 = arith.constant 1.000000e+00 : f32
      %227 = vector.broadcast %cst_83 : f32 to vector<8x128xf32>
      %228 = arith.addf %227, %226 : vector<8x128xf32>
      %229 = arith.divf %227, %228 : vector<8x128xf32>
      %230 = vector.extract_strided_slice %218 {offsets = [0, 128], sizes = [8, 128], strides = [1, 1]} : vector<8x384xf32> to vector<8x128xf32>
      %231 = vector.extract_strided_slice %221 {offsets = [0, 128], sizes = [8, 128], strides = [1, 1]} : vector<8x384xf32> to vector<8x128xf32>
      %232 = arith.addf %230, %231 : vector<8x128xf32>
      %233 = arith.negf %232 : vector<8x128xf32>
      %234 = math.exp %233 : vector<8x128xf32>
      %cst_84 = arith.constant 1.000000e+00 : f32
      %235 = vector.broadcast %cst_84 : f32 to vector<8x128xf32>
      %236 = arith.addf %235, %234 : vector<8x128xf32>
      %237 = arith.divf %235, %236 : vector<8x128xf32>
      %238 = vector.extract_strided_slice %218 {offsets = [0, 256], sizes = [8, 128], strides = [1, 1]} : vector<8x384xf32> to vector<8x128xf32>
      %239 = vector.extract_strided_slice %221 {offsets = [0, 256], sizes = [8, 128], strides = [1, 1]} : vector<8x384xf32> to vector<8x128xf32>
      %240 = arith.mulf %229, %239 : vector<8x128xf32>
      %241 = arith.addf %238, %240 : vector<8x128xf32>
      %242 = math.tanh %241 : vector<8x128xf32>
      %cst_85 = arith.constant 1.000000e+00 : f32
      %243 = vector.broadcast %cst_85 : f32 to vector<8x128xf32>
      %244 = arith.subf %243, %237 : vector<8x128xf32>
      %245 = arith.mulf %244, %242 : vector<8x128xf32>
      %246 = arith.mulf %237, %208 : vector<8x128xf32>
      %247 = arith.addf %245, %246 : vector<8x128xf32>
      %248 = arith.index_cast %216 : i32 to index
      %c0_86 = arith.constant 0 : index
      %249 = vector.load %arg3[%248, %c0_86] : memref<64x1xf32, #tpu.memory_space<vmem>>, vector<8x1xf32>
      %250 = vector.broadcast %249 : vector<8x1xf32> to vector<8x128xf32>
      %251 = arith.mulf %247, %250 : vector<8x128xf32>
      %252 = arith.index_cast %216 : i32 to index
      %c0_87 = arith.constant 0 : index
      %253 = vector.load %arg16[%252, %c0_87] : memref<64x128xf32, #tpu.memory_space<vmem>>, vector<8x128xf32>
      tpu.vector_store %arg16[%252, %c0_87], %251 {strides = array<i32>} : memref<64x128xf32, #tpu.memory_space<vmem>>, vector<8x128xf32>,
      %c5_i32 = arith.constant 5 : i32
      %c8_i32_88 = arith.constant 8 : i32
      %254 = arith.muli %c5_i32, %c8_i32_88 : i32
      %255 = tpu.assume_multiple %254, 8 : i32
      %256 = arith.index_cast %255 : i32 to index
      %c0_89 = arith.constant 0 : index
      %257 = vector.load %arg15[%256, %c0_89] : memref<64x384xf32, #tpu.memory_space<vmem>>, vector<8x384xf32>
      %cst_90 = arith.constant dense<0.000000e+00> : vector<8x384xf32>
      %258 = tpu.matmul %247, %57, %cst_90 {dimension_numbers = #tpu.dot_dimension_numbers<[1], [0], [0], [1], [0, 0, 1, 1], [], []>} : vector<8x128xf32>, vector<128x384xf32>, vector<8x384xf32> -> vector<8x384xf32>
      %259 = vector.broadcast %58 : vector<1x384xf32> to vector<8x384xf32>
      %260 = arith.addf %258, %259 : vector<8x384xf32>
      %261 = vector.extract_strided_slice %257 {offsets = [0, 0], sizes = [8, 128], strides = [1, 1]} : vector<8x384xf32> to vector<8x128xf32>
      %262 = vector.extract_strided_slice %260 {offsets = [0, 0], sizes = [8, 128], strides = [1, 1]} : vector<8x384xf32> to vector<8x128xf32>
      %263 = arith.addf %261, %262 : vector<8x128xf32>
      %264 = arith.negf %263 : vector<8x128xf32>
      %265 = math.exp %264 : vector<8x128xf32>
      %cst_91 = arith.constant 1.000000e+00 : f32
      %266 = vector.broadcast %cst_91 : f32 to vector<8x128xf32>
      %267 = arith.addf %266, %265 : vector<8x128xf32>
      %268 = arith.divf %266, %267 : vector<8x128xf32>
      %269 = vector.extract_strided_slice %257 {offsets = [0, 128], sizes = [8, 128], strides = [1, 1]} : vector<8x384xf32> to vector<8x128xf32>
      %270 = vector.extract_strided_slice %260 {offsets = [0, 128], sizes = [8, 128], strides = [1, 1]} : vector<8x384xf32> to vector<8x128xf32>
      %271 = arith.addf %269, %270 : vector<8x128xf32>
      %272 = arith.negf %271 : vector<8x128xf32>
      %273 = math.exp %272 : vector<8x128xf32>
      %cst_92 = arith.constant 1.000000e+00 : f32
      %274 = vector.broadcast %cst_92 : f32 to vector<8x128xf32>
      %275 = arith.addf %274, %273 : vector<8x128xf32>
      %276 = arith.divf %274, %275 : vector<8x128xf32>
      %277 = vector.extract_strided_slice %257 {offsets = [0, 256], sizes = [8, 128], strides = [1, 1]} : vector<8x384xf32> to vector<8x128xf32>
      %278 = vector.extract_strided_slice %260 {offsets = [0, 256], sizes = [8, 128], strides = [1, 1]} : vector<8x384xf32> to vector<8x128xf32>
      %279 = arith.mulf %268, %278 : vector<8x128xf32>
      %280 = arith.addf %277, %279 : vector<8x128xf32>
      %281 = math.tanh %280 : vector<8x128xf32>
      %cst_93 = arith.constant 1.000000e+00 : f32
      %282 = vector.broadcast %cst_93 : f32 to vector<8x128xf32>
      %283 = arith.subf %282, %276 : vector<8x128xf32>
      %284 = arith.mulf %283, %281 : vector<8x128xf32>
      %285 = arith.mulf %276, %247 : vector<8x128xf32>
      %286 = arith.addf %284, %285 : vector<8x128xf32>
      %287 = arith.index_cast %255 : i32 to index
      %c0_94 = arith.constant 0 : index
      %288 = vector.load %arg3[%287, %c0_94] : memref<64x1xf32, #tpu.memory_space<vmem>>, vector<8x1xf32>
      %289 = vector.broadcast %288 : vector<8x1xf32> to vector<8x128xf32>
      %290 = arith.mulf %286, %289 : vector<8x128xf32>
      %291 = arith.index_cast %255 : i32 to index
      %c0_95 = arith.constant 0 : index
      %292 = vector.load %arg16[%291, %c0_95] : memref<64x128xf32, #tpu.memory_space<vmem>>, vector<8x128xf32>
      tpu.vector_store %arg16[%291, %c0_95], %290 {strides = array<i32>} : memref<64x128xf32, #tpu.memory_space<vmem>>, vector<8x128xf32>,
      %c6_i32 = arith.constant 6 : i32
      %c8_i32_96 = arith.constant 8 : i32
      %293 = arith.muli %c6_i32, %c8_i32_96 : i32
      %294 = tpu.assume_multiple %293, 8 : i32
      %295 = arith.index_cast %294 : i32 to index
      %c0_97 = arith.constant 0 : index
      %296 = vector.load %arg15[%295, %c0_97] : memref<64x384xf32, #tpu.memory_space<vmem>>, vector<8x384xf32>
      %cst_98 = arith.constant dense<0.000000e+00> : vector<8x384xf32>
      %297 = tpu.matmul %286, %57, %cst_98 {dimension_numbers = #tpu.dot_dimension_numbers<[1], [0], [0], [1], [0, 0, 1, 1], [], []>} : vector<8x128xf32>, vector<128x384xf32>, vector<8x384xf32> -> vector<8x384xf32>
      %298 = vector.broadcast %58 : vector<1x384xf32> to vector<8x384xf32>
      %299 = arith.addf %297, %298 : vector<8x384xf32>
      %300 = vector.extract_strided_slice %296 {offsets = [0, 0], sizes = [8, 128], strides = [1, 1]} : vector<8x384xf32> to vector<8x128xf32>
      %301 = vector.extract_strided_slice %299 {offsets = [0, 0], sizes = [8, 128], strides = [1, 1]} : vector<8x384xf32> to vector<8x128xf32>
      %302 = arith.addf %300, %301 : vector<8x128xf32>
      %303 = arith.negf %302 : vector<8x128xf32>
      %304 = math.exp %303 : vector<8x128xf32>
      %cst_99 = arith.constant 1.000000e+00 : f32
      %305 = vector.broadcast %cst_99 : f32 to vector<8x128xf32>
      %306 = arith.addf %305, %304 : vector<8x128xf32>
      %307 = arith.divf %305, %306 : vector<8x128xf32>
      %308 = vector.extract_strided_slice %296 {offsets = [0, 128], sizes = [8, 128], strides = [1, 1]} : vector<8x384xf32> to vector<8x128xf32>
      %309 = vector.extract_strided_slice %299 {offsets = [0, 128], sizes = [8, 128], strides = [1, 1]} : vector<8x384xf32> to vector<8x128xf32>
      %310 = arith.addf %308, %309 : vector<8x128xf32>
      %311 = arith.negf %310 : vector<8x128xf32>
      %312 = math.exp %311 : vector<8x128xf32>
      %cst_100 = arith.constant 1.000000e+00 : f32
      %313 = vector.broadcast %cst_100 : f32 to vector<8x128xf32>
      %314 = arith.addf %313, %312 : vector<8x128xf32>
      %315 = arith.divf %313, %314 : vector<8x128xf32>
      %316 = vector.extract_strided_slice %296 {offsets = [0, 256], sizes = [8, 128], strides = [1, 1]} : vector<8x384xf32> to vector<8x128xf32>
      %317 = vector.extract_strided_slice %299 {offsets = [0, 256], sizes = [8, 128], strides = [1, 1]} : vector<8x384xf32> to vector<8x128xf32>
      %318 = arith.mulf %307, %317 : vector<8x128xf32>
      %319 = arith.addf %316, %318 : vector<8x128xf32>
      %320 = math.tanh %319 : vector<8x128xf32>
      %cst_101 = arith.constant 1.000000e+00 : f32
      %321 = vector.broadcast %cst_101 : f32 to vector<8x128xf32>
      %322 = arith.subf %321, %315 : vector<8x128xf32>
      %323 = arith.mulf %322, %320 : vector<8x128xf32>
      %324 = arith.mulf %315, %286 : vector<8x128xf32>
      %325 = arith.addf %323, %324 : vector<8x128xf32>
      %326 = arith.index_cast %294 : i32 to index
      %c0_102 = arith.constant 0 : index
      %327 = vector.load %arg3[%326, %c0_102] : memref<64x1xf32, #tpu.memory_space<vmem>>, vector<8x1xf32>
      %328 = vector.broadcast %327 : vector<8x1xf32> to vector<8x128xf32>
      %329 = arith.mulf %325, %328 : vector<8x128xf32>
      %330 = arith.index_cast %294 : i32 to index
      %c0_103 = arith.constant 0 : index
      %331 = vector.load %arg16[%330, %c0_103] : memref<64x128xf32, #tpu.memory_space<vmem>>, vector<8x128xf32>
      tpu.vector_store %arg16[%330, %c0_103], %329 {strides = array<i32>} : memref<64x128xf32, #tpu.memory_space<vmem>>, vector<8x128xf32>,
      %c7_i32 = arith.constant 7 : i32
      %c8_i32_104 = arith.constant 8 : i32
      %332 = arith.muli %c7_i32, %c8_i32_104 : i32
      %333 = tpu.assume_multiple %332, 8 : i32
      %334 = arith.index_cast %333 : i32 to index
      %c0_105 = arith.constant 0 : index
      %335 = vector.load %arg15[%334, %c0_105] : memref<64x384xf32, #tpu.memory_space<vmem>>, vector<8x384xf32>
      %cst_106 = arith.constant dense<0.000000e+00> : vector<8x384xf32>
      %336 = tpu.matmul %325, %57, %cst_106 {dimension_numbers = #tpu.dot_dimension_numbers<[1], [0], [0], [1], [0, 0, 1, 1], [], []>} : vector<8x128xf32>, vector<128x384xf32>, vector<8x384xf32> -> vector<8x384xf32>
      %337 = vector.broadcast %58 : vector<1x384xf32> to vector<8x384xf32>
      %338 = arith.addf %336, %337 : vector<8x384xf32>
      %339 = vector.extract_strided_slice %335 {offsets = [0, 0], sizes = [8, 128], strides = [1, 1]} : vector<8x384xf32> to vector<8x128xf32>
      %340 = vector.extract_strided_slice %338 {offsets = [0, 0], sizes = [8, 128], strides = [1, 1]} : vector<8x384xf32> to vector<8x128xf32>
      %341 = arith.addf %339, %340 : vector<8x128xf32>
      %342 = arith.negf %341 : vector<8x128xf32>
      %343 = math.exp %342 : vector<8x128xf32>
      %cst_107 = arith.constant 1.000000e+00 : f32
      %344 = vector.broadcast %cst_107 : f32 to vector<8x128xf32>
      %345 = arith.addf %344, %343 : vector<8x128xf32>
      %346 = arith.divf %344, %345 : vector<8x128xf32>
      %347 = vector.extract_strided_slice %335 {offsets = [0, 128], sizes = [8, 128], strides = [1, 1]} : vector<8x384xf32> to vector<8x128xf32>
      %348 = vector.extract_strided_slice %338 {offsets = [0, 128], sizes = [8, 128], strides = [1, 1]} : vector<8x384xf32> to vector<8x128xf32>
      %349 = arith.addf %347, %348 : vector<8x128xf32>
      %350 = arith.negf %349 : vector<8x128xf32>
      %351 = math.exp %350 : vector<8x128xf32>
      %cst_108 = arith.constant 1.000000e+00 : f32
      %352 = vector.broadcast %cst_108 : f32 to vector<8x128xf32>
      %353 = arith.addf %352, %351 : vector<8x128xf32>
      %354 = arith.divf %352, %353 : vector<8x128xf32>
      %355 = vector.extract_strided_slice %335 {offsets = [0, 256], sizes = [8, 128], strides = [1, 1]} : vector<8x384xf32> to vector<8x128xf32>
      %356 = vector.extract_strided_slice %338 {offsets = [0, 256], sizes = [8, 128], strides = [1, 1]} : vector<8x384xf32> to vector<8x128xf32>
      %357 = arith.mulf %346, %356 : vector<8x128xf32>
      %358 = arith.addf %355, %357 : vector<8x128xf32>
      %359 = math.tanh %358 : vector<8x128xf32>
      %cst_109 = arith.constant 1.000000e+00 : f32
      %360 = vector.broadcast %cst_109 : f32 to vector<8x128xf32>
      %361 = arith.subf %360, %354 : vector<8x128xf32>
      %362 = arith.mulf %361, %359 : vector<8x128xf32>
      %363 = arith.mulf %354, %325 : vector<8x128xf32>
      %364 = arith.addf %362, %363 : vector<8x128xf32>
      %365 = arith.index_cast %333 : i32 to index
      %c0_110 = arith.constant 0 : index
      %366 = vector.load %arg3[%365, %c0_110] : memref<64x1xf32, #tpu.memory_space<vmem>>, vector<8x1xf32>
      %367 = vector.broadcast %366 : vector<8x1xf32> to vector<8x128xf32>
      %368 = arith.mulf %364, %367 : vector<8x128xf32>
      %369 = arith.index_cast %333 : i32 to index
      %c0_111 = arith.constant 0 : index
      %370 = vector.load %arg16[%369, %c0_111] : memref<64x128xf32, #tpu.memory_space<vmem>>, vector<8x128xf32>
      tpu.vector_store %arg16[%369, %c0_111], %368 {strides = array<i32>} : memref<64x128xf32, #tpu.memory_space<vmem>>, vector<8x128xf32>,
      %c8_i32_112 = arith.constant 8 : i32
      %cst_113 = arith.constant 0xFF800000 : f32
      %371 = vector.broadcast %cst_113 : f32 to vector<64x1xf32>
      %c0_114 = arith.constant 0 : index
      %c0_115 = arith.constant 0 : index
      %372 = vector.load %arg17[%c0_114, %c0_115] : memref<64x1xf32, #tpu.memory_space<vmem>>, vector<64x1xf32>
      tpu.vector_store %arg17[%c0_114, %c0_115], %371 {strides = array<i32>} : memref<64x1xf32, #tpu.memory_space<vmem>>, vector<64x1xf32>,
      %cst_116 = arith.constant 0.000000e+00 : f32
      %373 = vector.broadcast %cst_116 : f32 to vector<64x1xf32>
      %c0_117 = arith.constant 0 : index
      %c0_118 = arith.constant 0 : index
      %374 = vector.load %arg18[%c0_117, %c0_118] : memref<64x1xf32, #tpu.memory_space<vmem>>, vector<64x1xf32>
      tpu.vector_store %arg18[%c0_117, %c0_118], %373 {strides = array<i32>} : memref<64x1xf32, #tpu.memory_space<vmem>>, vector<64x1xf32>,
      %cst_119 = arith.constant 0.000000e+00 : f32
      %375 = vector.broadcast %cst_119 : f32 to vector<64x1xf32>
      %c0_120 = arith.constant 0 : index
      %c0_121 = arith.constant 0 : index
      %376 = vector.load %arg19[%c0_120, %c0_121] : memref<64x1xf32, #tpu.memory_space<vmem>>, vector<64x1xf32>
      tpu.vector_store %arg19[%c0_120, %c0_121], %375 {strides = array<i32>} : memref<64x1xf32, #tpu.memory_space<vmem>>, vector<64x1xf32>,
    } else {
    }
    %c0 = arith.constant 0 : index
    %c0_1 = arith.constant 0 : index
    %3 = vector.load %arg16[%c0, %c0_1] : memref<64x128xf32, #tpu.memory_space<vmem>>, vector<64x128xf32>
    %4 = arith.truncf %3 : vector<64x128xf32> to vector<64x128xbf16>
    %c0_2 = arith.constant 0 : index
    %c0_3 = arith.constant 0 : index
    %5 = vector.load %arg11[%c0_2, %c0_3] : memref<128x128xbf16, #tpu.memory_space<vmem>>, vector<128x128xbf16>
    %cst = arith.constant dense<0.000000e+00> : vector<64x128xf32>
    %6 = tpu.matmul %4, %5, %cst {dimension_numbers = #tpu.dot_dimension_numbers<[1], [0], [0], [1], [0, 0, 1, 1], [], []>} : vector<64x128xbf16>, vector<128x128xbf16>, vector<64x128xf32> -> vector<64x128xf32>
    %c0_4 = arith.constant 0 : index
    %c0_5 = arith.constant 0 : index
    %7 = vector.load %arg12[%c0_4, %c0_5] : memref<1x128xf32, #tpu.memory_space<vmem>>, vector<1x128xf32>
    %8 = vector.broadcast %7 : vector<1x128xf32> to vector<64x128xf32>
    %9 = arith.addf %6, %8 : vector<64x128xf32>
    %10 = tpu.iota {dimensions = array<i32: 1>} : vector<64x128xi32>
    %c128_i32 = arith.constant 128 : i32
    %11 = arith.muli %arg0, %c128_i32 : i32
    %12 = vector.broadcast %11 : i32 to vector<64x128xi32>
    %13 = arith.addi %10, %12 : vector<64x128xi32>
    %c0_6 = arith.constant 0 : index
    %c0_7 = arith.constant 0 : index
    %14 = vector.load %arg4[%c0_6, %c0_7] : memref<64x1xi32, #tpu.memory_space<vmem>>, vector<64x1xi32>
    %c0_8 = arith.constant 0 : index
    %c0_9 = arith.constant 0 : index
    %15 = vector.load %arg17[%c0_8, %c0_9] : memref<64x1xf32, #tpu.memory_space<vmem>>, vector<64x1xf32>
    %cst_10 = arith.constant dense<0xFF800000> : vector<64xf32>
    %16 = vector.multi_reduction <maximumf>, %9, %cst_10 [1] : vector<64x128xf32> to vector<64xf32>
    %17 = vector.shape_cast %16 : vector<64xf32> to vector<64x1xf32>
    %18 = arith.maximumf %15, %17 : vector<64x1xf32>
    %c0_11 = arith.constant 0 : index
    %c0_12 = arith.constant 0 : index
    %19 = vector.load %arg18[%c0_11, %c0_12] : memref<64x1xf32, #tpu.memory_space<vmem>>, vector<64x1xf32>
    %20 = arith.subf %15, %18 : vector<64x1xf32>
    %21 = math.exp %20 : vector<64x1xf32>
    %22 = arith.mulf %19, %21 : vector<64x1xf32>
    %23 = vector.broadcast %18 : vector<64x1xf32> to vector<64x128xf32>
    %24 = arith.subf %9, %23 : vector<64x128xf32>
    %25 = math.exp %24 : vector<64x128xf32>
    %cst_13 = arith.constant dense<0.000000e+00> : vector<64xf32>
    %26 = vector.multi_reduction <add>, %25, %cst_13 [1] : vector<64x128xf32> to vector<64xf32>
    %27 = vector.shape_cast %26 : vector<64xf32> to vector<64x1xf32>
    %28 = arith.addf %22, %27 : vector<64x1xf32>
    %c0_14 = arith.constant 0 : index
    %c0_15 = arith.constant 0 : index
    %29 = vector.load %arg18[%c0_14, %c0_15] : memref<64x1xf32, #tpu.memory_space<vmem>>, vector<64x1xf32>
    tpu.vector_store %arg18[%c0_14, %c0_15], %28 {strides = array<i32>} : memref<64x1xf32, #tpu.memory_space<vmem>>, vector<64x1xf32>,
    %c0_16 = arith.constant 0 : index
    %c0_17 = arith.constant 0 : index
    %30 = vector.load %arg19[%c0_16, %c0_17] : memref<64x1xf32, #tpu.memory_space<vmem>>, vector<64x1xf32>
    %31 = vector.broadcast %14 : vector<64x1xi32> to vector<64x128xi32>
    %32 = arith.cmpi eq, %13, %31 : vector<64x128xi32>
    %cst_18 = arith.constant 0.000000e+00 : f32
    %33 = vector.broadcast %cst_18 : f32 to vector<64x128xf32>
    %34 = arith.select %32, %9, %33 : vector<64x128xi1>, vector<64x128xf32>
    %cst_19 = arith.constant dense<0.000000e+00> : vector<64xf32>
    %35 = vector.multi_reduction <add>, %34, %cst_19 [1] : vector<64x128xf32> to vector<64xf32>
    %36 = vector.shape_cast %35 : vector<64xf32> to vector<64x1xf32>
    %37 = arith.addf %30, %36 : vector<64x1xf32>
    %c0_20 = arith.constant 0 : index
    %c0_21 = arith.constant 0 : index
    %38 = vector.load %arg19[%c0_20, %c0_21] : memref<64x1xf32, #tpu.memory_space<vmem>>, vector<64x1xf32>
    tpu.vector_store %arg19[%c0_20, %c0_21], %37 {strides = array<i32>} : memref<64x1xf32, #tpu.memory_space<vmem>>, vector<64x1xf32>,
    %c0_22 = arith.constant 0 : index
    %c0_23 = arith.constant 0 : index
    %39 = vector.load %arg17[%c0_22, %c0_23] : memref<64x1xf32, #tpu.memory_space<vmem>>, vector<64x1xf32>
    tpu.vector_store %arg17[%c0_22, %c0_23], %18 {strides = array<i32>} : memref<64x1xf32, #tpu.memory_space<vmem>>, vector<64x1xf32>,
    %c0_i32_24 = arith.constant 0 : i32
    %40 = arith.cmpi eq, %arg0, %c0_i32_24 : i32
    %41 = arith.extui %40 : i1 to i32
    %c0_i32_25 = arith.constant 0 : i32
    %42 = arith.cmpi ne, %41, %c0_i32_25 : i32
    scf.if %42 {
      %c0_26 = arith.constant 0 : index
      %c0_27 = arith.constant 0 : index
      %43 = vector.load %arg17[%c0_26, %c0_27] : memref<64x1xf32, #tpu.memory_space<vmem>>, vector<64x1xf32>
      %c0_28 = arith.constant 0 : index
      %c0_29 = arith.constant 0 : index
      %44 = vector.load %arg18[%c0_28, %c0_29] : memref<64x1xf32, #tpu.memory_space<vmem>>, vector<64x1xf32>
      %45 = math.log %44 : vector<64x1xf32>
      %46 = arith.addf %43, %45 : vector<64x1xf32>
      %c0_30 = arith.constant 0 : index
      %c0_31 = arith.constant 0 : index
      %47 = vector.load %arg19[%c0_30, %c0_31] : memref<64x1xf32, #tpu.memory_space<vmem>>, vector<64x1xf32>
      %48 = arith.subf %46, %47 : vector<64x1xf32>
      %c0_32 = arith.constant 0 : index
      %c0_33 = arith.constant 0 : index
      %49 = vector.load %arg4[%c0_32, %c0_33] : memref<64x1xi32, #tpu.memory_space<vmem>>, vector<64x1xi32>
      %c0_i32_34 = arith.constant 0 : i32
      %50 = vector.broadcast %c0_i32_34 : i32 to vector<64x1xi32>
      %51 = arith.cmpi ne, %49, %50 : vector<64x1xi32>
      %52 = arith.extui %51 : vector<64x1xi1> to vector<64x1xi32>
      %53 = arith.sitofp %52 : vector<64x1xi32> to vector<64x1xf32>
      %54 = vector.shape_cast %53 : vector<64x1xf32> to vector<1x64x1xf32>
      %cst_35 = arith.constant dense<0.000000e+00> : vector<1xf32>
      %55 = vector.multi_reduction <add>, %54, %cst_35 [1, 2] : vector<1x64x1xf32> to vector<1xf32>
      %56 = vector.shape_cast %55 : vector<1xf32> to vector<1x1x1xf32>
      %57 = vector.extract %56[0, 0, 0] : f32 from vector<1x1x1xf32>
      %cst_36 = arith.constant 1.000000e+00 : f32
      %58 = arith.maximumf %57, %cst_36 : f32
      %59 = arith.mulf %48, %53 : vector<64x1xf32>
      %60 = vector.shape_cast %59 : vector<64x1xf32> to vector<1x64x1xf32>
      %cst_37 = arith.constant dense<0.000000e+00> : vector<1xf32>
      %61 = vector.multi_reduction <add>, %60, %cst_37 [1, 2] : vector<1x64x1xf32> to vector<1xf32>
      %62 = vector.shape_cast %61 : vector<1xf32> to vector<1x1x1xf32>
      %63 = vector.extract %62[0, 0, 0] : f32 from vector<1x1x1xf32>
      %64 = arith.divf %63, %58 : f32
      %c0_38 = arith.constant 0 : index
      %c0_39 = arith.constant 0 : index
      %65 = memref.load %arg14[%c0_38, %c0_39] : memref<1x1xf32, #tpu.memory_space<smem>>
      memref.store %64, %arg14[%c0_38, %c0_39] : memref<1x1xf32, #tpu.memory_space<smem>>
    } else {
    }
    return
  }
  func.func @transform_0(%arg0: i32) -> (i32, i32) {
    %c0_i32 = arith.constant 0 : i32
    %c0_i32_0 = arith.constant 0 : i32
    %c0_i32_1 = arith.constant 0 : i32
    return %c0_i32, %c0_i32_0 : i32, i32
  }
  func.func @transform_1(%arg0: i32) -> (i32, i32) {
    %c0_i32 = arith.constant 0 : i32
    %c0_i32_0 = arith.constant 0 : i32
    %c0_i32_1 = arith.constant 0 : i32
    return %c0_i32, %c0_i32_0 : i32, i32
  }
  func.func @transform_2(%arg0: i32) -> (i32, i32) {
    %c0_i32 = arith.constant 0 : i32
    %c0_i32_0 = arith.constant 0 : i32
    %c0_i32_1 = arith.constant 0 : i32
    return %c0_i32, %c0_i32_0 : i32, i32
  }
  func.func @transform_3(%arg0: i32) -> (i32, i32) {
    %c0_i32 = arith.constant 0 : i32
    %c0_i32_0 = arith.constant 0 : i32
    %c0_i32_1 = arith.constant 0 : i32
    return %c0_i32, %c0_i32_0 : i32, i32
  }
  func.func @transform_4(%arg0: i32) -> (i32, i32) {
    %c0_i32 = arith.constant 0 : i32
    %c0_i32_0 = arith.constant 0 : i32
    %c0_i32_1 = arith.constant 0 : i32
    return %c0_i32, %c0_i32_0 : i32, i32
  }
  func.func @transform_5(%arg0: i32) -> (i32, i32) {
    %c0_i32 = arith.constant 0 : i32
    %c0_i32_0 = arith.constant 0 : i32
    %c0_i32_1 = arith.constant 0 : i32
    return %c0_i32, %c0_i32_0 : i32, i32
  }
  func.func @transform_6(%arg0: i32) -> (i32, i32) {
    %c0_i32 = arith.constant 0 : i32
    %c0_i32_0 = arith.constant 0 : i32
    %c0_i32_1 = arith.constant 0 : i32
    return %c0_i32, %c0_i32_0 : i32, i32
  }
  func.func @transform_7(%arg0: i32) -> (i32, i32) {
    %c0_i32 = arith.constant 0 : i32
    %c0_i32_0 = arith.constant 0 : i32
    %c0_i32_1 = arith.constant 0 : i32
    return %c0_i32, %c0_i32_0 : i32, i32
  }
  func.func @transform_8(%arg0: i32) -> (i32, i32) {
    %c0_i32 = arith.constant 0 : i32
    %c0_i32_0 = arith.constant 0 : i32
    %c0_i32_1 = arith.constant 0 : i32
    return %c0_i32, %c0_i32_0 : i32, i32
  }
  func.func @transform_9(%arg0: i32) -> (i32, i32) {
    %c0_i32 = arith.constant 0 : i32
    %c0_i32_0 = arith.constant 0 : i32
    %c0_i32_1 = arith.constant 0 : i32
    return %c0_i32, %c0_i32_0 : i32, i32
  }
  func.func @transform_10(%arg0: i32) -> (i32, i32) {
    %c0_i32 = arith.constant 0 : i32
    %c0_i32_0 = arith.constant 0 : i32
    return %c0_i32, %arg0 : i32, i32
  }
  func.func @transform_11(%arg0: i32) -> (i32, i32) {
    %c0_i32 = arith.constant 0 : i32
    %c0_i32_0 = arith.constant 0 : i32
    return %c0_i32, %arg0 : i32, i32
  }
  func.func @transform_12(%arg0: i32) -> (i32, i32) {
    %c0_i32 = arith.constant 0 : i32
    %c0_i32_0 = arith.constant 0 : i32
    %c0_i32_1 = arith.constant 0 : i32
    return %c0_i32, %c0_i32_0 : i32, i32
  }
  func.func @transform_13(%arg0: i32) -> (i32, i32) {
    %c0_i32 = arith.constant 0 : i32
    %c0_i32_0 = arith.constant 0 : i32
    %c0_i32_1 = arith.constant 0 : i32
    return %c0_i32, %c0_i32_0 : i32, i32
  }
}

module attributes {stable_mosaic.version = 11 : i64} {
  func.func @_decoder_kernel(%arg0: i32, %arg1: memref<64x128xbf16, #tpu.memory_space<vmem>>, %arg2: memref<8x128xf32, #tpu.memory_space<vmem>>, %arg3: memref<64x1xf32, #tpu.memory_space<vmem>>, %arg4: memref<64x1xi32, #tpu.memory_space<vmem>>, %arg5: memref<128x128xf32, #tpu.memory_space<vmem>>, %arg6: memref<1x128xf32, #tpu.memory_space<vmem>>, %arg7: memref<128x384xbf16, #tpu.memory_space<vmem>>, %arg8: memref<1x384xf32, #tpu.memory_space<vmem>>, %arg9: memref<128x384xf32, #tpu.memory_space<vmem>>, %arg10: memref<1x384xf32, #tpu.memory_space<vmem>>, %arg11: memref<128x128xbf16, #tpu.memory_space<vmem>>, %arg12: memref<1x128xf32, #tpu.memory_space<vmem>>, %arg13: memref<8x128xf32, #tpu.memory_space<vmem>>, %arg14: memref<1x1xf32, #tpu.memory_space<smem>>, %arg15: memref<64x384xf32, #tpu.memory_space<vmem>>, %arg16: memref<64x128xf32, #tpu.memory_space<vmem>>, %arg17: memref<64x1xf32, #tpu.memory_space<vmem>>, %arg18: memref<64x1xf32, #tpu.memory_space<vmem>>, %arg19: memref<64x1xf32, #tpu.memory_space<vmem>>) attributes {dimension_semantics = [#tpu.dimension_semantics<arbitrary>], iteration_bounds = array<i64: 1>, scalar_prefetch = 0 : i64, scratch_operands = 5 : i64, tpu.core_type = #tpu.core_type<tc>, window_params = [{pipeline_mode = #tpu.pipeline_mode<synchronous>, transform_indices = @transform_0, window_bounds = array<i64: 64, 128>}, {pipeline_mode = #tpu.pipeline_mode<synchronous>, transform_indices = @transform_1, window_bounds = array<i64: 8, 128>}, {pipeline_mode = #tpu.pipeline_mode<synchronous>, transform_indices = @transform_2, window_bounds = array<i64: 64, 1>}, {pipeline_mode = #tpu.pipeline_mode<synchronous>, transform_indices = @transform_3, window_bounds = array<i64: 64, 1>}, {pipeline_mode = #tpu.pipeline_mode<synchronous>, transform_indices = @transform_4, window_bounds = array<i64: 128, 128>}, {pipeline_mode = #tpu.pipeline_mode<synchronous>, transform_indices = @transform_5, window_bounds = array<i64: 1, 128>}, {pipeline_mode = #tpu.pipeline_mode<synchronous>, transform_indices = @transform_6, window_bounds = array<i64: 128, 384>}, {pipeline_mode = #tpu.pipeline_mode<synchronous>, transform_indices = @transform_7, window_bounds = array<i64: 1, 384>}, {pipeline_mode = #tpu.pipeline_mode<synchronous>, transform_indices = @transform_8, window_bounds = array<i64: 128, 384>}, {pipeline_mode = #tpu.pipeline_mode<synchronous>, transform_indices = @transform_9, window_bounds = array<i64: 1, 384>}, {transform_indices = @transform_10, window_bounds = array<i64: 128, 128>}, {transform_indices = @transform_11, window_bounds = array<i64: 1, 128>}, {pipeline_mode = #tpu.pipeline_mode<synchronous>, transform_indices = @transform_12, window_bounds = array<i64: 8, 128>}, {transform_indices = @transform_13, window_bounds = array<i64: 1, 1>}]} {
    %c0_i32 = arith.constant 0 : i32
    %0 = arith.cmpi eq, %arg0, %c0_i32 : i32
    %1 = arith.extui %0 : i1 to i32
    %c0_i32_0 = arith.constant 0 : i32
    %2 = arith.cmpi ne, %1, %c0_i32_0 : i32
    scf.if %2 {
      %c0_26 = arith.constant 0 : index
      %c0_27 = arith.constant 0 : index
      %43 = vector.load %arg1[%c0_26, %c0_27] : memref<64x128xbf16, #tpu.memory_space<vmem>>, vector<64x128xbf16>
      %c0_28 = arith.constant 0 : index
      %c0_29 = arith.constant 0 : index
      %44 = vector.load %arg7[%c0_28, %c0_29] : memref<128x384xbf16, #tpu.memory_space<vmem>>, vector<128x384xbf16>
      %cst_30 = arith.constant dense<0.000000e+00> : vector<64x384xf32>
      %45 = tpu.matmul %43, %44, %cst_30 {dimension_numbers = #tpu.dot_dimension_numbers<[1], [0], [0], [1], [0, 0, 1, 1], [], []>} : vector<64x128xbf16>, vector<128x384xbf16>, vector<64x384xf32> -> vector<64x384xf32>
      %c0_31 = arith.constant 0 : index
      %c0_32 = arith.constant 0 : index
      %46 = vector.load %arg8[%c0_31, %c0_32] : memref<1x384xf32, #tpu.memory_space<vmem>>, vector<1x384xf32>
      %47 = vector.broadcast %46 : vector<1x384xf32> to vector<64x384xf32>
      %48 = arith.addf %45, %47 : vector<64x384xf32>
      %c0_33 = arith.constant 0 : index
      %c0_34 = arith.constant 0 : index
      %49 = vector.load %arg15[%c0_33, %c0_34] : memref<64x384xf32, #tpu.memory_space<vmem>>, vector<64x384xf32>
      tpu.vector_store %arg15[%c0_33, %c0_34], %48 {strides = array<i32>} : memref<64x384xf32, #tpu.memory_space<vmem>>, vector<64x384xf32>,
      %c0_35 = arith.constant 0 : index
      %c0_36 = arith.constant 0 : index
      %50 = vector.load %arg2[%c0_35, %c0_36] : memref<8x128xf32, #tpu.memory_space<vmem>>, vector<8x128xf32>
      %c0_37 = arith.constant 0 : index
      %c0_38 = arith.constant 0 : index
      %51 = vector.load %arg5[%c0_37, %c0_38] : memref<128x128xf32, #tpu.memory_space<vmem>>, vector<128x128xf32>
      %cst_39 = arith.constant dense<0.000000e+00> : vector<8x128xf32>
      %52 = tpu.matmul %50, %51, %cst_39 {dimension_numbers = #tpu.dot_dimension_numbers<[1], [0], [0], [1], [0, 0, 1, 1], [], []>} : vector<8x128xf32>, vector<128x128xf32>, vector<8x128xf32> -> vector<8x128xf32>
      %c0_40 = arith.constant 0 : index
      %c0_41 = arith.constant 0 : index
      %53 = vector.load %arg6[%c0_40, %c0_41] : memref<1x128xf32, #tpu.memory_space<vmem>>, vector<1x128xf32>
      %54 = vector.broadcast %53 : vector<1x128xf32> to vector<8x128xf32>
      %55 = arith.addf %52, %54 : vector<8x128xf32>
      %c0_42 = arith.constant 0 : index
      %c0_43 = arith.constant 0 : index
      %56 = vector.load %arg13[%c0_42, %c0_43] : memref<8x128xf32, #tpu.memory_space<vmem>>, vector<8x128xf32>
      tpu.vector_store %arg13[%c0_42, %c0_43], %55 {strides = array<i32>} : memref<8x128xf32, #tpu.memory_space<vmem>>, vector<8x128xf32>,
      %c0_44 = arith.constant 0 : index
      %c0_45 = arith.constant 0 : index
      %57 = vector.load %arg9[%c0_44, %c0_45] : memref<128x384xf32, #tpu.memory_space<vmem>>, vector<128x384xf32>
      %c0_46 = arith.constant 0 : index
      %c0_47 = arith.constant 0 : index
      %58 = vector.load %arg10[%c0_46, %c0_47] : memref<1x384xf32, #tpu.memory_space<vmem>>, vector<1x384xf32>
      %c0_i32_48 = arith.constant 0 : i32
      %c8_i32 = arith.constant 8 : i32
      %59 = arith.muli %c0_i32_48, %c8_i32 : i32
      %60 = tpu.assume_multiple %59, 8 : i32
      %61 = arith.index_cast %60 : i32 to index
      %c0_49 = arith.constant 0 : index
      %62 = vector.load %arg15[%61, %c0_49] : memref<64x384xf32, #tpu.memory_space<vmem>>, vector<8x384xf32>
      %cst_50 = arith.constant dense<0.000000e+00> : vector<8x384xf32>
      %63 = tpu.matmul %55, %57, %cst_50 {dimension_numbers = #tpu.dot_dimension_numbers<[1], [0], [0], [1], [0, 0, 1, 1], [], []>} : vector<8x128xf32>, vector<128x384xf32>, vector<8x384xf32> -> vector<8x384xf32>
      %64 = vector.broadcast %58 : vector<1x384xf32> to vector<8x384xf32>
      %65 = arith.addf %63, %64 : vector<8x384xf32>
      %66 = vector.extract_strided_slice %62 {offsets = [0, 0], sizes = [8, 128], strides = [1, 1]} : vector<8x384xf32> to vector<8x128xf32>
      %67 = vector.extract_strided_slice %65 {offsets = [0, 0], sizes = [8, 128], strides = [1, 1]} : vector<8x384xf32> to vector<8x128xf32>
      %68 = arith.addf %66, %67 : vector<8x128xf32>
      %69 = arith.negf %68 : vector<8x128xf32>
      %70 = math.exp %69 : vector<8x128xf32>
      %cst_51 = arith.constant 1.000000e+00 : f32
      %71 = vector.broadcast %cst_51 : f32 to vector<8x128xf32>
      %72 = arith.addf %71, %70 : vector<8x128xf32>
      %73 = arith.divf %71, %72 : vector<8x128xf32>
      %74 = vector.extract_strided_slice %62 {offsets = [0, 128], sizes = [8, 128], strides = [1, 1]} : vector<8x384xf32> to vector<8x128xf32>
      %75 = vector.extract_strided_slice %65 {offsets = [0, 128], sizes = [8, 128], strides = [1, 1]} : vector<8x384xf32> to vector<8x128xf32>
      %76 = arith.addf %74, %75 : vector<8x128xf32>
      %77 = arith.negf %76 : vector<8x128xf32>
      %78 = math.exp %77 : vector<8x128xf32>
      %cst_52 = arith.constant 1.000000e+00 : f32
      %79 = vector.broadcast %cst_52 : f32 to vector<8x128xf32>
      %80 = arith.addf %79, %78 : vector<8x128xf32>
      %81 = arith.divf %79, %80 : vector<8x128xf32>
      %82 = vector.extract_strided_slice %62 {offsets = [0, 256], sizes = [8, 128], strides = [1, 1]} : vector<8x384xf32> to vector<8x128xf32>
      %83 = vector.extract_strided_slice %65 {offsets = [0, 256], sizes = [8, 128], strides = [1, 1]} : vector<8x384xf32> to vector<8x128xf32>
      %84 = arith.mulf %73, %83 : vector<8x128xf32>
      %85 = arith.addf %82, %84 : vector<8x128xf32>
      %86 = math.tanh %85 : vector<8x128xf32>
      %cst_53 = arith.constant 1.000000e+00 : f32
      %87 = vector.broadcast %cst_53 : f32 to vector<8x128xf32>
      %88 = arith.subf %87, %81 : vector<8x128xf32>
      %89 = arith.mulf %88, %86 : vector<8x128xf32>
      %90 = arith.mulf %81, %55 : vector<8x128xf32>
      %91 = arith.addf %89, %90 : vector<8x128xf32>
      %92 = arith.index_cast %60 : i32 to index
      %c0_54 = arith.constant 0 : index
      %93 = vector.load %arg3[%92, %c0_54] : memref<64x1xf32, #tpu.memory_space<vmem>>, vector<8x1xf32>
      %94 = vector.broadcast %93 : vector<8x1xf32> to vector<8x128xf32>
      %95 = arith.mulf %91, %94 : vector<8x128xf32>
      %96 = arith.index_cast %60 : i32 to index
      %c0_55 = arith.constant 0 : index
      %97 = vector.load %arg16[%96, %c0_55] : memref<64x128xf32, #tpu.memory_space<vmem>>, vector<8x128xf32>
      tpu.vector_store %arg16[%96, %c0_55], %95 {strides = array<i32>} : memref<64x128xf32, #tpu.memory_space<vmem>>, vector<8x128xf32>,
      %c1_i32 = arith.constant 1 : i32
      %c8_i32_56 = arith.constant 8 : i32
      %98 = arith.muli %c1_i32, %c8_i32_56 : i32
      %99 = tpu.assume_multiple %98, 8 : i32
      %100 = arith.index_cast %99 : i32 to index
      %c0_57 = arith.constant 0 : index
      %101 = vector.load %arg15[%100, %c0_57] : memref<64x384xf32, #tpu.memory_space<vmem>>, vector<8x384xf32>
      %cst_58 = arith.constant dense<0.000000e+00> : vector<8x384xf32>
      %102 = tpu.matmul %91, %57, %cst_58 {dimension_numbers = #tpu.dot_dimension_numbers<[1], [0], [0], [1], [0, 0, 1, 1], [], []>} : vector<8x128xf32>, vector<128x384xf32>, vector<8x384xf32> -> vector<8x384xf32>
      %103 = vector.broadcast %58 : vector<1x384xf32> to vector<8x384xf32>
      %104 = arith.addf %102, %103 : vector<8x384xf32>
      %105 = vector.extract_strided_slice %101 {offsets = [0, 0], sizes = [8, 128], strides = [1, 1]} : vector<8x384xf32> to vector<8x128xf32>
      %106 = vector.extract_strided_slice %104 {offsets = [0, 0], sizes = [8, 128], strides = [1, 1]} : vector<8x384xf32> to vector<8x128xf32>
      %107 = arith.addf %105, %106 : vector<8x128xf32>
      %108 = arith.negf %107 : vector<8x128xf32>
      %109 = math.exp %108 : vector<8x128xf32>
      %cst_59 = arith.constant 1.000000e+00 : f32
      %110 = vector.broadcast %cst_59 : f32 to vector<8x128xf32>
      %111 = arith.addf %110, %109 : vector<8x128xf32>
      %112 = arith.divf %110, %111 : vector<8x128xf32>
      %113 = vector.extract_strided_slice %101 {offsets = [0, 128], sizes = [8, 128], strides = [1, 1]} : vector<8x384xf32> to vector<8x128xf32>
      %114 = vector.extract_strided_slice %104 {offsets = [0, 128], sizes = [8, 128], strides = [1, 1]} : vector<8x384xf32> to vector<8x128xf32>
      %115 = arith.addf %113, %114 : vector<8x128xf32>
      %116 = arith.negf %115 : vector<8x128xf32>
      %117 = math.exp %116 : vector<8x128xf32>
      %cst_60 = arith.constant 1.000000e+00 : f32
      %118 = vector.broadcast %cst_60 : f32 to vector<8x128xf32>
      %119 = arith.addf %118, %117 : vector<8x128xf32>
      %120 = arith.divf %118, %119 : vector<8x128xf32>
      %121 = vector.extract_strided_slice %101 {offsets = [0, 256], sizes = [8, 128], strides = [1, 1]} : vector<8x384xf32> to vector<8x128xf32>
      %122 = vector.extract_strided_slice %104 {offsets = [0, 256], sizes = [8, 128], strides = [1, 1]} : vector<8x384xf32> to vector<8x128xf32>
      %123 = arith.mulf %112, %122 : vector<8x128xf32>
      %124 = arith.addf %121, %123 : vector<8x128xf32>
      %125 = math.tanh %124 : vector<8x128xf32>
      %cst_61 = arith.constant 1.000000e+00 : f32
      %126 = vector.broadcast %cst_61 : f32 to vector<8x128xf32>
      %127 = arith.subf %126, %120 : vector<8x128xf32>
      %128 = arith.mulf %127, %125 : vector<8x128xf32>
      %129 = arith.mulf %120, %91 : vector<8x128xf32>
      %130 = arith.addf %128, %129 : vector<8x128xf32>
      %131 = arith.index_cast %99 : i32 to index
      %c0_62 = arith.constant 0 : index
      %132 = vector.load %arg3[%131, %c0_62] : memref<64x1xf32, #tpu.memory_space<vmem>>, vector<8x1xf32>
      %133 = vector.broadcast %132 : vector<8x1xf32> to vector<8x128xf32>
      %134 = arith.mulf %130, %133 : vector<8x128xf32>
      %135 = arith.index_cast %99 : i32 to index
      %c0_63 = arith.constant 0 : index
      %136 = vector.load %arg16[%135, %c0_63] : memref<64x128xf32, #tpu.memory_space<vmem>>, vector<8x128xf32>
      tpu.vector_store %arg16[%135, %c0_63], %134 {strides = array<i32>} : memref<64x128xf32, #tpu.memory_space<vmem>>, vector<8x128xf32>,
      %c2_i32 = arith.constant 2 : i32
      %c8_i32_64 = arith.constant 8 : i32
      %137 = arith.muli %c2_i32, %c8_i32_64 : i32
      %138 = tpu.assume_multiple %137, 8 : i32
      %139 = arith.index_cast %138 : i32 to index
      %c0_65 = arith.constant 0 : index
      %140 = vector.load %arg15[%139, %c0_65] : memref<64x384xf32, #tpu.memory_space<vmem>>, vector<8x384xf32>
      %cst_66 = arith.constant dense<0.000000e+00> : vector<8x384xf32>
      %141 = tpu.matmul %130, %57, %cst_66 {dimension_numbers = #tpu.dot_dimension_numbers<[1], [0], [0], [1], [0, 0, 1, 1], [], []>} : vector<8x128xf32>, vector<128x384xf32>, vector<8x384xf32> -> vector<8x384xf32>
      %142 = vector.broadcast %58 : vector<1x384xf32> to vector<8x384xf32>
      %143 = arith.addf %141, %142 : vector<8x384xf32>
      %144 = vector.extract_strided_slice %140 {offsets = [0, 0], sizes = [8, 128], strides = [1, 1]} : vector<8x384xf32> to vector<8x128xf32>
      %145 = vector.extract_strided_slice %143 {offsets = [0, 0], sizes = [8, 128], strides = [1, 1]} : vector<8x384xf32> to vector<8x128xf32>
      %146 = arith.addf %144, %145 : vector<8x128xf32>
      %147 = arith.negf %146 : vector<8x128xf32>
      %148 = math.exp %147 : vector<8x128xf32>
      %cst_67 = arith.constant 1.000000e+00 : f32
      %149 = vector.broadcast %cst_67 : f32 to vector<8x128xf32>
      %150 = arith.addf %149, %148 : vector<8x128xf32>
      %151 = arith.divf %149, %150 : vector<8x128xf32>
      %152 = vector.extract_strided_slice %140 {offsets = [0, 128], sizes = [8, 128], strides = [1, 1]} : vector<8x384xf32> to vector<8x128xf32>
      %153 = vector.extract_strided_slice %143 {offsets = [0, 128], sizes = [8, 128], strides = [1, 1]} : vector<8x384xf32> to vector<8x128xf32>
      %154 = arith.addf %152, %153 : vector<8x128xf32>
      %155 = arith.negf %154 : vector<8x128xf32>
      %156 = math.exp %155 : vector<8x128xf32>
      %cst_68 = arith.constant 1.000000e+00 : f32
      %157 = vector.broadcast %cst_68 : f32 to vector<8x128xf32>
      %158 = arith.addf %157, %156 : vector<8x128xf32>
      %159 = arith.divf %157, %158 : vector<8x128xf32>
      %160 = vector.extract_strided_slice %140 {offsets = [0, 256], sizes = [8, 128], strides = [1, 1]} : vector<8x384xf32> to vector<8x128xf32>
      %161 = vector.extract_strided_slice %143 {offsets = [0, 256], sizes = [8, 128], strides = [1, 1]} : vector<8x384xf32> to vector<8x128xf32>
      %162 = arith.mulf %151, %161 : vector<8x128xf32>
      %163 = arith.addf %160, %162 : vector<8x128xf32>
      %164 = math.tanh %163 : vector<8x128xf32>
      %cst_69 = arith.constant 1.000000e+00 : f32
      %165 = vector.broadcast %cst_69 : f32 to vector<8x128xf32>
      %166 = arith.subf %165, %159 : vector<8x128xf32>
      %167 = arith.mulf %166, %164 : vector<8x128xf32>
      %168 = arith.mulf %159, %130 : vector<8x128xf32>
      %169 = arith.addf %167, %168 : vector<8x128xf32>
      %170 = arith.index_cast %138 : i32 to index
      %c0_70 = arith.constant 0 : index
      %171 = vector.load %arg3[%170, %c0_70] : memref<64x1xf32, #tpu.memory_space<vmem>>, vector<8x1xf32>
      %172 = vector.broadcast %171 : vector<8x1xf32> to vector<8x128xf32>
      %173 = arith.mulf %169, %172 : vector<8x128xf32>
      %174 = arith.index_cast %138 : i32 to index
      %c0_71 = arith.constant 0 : index
      %175 = vector.load %arg16[%174, %c0_71] : memref<64x128xf32, #tpu.memory_space<vmem>>, vector<8x128xf32>
      tpu.vector_store %arg16[%174, %c0_71], %173 {strides = array<i32>} : memref<64x128xf32, #tpu.memory_space<vmem>>, vector<8x128xf32>,
      %c3_i32 = arith.constant 3 : i32
      %c8_i32_72 = arith.constant 8 : i32
      %176 = arith.muli %c3_i32, %c8_i32_72 : i32
      %177 = tpu.assume_multiple %176, 8 : i32
      %178 = arith.index_cast %177 : i32 to index
      %c0_73 = arith.constant 0 : index
      %179 = vector.load %arg15[%178, %c0_73] : memref<64x384xf32, #tpu.memory_space<vmem>>, vector<8x384xf32>
      %cst_74 = arith.constant dense<0.000000e+00> : vector<8x384xf32>
      %180 = tpu.matmul %169, %57, %cst_74 {dimension_numbers = #tpu.dot_dimension_numbers<[1], [0], [0], [1], [0, 0, 1, 1], [], []>} : vector<8x128xf32>, vector<128x384xf32>, vector<8x384xf32> -> vector<8x384xf32>
      %181 = vector.broadcast %58 : vector<1x384xf32> to vector<8x384xf32>
      %182 = arith.addf %180, %181 : vector<8x384xf32>
      %183 = vector.extract_strided_slice %179 {offsets = [0, 0], sizes = [8, 128], strides = [1, 1]} : vector<8x384xf32> to vector<8x128xf32>
      %184 = vector.extract_strided_slice %182 {offsets = [0, 0], sizes = [8, 128], strides = [1, 1]} : vector<8x384xf32> to vector<8x128xf32>
      %185 = arith.addf %183, %184 : vector<8x128xf32>
      %186 = arith.negf %185 : vector<8x128xf32>
      %187 = math.exp %186 : vector<8x128xf32>
      %cst_75 = arith.constant 1.000000e+00 : f32
      %188 = vector.broadcast %cst_75 : f32 to vector<8x128xf32>
      %189 = arith.addf %188, %187 : vector<8x128xf32>
      %190 = arith.divf %188, %189 : vector<8x128xf32>
      %191 = vector.extract_strided_slice %179 {offsets = [0, 128], sizes = [8, 128], strides = [1, 1]} : vector<8x384xf32> to vector<8x128xf32>
      %192 = vector.extract_strided_slice %182 {offsets = [0, 128], sizes = [8, 128], strides = [1, 1]} : vector<8x384xf32> to vector<8x128xf32>
      %193 = arith.addf %191, %192 : vector<8x128xf32>
      %194 = arith.negf %193 : vector<8x128xf32>
      %195 = math.exp %194 : vector<8x128xf32>
      %cst_76 = arith.constant 1.000000e+00 : f32
      %196 = vector.broadcast %cst_76 : f32 to vector<8x128xf32>
      %197 = arith.addf %196, %195 : vector<8x128xf32>
      %198 = arith.divf %196, %197 : vector<8x128xf32>
      %199 = vector.extract_strided_slice %179 {offsets = [0, 256], sizes = [8, 128], strides = [1, 1]} : vector<8x384xf32> to vector<8x128xf32>
      %200 = vector.extract_strided_slice %182 {offsets = [0, 256], sizes = [8, 128], strides = [1, 1]} : vector<8x384xf32> to vector<8x128xf32>
      %201 = arith.mulf %190, %200 : vector<8x128xf32>
      %202 = arith.addf %199, %201 : vector<8x128xf32>
      %203 = math.tanh %202 : vector<8x128xf32>
      %cst_77 = arith.constant 1.000000e+00 : f32
      %204 = vector.broadcast %cst_77 : f32 to vector<8x128xf32>
      %205 = arith.subf %204, %198 : vector<8x128xf32>
      %206 = arith.mulf %205, %203 : vector<8x128xf32>
      %207 = arith.mulf %198, %169 : vector<8x128xf32>
      %208 = arith.addf %206, %207 : vector<8x128xf32>
      %209 = arith.index_cast %177 : i32 to index
      %c0_78 = arith.constant 0 : index
      %210 = vector.load %arg3[%209, %c0_78] : memref<64x1xf32, #tpu.memory_space<vmem>>, vector<8x1xf32>
      %211 = vector.broadcast %210 : vector<8x1xf32> to vector<8x128xf32>
      %212 = arith.mulf %208, %211 : vector<8x128xf32>
      %213 = arith.index_cast %177 : i32 to index
      %c0_79 = arith.constant 0 : index
      %214 = vector.load %arg16[%213, %c0_79] : memref<64x128xf32, #tpu.memory_space<vmem>>, vector<8x128xf32>
      tpu.vector_store %arg16[%213, %c0_79], %212 {strides = array<i32>} : memref<64x128xf32, #tpu.memory_space<vmem>>, vector<8x128xf32>,
      %c4_i32 = arith.constant 4 : i32
      %c8_i32_80 = arith.constant 8 : i32
      %215 = arith.muli %c4_i32, %c8_i32_80 : i32
      %216 = tpu.assume_multiple %215, 8 : i32
      %217 = arith.index_cast %216 : i32 to index
      %c0_81 = arith.constant 0 : index
      %218 = vector.load %arg15[%217, %c0_81] : memref<64x384xf32, #tpu.memory_space<vmem>>, vector<8x384xf32>
      %cst_82 = arith.constant dense<0.000000e+00> : vector<8x384xf32>
      %219 = tpu.matmul %208, %57, %cst_82 {dimension_numbers = #tpu.dot_dimension_numbers<[1], [0], [0], [1], [0, 0, 1, 1], [], []>} : vector<8x128xf32>, vector<128x384xf32>, vector<8x384xf32> -> vector<8x384xf32>
      %220 = vector.broadcast %58 : vector<1x384xf32> to vector<8x384xf32>
      %221 = arith.addf %219, %220 : vector<8x384xf32>
      %222 = vector.extract_strided_slice %218 {offsets = [0, 0], sizes = [8, 128], strides = [1, 1]} : vector<8x384xf32> to vector<8x128xf32>
      %223 = vector.extract_strided_slice %221 {offsets = [0, 0], sizes = [8, 128], strides = [1, 1]} : vector<8x384xf32> to vector<8x128xf32>
      %224 = arith.addf %222, %223 : vector<8x128xf32>
      %225 = arith.negf %224 : vector<8x128xf32>
      %226 = math.exp %225 : vector<8x128xf32>
      %cst_83 = arith.constant 1.000000e+00 : f32
      %227 = vector.broadcast %cst_83 : f32 to vector<8x128xf32>
      %228 = arith.addf %227, %226 : vector<8x128xf32>
      %229 = arith.divf %227, %228 : vector<8x128xf32>
      %230 = vector.extract_strided_slice %218 {offsets = [0, 128], sizes = [8, 128], strides = [1, 1]} : vector<8x384xf32> to vector<8x128xf32>
      %231 = vector.extract_strided_slice %221 {offsets = [0, 128], sizes = [8, 128], strides = [1, 1]} : vector<8x384xf32> to vector<8x128xf32>
      %232 = arith.addf %230, %231 : vector<8x128xf32>
      %233 = arith.negf %232 : vector<8x128xf32>
      %234 = math.exp %233 : vector<8x128xf32>
      %cst_84 = arith.constant 1.000000e+00 : f32
      %235 = vector.broadcast %cst_84 : f32 to vector<8x128xf32>
      %236 = arith.addf %235, %234 : vector<8x128xf32>
      %237 = arith.divf %235, %236 : vector<8x128xf32>
      %238 = vector.extract_strided_slice %218 {offsets = [0, 256], sizes = [8, 128], strides = [1, 1]} : vector<8x384xf32> to vector<8x128xf32>
      %239 = vector.extract_strided_slice %221 {offsets = [0, 256], sizes = [8, 128], strides = [1, 1]} : vector<8x384xf32> to vector<8x128xf32>
      %240 = arith.mulf %229, %239 : vector<8x128xf32>
      %241 = arith.addf %238, %240 : vector<8x128xf32>
      %242 = math.tanh %241 : vector<8x128xf32>
      %cst_85 = arith.constant 1.000000e+00 : f32
      %243 = vector.broadcast %cst_85 : f32 to vector<8x128xf32>
      %244 = arith.subf %243, %237 : vector<8x128xf32>
      %245 = arith.mulf %244, %242 : vector<8x128xf32>
      %246 = arith.mulf %237, %208 : vector<8x128xf32>
      %247 = arith.addf %245, %246 : vector<8x128xf32>
      %248 = arith.index_cast %216 : i32 to index
      %c0_86 = arith.constant 0 : index
      %249 = vector.load %arg3[%248, %c0_86] : memref<64x1xf32, #tpu.memory_space<vmem>>, vector<8x1xf32>
      %250 = vector.broadcast %249 : vector<8x1xf32> to vector<8x128xf32>
      %251 = arith.mulf %247, %250 : vector<8x128xf32>
      %252 = arith.index_cast %216 : i32 to index
      %c0_87 = arith.constant 0 : index
      %253 = vector.load %arg16[%252, %c0_87] : memref<64x128xf32, #tpu.memory_space<vmem>>, vector<8x128xf32>
      tpu.vector_store %arg16[%252, %c0_87], %251 {strides = array<i32>} : memref<64x128xf32, #tpu.memory_space<vmem>>, vector<8x128xf32>,
      %c5_i32 = arith.constant 5 : i32
      %c8_i32_88 = arith.constant 8 : i32
      %254 = arith.muli %c5_i32, %c8_i32_88 : i32
      %255 = tpu.assume_multiple %254, 8 : i32
      %256 = arith.index_cast %255 : i32 to index
      %c0_89 = arith.constant 0 : index
      %257 = vector.load %arg15[%256, %c0_89] : memref<64x384xf32, #tpu.memory_space<vmem>>, vector<8x384xf32>
      %cst_90 = arith.constant dense<0.000000e+00> : vector<8x384xf32>
      %258 = tpu.matmul %247, %57, %cst_90 {dimension_numbers = #tpu.dot_dimension_numbers<[1], [0], [0], [1], [0, 0, 1, 1], [], []>} : vector<8x128xf32>, vector<128x384xf32>, vector<8x384xf32> -> vector<8x384xf32>
      %259 = vector.broadcast %58 : vector<1x384xf32> to vector<8x384xf32>
      %260 = arith.addf %258, %259 : vector<8x384xf32>
      %261 = vector.extract_strided_slice %257 {offsets = [0, 0], sizes = [8, 128], strides = [1, 1]} : vector<8x384xf32> to vector<8x128xf32>
      %262 = vector.extract_strided_slice %260 {offsets = [0, 0], sizes = [8, 128], strides = [1, 1]} : vector<8x384xf32> to vector<8x128xf32>
      %263 = arith.addf %261, %262 : vector<8x128xf32>
      %264 = arith.negf %263 : vector<8x128xf32>
      %265 = math.exp %264 : vector<8x128xf32>
      %cst_91 = arith.constant 1.000000e+00 : f32
      %266 = vector.broadcast %cst_91 : f32 to vector<8x128xf32>
      %267 = arith.addf %266, %265 : vector<8x128xf32>
      %268 = arith.divf %266, %267 : vector<8x128xf32>
      %269 = vector.extract_strided_slice %257 {offsets = [0, 128], sizes = [8, 128], strides = [1, 1]} : vector<8x384xf32> to vector<8x128xf32>
      %270 = vector.extract_strided_slice %260 {offsets = [0, 128], sizes = [8, 128], strides = [1, 1]} : vector<8x384xf32> to vector<8x128xf32>
      %271 = arith.addf %269, %270 : vector<8x128xf32>
      %272 = arith.negf %271 : vector<8x128xf32>
      %273 = math.exp %272 : vector<8x128xf32>
      %cst_92 = arith.constant 1.000000e+00 : f32
      %274 = vector.broadcast %cst_92 : f32 to vector<8x128xf32>
      %275 = arith.addf %274, %273 : vector<8x128xf32>
      %276 = arith.divf %274, %275 : vector<8x128xf32>
      %277 = vector.extract_strided_slice %257 {offsets = [0, 256], sizes = [8, 128], strides = [1, 1]} : vector<8x384xf32> to vector<8x128xf32>
      %278 = vector.extract_strided_slice %260 {offsets = [0, 256], sizes = [8, 128], strides = [1, 1]} : vector<8x384xf32> to vector<8x128xf32>
      %279 = arith.mulf %268, %278 : vector<8x128xf32>
      %280 = arith.addf %277, %279 : vector<8x128xf32>
      %281 = math.tanh %280 : vector<8x128xf32>
      %cst_93 = arith.constant 1.000000e+00 : f32
      %282 = vector.broadcast %cst_93 : f32 to vector<8x128xf32>
      %283 = arith.subf %282, %276 : vector<8x128xf32>
      %284 = arith.mulf %283, %281 : vector<8x128xf32>
      %285 = arith.mulf %276, %247 : vector<8x128xf32>
      %286 = arith.addf %284, %285 : vector<8x128xf32>
      %287 = arith.index_cast %255 : i32 to index
      %c0_94 = arith.constant 0 : index
      %288 = vector.load %arg3[%287, %c0_94] : memref<64x1xf32, #tpu.memory_space<vmem>>, vector<8x1xf32>
      %289 = vector.broadcast %288 : vector<8x1xf32> to vector<8x128xf32>
      %290 = arith.mulf %286, %289 : vector<8x128xf32>
      %291 = arith.index_cast %255 : i32 to index
      %c0_95 = arith.constant 0 : index
      %292 = vector.load %arg16[%291, %c0_95] : memref<64x128xf32, #tpu.memory_space<vmem>>, vector<8x128xf32>
      tpu.vector_store %arg16[%291, %c0_95], %290 {strides = array<i32>} : memref<64x128xf32, #tpu.memory_space<vmem>>, vector<8x128xf32>,
      %c6_i32 = arith.constant 6 : i32
      %c8_i32_96 = arith.constant 8 : i32
      %293 = arith.muli %c6_i32, %c8_i32_96 : i32
      %294 = tpu.assume_multiple %293, 8 : i32
      %295 = arith.index_cast %294 : i32 to index
      %c0_97 = arith.constant 0 : index
      %296 = vector.load %arg15[%295, %c0_97] : memref<64x384xf32, #tpu.memory_space<vmem>>, vector<8x384xf32>
      %cst_98 = arith.constant dense<0.000000e+00> : vector<8x384xf32>
      %297 = tpu.matmul %286, %57, %cst_98 {dimension_numbers = #tpu.dot_dimension_numbers<[1], [0], [0], [1], [0, 0, 1, 1], [], []>} : vector<8x128xf32>, vector<128x384xf32>, vector<8x384xf32> -> vector<8x384xf32>
      %298 = vector.broadcast %58 : vector<1x384xf32> to vector<8x384xf32>
      %299 = arith.addf %297, %298 : vector<8x384xf32>
      %300 = vector.extract_strided_slice %296 {offsets = [0, 0], sizes = [8, 128], strides = [1, 1]} : vector<8x384xf32> to vector<8x128xf32>
      %301 = vector.extract_strided_slice %299 {offsets = [0, 0], sizes = [8, 128], strides = [1, 1]} : vector<8x384xf32> to vector<8x128xf32>
      %302 = arith.addf %300, %301 : vector<8x128xf32>
      %303 = arith.negf %302 : vector<8x128xf32>
      %304 = math.exp %303 : vector<8x128xf32>
      %cst_99 = arith.constant 1.000000e+00 : f32
      %305 = vector.broadcast %cst_99 : f32 to vector<8x128xf32>
      %306 = arith.addf %305, %304 : vector<8x128xf32>
      %307 = arith.divf %305, %306 : vector<8x128xf32>
      %308 = vector.extract_strided_slice %296 {offsets = [0, 128], sizes = [8, 128], strides = [1, 1]} : vector<8x384xf32> to vector<8x128xf32>
      %309 = vector.extract_strided_slice %299 {offsets = [0, 128], sizes = [8, 128], strides = [1, 1]} : vector<8x384xf32> to vector<8x128xf32>
      %310 = arith.addf %308, %309 : vector<8x128xf32>
      %311 = arith.negf %310 : vector<8x128xf32>
      %312 = math.exp %311 : vector<8x128xf32>
      %cst_100 = arith.constant 1.000000e+00 : f32
      %313 = vector.broadcast %cst_100 : f32 to vector<8x128xf32>
      %314 = arith.addf %313, %312 : vector<8x128xf32>
      %315 = arith.divf %313, %314 : vector<8x128xf32>
      %316 = vector.extract_strided_slice %296 {offsets = [0, 256], sizes = [8, 128], strides = [1, 1]} : vector<8x384xf32> to vector<8x128xf32>
      %317 = vector.extract_strided_slice %299 {offsets = [0, 256], sizes = [8, 128], strides = [1, 1]} : vector<8x384xf32> to vector<8x128xf32>
      %318 = arith.mulf %307, %317 : vector<8x128xf32>
      %319 = arith.addf %316, %318 : vector<8x128xf32>
      %320 = math.tanh %319 : vector<8x128xf32>
      %cst_101 = arith.constant 1.000000e+00 : f32
      %321 = vector.broadcast %cst_101 : f32 to vector<8x128xf32>
      %322 = arith.subf %321, %315 : vector<8x128xf32>
      %323 = arith.mulf %322, %320 : vector<8x128xf32>
      %324 = arith.mulf %315, %286 : vector<8x128xf32>
      %325 = arith.addf %323, %324 : vector<8x128xf32>
      %326 = arith.index_cast %294 : i32 to index
      %c0_102 = arith.constant 0 : index
      %327 = vector.load %arg3[%326, %c0_102] : memref<64x1xf32, #tpu.memory_space<vmem>>, vector<8x1xf32>
      %328 = vector.broadcast %327 : vector<8x1xf32> to vector<8x128xf32>
      %329 = arith.mulf %325, %328 : vector<8x128xf32>
      %330 = arith.index_cast %294 : i32 to index
      %c0_103 = arith.constant 0 : index
      %331 = vector.load %arg16[%330, %c0_103] : memref<64x128xf32, #tpu.memory_space<vmem>>, vector<8x128xf32>
      tpu.vector_store %arg16[%330, %c0_103], %329 {strides = array<i32>} : memref<64x128xf32, #tpu.memory_space<vmem>>, vector<8x128xf32>,
      %c7_i32 = arith.constant 7 : i32
      %c8_i32_104 = arith.constant 8 : i32
      %332 = arith.muli %c7_i32, %c8_i32_104 : i32
      %333 = tpu.assume_multiple %332, 8 : i32
      %334 = arith.index_cast %333 : i32 to index
      %c0_105 = arith.constant 0 : index
      %335 = vector.load %arg15[%334, %c0_105] : memref<64x384xf32, #tpu.memory_space<vmem>>, vector<8x384xf32>
      %cst_106 = arith.constant dense<0.000000e+00> : vector<8x384xf32>
      %336 = tpu.matmul %325, %57, %cst_106 {dimension_numbers = #tpu.dot_dimension_numbers<[1], [0], [0], [1], [0, 0, 1, 1], [], []>} : vector<8x128xf32>, vector<128x384xf32>, vector<8x384xf32> -> vector<8x384xf32>
      %337 = vector.broadcast %58 : vector<1x384xf32> to vector<8x384xf32>
      %338 = arith.addf %336, %337 : vector<8x384xf32>
      %339 = vector.extract_strided_slice %335 {offsets = [0, 0], sizes = [8, 128], strides = [1, 1]} : vector<8x384xf32> to vector<8x128xf32>
      %340 = vector.extract_strided_slice %338 {offsets = [0, 0], sizes = [8, 128], strides = [1, 1]} : vector<8x384xf32> to vector<8x128xf32>
      %341 = arith.addf %339, %340 : vector<8x128xf32>
      %342 = arith.negf %341 : vector<8x128xf32>
      %343 = math.exp %342 : vector<8x128xf32>
      %cst_107 = arith.constant 1.000000e+00 : f32
      %344 = vector.broadcast %cst_107 : f32 to vector<8x128xf32>
      %345 = arith.addf %344, %343 : vector<8x128xf32>
      %346 = arith.divf %344, %345 : vector<8x128xf32>
      %347 = vector.extract_strided_slice %335 {offsets = [0, 128], sizes = [8, 128], strides = [1, 1]} : vector<8x384xf32> to vector<8x128xf32>
      %348 = vector.extract_strided_slice %338 {offsets = [0, 128], sizes = [8, 128], strides = [1, 1]} : vector<8x384xf32> to vector<8x128xf32>
      %349 = arith.addf %347, %348 : vector<8x128xf32>
      %350 = arith.negf %349 : vector<8x128xf32>
      %351 = math.exp %350 : vector<8x128xf32>
      %cst_108 = arith.constant 1.000000e+00 : f32
      %352 = vector.broadcast %cst_108 : f32 to vector<8x128xf32>
      %353 = arith.addf %352, %351 : vector<8x128xf32>
      %354 = arith.divf %352, %353 : vector<8x128xf32>
      %355 = vector.extract_strided_slice %335 {offsets = [0, 256], sizes = [8, 128], strides = [1, 1]} : vector<8x384xf32> to vector<8x128xf32>
      %356 = vector.extract_strided_slice %338 {offsets = [0, 256], sizes = [8, 128], strides = [1, 1]} : vector<8x384xf32> to vector<8x128xf32>
      %357 = arith.mulf %346, %356 : vector<8x128xf32>
      %358 = arith.addf %355, %357 : vector<8x128xf32>
      %359 = math.tanh %358 : vector<8x128xf32>
      %cst_109 = arith.constant 1.000000e+00 : f32
      %360 = vector.broadcast %cst_109 : f32 to vector<8x128xf32>
      %361 = arith.subf %360, %354 : vector<8x128xf32>
      %362 = arith.mulf %361, %359 : vector<8x128xf32>
      %363 = arith.mulf %354, %325 : vector<8x128xf32>
      %364 = arith.addf %362, %363 : vector<8x128xf32>
      %365 = arith.index_cast %333 : i32 to index
      %c0_110 = arith.constant 0 : index
      %366 = vector.load %arg3[%365, %c0_110] : memref<64x1xf32, #tpu.memory_space<vmem>>, vector<8x1xf32>
      %367 = vector.broadcast %366 : vector<8x1xf32> to vector<8x128xf32>
      %368 = arith.mulf %364, %367 : vector<8x128xf32>
      %369 = arith.index_cast %333 : i32 to index
      %c0_111 = arith.constant 0 : index
      %370 = vector.load %arg16[%369, %c0_111] : memref<64x128xf32, #tpu.memory_space<vmem>>, vector<8x128xf32>
      tpu.vector_store %arg16[%369, %c0_111], %368 {strides = array<i32>} : memref<64x128xf32, #tpu.memory_space<vmem>>, vector<8x128xf32>,
      %c8_i32_112 = arith.constant 8 : i32
      %cst_113 = arith.constant 0xFF800000 : f32
      %371 = vector.broadcast %cst_113 : f32 to vector<64x1xf32>
      %c0_114 = arith.constant 0 : index
      %c0_115 = arith.constant 0 : index
      %372 = vector.load %arg17[%c0_114, %c0_115] : memref<64x1xf32, #tpu.memory_space<vmem>>, vector<64x1xf32>
      tpu.vector_store %arg17[%c0_114, %c0_115], %371 {strides = array<i32>} : memref<64x1xf32, #tpu.memory_space<vmem>>, vector<64x1xf32>,
      %cst_116 = arith.constant 0.000000e+00 : f32
      %373 = vector.broadcast %cst_116 : f32 to vector<64x1xf32>
      %c0_117 = arith.constant 0 : index
      %c0_118 = arith.constant 0 : index
      %374 = vector.load %arg18[%c0_117, %c0_118] : memref<64x1xf32, #tpu.memory_space<vmem>>, vector<64x1xf32>
      tpu.vector_store %arg18[%c0_117, %c0_118], %373 {strides = array<i32>} : memref<64x1xf32, #tpu.memory_space<vmem>>, vector<64x1xf32>,
      %cst_119 = arith.constant 0.000000e+00 : f32
      %375 = vector.broadcast %cst_119 : f32 to vector<64x1xf32>
      %c0_120 = arith.constant 0 : index
      %c0_121 = arith.constant 0 : index
      %376 = vector.load %arg19[%c0_120, %c0_121] : memref<64x1xf32, #tpu.memory_space<vmem>>, vector<64x1xf32>
      tpu.vector_store %arg19[%c0_120, %c0_121], %375 {strides = array<i32>} : memref<64x1xf32, #tpu.memory_space<vmem>>, vector<64x1xf32>,
    } else {
    }
    %c0 = arith.constant 0 : index
    %c0_1 = arith.constant 0 : index
    %3 = vector.load %arg16[%c0, %c0_1] : memref<64x128xf32, #tpu.memory_space<vmem>>, vector<64x128xf32>
    %4 = arith.truncf %3 : vector<64x128xf32> to vector<64x128xbf16>
    %c0_2 = arith.constant 0 : index
    %c0_3 = arith.constant 0 : index
    %5 = vector.load %arg11[%c0_2, %c0_3] : memref<128x128xbf16, #tpu.memory_space<vmem>>, vector<128x128xbf16>
    %cst = arith.constant dense<0.000000e+00> : vector<64x128xf32>
    %6 = tpu.matmul %4, %5, %cst {dimension_numbers = #tpu.dot_dimension_numbers<[1], [0], [0], [1], [0, 0, 1, 1], [], []>} : vector<64x128xbf16>, vector<128x128xbf16>, vector<64x128xf32> -> vector<64x128xf32>
    %c0_4 = arith.constant 0 : index
    %c0_5 = arith.constant 0 : index
    %7 = vector.load %arg12[%c0_4, %c0_5] : memref<1x128xf32, #tpu.memory_space<vmem>>, vector<1x128xf32>
    %8 = vector.broadcast %7 : vector<1x128xf32> to vector<64x128xf32>
    %9 = arith.addf %6, %8 : vector<64x128xf32>
    %10 = tpu.iota {dimensions = array<i32: 1>} : vector<64x128xi32>
    %c128_i32 = arith.constant 128 : i32
    %11 = arith.muli %arg0, %c128_i32 : i32
    %12 = vector.broadcast %11 : i32 to vector<64x128xi32>
    %13 = arith.addi %10, %12 : vector<64x128xi32>
    %c0_6 = arith.constant 0 : index
    %c0_7 = arith.constant 0 : index
    %14 = vector.load %arg4[%c0_6, %c0_7] : memref<64x1xi32, #tpu.memory_space<vmem>>, vector<64x1xi32>
    %c0_8 = arith.constant 0 : index
    %c0_9 = arith.constant 0 : index
    %15 = vector.load %arg17[%c0_8, %c0_9] : memref<64x1xf32, #tpu.memory_space<vmem>>, vector<64x1xf32>
    %cst_10 = arith.constant dense<0xFF800000> : vector<64xf32>
    %16 = vector.multi_reduction <maximumf>, %9, %cst_10 [1] : vector<64x128xf32> to vector<64xf32>
    %17 = vector.shape_cast %16 : vector<64xf32> to vector<64x1xf32>
    %18 = arith.maximumf %15, %17 : vector<64x1xf32>
    %c0_11 = arith.constant 0 : index
    %c0_12 = arith.constant 0 : index
    %19 = vector.load %arg18[%c0_11, %c0_12] : memref<64x1xf32, #tpu.memory_space<vmem>>, vector<64x1xf32>
    %20 = arith.subf %15, %18 : vector<64x1xf32>
    %21 = math.exp %20 : vector<64x1xf32>
    %22 = arith.mulf %19, %21 : vector<64x1xf32>
    %23 = vector.broadcast %18 : vector<64x1xf32> to vector<64x128xf32>
    %24 = arith.subf %9, %23 : vector<64x128xf32>
    %25 = math.exp %24 : vector<64x128xf32>
    %cst_13 = arith.constant dense<0.000000e+00> : vector<64xf32>
    %26 = vector.multi_reduction <add>, %25, %cst_13 [1] : vector<64x128xf32> to vector<64xf32>
    %27 = vector.shape_cast %26 : vector<64xf32> to vector<64x1xf32>
    %28 = arith.addf %22, %27 : vector<64x1xf32>
    %c0_14 = arith.constant 0 : index
    %c0_15 = arith.constant 0 : index
    %29 = vector.load %arg18[%c0_14, %c0_15] : memref<64x1xf32, #tpu.memory_space<vmem>>, vector<64x1xf32>
    tpu.vector_store %arg18[%c0_14, %c0_15], %28 {strides = array<i32>} : memref<64x1xf32, #tpu.memory_space<vmem>>, vector<64x1xf32>,
    %c0_16 = arith.constant 0 : index
    %c0_17 = arith.constant 0 : index
    %30 = vector.load %arg19[%c0_16, %c0_17] : memref<64x1xf32, #tpu.memory_space<vmem>>, vector<64x1xf32>
    %31 = vector.broadcast %14 : vector<64x1xi32> to vector<64x128xi32>
    %32 = arith.cmpi eq, %13, %31 : vector<64x128xi32>
    %cst_18 = arith.constant 0.000000e+00 : f32
    %33 = vector.broadcast %cst_18 : f32 to vector<64x128xf32>
    %34 = arith.select %32, %9, %33 : vector<64x128xi1>, vector<64x128xf32>
    %cst_19 = arith.constant dense<0.000000e+00> : vector<64xf32>
    %35 = vector.multi_reduction <add>, %34, %cst_19 [1] : vector<64x128xf32> to vector<64xf32>
    %36 = vector.shape_cast %35 : vector<64xf32> to vector<64x1xf32>
    %37 = arith.addf %30, %36 : vector<64x1xf32>
    %c0_20 = arith.constant 0 : index
    %c0_21 = arith.constant 0 : index
    %38 = vector.load %arg19[%c0_20, %c0_21] : memref<64x1xf32, #tpu.memory_space<vmem>>, vector<64x1xf32>
    tpu.vector_store %arg19[%c0_20, %c0_21], %37 {strides = array<i32>} : memref<64x1xf32, #tpu.memory_space<vmem>>, vector<64x1xf32>,
    %c0_22 = arith.constant 0 : index
    %c0_23 = arith.constant 0 : index
    %39 = vector.load %arg17[%c0_22, %c0_23] : memref<64x1xf32, #tpu.memory_space<vmem>>, vector<64x1xf32>
    tpu.vector_store %arg17[%c0_22, %c0_23], %18 {strides = array<i32>} : memref<64x1xf32, #tpu.memory_space<vmem>>, vector<64x1xf32>,
    %c0_i32_24 = arith.constant 0 : i32
    %40 = arith.cmpi eq, %arg0, %c0_i32_24 : i32
    %41 = arith.extui %40 : i1 to i32
    %c0_i32_25 = arith.constant 0 : i32
    %42 = arith.cmpi ne, %41, %c0_i32_25 : i32
    scf.if %42 {
      %c0_26 = arith.constant 0 : index
      %c0_27 = arith.constant 0 : index
      %43 = vector.load %arg17[%c0_26, %c0_27] : memref<64x1xf32, #tpu.memory_space<vmem>>, vector<64x1xf32>
      %c0_28 = arith.constant 0 : index
      %c0_29 = arith.constant 0 : index
      %44 = vector.load %arg18[%c0_28, %c0_29] : memref<64x1xf32, #tpu.memory_space<vmem>>, vector<64x1xf32>
      %45 = math.log %44 : vector<64x1xf32>
      %46 = arith.addf %43, %45 : vector<64x1xf32>
      %c0_30 = arith.constant 0 : index
      %c0_31 = arith.constant 0 : index
      %47 = vector.load %arg19[%c0_30, %c0_31] : memref<64x1xf32, #tpu.memory_space<vmem>>, vector<64x1xf32>
      %48 = arith.subf %46, %47 : vector<64x1xf32>
      %c0_32 = arith.constant 0 : index
      %c0_33 = arith.constant 0 : index
      %49 = vector.load %arg4[%c0_32, %c0_33] : memref<64x1xi32, #tpu.memory_space<vmem>>, vector<64x1xi32>
      %c0_i32_34 = arith.constant 0 : i32
      %50 = vector.broadcast %c0_i32_34 : i32 to vector<64x1xi32>
      %51 = arith.cmpi ne, %49, %50 : vector<64x1xi32>
      %52 = arith.extui %51 : vector<64x1xi1> to vector<64x1xi32>
      %53 = arith.sitofp %52 : vector<64x1xi32> to vector<64x1xf32>
      %54 = vector.shape_cast %53 : vector<64x1xf32> to vector<1x64x1xf32>
      %cst_35 = arith.constant dense<0.000000e+00> : vector<1xf32>
      %55 = vector.multi_reduction <add>, %54, %cst_35 [1, 2] : vector<1x64x1xf32> to vector<1xf32>
      %56 = vector.shape_cast %55 : vector<1xf32> to vector<1x1x1xf32>
      %57 = vector.extract %56[0, 0, 0] : f32 from vector<1x1x1xf32>
      %cst_36 = arith.constant 1.000000e+00 : f32
      %58 = arith.maximumf %57, %cst_36 : f32
      %59 = arith.mulf %48, %53 : vector<64x1xf32>
      %60 = vector.shape_cast %59 : vector<64x1xf32> to vector<1x64x1xf32>
      %cst_37 = arith.constant dense<0.000000e+00> : vector<1xf32>
      %61 = vector.multi_reduction <add>, %60, %cst_37 [1, 2] : vector<1x64x1xf32> to vector<1xf32>
      %62 = vector.shape_cast %61 : vector<1xf32> to vector<1x1x1xf32>
      %63 = vector.extract %62[0, 0, 0] : f32 from vector<1x1x1xf32>
      %64 = arith.divf %63, %58 : f32
      %c0_38 = arith.constant 0 : index
      %c0_39 = arith.constant 0 : index
      %65 = memref.load %arg14[%c0_38, %c0_39] : memref<1x1xf32, #tpu.memory_space<smem>>
      memref.store %64, %arg14[%c0_38, %c0_39] : memref<1x1xf32, #tpu.memory_space<smem>>
    } else {
    }
    return
  }
  func.func @transform_0(%arg0: i32) -> (i32, i32) {
    %c0_i32 = arith.constant 0 : i32
    %c0_i32_0 = arith.constant 0 : i32
    %c0_i32_1 = arith.constant 0 : i32
    return %c0_i32, %c0_i32_0 : i32, i32
  }
  func.func @transform_1(%arg0: i32) -> (i32, i32) {
    %c0_i32 = arith.constant 0 : i32
    %c0_i32_0 = arith.constant 0 : i32
    %c0_i32_1 = arith.constant 0 : i32
    return %c0_i32, %c0_i32_0 : i32, i32
  }
  func.func @transform_2(%arg0: i32) -> (i32, i32) {
    %c0_i32 = arith.constant 0 : i32
    %c0_i32_0 = arith.constant 0 : i32
    %c0_i32_1 = arith.constant 0 : i32
    return %c0_i32, %c0_i32_0 : i32, i32
  }
  func.func @transform_3(%arg0: i32) -> (i32, i32) {
    %c0_i32 = arith.constant 0 : i32
    %c0_i32_0 = arith.constant 0 : i32
    %c0_i32_1 = arith.constant 0 : i32
    return %c0_i32, %c0_i32_0 : i32, i32
  }
  func.func @transform_4(%arg0: i32) -> (i32, i32) {
    %c0_i32 = arith.constant 0 : i32
    %c0_i32_0 = arith.constant 0 : i32
    %c0_i32_1 = arith.constant 0 : i32
    return %c0_i32, %c0_i32_0 : i32, i32
  }
  func.func @transform_5(%arg0: i32) -> (i32, i32) {
    %c0_i32 = arith.constant 0 : i32
    %c0_i32_0 = arith.constant 0 : i32
    %c0_i32_1 = arith.constant 0 : i32
    return %c0_i32, %c0_i32_0 : i32, i32
  }
  func.func @transform_6(%arg0: i32) -> (i32, i32) {
    %c0_i32 = arith.constant 0 : i32
    %c0_i32_0 = arith.constant 0 : i32
    %c0_i32_1 = arith.constant 0 : i32
    return %c0_i32, %c0_i32_0 : i32, i32
  }
  func.func @transform_7(%arg0: i32) -> (i32, i32) {
    %c0_i32 = arith.constant 0 : i32
    %c0_i32_0 = arith.constant 0 : i32
    %c0_i32_1 = arith.constant 0 : i32
    return %c0_i32, %c0_i32_0 : i32, i32
  }
  func.func @transform_8(%arg0: i32) -> (i32, i32) {
    %c0_i32 = arith.constant 0 : i32
    %c0_i32_0 = arith.constant 0 : i32
    %c0_i32_1 = arith.constant 0 : i32
    return %c0_i32, %c0_i32_0 : i32, i32
  }
  func.func @transform_9(%arg0: i32) -> (i32, i32) {
    %c0_i32 = arith.constant 0 : i32
    %c0_i32_0 = arith.constant 0 : i32
    %c0_i32_1 = arith.constant 0 : i32
    return %c0_i32, %c0_i32_0 : i32, i32
  }
  func.func @transform_10(%arg0: i32) -> (i32, i32) {
    %c0_i32 = arith.constant 0 : i32
    %c0_i32_0 = arith.constant 0 : i32
    return %c0_i32, %arg0 : i32, i32
  }
  func.func @transform_11(%arg0: i32) -> (i32, i32) {
    %c0_i32 = arith.constant 0 : i32
    %c0_i32_0 = arith.constant 0 : i32
    return %c0_i32, %arg0 : i32, i32
  }
  func.func @transform_12(%arg0: i32) -> (i32, i32) {
    %c0_i32 = arith.constant 0 : i32
    %c0_i32_0 = arith.constant 0 : i32
    %c0_i32_1 = arith.constant 0 : i32
    return %c0_i32, %c0_i32_0 : i32, i32
  }
  func.func @transform_13(%arg0: i32) -> (i32, i32) {
    %c0_i32 = arith.constant 0 : i32
    %c0_i32_0 = arith.constant 0 : i32
    %c0_i32_1 = arith.constant 0 : i32
    return %c0_i32, %c0_i32_0 : i32, i32
  }
}

</mosaic_0001>

<llo_original>
// kernel: tpu_custom_call.1
$region0: #{tpu_custom_call.1}
  #allocation0 [shape = 'u32[]', space=smem, size = 0x4, offset = 0x4, fixed_abs, tag = 'smem constant byte address 0x4 - core index']
  #allocation1 [shape = 'u32[144,128]{1,0:T(1,128)}', space=vmem, size = 0x12000, scoped, tag = 'internal scratch']
  #allocation2 [shape = 'f32[64,384]{1,0:T(8,128)}', space=vmem, size = 0x18000, scoped, tag = 'scratch operand']
  #allocation3 [shape = 'f32[64,128]{1,0:T(8,128)}', space=vmem, size = 0x8000, scoped, tag = 'scratch operand']
  #allocation4 [shape = 'f32[64,1]{1,0:T(8,128)}', space=vmem, size = 0x8000, scoped, tag = 'scratch operand']
  #allocation5 [shape = 'f32[64,1]{1,0:T(8,128)}', space=vmem, size = 0x8000, scoped, tag = 'scratch operand']
  #allocation6 [shape = 'f32[64,1]{1,0:T(8,128)}', space=vmem, size = 0x8000, scoped, tag = 'scratch operand']
  %s0 = inlined_call_operand.hbm [shape: bf16[64,128], index: 0, kind: input, shape index: {}]
  %s1 = inlined_call_operand.vmem [shape: f32[8,128], index: 1, kind: input, shape index: {}]
  %s2 = inlined_call_operand.vmem [shape: f32[64,1], index: 2, kind: input, shape index: {}]
  %s3 = inlined_call_operand.vmem [shape: s32[64,1], index: 3, kind: input, shape index: {}]
  %s4 = inlined_call_operand.vmem [shape: f32[128,128], index: 4, kind: input, shape index: {}]
  %s5 = inlined_call_operand.hbm [shape: f32[1,128], index: 5, kind: input, shape index: {}]
  %s6 = inlined_call_operand.hbm [shape: bf16[128,384], index: 6, kind: input, shape index: {}]
  %s7 = inlined_call_operand.vmem [shape: f32[1,384], index: 7, kind: input, shape index: {}]
  %s8 = inlined_call_operand.hbm [shape: f32[128,384], index: 8, kind: input, shape index: {}]
  %s9 = inlined_call_operand.vmem [shape: f32[1,384], index: 9, kind: input, shape index: {}]
  %s10 = inlined_call_operand.hbm [shape: bf16[128,128], index: 10, kind: input, shape index: {}]
  %s11 = inlined_call_operand.vmem [shape: f32[1,128], index: 11, kind: input, shape index: {}]
  %s12 = inlined_call_operand.hbm [shape: f32[8,128], index: 12, kind: output, shape index: {0}]
  %s13 = inlined_call_operand.hbm [shape: f32[1,1], index: 13, kind: output, shape index: {1}]
  %14 = xla_tuple %s12, %s13
  %s15 = sld [smem:[#allocation0]]
  $region94: #{tpu_custom_call.1} parent=0
    _
  %s17 = ssub.s32 1, %s15
  %s18 = scalar_select 0, %s17, %s15
  $region1: #{tpu_custom_call.1} parent=0
    #allocation7 [shape = 'u8[16384]{0}', space=vmem, size = 0x4000, scoped, tag = 'input window, operand 0, single buffered']
    #allocation8 [shape = 's32[1]{0}', space=sflag, size = 0x4, scoped, tag = 'scoped memory for tpu_custom_call.1']
    #allocation9 [shape = 's32[1]{0}', space=sflag, size = 0x4, scoped, tag = 'scoped memory for tpu_custom_call.1']
    #allocation10 [shape = 's32[1]{0}', space=sflag, size = 0x4, scoped, tag = 'scoped memory for tpu_custom_call.1']
    #allocation11 [shape = 'u8[512]{0}', space=vmem, size = 0x400, scoped, tag = 'input window, operand 5, single buffered']
    #allocation12 [shape = 's32[1]{0}', space=sflag, size = 0x4, scoped, tag = 'scoped memory for tpu_custom_call.1']
    #allocation13 [shape = 'u8[98304]{0}', space=vmem, size = 0x18000, scoped, tag = 'input window, operand 6, single buffered']
    #allocation14 [shape = 'u8[196608]{0}', space=vmem, size = 0x30000, scoped, tag = 'input window, operand 8, single buffered']
    #allocation15 [shape = 's32[1]{0}', space=sflag, size = 0x4, scoped, tag = 'scoped memory for tpu_custom_call.1']
    #allocation16 [shape = 'u8[32768]{0}', space=vmem, size = 0x8000, scoped, tag = 'input window, operand 10, single buffered']
    #allocation17 [shape = 'u8[4096]{0}', space=vmem, size = 0x1000, scoped, tag = 'output window, operand 0, single buffered']
    #allocation18 [shape = 'u8[512]{0}', space=smem, size = 0x200, scoped, tag = 'output window, operand 1, single buffered']
    %19 = vsyncpa [#allocation8], 0
    %20 = vsyncpa [#allocation12], 0
    %21 = vsyncpa [#allocation15], 0
    %22 = vsyncpa [#allocation9], 0
    %23 = vsyncpa [#allocation10], 0
    // Predicated region
    $region2: #{tpu_custom_call.1} parent=1 // pred_check
      _
    $region3: #{tpu_custom_call.1} parent=1 // pred_check_branch
      %25 = sbr.rel (0) target = $region5
    $region4: #{tpu_custom_call.1} parent=1 // pred_region
      %s27 = ssub.s32 512, 512
      %28 = vsyncadd [#allocation8], %s27
      %s29 = sshll.u32 [#allocation7], 4
      %s30 = int_to_ptr.vmem [resolvable:$true] %s29
      %35 = dma.hbm_to_vmem [thread:$0]  %s0, 512, %s30, [#allocation8], 64, 64, 4
    $region5: #{tpu_custom_call.1} parent=1 // pred_fallthru
      _
    // Predicated region
    $region6: #{tpu_custom_call.1} parent=1 // pred_check
      _
    $region7: #{tpu_custom_call.1} parent=1 // pred_check_branch
      %37 = sbr.rel (0) target = $region9
    $region8: #{tpu_custom_call.1} parent=1 // pred_region
      _
    $region9: #{tpu_custom_call.1} parent=1 // pred_fallthru
      _
    // Predicated region
    $region10: #{tpu_custom_call.1} parent=1 // pred_check
      _
    $region11: #{tpu_custom_call.1} parent=1 // pred_check_branch
      %39 = sbr.rel (0) target = $region13
    $region12: #{tpu_custom_call.1} parent=1 // pred_region
      _
    $region13: #{tpu_custom_call.1} parent=1 // pred_fallthru
      _
    // Predicated region
    $region14: #{tpu_custom_call.1} parent=1 // pred_check
      _
    $region15: #{tpu_custom_call.1} parent=1 // pred_check_branch
      %41 = sbr.rel (0) target = $region17
    $region16: #{tpu_custom_call.1} parent=1 // pred_region
      _
    $region17: #{tpu_custom_call.1} parent=1 // pred_fallthru
      _
    // Predicated region
    $region18: #{tpu_custom_call.1} parent=1 // pred_check
      _
    $region19: #{tpu_custom_call.1} parent=1 // pred_check_branch
      %43 = sbr.rel (0) target = $region21
    $region20: #{tpu_custom_call.1} parent=1 // pred_region
      _
    $region21: #{tpu_custom_call.1} parent=1 // pred_fallthru
      _
    // Predicated region
    $region22: #{tpu_custom_call.1} parent=1 // pred_check
      _
    $region23: #{tpu_custom_call.1} parent=1 // pred_check_branch
      %45 = sbr.rel (0) target = $region25
    $region24: #{tpu_custom_call.1} parent=1 // pred_region
      %s47 = ssub.s32 16, 16
      %48 = vsyncadd [#allocation12], %s47
      %s50 = sshll.u32 [#allocation11], 4
      %s51 = int_to_ptr.vmem [resolvable:$true] %s50
      %53 = dma.hbm_to_vmem [thread:$0]  %s5, 16, %s51, [#allocation12]
    $region25: #{tpu_custom_call.1} parent=1 // pred_fallthru
      _
    // Predicated region
    $region26: #{tpu_custom_call.1} parent=1 // pred_check
      _
    $region27: #{tpu_custom_call.1} parent=1 // pred_check_branch
      %55 = sbr.rel (0) target = $region29
    $region28: #{tpu_custom_call.1} parent=1 // pred_region
      %s57 = ssub.s32 3072, 3072
      %58 = vsyncadd [#allocation12], %s57
      %s59 = sshll.u32 [#allocation13], 4
      %s60 = int_to_ptr.vmem [resolvable:$true] %s59
      %65 = dma.hbm_to_vmem [thread:$0]  %s6, 3072, %s60, [#allocation12], 192, 192, 12
    $region29: #{tpu_custom_call.1} parent=1 // pred_fallthru
      _
    // Predicated region
    $region30: #{tpu_custom_call.1} parent=1 // pred_check
      _
    $region31: #{tpu_custom_call.1} parent=1 // pred_check_branch
      %67 = sbr.rel (0) target = $region33
    $region32: #{tpu_custom_call.1} parent=1 // pred_region
      _
    $region33: #{tpu_custom_call.1} parent=1 // pred_fallthru
      _
    // Predicated region
    $region34: #{tpu_custom_call.1} parent=1 // pred_check
      _
    $region35: #{tpu_custom_call.1} parent=1 // pred_check_branch
      %69 = sbr.rel (0) target = $region37
    $region36: #{tpu_custom_call.1} parent=1 // pred_region
      %s71 = ssub.s32 6144, 6144
      %72 = vsyncadd [#allocation15], %s71
      %s73 = sshll.u32 [#allocation14], 4
      %s74 = int_to_ptr.vmem [resolvable:$true] %s73
      %79 = dma.hbm_to_vmem [thread:$0]  %s8, 6144, %s74, [#allocation15], 384, 384, 24
    $region37: #{tpu_custom_call.1} parent=1 // pred_fallthru
      _
    // Predicated region
    $region38: #{tpu_custom_call.1} parent=1 // pred_check
      _
    $region39: #{tpu_custom_call.1} parent=1 // pred_check_branch
      %81 = sbr.rel (0) target = $region41
    $region40: #{tpu_custom_call.1} parent=1 // pred_region
      _
    $region41: #{tpu_custom_call.1} parent=1 // pred_fallthru
      _
    // Predicated region
    $region42: #{tpu_custom_call.1} parent=1 // pred_check
      _
    $region43: #{tpu_custom_call.1} parent=1 // pred_check_branch
      %83 = sbr.rel (0) target = $region45
    $region44: #{tpu_custom_call.1} parent=1 // pred_region
      %s85 = ssub.s32 1024, 1024
      %86 = vsyncadd [#allocation15], %s85
      %s87 = sshll.u32 [#allocation16], 4
      %s88 = int_to_ptr.vmem [resolvable:$true] %s87
      %93 = dma.hbm_to_vmem [thread:$0]  %s10, 1024, %s88, [#allocation15], 64, 64, 4
    $region45: #{tpu_custom_call.1} parent=1 // pred_fallthru
      _
    // Predicated region
    $region46: #{tpu_custom_call.1} parent=1 // pred_check
      _
    $region47: #{tpu_custom_call.1} parent=1 // pred_check_branch
      %95 = sbr.rel (0) target = $region49
    $region48: #{tpu_custom_call.1} parent=1 // pred_region
      _
    $region49: #{tpu_custom_call.1} parent=1 // pred_fallthru
      _
    // Predicated region
    $region50: #{tpu_custom_call.1} parent=1 // pred_check
      _
    $region51: #{tpu_custom_call.1} parent=1 // pred_check_branch
      %97 = sbr.rel (0) target = $region53
    $region52: #{tpu_custom_call.1} parent=1 // pred_region
      %98 = dma.done [#allocation8], 512
    $region53: #{tpu_custom_call.1} parent=1 // pred_fallthru
      _
    // Predicated region
    $region54: #{tpu_custom_call.1} parent=1 // pred_check
      _
    $region55: #{tpu_custom_call.1} parent=1 // pred_check_branch
      %100 = sbr.rel (0) target = $region57
    $region56: #{tpu_custom_call.1} parent=1 // pred_region
      %101 = dma.done [#allocation12], 16
    $region57: #{tpu_custom_call.1} parent=1 // pred_fallthru
      _
    // Predicated region
    $region58: #{tpu_custom_call.1} parent=1 // pred_check
      _
    $region59: #{tpu_custom_call.1} parent=1 // pred_check_branch
      %103 = sbr.rel (0) target = $region61
    $region60: #{tpu_custom_call.1} parent=1 // pred_region
      %104 = dma.done [#allocation12], 3072
    $region61: #{tpu_custom_call.1} parent=1 // pred_fallthru
      _
    // Predicated region
    $region62: #{tpu_custom_call.1} parent=1 // pred_check
      _
    $region63: #{tpu_custom_call.1} parent=1 // pred_check_branch
      %106 = sbr.rel (0) target = $region65
    $region64: #{tpu_custom_call.1} parent=1 // pred_region
      %107 = dma.done [#allocation15], 6144
    $region65: #{tpu_custom_call.1} parent=1 // pred_fallthru
      _
    // Predicated region
    $region66: #{tpu_custom_call.1} parent=1 // pred_check
      _
    $region67: #{tpu_custom_call.1} parent=1 // pred_check_branch
      %109 = sbr.rel (0) target = $region69
    $region68: #{tpu_custom_call.1} parent=1 // pred_region
      %110 = dma.done [#allocation15], 1024
    $region69: #{tpu_custom_call.1} parent=1 // pred_fallthru
      _
    %p112 = scmp.eq.s32.totalorder 0, 0
    // Predicated region
    $region70: #{tpu_custom_call.1} parent=1 // pred_check
      %p113 = pneg %p112
    $region71: #{tpu_custom_call.1} parent=1 // pred_check_branch
      %115 = sbr.rel (%p113) target = $region73
    $region72: #{tpu_custom_call.1} parent=1 // pred_region
      %v116 = vld [vmem:[#allocation7] sm:$0xf]
      %v117 = vld [vmem:[#allocation7 + $0x4] sm:$0xf]
      %v118 = vld [vmem:[#allocation7 + $0x8] sm:$0xf]
      %v119 = vld [vmem:[#allocation7 + $0xc] sm:$0xf]
      %v120 = vld [vmem:[#allocation7 + $0x10] sm:$0xf]
      %v121 = vld [vmem:[#allocation7 + $0x14] sm:$0xf]
      %v122 = vld [vmem:[#allocation7 + $0x18] sm:$0xf]
      %v123 = vld [vmem:[#allocation7 + $0x1c] sm:$0xf]
      %v124 = vld [vmem:[#allocation13] sm:$0xff]
      %v125 = vld [vmem:[#allocation13 + $0x8] sm:$0xf]
      %v126 = vld [vmem:[#allocation13 + $0xc] sm:$0xff]
      %v127 = vld [vmem:[#allocation13 + $0x14] sm:$0xf]
      %v128 = vld [vmem:[#allocation13 + $0x18] sm:$0xff]
      %v129 = vld [vmem:[#allocation13 + $0x20] sm:$0xf]
      %v130 = vld [vmem:[#allocation13 + $0x24] sm:$0xff]
      %v131 = vld [vmem:[#allocation13 + $0x2c] sm:$0xf]
      %v132 = vld [vmem:[#allocation13 + $0x30] sm:$0xff]
      %v133 = vld [vmem:[#allocation13 + $0x38] sm:$0xf]
      %v134 = vld [vmem:[#allocation13 + $0x3c] sm:$0xff]
      %v135 = vld [vmem:[#allocation13 + $0x44] sm:$0xf]
      %v136 = vld [vmem:[#allocation13 + $0x48] sm:$0xff]
      %v137 = vld [vmem:[#allocation13 + $0x50] sm:$0xf]
      %v138 = vld [vmem:[#allocation13 + $0x54] sm:$0xff]
      %v139 = vld [vmem:[#allocation13 + $0x5c] sm:$0xf]
      %v140 = vld [vmem:[#allocation13 + $0x60] sm:$0xff]
      %v141 = vld [vmem:[#allocation13 + $0x68] sm:$0xf]
      %v142 = vld [vmem:[#allocation13 + $0x6c] sm:$0xff]
      %v143 = vld [vmem:[#allocation13 + $0x74] sm:$0xf]
      %v144 = vld [vmem:[#allocation13 + $0x78] sm:$0xff]
      %v145 = vld [vmem:[#allocation13 + $0x80] sm:$0xf]
      %v146 = vld [vmem:[#allocation13 + $0x84] sm:$0xff]
      %v147 = vld [vmem:[#allocation13 + $0x8c] sm:$0xf]
      %v148 = vld [vmem:[#allocation13 + $0x90] sm:$0xff]
      %v149 = vld [vmem:[#allocation13 + $0x98] sm:$0xf]
      %v150 = vld [vmem:[#allocation13 + $0x9c] sm:$0xff]
      %v151 = vld [vmem:[#allocation13 + $0xa4] sm:$0xf]
      %v152 = vld [vmem:[#allocation13 + $0xa8] sm:$0xff]
      %v153 = vld [vmem:[#allocation13 + $0xb0] sm:$0xf]
      %v154 = vld [vmem:[#allocation13 + $0xb4] sm:$0xff]
      %v155 = vld [vmem:[#allocation13 + $0xbc] sm:$0xf]
      %v156 = vld [vmem:[%s7] sm:$0x7]
      %v158 = vlaneseq
      %v159 = vshrl.u32 %v158, 7
      %v160 = vsub.s32 0, %v159
      %v161 = vrot.slane %v156, %v160
      %v162 = vlaneseq
      %v163 = vshrl.u32 %v162, 7
      %v164 = vsub.s32 1, %v163
      %v165 = vrot.slane %v156, %v164
      %v166 = vlaneseq
      %v167 = vshrl.u32 %v166, 7
      %v168 = vsub.s32 2, %v167
      %v169 = vrot.slane %v156, %v168
      %v181 = vunpack.c.l.b16 %v116
      %v182 = vunpack.c.l.b16 %v117
      %v183 = vunpack.c.l.b16 %v118
      %v184 = vunpack.c.l.b16 %v119
      %v185 = vunpack.c.l.b16 %v120
      %v186 = vunpack.c.l.b16 %v121
      %v187 = vunpack.c.l.b16 %v122
      %v188 = vunpack.c.l.b16 %v123
      %v189 = vpack.c.b16 %v182, %v181
      %v190 = vpack.c.b16 %v184, %v183
      %v191 = vpack.c.b16 %v186, %v185
      %v192 = vpack.c.b16 %v188, %v187
      %v229 = vunpack.c.l.b16 %v124
      %v230 = vunpack.c.h.b16 %v124
      %v231 = vunpack.c.l.b16 %v125
      %v232 = vunpack.c.l.b16 %v126
      %v233 = vunpack.c.h.b16 %v126
      %v234 = vunpack.c.l.b16 %v127
      %v235 = vunpack.c.l.b16 %v128
      %v236 = vunpack.c.h.b16 %v128
      %v237 = vunpack.c.l.b16 %v129
      %v238 = vunpack.c.l.b16 %v130
      %v239 = vunpack.c.h.b16 %v130
      %v240 = vunpack.c.l.b16 %v131
      %v241 = vunpack.c.l.b16 %v132
      %v242 = vunpack.c.h.b16 %v132
      %v243 = vunpack.c.l.b16 %v133
      %v244 = vunpack.c.l.b16 %v134
      %v245 = vunpack.c.h.b16 %v134
      %v246 = vunpack.c.l.b16 %v135
      %v247 = vunpack.c.l.b16 %v136
      %v248 = vunpack.c.h.b16 %v136
      %v249 = vunpack.c.l.b16 %v137
      %v250 = vunpack.c.l.b16 %v138
      %v251 = vunpack.c.h.b16 %v138
      %v252 = vunpack.c.l.b16 %v139
      %v253 = vunpack.c.l.b16 %v140
      %v254 = vunpack.c.h.b16 %v140
      %v255 = vunpack.c.l.b16 %v141
      %v256 = vunpack.c.l.b16 %v142
      %v257 = vunpack.c.h.b16 %v142
      %v258 = vunpack.c.l.b16 %v143
      %v259 = vunpack.c.l.b16 %v144
      %v260 = vunpack.c.h.b16 %v144
      %v261 = vunpack.c.l.b16 %v145
      %v262 = vunpack.c.l.b16 %v146
      %v263 = vunpack.c.h.b16 %v146
      %v264 = vunpack.c.l.b16 %v147
      %v265 = vunpack.c.l.b16 %v148
      %v266 = vunpack.c.h.b16 %v148
      %v267 = vunpack.c.l.b16 %v149
      %v268 = vunpack.c.l.b16 %v150
      %v269 = vunpack.c.h.b16 %v150
      %v270 = vunpack.c.l.b16 %v151
      %v271 = vunpack.c.l.b16 %v152
      %v272 = vunpack.c.h.b16 %v152
      %v273 = vunpack.c.l.b16 %v153
      %v274 = vunpack.c.l.b16 %v154
      %v275 = vunpack.c.h.b16 %v154
      %v276 = vunpack.c.l.b16 %v155
      %v277 = vpack.c.b16 %v232, %v229
      %v278 = vpack.c.b16 %v233, %v230
      %v279 = vpack.c.b16 %v234, %v231
      %v280 = vpack.c.b16 %v238, %v235
      %v281 = vpack.c.b16 %v239, %v236
      %v282 = vpack.c.b16 %v240, %v237
      %v283 = vpack.c.b16 %v244, %v241
      %v284 = vpack.c.b16 %v245, %v242
      %v285 = vpack.c.b16 %v246, %v243
      %v286 = vpack.c.b16 %v250, %v247
      %v287 = vpack.c.b16 %v251, %v248
      %v288 = vpack.c.b16 %v252, %v249
      %v289 = vpack.c.b16 %v256, %v253
      %v290 = vpack.c.b16 %v257, %v254
      %v291 = vpack.c.b16 %v258, %v255
      %v292 = vpack.c.b16 %v262, %v259
      %v293 = vpack.c.b16 %v263, %v260
      %v294 = vpack.c.b16 %v264, %v261
      %v295 = vpack.c.b16 %v268, %v265
      %v296 = vpack.c.b16 %v269, %v266
      %v297 = vpack.c.b16 %v270, %v267
      %v298 = vpack.c.b16 %v274, %v271
      %v299 = vpack.c.b16 %v275, %v272
      %v300 = vpack.c.b16 %v276, %v273
      %325 = vmatprep.subr.bf16.mxu0 %v299
      %326 = vmatpush1.bf16.msra.mxu0 %v298
      %327 = vmatprep.subr.bf16.mxu0 %v296
      %328 = vmatpush1.bf16.msra.mxu0 %v295
      %329 = vmatprep.subr.bf16.mxu0 %v293
      %330 = vmatpush1.bf16.msra.mxu0 %v292
      %331 = vmatprep.subr.bf16.mxu0 %v290
      %332 = vmatpush1.bf16.msra.mxu0 %v289
      %333 = vmatprep.subr.bf16.mxu0 %v287
      %334 = vmatpush1.bf16.msra.mxu0 %v286
      %335 = vmatprep.subr.bf16.mxu0 %v284
      %336 = vmatpush1.bf16.msra.mxu0 %v283
      %337 = vmatprep.subr.bf16.mxu0 %v281
      %338 = vmatpush1.bf16.msra.mxu0 %v280
      %339 = vmatprep.subr.bf16.mxu0 %v278
      %340 = vmatpush1.bf16.msra.mxu0 %v277
      %341 = vmatprep.subr.bf16.mxu0 0
      %342 = vmatpush2.bf16.msra.mxu0 0
      %343 = vmatprep.subr.bf16.mxu0 0
      %344 = vmatpush2.bf16.msra.mxu0 0
      %345 = vmatprep.subr.bf16.mxu0 0
      %346 = vmatpush2.bf16.msra.mxu0 0
      %347 = vmatprep.subr.bf16.mxu0 0
      %348 = vmatpush2.bf16.msra.mxu0 0
      %349 = vmatprep.subr.bf16.mxu0 0
      %350 = vmatpush2.bf16.msra.mxu0 0
      %351 = vmatprep.subr.bf16.mxu0 0
      %352 = vmatpush2.bf16.msra.mxu0 0
      %353 = vmatprep.subr.bf16.mxu0 0
      %354 = vmatpush2.bf16.msra.mxu0 0
      %355 = vmatprep.subr.bf16.mxu0 0
      %356 = vmatpush2.bf16.msra.mxu0 0
      %357 = vmatprep.mubr.bf16.mxu0 0
      %358 = vmatmul.mubr.bf16.gmra.mxu0 %v189
      %v359 = vpop.f32.mrf.mxu0
      %v360 = vadd.f32 %v161, %v359
      %v361 = vpop.f32.mrf.mxu0
      %v362 = vadd.f32 %v165, %v361
      %v363 = vpop.f32.mrf.mxu0
      %v364 = vadd.f32 %v161, %v363
      %v365 = vpop.f32.mrf.mxu0
      %v366 = vadd.f32 %v165, %v365
      %367 = vmatprep.mubr.bf16.mxu0 0
      %368 = vmatmul.mubr.bf16.gmra.mxu0 %v190
      %v369 = vpop.f32.mrf.mxu0
      %v370 = vadd.f32 %v161, %v369
      %v371 = vpop.f32.mrf.mxu0
      %v372 = vadd.f32 %v165, %v371
      %v373 = vpop.f32.mrf.mxu0
      %v374 = vadd.f32 %v161, %v373
      %v375 = vpop.f32.mrf.mxu0
      %v376 = vadd.f32 %v165, %v375
      %377 = vmatprep.mubr.bf16.mxu0 0
      %378 = vmatmul.mubr.bf16.gmra.mxu0 %v191
      %v379 = vpop.f32.mrf.mxu0
      %v380 = vadd.f32 %v161, %v379
      %v381 = vpop.f32.mrf.mxu0
      %v382 = vadd.f32 %v165, %v381
      %v383 = vpop.f32.mrf.mxu0
      %v384 = vadd.f32 %v161, %v383
      %v385 = vpop.f32.mrf.mxu0
      %v386 = vadd.f32 %v165, %v385
      %387 = vmatprep.mubr.bf16.mxu0 0
      %388 = vmatmul.mubr.bf16.gmra.mxu0 %v192
      %v389 = vpop.f32.mrf.mxu0
      %v390 = vadd.f32 %v161, %v389
      %v391 = vpop.f32.mrf.mxu0
      %v392 = vadd.f32 %v165, %v391
      %v393 = vpop.f32.mrf.mxu0
      %v394 = vadd.f32 %v161, %v393
      %v395 = vpop.f32.mrf.mxu0
      %v396 = vadd.f32 %v165, %v395
      %397 = vdwg.mxu0
      %398 = vmatprep.subr.bf16.mxu0 0
      %399 = vmatpush1.bf16.msra.mxu0 %v300
      %400 = vmatprep.subr.bf16.mxu0 0
      %401 = vmatpush1.bf16.msra.mxu0 %v297
      %402 = vmatprep.subr.bf16.mxu0 0
      %403 = vmatpush1.bf16.msra.mxu0 %v294
      %404 = vmatprep.subr.bf16.mxu0 0
      %405 = vmatpush1.bf16.msra.mxu0 %v291
      %406 = vmatprep.subr.bf16.mxu0 0
      %407 = vmatpush1.bf16.msra.mxu0 %v288
      %408 = vmatprep.subr.bf16.mxu0 0
      %409 = vmatpush1.bf16.msra.mxu0 %v285
      %410 = vmatprep.subr.bf16.mxu0 0
      %411 = vmatpush1.bf16.msra.mxu0 %v282
      %412 = vmatprep.subr.bf16.mxu0 0
      %413 = vmatpush1.bf16.msra.mxu0 %v279
      %414 = vmatprep.subr.bf16.mxu0 0
      %415 = vmatpush2.bf16.msra.mxu0 0
      %416 = vmatprep.subr.bf16.mxu0 0
      %417 = vmatpush2.bf16.msra.mxu0 0
      %418 = vmatprep.subr.bf16.mxu0 0
      %419 = vmatpush2.bf16.msra.mxu0 0
      %420 = vmatprep.subr.bf16.mxu0 0
      %421 = vmatpush2.bf16.msra.mxu0 0
      %422 = vmatprep.subr.bf16.mxu0 0
      %423 = vmatpush2.bf16.msra.mxu0 0
      %424 = vmatprep.subr.bf16.mxu0 0
      %425 = vmatpush2.bf16.msra.mxu0 0
      %426 = vmatprep.subr.bf16.mxu0 0
      %427 = vmatpush2.bf16.msra.mxu0 0
      %428 = vmatprep.subr.bf16.mxu0 0
      %429 = vmatpush2.bf16.msra.mxu0 0
      %430 = vmatprep.mubr.bf16.mxu0 0
      %431 = vmatmul.mubr.bf16.gmra.mxu0 %v189
      %v432 = vpop.f32.mrf.mxu0
      %v433 = vadd.f32 %v169, %v432
      %v434 = vpop.f32.mrf.mxu0
      %v435 = vpop.f32.mrf.mxu0
      %v436 = vadd.f32 %v169, %v435
      %v437 = vpop.f32.mrf.mxu0
      %438 = vmatprep.mubr.bf16.mxu0 0
      %439 = vmatmul.mubr.bf16.gmra.mxu0 %v190
      %v440 = vpop.f32.mrf.mxu0
      %v441 = vadd.f32 %v169, %v440
      %v442 = vpop.f32.mrf.mxu0
      %v443 = vpop.f32.mrf.mxu0
      %v444 = vadd.f32 %v169, %v443
      %v445 = vpop.f32.mrf.mxu0
      %446 = vmatprep.mubr.bf16.mxu0 0
      %447 = vmatmul.mubr.bf16.gmra.mxu0 %v191
      %v448 = vpop.f32.mrf.mxu0
      %v449 = vadd.f32 %v169, %v448
      %v450 = vpop.f32.mrf.mxu0
      %v451 = vpop.f32.mrf.mxu0
      %v452 = vadd.f32 %v169, %v451
      %v453 = vpop.f32.mrf.mxu0
      %454 = vmatprep.mubr.bf16.mxu0 0
      %455 = vmatmul.mubr.bf16.gmra.mxu0 %v192
      %v456 = vpop.f32.mrf.mxu0
      %v457 = vadd.f32 %v169, %v456
      %v458 = vpop.f32.mrf.mxu0
      %v459 = vpop.f32.mrf.mxu0
      %v460 = vadd.f32 %v169, %v459
      %v461 = vpop.f32.mrf.mxu0
      %462 = vdwg.mxu0
      %463 = vst [vmem:[#allocation2] sm:$0xff] %v360
      %464 = vst [vmem:[#allocation2 + $0x8] sm:$0xff] %v362
      %465 = vst [vmem:[#allocation2 + $0x10] sm:$0xff] %v433
      %466 = vst [vmem:[#allocation2 + $0x18] sm:$0xff] %v364
      %467 = vst [vmem:[#allocation2 + $0x20] sm:$0xff] %v366
      %468 = vst [vmem:[#allocation2 + $0x28] sm:$0xff] %v436
      %469 = vst [vmem:[#allocation2 + $0x30] sm:$0xff] %v370
      %470 = vst [vmem:[#allocation2 + $0x38] sm:$0xff] %v372
      %471 = vst [vmem:[#allocation2 + $0x40] sm:$0xff] %v441
      %472 = vst [vmem:[#allocation2 + $0x48] sm:$0xff] %v374
      %473 = vst [vmem:[#allocation2 + $0x50] sm:$0xff] %v376
      %474 = vst [vmem:[#allocation2 + $0x58] sm:$0xff] %v444
      %475 = vst [vmem:[#allocation2 + $0x60] sm:$0xff] %v380
      %476 = vst [vmem:[#allocation2 + $0x68] sm:$0xff] %v382
      %477 = vst [vmem:[#allocation2 + $0x70] sm:$0xff] %v449
      %478 = vst [vmem:[#allocation2 + $0x78] sm:$0xff] %v384
      %479 = vst [vmem:[#allocation2 + $0x80] sm:$0xff] %v386
      %480 = vst [vmem:[#allocation2 + $0x88] sm:$0xff] %v452
      %481 = vst [vmem:[#allocation2 + $0x90] sm:$0xff] %v390
      %482 = vst [vmem:[#allocation2 + $0x98] sm:$0xff] %v392
      %483 = vst [vmem:[#allocation2 + $0xa0] sm:$0xff] %v457
      %484 = vst [vmem:[#allocation2 + $0xa8] sm:$0xff] %v394
      %485 = vst [vmem:[#allocation2 + $0xb0] sm:$0xff] %v396
      %486 = vst [vmem:[#allocation2 + $0xb8] sm:$0xff] %v460
      %v487 = vld [vmem:[%s1] sm:$0xff]
      %v488 = vld [vmem:[%s4] sm:$0xff]
      %v489 = vld [vmem:[%s4 + $0x8] sm:$0xff]
      %v490 = vld [vmem:[%s4 + $0x10] sm:$0xff]
      %v491 = vld [vmem:[%s4 + $0x18] sm:$0xff]
      %v492 = vld [vmem:[%s4 + $0x20] sm:$0xff]
      %v493 = vld [vmem:[%s4 + $0x28] sm:$0xff]
      %v494 = vld [vmem:[%s4 + $0x30] sm:$0xff]
      %v495 = vld [vmem:[%s4 + $0x38] sm:$0xff]
      %v496 = vld [vmem:[%s4 + $0x40] sm:$0xff]
      %v497 = vld [vmem:[%s4 + $0x48] sm:$0xff]
      %v498 = vld [vmem:[%s4 + $0x50] sm:$0xff]
      %v499 = vld [vmem:[%s4 + $0x58] sm:$0xff]
      %v500 = vld [vmem:[%s4 + $0x60] sm:$0xff]
      %v501 = vld [vmem:[%s4 + $0x68] sm:$0xff]
      %v502 = vld [vmem:[%s4 + $0x70] sm:$0xff]
      %v503 = vld [vmem:[%s4 + $0x78] sm:$0xff]
      %v504 = vld [vmem:[#allocation11] sm:$0x1]
      %v506 = vlaneseq
      %v507 = vshrl.u32 %v506, 7
      %v508 = vsub.s32 0, %v507
      %v509 = vrot.slane %v504, %v508
      %511 = vmatprep.subr.mxu0 0.0
      %512 = vmatpush1.msra.mxu0 %v503
      %513 = vmatprep.subr.mxu0 0.0
      %514 = vmatpush1.msra.mxu0 %v502
      %515 = vmatprep.subr.mxu0 0.0
      %516 = vmatpush1.msra.mxu0 %v501
      %517 = vmatprep.subr.mxu0 0.0
      %518 = vmatpush1.msra.mxu0 %v500
      %519 = vmatprep.subr.mxu0 0.0
      %520 = vmatpush1.msra.mxu0 %v499
      %521 = vmatprep.subr.mxu0 0.0
      %522 = vmatpush1.msra.mxu0 %v498
      %523 = vmatprep.subr.mxu0 0.0
      %524 = vmatpush1.msra.mxu0 %v497
      %525 = vmatprep.subr.mxu0 0.0
      %526 = vmatpush1.msra.mxu0 %v496
      %527 = vmatprep.subr.mxu0 0.0
      %528 = vmatpush1.msra.mxu0 %v495
      %529 = vmatprep.subr.mxu0 0.0
      %530 = vmatpush1.msra.mxu0 %v494
      %531 = vmatprep.subr.mxu0 0.0
      %532 = vmatpush1.msra.mxu0 %v493
      %533 = vmatprep.subr.mxu0 0.0
      %534 = vmatpush1.msra.mxu0 %v492
      %535 = vmatprep.subr.mxu0 0.0
      %536 = vmatpush1.msra.mxu0 %v491
      %537 = vmatprep.subr.mxu0 0.0
      %538 = vmatpush1.msra.mxu0 %v490
      %539 = vmatprep.subr.mxu0 0.0
      %540 = vmatpush1.msra.mxu0 %v489
      %541 = vmatprep.subr.mxu0 0.0
      %542 = vmatpush1.msra.mxu0 %v488
      %543 = vmatprep.subr.mxu0 0.0
      %544 = vmatpush2.msra.mxu0 0.0
      %545 = vmatprep.subr.mxu0 0.0
      %546 = vmatpush2.msra.mxu0 0.0
      %547 = vmatprep.subr.mxu0 0.0
      %548 = vmatpush2.msra.mxu0 0.0
      %549 = vmatprep.subr.mxu0 0.0
      %550 = vmatpush2.msra.mxu0 0.0
      %551 = vmatprep.subr.mxu0 0.0
      %552 = vmatpush2.msra.mxu0 0.0
      %553 = vmatprep.subr.mxu0 0.0
      %554 = vmatpush2.msra.mxu0 0.0
      %555 = vmatprep.subr.mxu0 0.0
      %556 = vmatpush2.msra.mxu0 0.0
      %557 = vmatprep.subr.mxu0 0.0
      %558 = vmatpush2.msra.mxu0 0.0
      %559 = vmatprep.subr.mxu0 0.0
      %560 = vmatpush2.msra.mxu0 0.0
      %561 = vmatprep.subr.mxu0 0.0
      %562 = vmatpush2.msra.mxu0 0.0
      %563 = vmatprep.subr.mxu0 0.0
      %564 = vmatpush2.msra.mxu0 0.0
      %565 = vmatprep.subr.mxu0 0.0
      %566 = vmatpush2.msra.mxu0 0.0
      %567 = vmatprep.subr.mxu0 0.0
      %568 = vmatpush2.msra.mxu0 0.0
      %569 = vmatprep.subr.mxu0 0.0
      %570 = vmatpush2.msra.mxu0 0.0
      %571 = vmatprep.subr.mxu0 0.0
      %572 = vmatpush2.msra.mxu0 0.0
      %573 = vmatprep.subr.mxu0 0.0
      %574 = vmatpush2.msra.mxu0 0.0
      %575 = vmatprep.mubr.f32.mxu0 0.0
      %576 = vmatmul.mubr.f32.gmra.mxu0 %v487
      %v577 = vpop.f32.mrf.mxu0
      %v578 = vadd.f32 %v509, %v577
      %v579 = vpop.f32.mrf.mxu0
      %580 = vdwg.mxu0
      %581 = vst [vmem:[#allocation17] sm:$0xff] %v578
      %v582 = vld [vmem:[#allocation14] sm:$0xff]
      %v583 = vld [vmem:[#allocation14 + $0x8] sm:$0xff]
      %v584 = vld [vmem:[#allocation14 + $0x10] sm:$0xff]
      %v585 = vld [vmem:[#allocation14 + $0x18] sm:$0xff]
      %v586 = vld [vmem:[#allocation14 + $0x20] sm:$0xff]
      %v587 = vld [vmem:[#allocation14 + $0x28] sm:$0xff]
      %v588 = vld [vmem:[#allocation14 + $0x30] sm:$0xff]
      %v589 = vld [vmem:[#allocation14 + $0x38] sm:$0xff]
      %v590 = vld [vmem:[#allocation14 + $0x40] sm:$0xff]
      %v591 = vld [vmem:[#allocation14 + $0x48] sm:$0xff]
      %v592 = vld [vmem:[#allocation14 + $0x50] sm:$0xff]
      %v593 = vld [vmem:[#allocation14 + $0x58] sm:$0xff]
      %v594 = vld [vmem:[#allocation14 + $0x60] sm:$0xff]
      %v595 = vld [vmem:[#allocation14 + $0x68] sm:$0xff]
      %v596 = vld [vmem:[#allocation14 + $0x70] sm:$0xff]
      %v597 = vld [vmem:[#allocation14 + $0x78] sm:$0xff]
      %v598 = vld [vmem:[#allocation14 + $0x80] sm:$0xff]
      %v599 = vld [vmem:[#allocation14 + $0x88] sm:$0xff]
      %v600 = vld [vmem:[#allocation14 + $0x90] sm:$0xff]
      %v601 = vld [vmem:[#allocation14 + $0x98] sm:$0xff]
      %v602 = vld [vmem:[#allocation14 + $0xa0] sm:$0xff]
      %v603 = vld [vmem:[#allocation14 + $0xa8] sm:$0xff]
      %v604 = vld [vmem:[#allocation14 + $0xb0] sm:$0xff]
      %v605 = vld [vmem:[#allocation14 + $0xb8] sm:$0xff]
      %v606 = vld [vmem:[#allocation14 + $0xc0] sm:$0xff]
      %v607 = vld [vmem:[#allocation14 + $0xc8] sm:$0xff]
      %v608 = vld [vmem:[#allocation14 + $0xd0] sm:$0xff]
      %v609 = vld [vmem:[#allocation14 + $0xd8] sm:$0xff]
      %v610 = vld [vmem:[#allocation14 + $0xe0] sm:$0xff]
      %v611 = vld [vmem:[#allocation14 + $0xe8] sm:$0xff]
      %v612 = vld [vmem:[#allocation14 + $0xf0] sm:$0xff]
      %v613 = vld [vmem:[#allocation14 + $0xf8] sm:$0xff]
      %v614 = vld [vmem:[#allocation14 + $0x100] sm:$0xff]
      %v615 = vld [vmem:[#allocation14 + $0x108] sm:$0xff]
      %v616 = vld [vmem:[#allocation14 + $0x110] sm:$0xff]
      %v617 = vld [vmem:[#allocation14 + $0x118] sm:$0xff]
      %v618 = vld [vmem:[#allocation14 + $0x120] sm:$0xff]
      %v619 = vld [vmem:[#allocation14 + $0x128] sm:$0xff]
      %v620 = vld [vmem:[#allocation14 + $0x130] sm:$0xff]
      %v621 = vld [vmem:[#allocation14 + $0x138] sm:$0xff]
      %v622 = vld [vmem:[#allocation14 + $0x140] sm:$0xff]
      %v623 = vld [vmem:[#allocation14 + $0x148] sm:$0xff]
      %v624 = vld [vmem:[#allocation14 + $0x150] sm:$0xff]
      %v625 = vld [vmem:[#allocation14 + $0x158] sm:$0xff]
      %v626 = vld [vmem:[#allocation14 + $0x160] sm:$0xff]
      %v627 = vld [vmem:[#allocation14 + $0x168] sm:$0xff]
      %v628 = vld [vmem:[#allocation14 + $0x170] sm:$0xff]
      %v629 = vld [vmem:[#allocation14 + $0x178] sm:$0xff]
      %v630 = vld [vmem:[%s9] sm:$0x7]
      %s631 = smul.u32 0, 3
      %s632 = smul.addr %s631, 8
      %s633 = scalar_lea.vmem [#allocation2], %s632
      %v634 = vld [vmem:[%s633] sm:$0xff]
      %v635 = vld [vmem:[%s633 + $0x8] sm:$0xff]
      %v636 = vld [vmem:[%s633 + $0x10] sm:$0xff]
      %v638 = vlaneseq
      %v639 = vshrl.u32 %v638, 7
      %v640 = vsub.s32 0, %v639
      %v641 = vrot.slane %v630, %v640
      %v642 = vlaneseq
      %v643 = vshrl.u32 %v642, 7
      %v644 = vsub.s32 1, %v643
      %v645 = vrot.slane %v630, %v644
      %v646 = vlaneseq
      %v647 = vshrl.u32 %v646, 7
      %v648 = vsub.s32 2, %v647
      %v649 = vrot.slane %v630, %v648
      %653 = vmatprep.subr.mxu0 %v628
      %654 = vmatpush1.msra.mxu0 %v627
      %655 = vmatprep.subr.mxu0 %v625
      %656 = vmatpush1.msra.mxu0 %v624
      %657 = vmatprep.subr.mxu0 %v622
      %658 = vmatpush1.msra.mxu0 %v621
      %659 = vmatprep.subr.mxu0 %v619
      %660 = vmatpush1.msra.mxu0 %v618
      %661 = vmatprep.subr.mxu0 %v616
      %662 = vmatpush1.msra.mxu0 %v615
      %663 = vmatprep.subr.mxu0 %v613
      %664 = vmatpush1.msra.mxu0 %v612
      %665 = vmatprep.subr.mxu0 %v610
      %666 = vmatpush1.msra.mxu0 %v609
      %667 = vmatprep.subr.mxu0 %v607
      %668 = vmatpush1.msra.mxu0 %v606
      %669 = vmatprep.subr.mxu0 %v604
      %670 = vmatpush1.msra.mxu0 %v603
      %671 = vmatprep.subr.mxu0 %v601
      %672 = vmatpush1.msra.mxu0 %v600
      %673 = vmatprep.subr.mxu0 %v598
      %674 = vmatpush1.msra.mxu0 %v597
      %675 = vmatprep.subr.mxu0 %v595
      %676 = vmatpush1.msra.mxu0 %v594
      %677 = vmatprep.subr.mxu0 %v592
      %678 = vmatpush1.msra.mxu0 %v591
      %679 = vmatprep.subr.mxu0 %v589
      %680 = vmatpush1.msra.mxu0 %v588
      %681 = vmatprep.subr.mxu0 %v586
      %682 = vmatpush1.msra.mxu0 %v585
      %683 = vmatprep.subr.mxu0 %v583
      %684 = vmatpush1.msra.mxu0 %v582
      %685 = vmatprep.subr.mxu0 0.0
      %686 = vmatpush2.msra.mxu0 0.0
      %687 = vmatprep.subr.mxu0 0.0
      %688 = vmatpush2.msra.mxu0 0.0
      %689 = vmatprep.subr.mxu0 0.0
      %690 = vmatpush2.msra.mxu0 0.0
      %691 = vmatprep.subr.mxu0 0.0
      %692 = vmatpush2.msra.mxu0 0.0
      %693 = vmatprep.subr.mxu0 0.0
      %694 = vmatpush2.msra.mxu0 0.0
      %695 = vmatprep.subr.mxu0 0.0
      %696 = vmatpush2.msra.mxu0 0.0
      %697 = vmatprep.subr.mxu0 0.0
      %698 = vmatpush2.msra.mxu0 0.0
      %699 = vmatprep.subr.mxu0 0.0
      %700 = vmatpush2.msra.mxu0 0.0
      %701 = vmatprep.subr.mxu0 0.0
      %702 = vmatpush2.msra.mxu0 0.0
      %703 = vmatprep.subr.mxu0 0.0
      %704 = vmatpush2.msra.mxu0 0.0
      %705 = vmatprep.subr.mxu0 0.0
      %706 = vmatpush2.msra.mxu0 0.0
      %707 = vmatprep.subr.mxu0 0.0
      %708 = vmatpush2.msra.mxu0 0.0
      %709 = vmatprep.subr.mxu0 0.0
      %710 = vmatpush2.msra.mxu0 0.0
      %711 = vmatprep.subr.mxu0 0.0
      %712 = vmatpush2.msra.mxu0 0.0
      %713 = vmatprep.subr.mxu0 0.0
      %714 = vmatpush2.msra.mxu0 0.0
      %715 = vmatprep.subr.mxu0 0.0
      %716 = vmatpush2.msra.mxu0 0.0
      %717 = vmatprep.mubr.f32.mxu0 0.0
      %718 = vmatmul.mubr.f32.gmra.mxu0 %v578
      %v719 = vpop.f32.mrf.mxu0
      %v720 = vadd.f32 %v641, %v719
      %v721 = vpop.f32.mrf.mxu0
      %v722 = vadd.f32 %v645, %v721
      %723 = vdwg.mxu0
      %724 = vmatprep.subr.mxu0 0.0
      %725 = vmatpush1.msra.mxu0 %v629
      %726 = vmatprep.subr.mxu0 0.0
      %727 = vmatpush1.msra.mxu0 %v626
      %728 = vmatprep.subr.mxu0 0.0
      %729 = vmatpush1.msra.mxu0 %v623
      %730 = vmatprep.subr.mxu0 0.0
      %731 = vmatpush1.msra.mxu0 %v620
      %732 = vmatprep.subr.mxu0 0.0
      %733 = vmatpush1.msra.mxu0 %v617
      %734 = vmatprep.subr.mxu0 0.0
      %735 = vmatpush1.msra.mxu0 %v614
      %736 = vmatprep.subr.mxu0 0.0
      %737 = vmatpush1.msra.mxu0 %v611
      %738 = vmatprep.subr.mxu0 0.0
      %739 = vmatpush1.msra.mxu0 %v608
      %740 = vmatprep.subr.mxu0 0.0
      %741 = vmatpush1.msra.mxu0 %v605
      %742 = vmatprep.subr.mxu0 0.0
      %743 = vmatpush1.msra.mxu0 %v602
      %744 = vmatprep.subr.mxu0 0.0
      %745 = vmatpush1.msra.mxu0 %v599
      %746 = vmatprep.subr.mxu0 0.0
      %747 = vmatpush1.msra.mxu0 %v596
      %748 = vmatprep.subr.mxu0 0.0
      %749 = vmatpush1.msra.mxu0 %v593
      %750 = vmatprep.subr.mxu0 0.0
      %751 = vmatpush1.msra.mxu0 %v590
      %752 = vmatprep.subr.mxu0 0.0
      %753 = vmatpush1.msra.mxu0 %v587
      %754 = vmatprep.subr.mxu0 0.0
      %755 = vmatpush1.msra.mxu0 %v584
      %756 = vmatprep.subr.mxu0 0.0
      %757 = vmatpush2.msra.mxu0 0.0
      %758 = vmatprep.subr.mxu0 0.0
      %759 = vmatpush2.msra.mxu0 0.0
      %760 = vmatprep.subr.mxu0 0.0
      %761 = vmatpush2.msra.mxu0 0.0
      %762 = vmatprep.subr.mxu0 0.0
      %763 = vmatpush2.msra.mxu0 0.0
      %764 = vmatprep.subr.mxu0 0.0
      %765 = vmatpush2.msra.mxu0 0.0
      %766 = vmatprep.subr.mxu0 0.0
      %767 = vmatpush2.msra.mxu0 0.0
      %768 = vmatprep.subr.mxu0 0.0
      %769 = vmatpush2.msra.mxu0 0.0
      %770 = vmatprep.subr.mxu0 0.0
      %771 = vmatpush2.msra.mxu0 0.0
      %772 = vmatprep.subr.mxu0 0.0
      %773 = vmatpush2.msra.mxu0 0.0
      %774 = vmatprep.subr.mxu0 0.0
      %775 = vmatpush2.msra.mxu0 0.0
      %776 = vmatprep.subr.mxu0 0.0
      %777 = vmatpush2.msra.mxu0 0.0
      %778 = vmatprep.subr.mxu0 0.0
      %779 = vmatpush2.msra.mxu0 0.0
      %780 = vmatprep.subr.mxu0 0.0
      %781 = vmatpush2.msra.mxu0 0.0
      %782 = vmatprep.subr.mxu0 0.0
      %783 = vmatpush2.msra.mxu0 0.0
      %784 = vmatprep.subr.mxu0 0.0
      %785 = vmatpush2.msra.mxu0 0.0
      %786 = vmatprep.subr.mxu0 0.0
      %787 = vmatpush2.msra.mxu0 0.0
      %788 = vmatprep.mubr.f32.mxu0 0.0
      %789 = vmatmul.mubr.f32.gmra.mxu0 %v578
      %v790 = vpop.f32.mrf.mxu0
      %v791 = vadd.f32 %v649, %v790
      %v792 = vpop.f32.mrf.mxu0
      %793 = vdwg.mxu0
      %v794 = vadd.f32 %v634, %v720
      %v795 = vxor.u32 %v794, 2147483648
      %v796 = vmul.f32 %v795, 1.442695
      %v797 = vpow.pop %v796
      %v798 = vadd.f32 %v797, 1.0
      %v799 = vrcp.pop %v798
      %v800 = vmul.f32 1.0, %v799
      %v801 = vadd.f32 %v635, %v722
      %v802 = vxor.u32 %v801, 2147483648
      %v803 = vmul.f32 %v802, 1.442695
      %v804 = vpow.pop %v803
      %v805 = vadd.f32 %v804, 1.0
      %v806 = vrcp.pop %v805
      %v807 = vmul.f32 1.0, %v806
      %v808 = vmul.f32 %v800, %v791
      %v809 = vadd.f32 %v636, %v808
      %v810 = vtanh.pop %v809
      %v811 = vsub.f32 1.0, %v807
      %v812 = vmul.f32 %v811, %v810
      %v813 = vmul.f32 %v807, %v578
      %v814 = vadd.f32 %v812, %v813
      %v815 = vld [vmem:[%s2] sm:$0xff]
      %817 = vset.pattern.permute.xlu0 0
      %818 = vperm.xlu0 %817, %v815
      %v819 = vpop.permute.xlu0 %818
      %v821 = vmul.f32 %v814, %v819
      %822 = vst [vmem:[#allocation3] sm:$0xff] %v821
      %s823 = smul.u32 1, 3
      %s824 = smul.addr %s823, 8
      %s825 = scalar_lea.vmem [#allocation2], %s824
      %v826 = vld [vmem:[%s825] sm:$0xff]
      %v827 = vld [vmem:[%s825 + $0x8] sm:$0xff]
      %v828 = vld [vmem:[%s825 + $0x10] sm:$0xff]
      %829 = vmatprep.subr.mxu0 %v628
      %830 = vmatpush1.msra.mxu0 %v627
      %831 = vmatprep.subr.mxu0 %v625
      %832 = vmatpush1.msra.mxu0 %v624
      %833 = vmatprep.subr.mxu0 %v622
      %834 = vmatpush1.msra.mxu0 %v621
      %835 = vmatprep.subr.mxu0 %v619
      %836 = vmatpush1.msra.mxu0 %v618
      %837 = vmatprep.subr.mxu0 %v616
      %838 = vmatpush1.msra.mxu0 %v615
      %839 = vmatprep.subr.mxu0 %v613
      %840 = vmatpush1.msra.mxu0 %v612
      %841 = vmatprep.subr.mxu0 %v610
      %842 = vmatpush1.msra.mxu0 %v609
      %843 = vmatprep.subr.mxu0 %v607
      %844 = vmatpush1.msra.mxu0 %v606
      %845 = vmatprep.subr.mxu0 %v604
      %846 = vmatpush1.msra.mxu0 %v603
      %847 = vmatprep.subr.mxu0 %v601
      %848 = vmatpush1.msra.mxu0 %v600
      %849 = vmatprep.subr.mxu0 %v598
      %850 = vmatpush1.msra.mxu0 %v597
      %851 = vmatprep.subr.mxu0 %v595
      %852 = vmatpush1.msra.mxu0 %v594
      %853 = vmatprep.subr.mxu0 %v592
      %854 = vmatpush1.msra.mxu0 %v591
      %855 = vmatprep.subr.mxu0 %v589
      %856 = vmatpush1.msra.mxu0 %v588
      %857 = vmatprep.subr.mxu0 %v586
      %858 = vmatpush1.msra.mxu0 %v585
      %859 = vmatprep.subr.mxu0 %v583
      %860 = vmatpush1.msra.mxu0 %v582
      %861 = vmatprep.subr.mxu0 0.0
      %862 = vmatpush2.msra.mxu0 0.0
      %863 = vmatprep.subr.mxu0 0.0
      %864 = vmatpush2.msra.mxu0 0.0
      %865 = vmatprep.subr.mxu0 0.0
      %866 = vmatpush2.msra.mxu0 0.0
      %867 = vmatprep.subr.mxu0 0.0
      %868 = vmatpush2.msra.mxu0 0.0
      %869 = vmatprep.subr.mxu0 0.0
      %870 = vmatpush2.msra.mxu0 0.0
      %871 = vmatprep.subr.mxu0 0.0
      %872 = vmatpush2.msra.mxu0 0.0
      %873 = vmatprep.subr.mxu0 0.0
      %874 = vmatpush2.msra.mxu0 0.0
      %875 = vmatprep.subr.mxu0 0.0
      %876 = vmatpush2.msra.mxu0 0.0
      %877 = vmatprep.subr.mxu0 0.0
      %878 = vmatpush2.msra.mxu0 0.0
      %879 = vmatprep.subr.mxu0 0.0
      %880 = vmatpush2.msra.mxu0 0.0
      %881 = vmatprep.subr.mxu0 0.0
      %882 = vmatpush2.msra.mxu0 0.0
      %883 = vmatprep.subr.mxu0 0.0
      %884 = vmatpush2.msra.mxu0 0.0
      %885 = vmatprep.subr.mxu0 0.0
      %886 = vmatpush2.msra.mxu0 0.0
      %887 = vmatprep.subr.mxu0 0.0
      %888 = vmatpush2.msra.mxu0 0.0
      %889 = vmatprep.subr.mxu0 0.0
      %890 = vmatpush2.msra.mxu0 0.0
      %891 = vmatprep.subr.mxu0 0.0
      %892 = vmatpush2.msra.mxu0 0.0
      %893 = vmatprep.mubr.f32.mxu0 0.0
      %894 = vmatmul.mubr.f32.gmra.mxu0 %v814
      %v895 = vpop.f32.mrf.mxu0
      %v896 = vadd.f32 %v641, %v895
      %v897 = vpop.f32.mrf.mxu0
      %v898 = vadd.f32 %v645, %v897
      %899 = vdwg.mxu0
      %900 = vmatprep.subr.mxu0 0.0
      %901 = vmatpush1.msra.mxu0 %v629
      %902 = vmatprep.subr.mxu0 0.0
      %903 = vmatpush1.msra.mxu0 %v626
      %904 = vmatprep.subr.mxu0 0.0
      %905 = vmatpush1.msra.mxu0 %v623
      %906 = vmatprep.subr.mxu0 0.0
      %907 = vmatpush1.msra.mxu0 %v620
      %908 = vmatprep.subr.mxu0 0.0
      %909 = vmatpush1.msra.mxu0 %v617
      %910 = vmatprep.subr.mxu0 0.0
      %911 = vmatpush1.msra.mxu0 %v614
      %912 = vmatprep.subr.mxu0 0.0
      %913 = vmatpush1.msra.mxu0 %v611
      %914 = vmatprep.subr.mxu0 0.0
      %915 = vmatpush1.msra.mxu0 %v608
      %916 = vmatprep.subr.mxu0 0.0
      %917 = vmatpush1.msra.mxu0 %v605
      %918 = vmatprep.subr.mxu0 0.0
      %919 = vmatpush1.msra.mxu0 %v602
      %920 = vmatprep.subr.mxu0 0.0
      %921 = vmatpush1.msra.mxu0 %v599
      %922 = vmatprep.subr.mxu0 0.0
      %923 = vmatpush1.msra.mxu0 %v596
      %924 = vmatprep.subr.mxu0 0.0
      %925 = vmatpush1.msra.mxu0 %v593
      %926 = vmatprep.subr.mxu0 0.0
      %927 = vmatpush1.msra.mxu0 %v590
      %928 = vmatprep.subr.mxu0 0.0
      %929 = vmatpush1.msra.mxu0 %v587
      %930 = vmatprep.subr.mxu0 0.0
      %931 = vmatpush1.msra.mxu0 %v584
      %932 = vmatprep.subr.mxu0 0.0
      %933 = vmatpush2.msra.mxu0 0.0
      %934 = vmatprep.subr.mxu0 0.0
      %935 = vmatpush2.msra.mxu0 0.0
      %936 = vmatprep.subr.mxu0 0.0
      %937 = vmatpush2.msra.mxu0 0.0
      %938 = vmatprep.subr.mxu0 0.0
      %939 = vmatpush2.msra.mxu0 0.0
      %940 = vmatprep.subr.mxu0 0.0
      %941 = vmatpush2.msra.mxu0 0.0
      %942 = vmatprep.subr.mxu0 0.0
      %943 = vmatpush2.msra.mxu0 0.0
      %944 = vmatprep.subr.mxu0 0.0
      %945 = vmatpush2.msra.mxu0 0.0
      %946 = vmatprep.subr.mxu0 0.0
      %947 = vmatpush2.msra.mxu0 0.0
      %948 = vmatprep.subr.mxu0 0.0
      %949 = vmatpush2.msra.mxu0 0.0
      %950 = vmatprep.subr.mxu0 0.0
      %951 = vmatpush2.msra.mxu0 0.0
      %952 = vmatprep.subr.mxu0 0.0
      %953 = vmatpush2.msra.mxu0 0.0
      %954 = vmatprep.subr.mxu0 0.0
      %955 = vmatpush2.msra.mxu0 0.0
      %956 = vmatprep.subr.mxu0 0.0
      %957 = vmatpush2.msra.mxu0 0.0
      %958 = vmatprep.subr.mxu0 0.0
      %959 = vmatpush2.msra.mxu0 0.0
      %960 = vmatprep.subr.mxu0 0.0
      %961 = vmatpush2.msra.mxu0 0.0
      %962 = vmatprep.subr.mxu0 0.0
      %963 = vmatpush2.msra.mxu0 0.0
      %964 = vmatprep.mubr.f32.mxu0 0.0
      %965 = vmatmul.mubr.f32.gmra.mxu0 %v814
      %v966 = vpop.f32.mrf.mxu0
      %v967 = vadd.f32 %v649, %v966
      %v968 = vpop.f32.mrf.mxu0
      %969 = vdwg.mxu0
      %v970 = vadd.f32 %v826, %v896
      %v971 = vxor.u32 %v970, 2147483648
      %v972 = vmul.f32 %v971, 1.442695
      %v973 = vpow.pop %v972
      %v974 = vadd.f32 %v973, 1.0
      %v975 = vrcp.pop %v974
      %v976 = vmul.f32 1.0, %v975
      %v977 = vadd.f32 %v827, %v898
      %v978 = vxor.u32 %v977, 2147483648
      %v979 = vmul.f32 %v978, 1.442695
      %v980 = vpow.pop %v979
      %v981 = vadd.f32 %v980, 1.0
      %v982 = vrcp.pop %v981
      %v983 = vmul.f32 1.0, %v982
      %v984 = vmul.f32 %v976, %v967
      %v985 = vadd.f32 %v828, %v984
      %v986 = vtanh.pop %v985
      %v987 = vsub.f32 1.0, %v983
      %v988 = vmul.f32 %v987, %v986
      %v989 = vmul.f32 %v983, %v814
      %v990 = vadd.f32 %v988, %v989
      %s991 = scalar_lea.vmem %s2, 8
      %v992 = vld [vmem:[%s991] sm:$0xff]
      %994 = vset.pattern.permute.xlu0 0
      %995 = vperm.xlu0 %994, %v992
      %v996 = vpop.permute.xlu0 %995
      %v998 = vmul.f32 %v990, %v996
      %s999 = scalar_lea.vmem [#allocation3], 8
      %1000 = vst [vmem:[%s999] sm:$0xff] %v998
      %s1001 = smul.u32 2, 3
      %s1002 = smul.addr %s1001, 8
      %s1003 = scalar_lea.vmem [#allocation2], %s1002
      %v1004 = vld [vmem:[%s1003] sm:$0xff]
      %v1005 = vld [vmem:[%s1003 + $0x8] sm:$0xff]
      %v1006 = vld [vmem:[%s1003 + $0x10] sm:$0xff]
      %1007 = vmatprep.subr.mxu0 %v628
      %1008 = vmatpush1.msra.mxu0 %v627
      %1009 = vmatprep.subr.mxu0 %v625
      %1010 = vmatpush1.msra.mxu0 %v624
      %1011 = vmatprep.subr.mxu0 %v622
      %1012 = vmatpush1.msra.mxu0 %v621
      %1013 = vmatprep.subr.mxu0 %v619
      %1014 = vmatpush1.msra.mxu0 %v618
      %1015 = vmatprep.subr.mxu0 %v616
      %1016 = vmatpush1.msra.mxu0 %v615
      %1017 = vmatprep.subr.mxu0 %v613
      %1018 = vmatpush1.msra.mxu0 %v612
      %1019 = vmatprep.subr.mxu0 %v610
      %1020 = vmatpush1.msra.mxu0 %v609
      %1021 = vmatprep.subr.mxu0 %v607
      %1022 = vmatpush1.msra.mxu0 %v606
      %1023 = vmatprep.subr.mxu0 %v604
      %1024 = vmatpush1.msra.mxu0 %v603
      %1025 = vmatprep.subr.mxu0 %v601
      %1026 = vmatpush1.msra.mxu0 %v600
      %1027 = vmatprep.subr.mxu0 %v598
      %1028 = vmatpush1.msra.mxu0 %v597
      %1029 = vmatprep.subr.mxu0 %v595
      %1030 = vmatpush1.msra.mxu0 %v594
      %1031 = vmatprep.subr.mxu0 %v592
      %1032 = vmatpush1.msra.mxu0 %v591
      %1033 = vmatprep.subr.mxu0 %v589
      %1034 = vmatpush1.msra.mxu0 %v588
      %1035 = vmatprep.subr.mxu0 %v586
      %1036 = vmatpush1.msra.mxu0 %v585
      %1037 = vmatprep.subr.mxu0 %v583
      %1038 = vmatpush1.msra.mxu0 %v582
      %1039 = vmatprep.subr.mxu0 0.0
      %1040 = vmatpush2.msra.mxu0 0.0
      %1041 = vmatprep.subr.mxu0 0.0
      %1042 = vmatpush2.msra.mxu0 0.0
      %1043 = vmatprep.subr.mxu0 0.0
      %1044 = vmatpush2.msra.mxu0 0.0
      %1045 = vmatprep.subr.mxu0 0.0
      %1046 = vmatpush2.msra.mxu0 0.0
      %1047 = vmatprep.subr.mxu0 0.0
      %1048 = vmatpush2.msra.mxu0 0.0
      %1049 = vmatprep.subr.mxu0 0.0
      %1050 = vmatpush2.msra.mxu0 0.0
      %1051 = vmatprep.subr.mxu0 0.0
      %1052 = vmatpush2.msra.mxu0 0.0
      %1053 = vmatprep.subr.mxu0 0.0
      %1054 = vmatpush2.msra.mxu0 0.0
      %1055 = vmatprep.subr.mxu0 0.0
      %1056 = vmatpush2.msra.mxu0 0.0
      %1057 = vmatprep.subr.mxu0 0.0
      %1058 = vmatpush2.msra.mxu0 0.0
      %1059 = vmatprep.subr.mxu0 0.0
      %1060 = vmatpush2.msra.mxu0 0.0
      %1061 = vmatprep.subr.mxu0 0.0
      %1062 = vmatpush2.msra.mxu0 0.0
      %1063 = vmatprep.subr.mxu0 0.0
      %1064 = vmatpush2.msra.mxu0 0.0
      %1065 = vmatprep.subr.mxu0 0.0
      %1066 = vmatpush2.msra.mxu0 0.0
      %1067 = vmatprep.subr.mxu0 0.0
      %1068 = vmatpush2.msra.mxu0 0.0
      %1069 = vmatprep.subr.mxu0 0.0
      %1070 = vmatpush2.msra.mxu0 0.0
      %1071 = vmatprep.mubr.f32.mxu0 0.0
      %1072 = vmatmul.mubr.f32.gmra.mxu0 %v990
      %v1073 = vpop.f32.mrf.mxu0
      %v1074 = vadd.f32 %v641, %v1073
      %v1075 = vpop.f32.mrf.mxu0
      %v1076 = vadd.f32 %v645, %v1075
      %1077 = vdwg.mxu0
      %1078 = vmatprep.subr.mxu0 0.0
      %1079 = vmatpush1.msra.mxu0 %v629
      %1080 = vmatprep.subr.mxu0 0.0
      %1081 = vmatpush1.msra.mxu0 %v626
      %1082 = vmatprep.subr.mxu0 0.0
      %1083 = vmatpush1.msra.mxu0 %v623
      %1084 = vmatprep.subr.mxu0 0.0
      %1085 = vmatpush1.msra.mxu0 %v620
      %1086 = vmatprep.subr.mxu0 0.0
      %1087 = vmatpush1.msra.mxu0 %v617
      %1088 = vmatprep.subr.mxu0 0.0
      %1089 = vmatpush1.msra.mxu0 %v614
      %1090 = vmatprep.subr.mxu0 0.0
      %1091 = vmatpush1.msra.mxu0 %v611
      %1092 = vmatprep.subr.mxu0 0.0
      %1093 = vmatpush1.msra.mxu0 %v608
      %1094 = vmatprep.subr.mxu0 0.0
      %1095 = vmatpush1.msra.mxu0 %v605
      %1096 = vmatprep.subr.mxu0 0.0
      %1097 = vmatpush1.msra.mxu0 %v602
      %1098 = vmatprep.subr.mxu0 0.0
      %1099 = vmatpush1.msra.mxu0 %v599
      %1100 = vmatprep.subr.mxu0 0.0
      %1101 = vmatpush1.msra.mxu0 %v596
      %1102 = vmatprep.subr.mxu0 0.0
      %1103 = vmatpush1.msra.mxu0 %v593
      %1104 = vmatprep.subr.mxu0 0.0
      %1105 = vmatpush1.msra.mxu0 %v590
      %1106 = vmatprep.subr.mxu0 0.0
      %1107 = vmatpush1.msra.mxu0 %v587
      %1108 = vmatprep.subr.mxu0 0.0
      %1109 = vmatpush1.msra.mxu0 %v584
      %1110 = vmatprep.subr.mxu0 0.0
      %1111 = vmatpush2.msra.mxu0 0.0
      %1112 = vmatprep.subr.mxu0 0.0
      %1113 = vmatpush2.msra.mxu0 0.0
      %1114 = vmatprep.subr.mxu0 0.0
      %1115 = vmatpush2.msra.mxu0 0.0
      %1116 = vmatprep.subr.mxu0 0.0
      %1117 = vmatpush2.msra.mxu0 0.0
      %1118 = vmatprep.subr.mxu0 0.0
      %1119 = vmatpush2.msra.mxu0 0.0
      %1120 = vmatprep.subr.mxu0 0.0
      %1121 = vmatpush2.msra.mxu0 0.0
      %1122 = vmatprep.subr.mxu0 0.0
      %1123 = vmatpush2.msra.mxu0 0.0
      %1124 = vmatprep.subr.mxu0 0.0
      %1125 = vmatpush2.msra.mxu0 0.0
      %1126 = vmatprep.subr.mxu0 0.0
      %1127 = vmatpush2.msra.mxu0 0.0
      %1128 = vmatprep.subr.mxu0 0.0
      %1129 = vmatpush2.msra.mxu0 0.0
      %1130 = vmatprep.subr.mxu0 0.0
      %1131 = vmatpush2.msra.mxu0 0.0
      %1132 = vmatprep.subr.mxu0 0.0
      %1133 = vmatpush2.msra.mxu0 0.0
      %1134 = vmatprep.subr.mxu0 0.0
      %1135 = vmatpush2.msra.mxu0 0.0
      %1136 = vmatprep.subr.mxu0 0.0
      %1137 = vmatpush2.msra.mxu0 0.0
      %1138 = vmatprep.subr.mxu0 0.0
      %1139 = vmatpush2.msra.mxu0 0.0
      %1140 = vmatprep.subr.mxu0 0.0
      %1141 = vmatpush2.msra.mxu0 0.0
      %1142 = vmatprep.mubr.f32.mxu0 0.0
      %1143 = vmatmul.mubr.f32.gmra.mxu0 %v990
      %v1144 = vpop.f32.mrf.mxu0
      %v1145 = vadd.f32 %v649, %v1144
      %v1146 = vpop.f32.mrf.mxu0
      %1147 = vdwg.mxu0
      %v1148 = vadd.f32 %v1004, %v1074
      %v1149 = vxor.u32 %v1148, 2147483648
      %v1150 = vmul.f32 %v1149, 1.442695
      %v1151 = vpow.pop %v1150
      %v1152 = vadd.f32 %v1151, 1.0
      %v1153 = vrcp.pop %v1152
      %v1154 = vmul.f32 1.0, %v1153
      %v1155 = vadd.f32 %v1005, %v1076
      %v1156 = vxor.u32 %v1155, 2147483648
      %v1157 = vmul.f32 %v1156, 1.442695
      %v1158 = vpow.pop %v1157
      %v1159 = vadd.f32 %v1158, 1.0
      %v1160 = vrcp.pop %v1159
      %v1161 = vmul.f32 1.0, %v1160
      %v1162 = vmul.f32 %v1154, %v1145
      %v1163 = vadd.f32 %v1006, %v1162
      %v1164 = vtanh.pop %v1163
      %v1165 = vsub.f32 1.0, %v1161
      %v1166 = vmul.f32 %v1165, %v1164
      %v1167 = vmul.f32 %v1161, %v990
      %v1168 = vadd.f32 %v1166, %v1167
      %s1169 = scalar_lea.vmem %s2, 16
      %v1170 = vld [vmem:[%s1169] sm:$0xff]
      %1172 = vset.pattern.permute.xlu0 0
      %1173 = vperm.xlu0 %1172, %v1170
      %v1174 = vpop.permute.xlu0 %1173
      %v1176 = vmul.f32 %v1168, %v1174
      %s1177 = scalar_lea.vmem [#allocation3], 16
      %1178 = vst [vmem:[%s1177] sm:$0xff] %v1176
      %s1179 = smul.u32 3, 3
      %s1180 = smul.addr %s1179, 8
      %s1181 = scalar_lea.vmem [#allocation2], %s1180
      %v1182 = vld [vmem:[%s1181] sm:$0xff]
      %v1183 = vld [vmem:[%s1181 + $0x8] sm:$0xff]
      %v1184 = vld [vmem:[%s1181 + $0x10] sm:$0xff]
      %1185 = vmatprep.subr.mxu0 %v628
      %1186 = vmatpush1.msra.mxu0 %v627
      %1187 = vmatprep.subr.mxu0 %v625
      %1188 = vmatpush1.msra.mxu0 %v624
      %1189 = vmatprep.subr.mxu0 %v622
      %1190 = vmatpush1.msra.mxu0 %v621
      %1191 = vmatprep.subr.mxu0 %v619
      %1192 = vmatpush1.msra.mxu0 %v618
      %1193 = vmatprep.subr.mxu0 %v616
      %1194 = vmatpush1.msra.mxu0 %v615
      %1195 = vmatprep.subr.mxu0 %v613
      %1196 = vmatpush1.msra.mxu0 %v612
      %1197 = vmatprep.subr.mxu0 %v610
      %1198 = vmatpush1.msra.mxu0 %v609
      %1199 = vmatprep.subr.mxu0 %v607
      %1200 = vmatpush1.msra.mxu0 %v606
      %1201 = vmatprep.subr.mxu0 %v604
      %1202 = vmatpush1.msra.mxu0 %v603
      %1203 = vmatprep.subr.mxu0 %v601
      %1204 = vmatpush1.msra.mxu0 %v600
      %1205 = vmatprep.subr.mxu0 %v598
      %1206 = vmatpush1.msra.mxu0 %v597
      %1207 = vmatprep.subr.mxu0 %v595
      %1208 = vmatpush1.msra.mxu0 %v594
      %1209 = vmatprep.subr.mxu0 %v592
      %1210 = vmatpush1.msra.mxu0 %v591
      %1211 = vmatprep.subr.mxu0 %v589
      %1212 = vmatpush1.msra.mxu0 %v588
      %1213 = vmatprep.subr.mxu0 %v586
      %1214 = vmatpush1.msra.mxu0 %v585
      %1215 = vmatprep.subr.mxu0 %v583
      %1216 = vmatpush1.msra.mxu0 %v582
      %1217 = vmatprep.subr.mxu0 0.0
      %1218 = vmatpush2.msra.mxu0 0.0
      %1219 = vmatprep.subr.mxu0 0.0
      %1220 = vmatpush2.msra.mxu0 0.0
      %1221 = vmatprep.subr.mxu0 0.0
      %1222 = vmatpush2.msra.mxu0 0.0
      %1223 = vmatprep.subr.mxu0 0.0
      %1224 = vmatpush2.msra.mxu0 0.0
      %1225 = vmatprep.subr.mxu0 0.0
      %1226 = vmatpush2.msra.mxu0 0.0
      %1227 = vmatprep.subr.mxu0 0.0
      %1228 = vmatpush2.msra.mxu0 0.0
      %1229 = vmatprep.subr.mxu0 0.0
      %1230 = vmatpush2.msra.mxu0 0.0
      %1231 = vmatprep.subr.mxu0 0.0
      %1232 = vmatpush2.msra.mxu0 0.0
      %1233 = vmatprep.subr.mxu0 0.0
      %1234 = vmatpush2.msra.mxu0 0.0
      %1235 = vmatprep.subr.mxu0 0.0
      %1236 = vmatpush2.msra.mxu0 0.0
      %1237 = vmatprep.subr.mxu0 0.0
      %1238 = vmatpush2.msra.mxu0 0.0
      %1239 = vmatprep.subr.mxu0 0.0
      %1240 = vmatpush2.msra.mxu0 0.0
      %1241 = vmatprep.subr.mxu0 0.0
      %1242 = vmatpush2.msra.mxu0 0.0
      %1243 = vmatprep.subr.mxu0 0.0
      %1244 = vmatpush2.msra.mxu0 0.0
      %1245 = vmatprep.subr.mxu0 0.0
      %1246 = vmatpush2.msra.mxu0 0.0
      %1247 = vmatprep.subr.mxu0 0.0
      %1248 = vmatpush2.msra.mxu0 0.0
      %1249 = vmatprep.mubr.f32.mxu0 0.0
      %1250 = vmatmul.mubr.f32.gmra.mxu0 %v1168
      %v1251 = vpop.f32.mrf.mxu0
      %v1252 = vadd.f32 %v641, %v1251
      %v1253 = vpop.f32.mrf.mxu0
      %v1254 = vadd.f32 %v645, %v1253
      %1255 = vdwg.mxu0
      %1256 = vmatprep.subr.mxu0 0.0
      %1257 = vmatpush1.msra.mxu0 %v629
      %1258 = vmatprep.subr.mxu0 0.0
      %1259 = vmatpush1.msra.mxu0 %v626
      %1260 = vmatprep.subr.mxu0 0.0
      %1261 = vmatpush1.msra.mxu0 %v623
      %1262 = vmatprep.subr.mxu0 0.0
      %1263 = vmatpush1.msra.mxu0 %v620
      %1264 = vmatprep.subr.mxu0 0.0
      %1265 = vmatpush1.msra.mxu0 %v617
      %1266 = vmatprep.subr.mxu0 0.0
      %1267 = vmatpush1.msra.mxu0 %v614
      %1268 = vmatprep.subr.mxu0 0.0
      %1269 = vmatpush1.msra.mxu0 %v611
      %1270 = vmatprep.subr.mxu0 0.0
      %1271 = vmatpush1.msra.mxu0 %v608
      %1272 = vmatprep.subr.mxu0 0.0
      %1273 = vmatpush1.msra.mxu0 %v605
      %1274 = vmatprep.subr.mxu0 0.0
      %1275 = vmatpush1.msra.mxu0 %v602
      %1276 = vmatprep.subr.mxu0 0.0
      %1277 = vmatpush1.msra.mxu0 %v599
      %1278 = vmatprep.subr.mxu0 0.0
      %1279 = vmatpush1.msra.mxu0 %v596
      %1280 = vmatprep.subr.mxu0 0.0
      %1281 = vmatpush1.msra.mxu0 %v593
      %1282 = vmatprep.subr.mxu0 0.0
      %1283 = vmatpush1.msra.mxu0 %v590
      %1284 = vmatprep.subr.mxu0 0.0
      %1285 = vmatpush1.msra.mxu0 %v587
      %1286 = vmatprep.subr.mxu0 0.0
      %1287 = vmatpush1.msra.mxu0 %v584
      %1288 = vmatprep.subr.mxu0 0.0
      %1289 = vmatpush2.msra.mxu0 0.0
      %1290 = vmatprep.subr.mxu0 0.0
      %1291 = vmatpush2.msra.mxu0 0.0
      %1292 = vmatprep.subr.mxu0 0.0
      %1293 = vmatpush2.msra.mxu0 0.0
      %1294 = vmatprep.subr.mxu0 0.0
      %1295 = vmatpush2.msra.mxu0 0.0
      %1296 = vmatprep.subr.mxu0 0.0
      %1297 = vmatpush2.msra.mxu0 0.0
      %1298 = vmatprep.subr.mxu0 0.0
      %1299 = vmatpush2.msra.mxu0 0.0
      %1300 = vmatprep.subr.mxu0 0.0
      %1301 = vmatpush2.msra.mxu0 0.0
      %1302 = vmatprep.subr.mxu0 0.0
      %1303 = vmatpush2.msra.mxu0 0.0
      %1304 = vmatprep.subr.mxu0 0.0
      %1305 = vmatpush2.msra.mxu0 0.0
      %1306 = vmatprep.subr.mxu0 0.0
      %1307 = vmatpush2.msra.mxu0 0.0
      %1308 = vmatprep.subr.mxu0 0.0
      %1309 = vmatpush2.msra.mxu0 0.0
      %1310 = vmatprep.subr.mxu0 0.0
      %1311 = vmatpush2.msra.mxu0 0.0
      %1312 = vmatprep.subr.mxu0 0.0
      %1313 = vmatpush2.msra.mxu0 0.0
      %1314 = vmatprep.subr.mxu0 0.0
      %1315 = vmatpush2.msra.mxu0 0.0
      %1316 = vmatprep.subr.mxu0 0.0
      %1317 = vmatpush2.msra.mxu0 0.0
      %1318 = vmatprep.subr.mxu0 0.0
      %1319 = vmatpush2.msra.mxu0 0.0
      %1320 = vmatprep.mubr.f32.mxu0 0.0
      %1321 = vmatmul.mubr.f32.gmra.mxu0 %v1168
      %v1322 = vpop.f32.mrf.mxu0
      %v1323 = vadd.f32 %v649, %v1322
      %v1324 = vpop.f32.mrf.mxu0
      %1325 = vdwg.mxu0
      %v1326 = vadd.f32 %v1182, %v1252
      %v1327 = vxor.u32 %v1326, 2147483648
      %v1328 = vmul.f32 %v1327, 1.442695
      %v1329 = vpow.pop %v1328
      %v1330 = vadd.f32 %v1329, 1.0
      %v1331 = vrcp.pop %v1330
      %v1332 = vmul.f32 1.0, %v1331
      %v1333 = vadd.f32 %v1183, %v1254
      %v1334 = vxor.u32 %v1333, 2147483648
      %v1335 = vmul.f32 %v1334, 1.442695
      %v1336 = vpow.pop %v1335
      %v1337 = vadd.f32 %v1336, 1.0
      %v1338 = vrcp.pop %v1337
      %v1339 = vmul.f32 1.0, %v1338
      %v1340 = vmul.f32 %v1332, %v1323
      %v1341 = vadd.f32 %v1184, %v1340
      %v1342 = vtanh.pop %v1341
      %v1343 = vsub.f32 1.0, %v1339
      %v1344 = vmul.f32 %v1343, %v1342
      %v1345 = vmul.f32 %v1339, %v1168
      %v1346 = vadd.f32 %v1344, %v1345
      %s1347 = scalar_lea.vmem %s2, 24
      %v1348 = vld [vmem:[%s1347] sm:$0xff]
      %1350 = vset.pattern.permute.xlu0 0
      %1351 = vperm.xlu0 %1350, %v1348
      %v1352 = vpop.permute.xlu0 %1351
      %v1354 = vmul.f32 %v1346, %v1352
      %s1355 = scalar_lea.vmem [#allocation3], 24
      %1356 = vst [vmem:[%s1355] sm:$0xff] %v1354
      %s1357 = smul.u32 4, 3
      %s1358 = smul.addr %s1357, 8
      %s1359 = scalar_lea.vmem [#allocation2], %s1358
      %v1360 = vld [vmem:[%s1359] sm:$0xff]
      %v1361 = vld [vmem:[%s1359 + $0x8] sm:$0xff]
      %v1362 = vld [vmem:[%s1359 + $0x10] sm:$0xff]
      %1363 = vmatprep.subr.mxu0 %v628
      %1364 = vmatpush1.msra.mxu0 %v627
      %1365 = vmatprep.subr.mxu0 %v625
      %1366 = vmatpush1.msra.mxu0 %v624
      %1367 = vmatprep.subr.mxu0 %v622
      %1368 = vmatpush1.msra.mxu0 %v621
      %1369 = vmatprep.subr.mxu0 %v619
      %1370 = vmatpush1.msra.mxu0 %v618
      %1371 = vmatprep.subr.mxu0 %v616
      %1372 = vmatpush1.msra.mxu0 %v615
      %1373 = vmatprep.subr.mxu0 %v613
      %1374 = vmatpush1.msra.mxu0 %v612
      %1375 = vmatprep.subr.mxu0 %v610
      %1376 = vmatpush1.msra.mxu0 %v609
      %1377 = vmatprep.subr.mxu0 %v607
      %1378 = vmatpush1.msra.mxu0 %v606
      %1379 = vmatprep.subr.mxu0 %v604
      %1380 = vmatpush1.msra.mxu0 %v603
      %1381 = vmatprep.subr.mxu0 %v601
      %1382 = vmatpush1.msra.mxu0 %v600
      %1383 = vmatprep.subr.mxu0 %v598
      %1384 = vmatpush1.msra.mxu0 %v597
      %1385 = vmatprep.subr.mxu0 %v595
      %1386 = vmatpush1.msra.mxu0 %v594
      %1387 = vmatprep.subr.mxu0 %v592
      %1388 = vmatpush1.msra.mxu0 %v591
      %1389 = vmatprep.subr.mxu0 %v589
      %1390 = vmatpush1.msra.mxu0 %v588
      %1391 = vmatprep.subr.mxu0 %v586
      %1392 = vmatpush1.msra.mxu0 %v585
      %1393 = vmatprep.subr.mxu0 %v583
      %1394 = vmatpush1.msra.mxu0 %v582
      %1395 = vmatprep.subr.mxu0 0.0
      %1396 = vmatpush2.msra.mxu0 0.0
      %1397 = vmatprep.subr.mxu0 0.0
      %1398 = vmatpush2.msra.mxu0 0.0
      %1399 = vmatprep.subr.mxu0 0.0
      %1400 = vmatpush2.msra.mxu0 0.0
      %1401 = vmatprep.subr.mxu0 0.0
      %1402 = vmatpush2.msra.mxu0 0.0
      %1403 = vmatprep.subr.mxu0 0.0
      %1404 = vmatpush2.msra.mxu0 0.0
      %1405 = vmatprep.subr.mxu0 0.0
      %1406 = vmatpush2.msra.mxu0 0.0
      %1407 = vmatprep.subr.mxu0 0.0
      %1408 = vmatpush2.msra.mxu0 0.0
      %1409 = vmatprep.subr.mxu0 0.0
      %1410 = vmatpush2.msra.mxu0 0.0
      %1411 = vmatprep.subr.mxu0 0.0
      %1412 = vmatpush2.msra.mxu0 0.0
      %1413 = vmatprep.subr.mxu0 0.0
      %1414 = vmatpush2.msra.mxu0 0.0
      %1415 = vmatprep.subr.mxu0 0.0
      %1416 = vmatpush2.msra.mxu0 0.0
      %1417 = vmatprep.subr.mxu0 0.0
      %1418 = vmatpush2.msra.mxu0 0.0
      %1419 = vmatprep.subr.mxu0 0.0
      %1420 = vmatpush2.msra.mxu0 0.0
      %1421 = vmatprep.subr.mxu0 0.0
      %1422 = vmatpush2.msra.mxu0 0.0
      %1423 = vmatprep.subr.mxu0 0.0
      %1424 = vmatpush2.msra.mxu0 0.0
      %1425 = vmatprep.subr.mxu0 0.0
      %1426 = vmatpush2.msra.mxu0 0.0
      %1427 = vmatprep.mubr.f32.mxu0 0.0
      %1428 = vmatmul.mubr.f32.gmra.mxu0 %v1346
      %v1429 = vpop.f32.mrf.mxu0
      %v1430 = vadd.f32 %v641, %v1429
      %v1431 = vpop.f32.mrf.mxu0
      %v1432 = vadd.f32 %v645, %v1431
      %1433 = vdwg.mxu0
      %1434 = vmatprep.subr.mxu0 0.0
      %1435 = vmatpush1.msra.mxu0 %v629
      %1436 = vmatprep.subr.mxu0 0.0
      %1437 = vmatpush1.msra.mxu0 %v626
      %1438 = vmatprep.subr.mxu0 0.0
      %1439 = vmatpush1.msra.mxu0 %v623
      %1440 = vmatprep.subr.mxu0 0.0
      %1441 = vmatpush1.msra.mxu0 %v620
      %1442 = vmatprep.subr.mxu0 0.0
      %1443 = vmatpush1.msra.mxu0 %v617
      %1444 = vmatprep.subr.mxu0 0.0
      %1445 = vmatpush1.msra.mxu0 %v614
      %1446 = vmatprep.subr.mxu0 0.0
      %1447 = vmatpush1.msra.mxu0 %v611
      %1448 = vmatprep.subr.mxu0 0.0
      %1449 = vmatpush1.msra.mxu0 %v608
      %1450 = vmatprep.subr.mxu0 0.0
      %1451 = vmatpush1.msra.mxu0 %v605
      %1452 = vmatprep.subr.mxu0 0.0
      %1453 = vmatpush1.msra.mxu0 %v602
      %1454 = vmatprep.subr.mxu0 0.0
      %1455 = vmatpush1.msra.mxu0 %v599
      %1456 = vmatprep.subr.mxu0 0.0
      %1457 = vmatpush1.msra.mxu0 %v596
      %1458 = vmatprep.subr.mxu0 0.0
      %1459 = vmatpush1.msra.mxu0 %v593
      %1460 = vmatprep.subr.mxu0 0.0
      %1461 = vmatpush1.msra.mxu0 %v590
      %1462 = vmatprep.subr.mxu0 0.0
      %1463 = vmatpush1.msra.mxu0 %v587
      %1464 = vmatprep.subr.mxu0 0.0
      %1465 = vmatpush1.msra.mxu0 %v584
      %1466 = vmatprep.subr.mxu0 0.0
      %1467 = vmatpush2.msra.mxu0 0.0
      %1468 = vmatprep.subr.mxu0 0.0
      %1469 = vmatpush2.msra.mxu0 0.0
      %1470 = vmatprep.subr.mxu0 0.0
      %1471 = vmatpush2.msra.mxu0 0.0
      %1472 = vmatprep.subr.mxu0 0.0
      %1473 = vmatpush2.msra.mxu0 0.0
      %1474 = vmatprep.subr.mxu0 0.0
      %1475 = vmatpush2.msra.mxu0 0.0
      %1476 = vmatprep.subr.mxu0 0.0
      %1477 = vmatpush2.msra.mxu0 0.0
      %1478 = vmatprep.subr.mxu0 0.0
      %1479 = vmatpush2.msra.mxu0 0.0
      %1480 = vmatprep.subr.mxu0 0.0
      %1481 = vmatpush2.msra.mxu0 0.0
      %1482 = vmatprep.subr.mxu0 0.0
      %1483 = vmatpush2.msra.mxu0 0.0
      %1484 = vmatprep.subr.mxu0 0.0
      %1485 = vmatpush2.msra.mxu0 0.0
      %1486 = vmatprep.subr.mxu0 0.0
      %1487 = vmatpush2.msra.mxu0 0.0
      %1488 = vmatprep.subr.mxu0 0.0
      %1489 = vmatpush2.msra.mxu0 0.0
      %1490 = vmatprep.subr.mxu0 0.0
      %1491 = vmatpush2.msra.mxu0 0.0
      %1492 = vmatprep.subr.mxu0 0.0
      %1493 = vmatpush2.msra.mxu0 0.0
      %1494 = vmatprep.subr.mxu0 0.0
      %1495 = vmatpush2.msra.mxu0 0.0
      %1496 = vmatprep.subr.mxu0 0.0
      %1497 = vmatpush2.msra.mxu0 0.0
      %1498 = vmatprep.mubr.f32.mxu0 0.0
      %1499 = vmatmul.mubr.f32.gmra.mxu0 %v1346
      %v1500 = vpop.f32.mrf.mxu0
      %v1501 = vadd.f32 %v649, %v1500
      %v1502 = vpop.f32.mrf.mxu0
      %1503 = vdwg.mxu0
      %v1504 = vadd.f32 %v1360, %v1430
      %v1505 = vxor.u32 %v1504, 2147483648
      %v1506 = vmul.f32 %v1505, 1.442695
      %v1507 = vpow.pop %v1506
      %v1508 = vadd.f32 %v1507, 1.0
      %v1509 = vrcp.pop %v1508
      %v1510 = vmul.f32 1.0, %v1509
      %v1511 = vadd.f32 %v1361, %v1432
      %v1512 = vxor.u32 %v1511, 2147483648
      %v1513 = vmul.f32 %v1512, 1.442695
      %v1514 = vpow.pop %v1513
      %v1515 = vadd.f32 %v1514, 1.0
      %v1516 = vrcp.pop %v1515
      %v1517 = vmul.f32 1.0, %v1516
      %v1518 = vmul.f32 %v1510, %v1501
      %v1519 = vadd.f32 %v1362, %v1518
      %v1520 = vtanh.pop %v1519
      %v1521 = vsub.f32 1.0, %v1517
      %v1522 = vmul.f32 %v1521, %v1520
      %v1523 = vmul.f32 %v1517, %v1346
      %v1524 = vadd.f32 %v1522, %v1523
      %s1525 = scalar_lea.vmem %s2, 32
      %v1526 = vld [vmem:[%s1525] sm:$0xff]
      %1528 = vset.pattern.permute.xlu0 0
      %1529 = vperm.xlu0 %1528, %v1526
      %v1530 = vpop.permute.xlu0 %1529
      %v1532 = vmul.f32 %v1524, %v1530
      %s1533 = scalar_lea.vmem [#allocation3], 32
      %1534 = vst [vmem:[%s1533] sm:$0xff] %v1532
      %s1535 = smul.u32 5, 3
      %s1536 = smul.addr %s1535, 8
      %s1537 = scalar_lea.vmem [#allocation2], %s1536
      %v1538 = vld [vmem:[%s1537] sm:$0xff]
      %v1539 = vld [vmem:[%s1537 + $0x8] sm:$0xff]
      %v1540 = vld [vmem:[%s1537 + $0x10] sm:$0xff]
      %1541 = vmatprep.subr.mxu0 %v628
      %1542 = vmatpush1.msra.mxu0 %v627
      %1543 = vmatprep.subr.mxu0 %v625
      %1544 = vmatpush1.msra.mxu0 %v624
      %1545 = vmatprep.subr.mxu0 %v622
      %1546 = vmatpush1.msra.mxu0 %v621
      %1547 = vmatprep.subr.mxu0 %v619
      %1548 = vmatpush1.msra.mxu0 %v618
      %1549 = vmatprep.subr.mxu0 %v616
      %1550 = vmatpush1.msra.mxu0 %v615
      %1551 = vmatprep.subr.mxu0 %v613
      %1552 = vmatpush1.msra.mxu0 %v612
      %1553 = vmatprep.subr.mxu0 %v610
      %1554 = vmatpush1.msra.mxu0 %v609
      %1555 = vmatprep.subr.mxu0 %v607
      %1556 = vmatpush1.msra.mxu0 %v606
      %1557 = vmatprep.subr.mxu0 %v604
      %1558 = vmatpush1.msra.mxu0 %v603
      %1559 = vmatprep.subr.mxu0 %v601
      %1560 = vmatpush1.msra.mxu0 %v600
      %1561 = vmatprep.subr.mxu0 %v598
      %1562 = vmatpush1.msra.mxu0 %v597
      %1563 = vmatprep.subr.mxu0 %v595
      %1564 = vmatpush1.msra.mxu0 %v594
      %1565 = vmatprep.subr.mxu0 %v592
      %1566 = vmatpush1.msra.mxu0 %v591
      %1567 = vmatprep.subr.mxu0 %v589
      %1568 = vmatpush1.msra.mxu0 %v588
      %1569 = vmatprep.subr.mxu0 %v586
      %1570 = vmatpush1.msra.mxu0 %v585
      %1571 = vmatprep.subr.mxu0 %v583
      %1572 = vmatpush1.msra.mxu0 %v582
      %1573 = vmatprep.subr.mxu0 0.0
      %1574 = vmatpush2.msra.mxu0 0.0
      %1575 = vmatprep.subr.mxu0 0.0
      %1576 = vmatpush2.msra.mxu0 0.0
      %1577 = vmatprep.subr.mxu0 0.0
      %1578 = vmatpush2.msra.mxu0 0.0
      %1579 = vmatprep.subr.mxu0 0.0
      %1580 = vmatpush2.msra.mxu0 0.0
      %1581 = vmatprep.subr.mxu0 0.0
      %1582 = vmatpush2.msra.mxu0 0.0
      %1583 = vmatprep.subr.mxu0 0.0
      %1584 = vmatpush2.msra.mxu0 0.0
      %1585 = vmatprep.subr.mxu0 0.0
      %1586 = vmatpush2.msra.mxu0 0.0
      %1587 = vmatprep.subr.mxu0 0.0
      %1588 = vmatpush2.msra.mxu0 0.0
      %1589 = vmatprep.subr.mxu0 0.0
      %1590 = vmatpush2.msra.mxu0 0.0
      %1591 = vmatprep.subr.mxu0 0.0
      %1592 = vmatpush2.msra.mxu0 0.0
      %1593 = vmatprep.subr.mxu0 0.0
      %1594 = vmatpush2.msra.mxu0 0.0
      %1595 = vmatprep.subr.mxu0 0.0
      %1596 = vmatpush2.msra.mxu0 0.0
      %1597 = vmatprep.subr.mxu0 0.0
      %1598 = vmatpush2.msra.mxu0 0.0
      %1599 = vmatprep.subr.mxu0 0.0
      %1600 = vmatpush2.msra.mxu0 0.0
      %1601 = vmatprep.subr.mxu0 0.0
      %1602 = vmatpush2.msra.mxu0 0.0
      %1603 = vmatprep.subr.mxu0 0.0
      %1604 = vmatpush2.msra.mxu0 0.0
      %1605 = vmatprep.mubr.f32.mxu0 0.0
      %1606 = vmatmul.mubr.f32.gmra.mxu0 %v1524
      %v1607 = vpop.f32.mrf.mxu0
      %v1608 = vadd.f32 %v641, %v1607
      %v1609 = vpop.f32.mrf.mxu0
      %v1610 = vadd.f32 %v645, %v1609
      %1611 = vdwg.mxu0
      %1612 = vmatprep.subr.mxu0 0.0
      %1613 = vmatpush1.msra.mxu0 %v629
      %1614 = vmatprep.subr.mxu0 0.0
      %1615 = vmatpush1.msra.mxu0 %v626
      %1616 = vmatprep.subr.mxu0 0.0
      %1617 = vmatpush1.msra.mxu0 %v623
      %1618 = vmatprep.subr.mxu0 0.0
      %1619 = vmatpush1.msra.mxu0 %v620
      %1620 = vmatprep.subr.mxu0 0.0
      %1621 = vmatpush1.msra.mxu0 %v617
      %1622 = vmatprep.subr.mxu0 0.0
      %1623 = vmatpush1.msra.mxu0 %v614
      %1624 = vmatprep.subr.mxu0 0.0
      %1625 = vmatpush1.msra.mxu0 %v611
      %1626 = vmatprep.subr.mxu0 0.0
      %1627 = vmatpush1.msra.mxu0 %v608
      %1628 = vmatprep.subr.mxu0 0.0
      %1629 = vmatpush1.msra.mxu0 %v605
      %1630 = vmatprep.subr.mxu0 0.0
      %1631 = vmatpush1.msra.mxu0 %v602
      %1632 = vmatprep.subr.mxu0 0.0
      %1633 = vmatpush1.msra.mxu0 %v599
      %1634 = vmatprep.subr.mxu0 0.0
      %1635 = vmatpush1.msra.mxu0 %v596
      %1636 = vmatprep.subr.mxu0 0.0
      %1637 = vmatpush1.msra.mxu0 %v593
      %1638 = vmatprep.subr.mxu0 0.0
      %1639 = vmatpush1.msra.mxu0 %v590
      %1640 = vmatprep.subr.mxu0 0.0
      %1641 = vmatpush1.msra.mxu0 %v587
      %1642 = vmatprep.subr.mxu0 0.0
      %1643 = vmatpush1.msra.mxu0 %v584
      %1644 = vmatprep.subr.mxu0 0.0
      %1645 = vmatpush2.msra.mxu0 0.0
      %1646 = vmatprep.subr.mxu0 0.0
      %1647 = vmatpush2.msra.mxu0 0.0
      %1648 = vmatprep.subr.mxu0 0.0
      %1649 = vmatpush2.msra.mxu0 0.0
      %1650 = vmatprep.subr.mxu0 0.0
      %1651 = vmatpush2.msra.mxu0 0.0
      %1652 = vmatprep.subr.mxu0 0.0
      %1653 = vmatpush2.msra.mxu0 0.0
      %1654 = vmatprep.subr.mxu0 0.0
      %1655 = vmatpush2.msra.mxu0 0.0
      %1656 = vmatprep.subr.mxu0 0.0
      %1657 = vmatpush2.msra.mxu0 0.0
      %1658 = vmatprep.subr.mxu0 0.0
      %1659 = vmatpush2.msra.mxu0 0.0
      %1660 = vmatprep.subr.mxu0 0.0
      %1661 = vmatpush2.msra.mxu0 0.0
      %1662 = vmatprep.subr.mxu0 0.0
      %1663 = vmatpush2.msra.mxu0 0.0
      %1664 = vmatprep.subr.mxu0 0.0
      %1665 = vmatpush2.msra.mxu0 0.0
      %1666 = vmatprep.subr.mxu0 0.0
      %1667 = vmatpush2.msra.mxu0 0.0
      %1668 = vmatprep.subr.mxu0 0.0
      %1669 = vmatpush2.msra.mxu0 0.0
      %1670 = vmatprep.subr.mxu0 0.0
      %1671 = vmatpush2.msra.mxu0 0.0
      %1672 = vmatprep.subr.mxu0 0.0
      %1673 = vmatpush2.msra.mxu0 0.0
      %1674 = vmatprep.subr.mxu0 0.0
      %1675 = vmatpush2.msra.mxu0 0.0
      %1676 = vmatprep.mubr.f32.mxu0 0.0
      %1677 = vmatmul.mubr.f32.gmra.mxu0 %v1524
      %v1678 = vpop.f32.mrf.mxu0
      %v1679 = vadd.f32 %v649, %v1678
      %v1680 = vpop.f32.mrf.mxu0
      %1681 = vdwg.mxu0
      %v1682 = vadd.f32 %v1538, %v1608
      %v1683 = vxor.u32 %v1682, 2147483648
      %v1684 = vmul.f32 %v1683, 1.442695
      %v1685 = vpow.pop %v1684
      %v1686 = vadd.f32 %v1685, 1.0
      %v1687 = vrcp.pop %v1686
      %v1688 = vmul.f32 1.0, %v1687
      %v1689 = vadd.f32 %v1539, %v1610
      %v1690 = vxor.u32 %v1689, 2147483648
      %v1691 = vmul.f32 %v1690, 1.442695
      %v1692 = vpow.pop %v1691
      %v1693 = vadd.f32 %v1692, 1.0
      %v1694 = vrcp.pop %v1693
      %v1695 = vmul.f32 1.0, %v1694
      %v1696 = vmul.f32 %v1688, %v1679
      %v1697 = vadd.f32 %v1540, %v1696
      %v1698 = vtanh.pop %v1697
      %v1699 = vsub.f32 1.0, %v1695
      %v1700 = vmul.f32 %v1699, %v1698
      %v1701 = vmul.f32 %v1695, %v1524
      %v1702 = vadd.f32 %v1700, %v1701
      %s1703 = scalar_lea.vmem %s2, 40
      %v1704 = vld [vmem:[%s1703] sm:$0xff]
      %1706 = vset.pattern.permute.xlu0 0
      %1707 = vperm.xlu0 %1706, %v1704
      %v1708 = vpop.permute.xlu0 %1707
      %v1710 = vmul.f32 %v1702, %v1708
      %s1711 = scalar_lea.vmem [#allocation3], 40
      %1712 = vst [vmem:[%s1711] sm:$0xff] %v1710
      %s1713 = smul.u32 6, 3
      %s1714 = smul.addr %s1713, 8
      %s1715 = scalar_lea.vmem [#allocation2], %s1714
      %v1716 = vld [vmem:[%s1715] sm:$0xff]
      %v1717 = vld [vmem:[%s1715 + $0x8] sm:$0xff]
      %v1718 = vld [vmem:[%s1715 + $0x10] sm:$0xff]
      %1719 = vmatprep.subr.mxu0 %v628
      %1720 = vmatpush1.msra.mxu0 %v627
      %1721 = vmatprep.subr.mxu0 %v625
      %1722 = vmatpush1.msra.mxu0 %v624
      %1723 = vmatprep.subr.mxu0 %v622
      %1724 = vmatpush1.msra.mxu0 %v621
      %1725 = vmatprep.subr.mxu0 %v619
      %1726 = vmatpush1.msra.mxu0 %v618
      %1727 = vmatprep.subr.mxu0 %v616
      %1728 = vmatpush1.msra.mxu0 %v615
      %1729 = vmatprep.subr.mxu0 %v613
      %1730 = vmatpush1.msra.mxu0 %v612
      %1731 = vmatprep.subr.mxu0 %v610
      %1732 = vmatpush1.msra.mxu0 %v609
      %1733 = vmatprep.subr.mxu0 %v607
      %1734 = vmatpush1.msra.mxu0 %v606
      %1735 = vmatprep.subr.mxu0 %v604
      %1736 = vmatpush1.msra.mxu0 %v603
      %1737 = vmatprep.subr.mxu0 %v601
      %1738 = vmatpush1.msra.mxu0 %v600
      %1739 = vmatprep.subr.mxu0 %v598
      %1740 = vmatpush1.msra.mxu0 %v597
      %1741 = vmatprep.subr.mxu0 %v595
      %1742 = vmatpush1.msra.mxu0 %v594
      %1743 = vmatprep.subr.mxu0 %v592
      %1744 = vmatpush1.msra.mxu0 %v591
      %1745 = vmatprep.subr.mxu0 %v589
      %1746 = vmatpush1.msra.mxu0 %v588
      %1747 = vmatprep.subr.mxu0 %v586
      %1748 = vmatpush1.msra.mxu0 %v585
      %1749 = vmatprep.subr.mxu0 %v583
      %1750 = vmatpush1.msra.mxu0 %v582
      %1751 = vmatprep.subr.mxu0 0.0
      %1752 = vmatpush2.msra.mxu0 0.0
      %1753 = vmatprep.subr.mxu0 0.0
      %1754 = vmatpush2.msra.mxu0 0.0
      %1755 = vmatprep.subr.mxu0 0.0
      %1756 = vmatpush2.msra.mxu0 0.0
      %1757 = vmatprep.subr.mxu0 0.0
      %1758 = vmatpush2.msra.mxu0 0.0
      %1759 = vmatprep.subr.mxu0 0.0
      %1760 = vmatpush2.msra.mxu0 0.0
      %1761 = vmatprep.subr.mxu0 0.0
      %1762 = vmatpush2.msra.mxu0 0.0
      %1763 = vmatprep.subr.mxu0 0.0
      %1764 = vmatpush2.msra.mxu0 0.0
      %1765 = vmatprep.subr.mxu0 0.0
      %1766 = vmatpush2.msra.mxu0 0.0
      %1767 = vmatprep.subr.mxu0 0.0
      %1768 = vmatpush2.msra.mxu0 0.0
      %1769 = vmatprep.subr.mxu0 0.0
      %1770 = vmatpush2.msra.mxu0 0.0
      %1771 = vmatprep.subr.mxu0 0.0
      %1772 = vmatpush2.msra.mxu0 0.0
      %1773 = vmatprep.subr.mxu0 0.0
      %1774 = vmatpush2.msra.mxu0 0.0
      %1775 = vmatprep.subr.mxu0 0.0
      %1776 = vmatpush2.msra.mxu0 0.0
      %1777 = vmatprep.subr.mxu0 0.0
      %1778 = vmatpush2.msra.mxu0 0.0
      %1779 = vmatprep.subr.mxu0 0.0
      %1780 = vmatpush2.msra.mxu0 0.0
      %1781 = vmatprep.subr.mxu0 0.0
      %1782 = vmatpush2.msra.mxu0 0.0
      %1783 = vmatprep.mubr.f32.mxu0 0.0
      %1784 = vmatmul.mubr.f32.gmra.mxu0 %v1702
      %v1785 = vpop.f32.mrf.mxu0
      %v1786 = vadd.f32 %v641, %v1785
      %v1787 = vpop.f32.mrf.mxu0
      %v1788 = vadd.f32 %v645, %v1787
      %1789 = vdwg.mxu0
      %1790 = vmatprep.subr.mxu0 0.0
      %1791 = vmatpush1.msra.mxu0 %v629
      %1792 = vmatprep.subr.mxu0 0.0
      %1793 = vmatpush1.msra.mxu0 %v626
      %1794 = vmatprep.subr.mxu0 0.0
      %1795 = vmatpush1.msra.mxu0 %v623
      %1796 = vmatprep.subr.mxu0 0.0
      %1797 = vmatpush1.msra.mxu0 %v620
      %1798 = vmatprep.subr.mxu0 0.0
      %1799 = vmatpush1.msra.mxu0 %v617
      %1800 = vmatprep.subr.mxu0 0.0
      %1801 = vmatpush1.msra.mxu0 %v614
      %1802 = vmatprep.subr.mxu0 0.0
      %1803 = vmatpush1.msra.mxu0 %v611
      %1804 = vmatprep.subr.mxu0 0.0
      %1805 = vmatpush1.msra.mxu0 %v608
      %1806 = vmatprep.subr.mxu0 0.0
      %1807 = vmatpush1.msra.mxu0 %v605
      %1808 = vmatprep.subr.mxu0 0.0
      %1809 = vmatpush1.msra.mxu0 %v602
      %1810 = vmatprep.subr.mxu0 0.0
      %1811 = vmatpush1.msra.mxu0 %v599
      %1812 = vmatprep.subr.mxu0 0.0
      %1813 = vmatpush1.msra.mxu0 %v596
      %1814 = vmatprep.subr.mxu0 0.0
      %1815 = vmatpush1.msra.mxu0 %v593
      %1816 = vmatprep.subr.mxu0 0.0
      %1817 = vmatpush1.msra.mxu0 %v590
      %1818 = vmatprep.subr.mxu0 0.0
      %1819 = vmatpush1.msra.mxu0 %v587
      %1820 = vmatprep.subr.mxu0 0.0
      %1821 = vmatpush1.msra.mxu0 %v584
      %1822 = vmatprep.subr.mxu0 0.0
      %1823 = vmatpush2.msra.mxu0 0.0
      %1824 = vmatprep.subr.mxu0 0.0
      %1825 = vmatpush2.msra.mxu0 0.0
      %1826 = vmatprep.subr.mxu0 0.0
      %1827 = vmatpush2.msra.mxu0 0.0
      %1828 = vmatprep.subr.mxu0 0.0
      %1829 = vmatpush2.msra.mxu0 0.0
      %1830 = vmatprep.subr.mxu0 0.0
      %1831 = vmatpush2.msra.mxu0 0.0
      %1832 = vmatprep.subr.mxu0 0.0
      %1833 = vmatpush2.msra.mxu0 0.0
      %1834 = vmatprep.subr.mxu0 0.0
      %1835 = vmatpush2.msra.mxu0 0.0
      %1836 = vmatprep.subr.mxu0 0.0
      %1837 = vmatpush2.msra.mxu0 0.0
      %1838 = vmatprep.subr.mxu0 0.0
      %1839 = vmatpush2.msra.mxu0 0.0
      %1840 = vmatprep.subr.mxu0 0.0
      %1841 = vmatpush2.msra.mxu0 0.0
      %1842 = vmatprep.subr.mxu0 0.0
      %1843 = vmatpush2.msra.mxu0 0.0
      %1844 = vmatprep.subr.mxu0 0.0
      %1845 = vmatpush2.msra.mxu0 0.0
      %1846 = vmatprep.subr.mxu0 0.0
      %1847 = vmatpush2.msra.mxu0 0.0
      %1848 = vmatprep.subr.mxu0 0.0
      %1849 = vmatpush2.msra.mxu0 0.0
      %1850 = vmatprep.subr.mxu0 0.0
      %1851 = vmatpush2.msra.mxu0 0.0
      %1852 = vmatprep.subr.mxu0 0.0
      %1853 = vmatpush2.msra.mxu0 0.0
      %1854 = vmatprep.mubr.f32.mxu0 0.0
      %1855 = vmatmul.mubr.f32.gmra.mxu0 %v1702
      %v1856 = vpop.f32.mrf.mxu0
      %v1857 = vadd.f32 %v649, %v1856
      %v1858 = vpop.f32.mrf.mxu0
      %1859 = vdwg.mxu0
      %v1860 = vadd.f32 %v1716, %v1786
      %v1861 = vxor.u32 %v1860, 2147483648
      %v1862 = vmul.f32 %v1861, 1.442695
      %v1863 = vpow.pop %v1862
      %v1864 = vadd.f32 %v1863, 1.0
      %v1865 = vrcp.pop %v1864
      %v1866 = vmul.f32 1.0, %v1865
      %v1867 = vadd.f32 %v1717, %v1788
      %v1868 = vxor.u32 %v1867, 2147483648
      %v1869 = vmul.f32 %v1868, 1.442695
      %v1870 = vpow.pop %v1869
      %v1871 = vadd.f32 %v1870, 1.0
      %v1872 = vrcp.pop %v1871
      %v1873 = vmul.f32 1.0, %v1872
      %v1874 = vmul.f32 %v1866, %v1857
      %v1875 = vadd.f32 %v1718, %v1874
      %v1876 = vtanh.pop %v1875
      %v1877 = vsub.f32 1.0, %v1873
      %v1878 = vmul.f32 %v1877, %v1876
      %v1879 = vmul.f32 %v1873, %v1702
      %v1880 = vadd.f32 %v1878, %v1879
      %s1881 = scalar_lea.vmem %s2, 48
      %v1882 = vld [vmem:[%s1881] sm:$0xff]
      %1884 = vset.pattern.permute.xlu0 0
      %1885 = vperm.xlu0 %1884, %v1882
      %v1886 = vpop.permute.xlu0 %1885
      %v1888 = vmul.f32 %v1880, %v1886
      %s1889 = scalar_lea.vmem [#allocation3], 48
      %1890 = vst [vmem:[%s1889] sm:$0xff] %v1888
      %s1891 = smul.u32 7, 3
      %s1892 = smul.addr %s1891, 8
      %s1893 = scalar_lea.vmem [#allocation2], %s1892
      %v1894 = vld [vmem:[%s1893] sm:$0xff]
      %v1895 = vld [vmem:[%s1893 + $0x8] sm:$0xff]
      %v1896 = vld [vmem:[%s1893 + $0x10] sm:$0xff]
      %1897 = vmatprep.subr.mxu0 %v628
      %1898 = vmatpush1.msra.mxu0 %v627
      %1899 = vmatprep.subr.mxu0 %v625
      %1900 = vmatpush1.msra.mxu0 %v624
      %1901 = vmatprep.subr.mxu0 %v622
      %1902 = vmatpush1.msra.mxu0 %v621
      %1903 = vmatprep.subr.mxu0 %v619
      %1904 = vmatpush1.msra.mxu0 %v618
      %1905 = vmatprep.subr.mxu0 %v616
      %1906 = vmatpush1.msra.mxu0 %v615
      %1907 = vmatprep.subr.mxu0 %v613
      %1908 = vmatpush1.msra.mxu0 %v612
      %1909 = vmatprep.subr.mxu0 %v610
      %1910 = vmatpush1.msra.mxu0 %v609
      %1911 = vmatprep.subr.mxu0 %v607
      %1912 = vmatpush1.msra.mxu0 %v606
      %1913 = vmatprep.subr.mxu0 %v604
      %1914 = vmatpush1.msra.mxu0 %v603
      %1915 = vmatprep.subr.mxu0 %v601
      %1916 = vmatpush1.msra.mxu0 %v600
      %1917 = vmatprep.subr.mxu0 %v598
      %1918 = vmatpush1.msra.mxu0 %v597
      %1919 = vmatprep.subr.mxu0 %v595
      %1920 = vmatpush1.msra.mxu0 %v594
      %1921 = vmatprep.subr.mxu0 %v592
      %1922 = vmatpush1.msra.mxu0 %v591
      %1923 = vmatprep.subr.mxu0 %v589
      %1924 = vmatpush1.msra.mxu0 %v588
      %1925 = vmatprep.subr.mxu0 %v586
      %1926 = vmatpush1.msra.mxu0 %v585
      %1927 = vmatprep.subr.mxu0 %v583
      %1928 = vmatpush1.msra.mxu0 %v582
      %1929 = vmatprep.subr.mxu0 0.0
      %1930 = vmatpush2.msra.mxu0 0.0
      %1931 = vmatprep.subr.mxu0 0.0
      %1932 = vmatpush2.msra.mxu0 0.0
      %1933 = vmatprep.subr.mxu0 0.0
      %1934 = vmatpush2.msra.mxu0 0.0
      %1935 = vmatprep.subr.mxu0 0.0
      %1936 = vmatpush2.msra.mxu0 0.0
      %1937 = vmatprep.subr.mxu0 0.0
      %1938 = vmatpush2.msra.mxu0 0.0
      %1939 = vmatprep.subr.mxu0 0.0
      %1940 = vmatpush2.msra.mxu0 0.0
      %1941 = vmatprep.subr.mxu0 0.0
      %1942 = vmatpush2.msra.mxu0 0.0
      %1943 = vmatprep.subr.mxu0 0.0
      %1944 = vmatpush2.msra.mxu0 0.0
      %1945 = vmatprep.subr.mxu0 0.0
      %1946 = vmatpush2.msra.mxu0 0.0
      %1947 = vmatprep.subr.mxu0 0.0
      %1948 = vmatpush2.msra.mxu0 0.0
      %1949 = vmatprep.subr.mxu0 0.0
      %1950 = vmatpush2.msra.mxu0 0.0
      %1951 = vmatprep.subr.mxu0 0.0
      %1952 = vmatpush2.msra.mxu0 0.0
      %1953 = vmatprep.subr.mxu0 0.0
      %1954 = vmatpush2.msra.mxu0 0.0
      %1955 = vmatprep.subr.mxu0 0.0
      %1956 = vmatpush2.msra.mxu0 0.0
      %1957 = vmatprep.subr.mxu0 0.0
      %1958 = vmatpush2.msra.mxu0 0.0
      %1959 = vmatprep.subr.mxu0 0.0
      %1960 = vmatpush2.msra.mxu0 0.0
      %1961 = vmatprep.mubr.f32.mxu0 0.0
      %1962 = vmatmul.mubr.f32.gmra.mxu0 %v1880
      %v1963 = vpop.f32.mrf.mxu0
      %v1964 = vadd.f32 %v641, %v1963
      %v1965 = vpop.f32.mrf.mxu0
      %v1966 = vadd.f32 %v645, %v1965
      %1967 = vdwg.mxu0
      %1968 = vmatprep.subr.mxu0 0.0
      %1969 = vmatpush1.msra.mxu0 %v629
      %1970 = vmatprep.subr.mxu0 0.0
      %1971 = vmatpush1.msra.mxu0 %v626
      %1972 = vmatprep.subr.mxu0 0.0
      %1973 = vmatpush1.msra.mxu0 %v623
      %1974 = vmatprep.subr.mxu0 0.0
      %1975 = vmatpush1.msra.mxu0 %v620
      %1976 = vmatprep.subr.mxu0 0.0
      %1977 = vmatpush1.msra.mxu0 %v617
      %1978 = vmatprep.subr.mxu0 0.0
      %1979 = vmatpush1.msra.mxu0 %v614
      %1980 = vmatprep.subr.mxu0 0.0
      %1981 = vmatpush1.msra.mxu0 %v611
      %1982 = vmatprep.subr.mxu0 0.0
      %1983 = vmatpush1.msra.mxu0 %v608
      %1984 = vmatprep.subr.mxu0 0.0
      %1985 = vmatpush1.msra.mxu0 %v605
      %1986 = vmatprep.subr.mxu0 0.0
      %1987 = vmatpush1.msra.mxu0 %v602
      %1988 = vmatprep.subr.mxu0 0.0
      %1989 = vmatpush1.msra.mxu0 %v599
      %1990 = vmatprep.subr.mxu0 0.0
      %1991 = vmatpush1.msra.mxu0 %v596
      %1992 = vmatprep.subr.mxu0 0.0
      %1993 = vmatpush1.msra.mxu0 %v593
      %1994 = vmatprep.subr.mxu0 0.0
      %1995 = vmatpush1.msra.mxu0 %v590
      %1996 = vmatprep.subr.mxu0 0.0
      %1997 = vmatpush1.msra.mxu0 %v587
      %1998 = vmatprep.subr.mxu0 0.0
      %1999 = vmatpush1.msra.mxu0 %v584
      %2000 = vmatprep.subr.mxu0 0.0
      %2001 = vmatpush2.msra.mxu0 0.0
      %2002 = vmatprep.subr.mxu0 0.0
      %2003 = vmatpush2.msra.mxu0 0.0
      %2004 = vmatprep.subr.mxu0 0.0
      %2005 = vmatpush2.msra.mxu0 0.0
      %2006 = vmatprep.subr.mxu0 0.0
      %2007 = vmatpush2.msra.mxu0 0.0
      %2008 = vmatprep.subr.mxu0 0.0
      %2009 = vmatpush2.msra.mxu0 0.0
      %2010 = vmatprep.subr.mxu0 0.0
      %2011 = vmatpush2.msra.mxu0 0.0
      %2012 = vmatprep.subr.mxu0 0.0
      %2013 = vmatpush2.msra.mxu0 0.0
      %2014 = vmatprep.subr.mxu0 0.0
      %2015 = vmatpush2.msra.mxu0 0.0
      %2016 = vmatprep.subr.mxu0 0.0
      %2017 = vmatpush2.msra.mxu0 0.0
      %2018 = vmatprep.subr.mxu0 0.0
      %2019 = vmatpush2.msra.mxu0 0.0
      %2020 = vmatprep.subr.mxu0 0.0
      %2021 = vmatpush2.msra.mxu0 0.0
      %2022 = vmatprep.subr.mxu0 0.0
      %2023 = vmatpush2.msra.mxu0 0.0
      %2024 = vmatprep.subr.mxu0 0.0
      %2025 = vmatpush2.msra.mxu0 0.0
      %2026 = vmatprep.subr.mxu0 0.0
      %2027 = vmatpush2.msra.mxu0 0.0
      %2028 = vmatprep.subr.mxu0 0.0
      %2029 = vmatpush2.msra.mxu0 0.0
      %2030 = vmatprep.subr.mxu0 0.0
      %2031 = vmatpush2.msra.mxu0 0.0
      %2032 = vmatprep.mubr.f32.mxu0 0.0
      %2033 = vmatmul.mubr.f32.gmra.mxu0 %v1880
      %v2034 = vpop.f32.mrf.mxu0
      %v2035 = vadd.f32 %v649, %v2034
      %v2036 = vpop.f32.mrf.mxu0
      %2037 = vdwg.mxu0
      %v2038 = vadd.f32 %v1894, %v1964
      %v2039 = vxor.u32 %v2038, 2147483648
      %v2040 = vmul.f32 %v2039, 1.442695
      %v2041 = vpow.pop %v2040
      %v2042 = vadd.f32 %v2041, 1.0
      %v2043 = vrcp.pop %v2042
      %v2044 = vmul.f32 1.0, %v2043
      %v2045 = vadd.f32 %v1895, %v1966
      %v2046 = vxor.u32 %v2045, 2147483648
      %v2047 = vmul.f32 %v2046, 1.442695
      %v2048 = vpow.pop %v2047
      %v2049 = vadd.f32 %v2048, 1.0
      %v2050 = vrcp.pop %v2049
      %v2051 = vmul.f32 1.0, %v2050
      %v2052 = vmul.f32 %v2044, %v2035
      %v2053 = vadd.f32 %v1896, %v2052
      %v2054 = vtanh.pop %v2053
      %v2055 = vsub.f32 1.0, %v2051
      %v2056 = vmul.f32 %v2055, %v2054
      %v2057 = vmul.f32 %v2051, %v1880
      %v2058 = vadd.f32 %v2056, %v2057
      %s2059 = scalar_lea.vmem %s2, 56
      %v2060 = vld [vmem:[%s2059] sm:$0xff]
      %2062 = vset.pattern.permute.xlu0 0
      %2063 = vperm.xlu0 %2062, %v2060
      %v2064 = vpop.permute.xlu0 %2063
      %v2066 = vmul.f32 %v2058, %v2064
      %s2067 = scalar_lea.vmem [#allocation3], 56
      %2068 = vst [vmem:[%s2067] sm:$0xff] %v2066
      %vm2069 = vcmask 7168
      %2070 = vst.msk [vmem:[#allocation4] sm:$0xff] %vm2069, -inf
      %2071 = vst.msk [vmem:[#allocation4 + $0x8] sm:$0xff] %vm2069, -inf
      %2072 = vst.msk [vmem:[#allocation4 + $0x10] sm:$0xff] %vm2069, -inf
      %2073 = vst.msk [vmem:[#allocation4 + $0x18] sm:$0xff] %vm2069, -inf
      %2074 = vst.msk [vmem:[#allocation4 + $0x20] sm:$0xff] %vm2069, -inf
      %2075 = vst.msk [vmem:[#allocation4 + $0x28] sm:$0xff] %vm2069, -inf
      %2076 = vst.msk [vmem:[#allocation4 + $0x30] sm:$0xff] %vm2069, -inf
      %2077 = vst.msk [vmem:[#allocation4 + $0x38] sm:$0xff] %vm2069, -inf
      %2078 = vst.msk [vmem:[#allocation5] sm:$0xff] %vm2069, 0.0
      %2079 = vst.msk [vmem:[#allocation5 + $0x8] sm:$0xff] %vm2069, 0.0
      %2080 = vst.msk [vmem:[#allocation5 + $0x10] sm:$0xff] %vm2069, 0.0
      %2081 = vst.msk [vmem:[#allocation5 + $0x18] sm:$0xff] %vm2069, 0.0
      %2082 = vst.msk [vmem:[#allocation5 + $0x20] sm:$0xff] %vm2069, 0.0
      %2083 = vst.msk [vmem:[#allocation5 + $0x28] sm:$0xff] %vm2069, 0.0
      %2084 = vst.msk [vmem:[#allocation5 + $0x30] sm:$0xff] %vm2069, 0.0
      %2085 = vst.msk [vmem:[#allocation5 + $0x38] sm:$0xff] %vm2069, 0.0
      %2086 = vst.msk [vmem:[#allocation6] sm:$0xff] %vm2069, 0.0
      %2087 = vst.msk [vmem:[#allocation6 + $0x8] sm:$0xff] %vm2069, 0.0
      %2088 = vst.msk [vmem:[#allocation6 + $0x10] sm:$0xff] %vm2069, 0.0
      %2089 = vst.msk [vmem:[#allocation6 + $0x18] sm:$0xff] %vm2069, 0.0
      %2090 = vst.msk [vmem:[#allocation6 + $0x20] sm:$0xff] %vm2069, 0.0
      %2091 = vst.msk [vmem:[#allocation6 + $0x28] sm:$0xff] %vm2069, 0.0
      %2092 = vst.msk [vmem:[#allocation6 + $0x30] sm:$0xff] %vm2069, 0.0
      %2093 = vst.msk [vmem:[#allocation6 + $0x38] sm:$0xff] %vm2069, 0.0
    $region73: #{tpu_custom_call.1} parent=1 // pred_fallthru
      _
    %v2094 = vld [vmem:[#allocation3] sm:$0xff]
    %v2095 = vld [vmem:[#allocation3 + $0x8] sm:$0xff]
    %v2096 = vld [vmem:[#allocation3 + $0x10] sm:$0xff]
    %v2097 = vld [vmem:[#allocation3 + $0x18] sm:$0xff]
    %v2098 = vld [vmem:[#allocation3 + $0x20] sm:$0xff]
    %v2099 = vld [vmem:[#allocation3 + $0x28] sm:$0xff]
    %v2100 = vld [vmem:[#allocation3 + $0x30] sm:$0xff]
    %v2101 = vld [vmem:[#allocation3 + $0x38] sm:$0xff]
    %v2102 = vpack.c.bf16 %v2095, %v2094
    %v2103 = vpack.c.bf16 %v2097, %v2096
    %v2104 = vpack.c.bf16 %v2099, %v2098
    %v2105 = vpack.c.bf16 %v2101, %v2100
    %v2106 = vld [vmem:[#allocation16] sm:$0xf]
    %v2107 = vld [vmem:[#allocation16 + $0x4] sm:$0xf]
    %v2108 = vld [vmem:[#allocation16 + $0x8] sm:$0xf]
    %v2109 = vld [vmem:[#allocation16 + $0xc] sm:$0xf]
    %v2110 = vld [vmem:[#allocation16 + $0x10] sm:$0xf]
    %v2111 = vld [vmem:[#allocation16 + $0x14] sm:$0xf]
    %v2112 = vld [vmem:[#allocation16 + $0x18] sm:$0xf]
    %v2113 = vld [vmem:[#allocation16 + $0x1c] sm:$0xf]
    %v2114 = vld [vmem:[#allocation16 + $0x20] sm:$0xf]
    %v2115 = vld [vmem:[#allocation16 + $0x24] sm:$0xf]
    %v2116 = vld [vmem:[#allocation16 + $0x28] sm:$0xf]
    %v2117 = vld [vmem:[#allocation16 + $0x2c] sm:$0xf]
    %v2118 = vld [vmem:[#allocation16 + $0x30] sm:$0xf]
    %v2119 = vld [vmem:[#allocation16 + $0x34] sm:$0xf]
    %v2120 = vld [vmem:[#allocation16 + $0x38] sm:$0xf]
    %v2121 = vld [vmem:[#allocation16 + $0x3c] sm:$0xf]
    %v2122 = vld [vmem:[%s11] sm:$0x1]
    %v2124 = vlaneseq
    %v2125 = vshrl.u32 %v2124, 7
    %v2126 = vsub.s32 0, %v2125
    %v2127 = vrot.slane %v2122, %v2126
    %v2145 = vunpack.c.l.b16 %v2106
    %v2146 = vunpack.c.l.b16 %v2107
    %v2147 = vunpack.c.l.b16 %v2108
    %v2148 = vunpack.c.l.b16 %v2109
    %v2149 = vunpack.c.l.b16 %v2110
    %v2150 = vunpack.c.l.b16 %v2111
    %v2151 = vunpack.c.l.b16 %v2112
    %v2152 = vunpack.c.l.b16 %v2113
    %v2153 = vunpack.c.l.b16 %v2114
    %v2154 = vunpack.c.l.b16 %v2115
    %v2155 = vunpack.c.l.b16 %v2116
    %v2156 = vunpack.c.l.b16 %v2117
    %v2157 = vunpack.c.l.b16 %v2118
    %v2158 = vunpack.c.l.b16 %v2119
    %v2159 = vunpack.c.l.b16 %v2120
    %v2160 = vunpack.c.l.b16 %v2121
    %v2161 = vpack.c.b16 %v2146, %v2145
    %v2162 = vpack.c.b16 %v2148, %v2147
    %v2163 = vpack.c.b16 %v2150, %v2149
    %v2164 = vpack.c.b16 %v2152, %v2151
    %v2165 = vpack.c.b16 %v2154, %v2153
    %v2166 = vpack.c.b16 %v2156, %v2155
    %v2167 = vpack.c.b16 %v2158, %v2157
    %v2168 = vpack.c.b16 %v2160, %v2159
    %2177 = vmatprep.subr.bf16.mxu0 0
    %2178 = vmatpush1.bf16.msra.mxu0 %v2168
    %2179 = vmatprep.subr.bf16.mxu0 0
    %2180 = vmatpush1.bf16.msra.mxu0 %v2167
    %2181 = vmatprep.subr.bf16.mxu0 0
    %2182 = vmatpush1.bf16.msra.mxu0 %v2166
    %2183 = vmatprep.subr.bf16.mxu0 0
    %2184 = vmatpush1.bf16.msra.mxu0 %v2165
    %2185 = vmatprep.subr.bf16.mxu0 0
    %2186 = vmatpush1.bf16.msra.mxu0 %v2164
    %2187 = vmatprep.subr.bf16.mxu0 0
    %2188 = vmatpush1.bf16.msra.mxu0 %v2163
    %2189 = vmatprep.subr.bf16.mxu0 0
    %2190 = vmatpush1.bf16.msra.mxu0 %v2162
    %2191 = vmatprep.subr.bf16.mxu0 0
    %2192 = vmatpush1.bf16.msra.mxu0 %v2161
    %2193 = vmatprep.subr.bf16.mxu0 0
    %2194 = vmatpush2.bf16.msra.mxu0 0
    %2195 = vmatprep.subr.bf16.mxu0 0
    %2196 = vmatpush2.bf16.msra.mxu0 0
    %2197 = vmatprep.subr.bf16.mxu0 0
    %2198 = vmatpush2.bf16.msra.mxu0 0
    %2199 = vmatprep.subr.bf16.mxu0 0
    %2200 = vmatpush2.bf16.msra.mxu0 0
    %2201 = vmatprep.subr.bf16.mxu0 0
    %2202 = vmatpush2.bf16.msra.mxu0 0
    %2203 = vmatprep.subr.bf16.mxu0 0
    %2204 = vmatpush2.bf16.msra.mxu0 0
    %2205 = vmatprep.subr.bf16.mxu0 0
    %2206 = vmatpush2.bf16.msra.mxu0 0
    %2207 = vmatprep.subr.bf16.mxu0 0
    %2208 = vmatpush2.bf16.msra.mxu0 0
    %2209 = vmatprep.mubr.bf16.mxu0 0
    %2210 = vmatmul.mubr.bf16.gmra.mxu0 %v2102
    %v2211 = vpop.f32.mrf.mxu0
    %v2212 = vadd.f32 %v2127, %v2211
    %v2213 = vpop.f32.mrf.mxu0
    %v2214 = vpop.f32.mrf.mxu0
    %v2215 = vadd.f32 %v2127, %v2214
    %v2216 = vpop.f32.mrf.mxu0
    %2217 = vmatprep.mubr.bf16.mxu0 0
    %2218 = vmatmul.mubr.bf16.gmra.mxu0 %v2103
    %v2219 = vpop.f32.mrf.mxu0
    %v2220 = vadd.f32 %v2127, %v2219
    %v2221 = vpop.f32.mrf.mxu0
    %v2222 = vpop.f32.mrf.mxu0
    %v2223 = vadd.f32 %v2127, %v2222
    %v2224 = vpop.f32.mrf.mxu0
    %2225 = vmatprep.mubr.bf16.mxu0 0
    %2226 = vmatmul.mubr.bf16.gmra.mxu0 %v2104
    %v2227 = vpop.f32.mrf.mxu0
    %v2228 = vadd.f32 %v2127, %v2227
    %v2229 = vpop.f32.mrf.mxu0
    %v2230 = vpop.f32.mrf.mxu0
    %v2231 = vadd.f32 %v2127, %v2230
    %v2232 = vpop.f32.mrf.mxu0
    %2233 = vmatprep.mubr.bf16.mxu0 0
    %2234 = vmatmul.mubr.bf16.gmra.mxu0 %v2105
    %v2235 = vpop.f32.mrf.mxu0
    %v2236 = vadd.f32 %v2127, %v2235
    %v2237 = vpop.f32.mrf.mxu0
    %v2238 = vpop.f32.mrf.mxu0
    %v2239 = vadd.f32 %v2127, %v2238
    %v2240 = vpop.f32.mrf.mxu0
    %2241 = vdwg.mxu0
    %v2242 = vlaneseq
    %v2243 = vand.u32 %v2242, 127
    %s2244 = smul.u32 0, 128
    %v2245 = vstv %s2244
    %v2246 = vadd.s32 %v2243, %v2245
    %v2247 = vld [vmem:[%s3] sm:$0xff]
    %v2248 = vld [vmem:[%s3 + $0x8] sm:$0xff]
    %v2249 = vld [vmem:[%s3 + $0x10] sm:$0xff]
    %v2250 = vld [vmem:[%s3 + $0x18] sm:$0xff]
    %v2251 = vld [vmem:[%s3 + $0x20] sm:$0xff]
    %v2252 = vld [vmem:[%s3 + $0x28] sm:$0xff]
    %v2253 = vld [vmem:[%s3 + $0x30] sm:$0xff]
    %v2254 = vld [vmem:[%s3 + $0x38] sm:$0xff]
    %v2255 = vld [vmem:[#allocation4] sm:$0xff]
    %v2256 = vld [vmem:[#allocation4 + $0x8] sm:$0xff]
    %v2257 = vld [vmem:[#allocation4 + $0x10] sm:$0xff]
    %v2258 = vld [vmem:[#allocation4 + $0x18] sm:$0xff]
    %v2259 = vld [vmem:[#allocation4 + $0x20] sm:$0xff]
    %v2260 = vld [vmem:[#allocation4 + $0x28] sm:$0xff]
    %v2261 = vld [vmem:[#allocation4 + $0x30] sm:$0xff]
    %v2262 = vld [vmem:[#allocation4 + $0x38] sm:$0xff]
    %2263 = vmax.xlane.f32.xlu0 %v2212
    %v2264 = vpop.xlane.xlu0 %2263
    %2265 = vmax.xlane.f32.xlu0 %v2215
    %v2266 = vpop.xlane.xlu0 %2265
    %2267 = vmax.xlane.f32.xlu0 %v2220
    %v2268 = vpop.xlane.xlu0 %2267
    %2269 = vmax.xlane.f32.xlu0 %v2223
    %v2270 = vpop.xlane.xlu0 %2269
    %2271 = vmax.xlane.f32.xlu0 %v2228
    %v2272 = vpop.xlane.xlu0 %2271
    %2273 = vmax.xlane.f32.xlu0 %v2231
    %v2274 = vpop.xlane.xlu0 %2273
    %2275 = vmax.xlane.f32.xlu0 %v2236
    %v2276 = vpop.xlane.xlu0 %2275
    %2277 = vmax.xlane.f32.xlu0 %v2239
    %v2278 = vpop.xlane.xlu0 %2277
    %v2279 = vmax.f32 %v2255, %v2264
    %v2280 = vmax.f32 %v2256, %v2266
    %v2281 = vmax.f32 %v2257, %v2268
    %v2282 = vmax.f32 %v2258, %v2270
    %v2283 = vmax.f32 %v2259, %v2272
    %v2284 = vmax.f32 %v2260, %v2274
    %v2285 = vmax.f32 %v2261, %v2276
    %v2286 = vmax.f32 %v2262, %v2278
    %v2287 = vld [vmem:[#allocation5] sm:$0xff]
    %v2288 = vld [vmem:[#allocation5 + $0x8] sm:$0xff]
    %v2289 = vld [vmem:[#allocation5 + $0x10] sm:$0xff]
    %v2290 = vld [vmem:[#allocation5 + $0x18] sm:$0xff]
    %v2291 = vld [vmem:[#allocation5 + $0x20] sm:$0xff]
    %v2292 = vld [vmem:[#allocation5 + $0x28] sm:$0xff]
    %v2293 = vld [vmem:[#allocation5 + $0x30] sm:$0xff]
    %v2294 = vld [vmem:[#allocation5 + $0x38] sm:$0xff]
    %v2295 = vsub.f32 %v2255, %v2279
    %v2296 = vsub.f32 %v2256, %v2280
    %v2297 = vsub.f32 %v2257, %v2281
    %v2298 = vsub.f32 %v2258, %v2282
    %v2299 = vsub.f32 %v2259, %v2283
    %v2300 = vsub.f32 %v2260, %v2284
    %v2301 = vsub.f32 %v2261, %v2285
    %v2302 = vsub.f32 %v2262, %v2286
    %v2303 = vmul.f32 %v2295, 1.442695
    %v2304 = vpow.pop %v2303
    %v2305 = vmul.f32 %v2296, 1.442695
    %v2306 = vpow.pop %v2305
    %v2307 = vmul.f32 %v2297, 1.442695
    %v2308 = vpow.pop %v2307
    %v2309 = vmul.f32 %v2298, 1.442695
    %v2310 = vpow.pop %v2309
    %v2311 = vmul.f32 %v2299, 1.442695
    %v2312 = vpow.pop %v2311
    %v2313 = vmul.f32 %v2300, 1.442695
    %v2314 = vpow.pop %v2313
    %v2315 = vmul.f32 %v2301, 1.442695
    %v2316 = vpow.pop %v2315
    %v2317 = vmul.f32 %v2302, 1.442695
    %v2318 = vpow.pop %v2317
    %v2319 = vmul.f32 %v2287, %v2304
    %v2320 = vmul.f32 %v2288, %v2306
    %v2321 = vmul.f32 %v2289, %v2308
    %v2322 = vmul.f32 %v2290, %v2310
    %v2323 = vmul.f32 %v2291, %v2312
    %v2324 = vmul.f32 %v2292, %v2314
    %v2325 = vmul.f32 %v2293, %v2316
    %v2326 = vmul.f32 %v2294, %v2318
    %2328 = vset.pattern.permute.xlu0 0
    %2329 = vperm.xlu0 %2328, %v2279
    %v2330 = vpop.permute.xlu0 %2329
    %2333 = vset.pattern.permute.xlu0 0
    %2334 = vperm.xlu0 %2333, %v2280
    %v2335 = vpop.permute.xlu0 %2334
    %2338 = vset.pattern.permute.xlu0 0
    %2339 = vperm.xlu0 %2338, %v2281
    %v2340 = vpop.permute.xlu0 %2339
    %2343 = vset.pattern.permute.xlu0 0
    %2344 = vperm.xlu0 %2343, %v2282
    %v2345 = vpop.permute.xlu0 %2344
    %2348 = vset.pattern.permute.xlu0 0
    %2349 = vperm.xlu0 %2348, %v2283
    %v2350 = vpop.permute.xlu0 %2349
    %2353 = vset.pattern.permute.xlu0 0
    %2354 = vperm.xlu0 %2353, %v2284
    %v2355 = vpop.permute.xlu0 %2354
    %2358 = vset.pattern.permute.xlu0 0
    %2359 = vperm.xlu0 %2358, %v2285
    %v2360 = vpop.permute.xlu0 %2359
    %2363 = vset.pattern.permute.xlu0 0
    %2364 = vperm.xlu0 %2363, %v2286
    %v2365 = vpop.permute.xlu0 %2364
    %v2367 = vsub.f32 %v2212, %v2330
    %v2368 = vsub.f32 %v2215, %v2335
    %v2369 = vsub.f32 %v2220, %v2340
    %v2370 = vsub.f32 %v2223, %v2345
    %v2371 = vsub.f32 %v2228, %v2350
    %v2372 = vsub.f32 %v2231, %v2355
    %v2373 = vsub.f32 %v2236, %v2360
    %v2374 = vsub.f32 %v2239, %v2365
    %v2375 = vmul.f32 %v2367, 1.442695
    %v2376 = vpow.pop %v2375
    %v2377 = vmul.f32 %v2368, 1.442695
    %v2378 = vpow.pop %v2377
    %v2379 = vmul.f32 %v2369, 1.442695
    %v2380 = vpow.pop %v2379
    %v2381 = vmul.f32 %v2370, 1.442695
    %v2382 = vpow.pop %v2381
    %v2383 = vmul.f32 %v2371, 1.442695
    %v2384 = vpow.pop %v2383
    %v2385 = vmul.f32 %v2372, 1.442695
    %v2386 = vpow.pop %v2385
    %v2387 = vmul.f32 %v2373, 1.442695
    %v2388 = vpow.pop %v2387
    %v2389 = vmul.f32 %v2374, 1.442695
    %v2390 = vpow.pop %v2389
    %2391 = vadd.xlane.f32.xlu0 %v2376
    %v2392 = vpop.xlane.xlu0 %2391
    %2393 = vadd.xlane.f32.xlu0 %v2378
    %v2394 = vpop.xlane.xlu0 %2393
    %2395 = vadd.xlane.f32.xlu0 %v2380
    %v2396 = vpop.xlane.xlu0 %2395
    %2397 = vadd.xlane.f32.xlu0 %v2382
    %v2398 = vpop.xlane.xlu0 %2397
    %2399 = vadd.xlane.f32.xlu0 %v2384
    %v2400 = vpop.xlane.xlu0 %2399
    %2401 = vadd.xlane.f32.xlu0 %v2386
    %v2402 = vpop.xlane.xlu0 %2401
    %2403 = vadd.xlane.f32.xlu0 %v2388
    %v2404 = vpop.xlane.xlu0 %2403
    %2405 = vadd.xlane.f32.xlu0 %v2390
    %v2406 = vpop.xlane.xlu0 %2405
    %v2407 = vadd.f32 %v2319, %v2392
    %v2408 = vadd.f32 %v2320, %v2394
    %v2409 = vadd.f32 %v2321, %v2396
    %v2410 = vadd.f32 %v2322, %v2398
    %v2411 = vadd.f32 %v2323, %v2400
    %v2412 = vadd.f32 %v2324, %v2402
    %v2413 = vadd.f32 %v2325, %v2404
    %v2414 = vadd.f32 %v2326, %v2406
    %vm2415 = vcmask 7168
    %2416 = vst.msk [vmem:[#allocation5] sm:$0xff] %vm2415, %v2407
    %2417 = vst.msk [vmem:[#allocation5 + $0x8] sm:$0xff] %vm2415, %v2408
    %2418 = vst.msk [vmem:[#allocation5 + $0x10] sm:$0xff] %vm2415, %v2409
    %2419 = vst.msk [vmem:[#allocation5 + $0x18] sm:$0xff] %vm2415, %v2410
    %2420 = vst.msk [vmem:[#allocation5 + $0x20] sm:$0xff] %vm2415, %v2411
    %2421 = vst.msk [vmem:[#allocation5 + $0x28] sm:$0xff] %vm2415, %v2412
    %2422 = vst.msk [vmem:[#allocation5 + $0x30] sm:$0xff] %vm2415, %v2413
    %2423 = vst.msk [vmem:[#allocation5 + $0x38] sm:$0xff] %vm2415, %v2414
    %v2424 = vld [vmem:[#allocation6] sm:$0xff]
    %v2425 = vld [vmem:[#allocation6 + $0x8] sm:$0xff]
    %v2426 = vld [vmem:[#allocation6 + $0x10] sm:$0xff]
    %v2427 = vld [vmem:[#allocation6 + $0x18] sm:$0xff]
    %v2428 = vld [vmem:[#allocation6 + $0x20] sm:$0xff]
    %v2429 = vld [vmem:[#allocation6 + $0x28] sm:$0xff]
    %v2430 = vld [vmem:[#allocation6 + $0x30] sm:$0xff]
    %v2431 = vld [vmem:[#allocation6 + $0x38] sm:$0xff]
    %2432 = vset.pattern.permute.xlu0 0
    %2433 = vperm.xlu0 %2432, %v2247
    %v2434 = vpop.permute.xlu0 %2433
    %2435 = vset.pattern.permute.xlu0 0
    %2436 = vperm.xlu0 %2435, %v2248
    %v2437 = vpop.permute.xlu0 %2436
    %2438 = vset.pattern.permute.xlu0 0
    %2439 = vperm.xlu0 %2438, %v2249
    %v2440 = vpop.permute.xlu0 %2439
    %2441 = vset.pattern.permute.xlu0 0
    %2442 = vperm.xlu0 %2441, %v2250
    %v2443 = vpop.permute.xlu0 %2442
    %2444 = vset.pattern.permute.xlu0 0
    %2445 = vperm.xlu0 %2444, %v2251
    %v2446 = vpop.permute.xlu0 %2445
    %2447 = vset.pattern.permute.xlu0 0
    %2448 = vperm.xlu0 %2447, %v2252
    %v2449 = vpop.permute.xlu0 %2448
    %2450 = vset.pattern.permute.xlu0 0
    %2451 = vperm.xlu0 %2450, %v2253
    %v2452 = vpop.permute.xlu0 %2451
    %2453 = vset.pattern.permute.xlu0 0
    %2454 = vperm.xlu0 %2453, %v2254
    %v2455 = vpop.permute.xlu0 %2454
    %vm2456 = vcmp.eq.s32.totalorder %v2246, %v2434
    %vm2457 = vcmp.eq.s32.totalorder %v2246, %v2437
    %vm2458 = vcmp.eq.s32.totalorder %v2246, %v2440
    %vm2459 = vcmp.eq.s32.totalorder %v2246, %v2443
    %vm2460 = vcmp.eq.s32.totalorder %v2246, %v2446
    %vm2461 = vcmp.eq.s32.totalorder %v2246, %v2449
    %vm2462 = vcmp.eq.s32.totalorder %v2246, %v2452
    %vm2463 = vcmp.eq.s32.totalorder %v2246, %v2455
    %v2464 = vsel %vm2456, %v2212, 0.0
    %v2465 = vsel %vm2457, %v2215, 0.0
    %v2466 = vsel %vm2458, %v2220, 0.0
    %v2467 = vsel %vm2459, %v2223, 0.0
    %v2468 = vsel %vm2460, %v2228, 0.0
    %v2469 = vsel %vm2461, %v2231, 0.0
    %v2470 = vsel %vm2462, %v2236, 0.0
    %v2471 = vsel %vm2463, %v2239, 0.0
    %2472 = vadd.xlane.f32.xlu0 %v2464
    %v2473 = vpop.xlane.xlu0 %2472
    %2474 = vadd.xlane.f32.xlu0 %v2465
    %v2475 = vpop.xlane.xlu0 %2474
    %2476 = vadd.xlane.f32.xlu0 %v2466
    %v2477 = vpop.xlane.xlu0 %2476
    %2478 = vadd.xlane.f32.xlu0 %v2467
    %v2479 = vpop.xlane.xlu0 %2478
    %2480 = vadd.xlane.f32.xlu0 %v2468
    %v2481 = vpop.xlane.xlu0 %2480
    %2482 = vadd.xlane.f32.xlu0 %v2469
    %v2483 = vpop.xlane.xlu0 %2482
    %2484 = vadd.xlane.f32.xlu0 %v2470
    %v2485 = vpop.xlane.xlu0 %2484
    %2486 = vadd.xlane.f32.xlu0 %v2471
    %v2487 = vpop.xlane.xlu0 %2486
    %v2488 = vadd.f32 %v2424, %v2473
    %v2489 = vadd.f32 %v2425, %v2475
    %v2490 = vadd.f32 %v2426, %v2477
    %v2491 = vadd.f32 %v2427, %v2479
    %v2492 = vadd.f32 %v2428, %v2481
    %v2493 = vadd.f32 %v2429, %v2483
    %v2494 = vadd.f32 %v2430, %v2485
    %v2495 = vadd.f32 %v2431, %v2487
    %2496 = vst.msk [vmem:[#allocation6] sm:$0xff] %vm2415, %v2488
    %2497 = vst.msk [vmem:[#allocation6 + $0x8] sm:$0xff] %vm2415, %v2489
    %2498 = vst.msk [vmem:[#allocation6 + $0x10] sm:$0xff] %vm2415, %v2490
    %2499 = vst.msk [vmem:[#allocation6 + $0x18] sm:$0xff] %vm2415, %v2491
    %2500 = vst.msk [vmem:[#allocation6 + $0x20] sm:$0xff] %vm2415, %v2492
    %2501 = vst.msk [vmem:[#allocation6 + $0x28] sm:$0xff] %vm2415, %v2493
    %2502 = vst.msk [vmem:[#allocation6 + $0x30] sm:$0xff] %vm2415, %v2494
    %2503 = vst.msk [vmem:[#allocation6 + $0x38] sm:$0xff] %vm2415, %v2495
    %2504 = vst.msk [vmem:[#allocation4] sm:$0xff] %vm2415, %v2279
    %2505 = vst.msk [vmem:[#allocation4 + $0x8] sm:$0xff] %vm2415, %v2280
    %2506 = vst.msk [vmem:[#allocation4 + $0x10] sm:$0xff] %vm2415, %v2281
    %2507 = vst.msk [vmem:[#allocation4 + $0x18] sm:$0xff] %vm2415, %v2282
    %2508 = vst.msk [vmem:[#allocation4 + $0x20] sm:$0xff] %vm2415, %v2283
    %2509 = vst.msk [vmem:[#allocation4 + $0x28] sm:$0xff] %vm2415, %v2284
    %2510 = vst.msk [vmem:[#allocation4 + $0x30] sm:$0xff] %vm2415, %v2285
    %2511 = vst.msk [vmem:[#allocation4 + $0x38] sm:$0xff] %vm2415, %v2286
    // Predicated region
    $region74: #{tpu_custom_call.1} parent=1 // pred_check
      %p2512 = pneg %p112
    $region75: #{tpu_custom_call.1} parent=1 // pred_check_branch
      %2514 = sbr.rel (%p2512) target = $region77
    $region76: #{tpu_custom_call.1} parent=1 // pred_region
      %v2515 = vld [vmem:[#allocation4] sm:$0xff]
      %v2516 = vld [vmem:[#allocation4 + $0x8] sm:$0xff]
      %v2517 = vld [vmem:[#allocation4 + $0x10] sm:$0xff]
      %v2518 = vld [vmem:[#allocation4 + $0x18] sm:$0xff]
      %v2519 = vld [vmem:[#allocation4 + $0x20] sm:$0xff]
      %v2520 = vld [vmem:[#allocation4 + $0x28] sm:$0xff]
      %v2521 = vld [vmem:[#allocation4 + $0x30] sm:$0xff]
      %v2522 = vld [vmem:[#allocation4 + $0x38] sm:$0xff]
      %v2523 = vld [vmem:[#allocation5] sm:$0xff]
      %v2524 = vld [vmem:[#allocation5 + $0x8] sm:$0xff]
      %v2525 = vld [vmem:[#allocation5 + $0x10] sm:$0xff]
      %v2526 = vld [vmem:[#allocation5 + $0x18] sm:$0xff]
      %v2527 = vld [vmem:[#allocation5 + $0x20] sm:$0xff]
      %v2528 = vld [vmem:[#allocation5 + $0x28] sm:$0xff]
      %v2529 = vld [vmem:[#allocation5 + $0x30] sm:$0xff]
      %v2530 = vld [vmem:[#allocation5 + $0x38] sm:$0xff]
      %v2531 = vlog2.pop %v2523
      %v2532 = vmul.f32 %v2531, 0.6931472
      %v2533 = vlog2.pop %v2524
      %v2534 = vmul.f32 %v2533, 0.6931472
      %v2535 = vlog2.pop %v2525
      %v2536 = vmul.f32 %v2535, 0.6931472
      %v2537 = vlog2.pop %v2526
      %v2538 = vmul.f32 %v2537, 0.6931472
      %v2539 = vlog2.pop %v2527
      %v2540 = vmul.f32 %v2539, 0.6931472
      %v2541 = vlog2.pop %v2528
      %v2542 = vmul.f32 %v2541, 0.6931472
      %v2543 = vlog2.pop %v2529
      %v2544 = vmul.f32 %v2543, 0.6931472
      %v2545 = vlog2.pop %v2530
      %v2546 = vmul.f32 %v2545, 0.6931472
      %v2547 = vadd.f32 %v2515, %v2532
      %v2548 = vadd.f32 %v2516, %v2534
      %v2549 = vadd.f32 %v2517, %v2536
      %v2550 = vadd.f32 %v2518, %v2538
      %v2551 = vadd.f32 %v2519, %v2540
      %v2552 = vadd.f32 %v2520, %v2542
      %v2553 = vadd.f32 %v2521, %v2544
      %v2554 = vadd.f32 %v2522, %v2546
      %v2555 = vld [vmem:[#allocation6] sm:$0xff]
      %v2556 = vld [vmem:[#allocation6 + $0x8] sm:$0xff]
      %v2557 = vld [vmem:[#allocation6 + $0x10] sm:$0xff]
      %v2558 = vld [vmem:[#allocation6 + $0x18] sm:$0xff]
      %v2559 = vld [vmem:[#allocation6 + $0x20] sm:$0xff]
      %v2560 = vld [vmem:[#allocation6 + $0x28] sm:$0xff]
      %v2561 = vld [vmem:[#allocation6 + $0x30] sm:$0xff]
      %v2562 = vld [vmem:[#allocation6 + $0x38] sm:$0xff]
      %v2563 = vsub.f32 %v2547, %v2555
      %v2564 = vsub.f32 %v2548, %v2556
      %v2565 = vsub.f32 %v2549, %v2557
      %v2566 = vsub.f32 %v2550, %v2558
      %v2567 = vsub.f32 %v2551, %v2559
      %v2568 = vsub.f32 %v2552, %v2560
      %v2569 = vsub.f32 %v2553, %v2561
      %v2570 = vsub.f32 %v2554, %v2562
      %v2571 = vld [vmem:[%s3] sm:$0xff]
      %v2572 = vld [vmem:[%s3 + $0x8] sm:$0xff]
      %v2573 = vld [vmem:[%s3 + $0x10] sm:$0xff]
      %v2574 = vld [vmem:[%s3 + $0x18] sm:$0xff]
      %v2575 = vld [vmem:[%s3 + $0x20] sm:$0xff]
      %v2576 = vld [vmem:[%s3 + $0x28] sm:$0xff]
      %v2577 = vld [vmem:[%s3 + $0x30] sm:$0xff]
      %v2578 = vld [vmem:[%s3 + $0x38] sm:$0xff]
      %vm2579 = vcmp.ne.s32.totalorder %v2571, 0
      %vm2580 = vcmp.ne.s32.totalorder %v2572, 0
      %vm2581 = vcmp.ne.s32.totalorder %v2573, 0
      %vm2582 = vcmp.ne.s32.totalorder %v2574, 0
      %vm2583 = vcmp.ne.s32.totalorder %v2575, 0
      %vm2584 = vcmp.ne.s32.totalorder %v2576, 0
      %vm2585 = vcmp.ne.s32.totalorder %v2577, 0
      %vm2586 = vcmp.ne.s32.totalorder %v2578, 0
      %v2587 = vsel %vm2579, 1, 0
      %v2588 = vsel %vm2580, 1, 0
      %v2589 = vsel %vm2581, 1, 0
      %v2590 = vsel %vm2582, 1, 0
      %v2591 = vsel %vm2583, 1, 0
      %v2592 = vsel %vm2584, 1, 0
      %v2593 = vsel %vm2585, 1, 0
      %v2594 = vsel %vm2586, 1, 0
      %v2595 = vcvt.s32.f32 %v2587
      %v2596 = vcvt.s32.f32 %v2588
      %v2597 = vcvt.s32.f32 %v2589
      %v2598 = vcvt.s32.f32 %v2590
      %v2599 = vcvt.s32.f32 %v2591
      %v2600 = vcvt.s32.f32 %v2592
      %v2601 = vcvt.s32.f32 %v2593
      %v2602 = vcvt.s32.f32 %v2594
      %v2603 = vsel %vm2415, %v2595, 0.0
      %v2604 = vsel %vm2415, %v2596, 0.0
      %v2605 = vadd.f32 %v2603, %v2604
      %v2606 = vsel %vm2415, %v2597, 0.0
      %v2607 = vadd.f32 %v2605, %v2606
      %v2608 = vsel %vm2415, %v2598, 0.0
      %v2609 = vadd.f32 %v2607, %v2608
      %v2610 = vsel %vm2415, %v2599, 0.0
      %v2611 = vadd.f32 %v2609, %v2610
      %v2612 = vsel %vm2415, %v2600, 0.0
      %v2613 = vadd.f32 %v2611, %v2612
      %v2614 = vsel %vm2415, %v2601, 0.0
      %v2615 = vadd.f32 %v2613, %v2614
      %v2616 = vsel %vm2415, %v2602, 0.0
      %v2617 = vadd.f32 %v2615, %v2616
      %2618 = vadd.xlane.f32.xlu0 %v2617
      %v2619 = vpop.xlane.xlu0 %2618
      %v2620 = vrot.slane %v2619, 4
      %v2621 = vadd.f32 %v2619, %v2620
      %v2622 = vrot.slane %v2621, 2
      %v2623 = vadd.f32 %v2621, %v2622
      %v2624 = vrot.slane %v2623, 1
      %v2625 = vadd.f32 %v2623, %v2624
      %s2626 = vtos %v2625
      %s2627 = smax.f32 %s2626, 1.0
      %v2628 = vmul.f32 %v2563, %v2595
      %v2629 = vmul.f32 %v2564, %v2596
      %v2630 = vmul.f32 %v2565, %v2597
      %v2631 = vmul.f32 %v2566, %v2598
      %v2632 = vmul.f32 %v2567, %v2599
      %v2633 = vmul.f32 %v2568, %v2600
      %v2634 = vmul.f32 %v2569, %v2601
      %v2635 = vmul.f32 %v2570, %v2602
      %v2636 = vsel %vm2415, %v2628, 0.0
      %v2637 = vsel %vm2415, %v2629, 0.0
      %v2638 = vadd.f32 %v2636, %v2637
      %v2639 = vsel %vm2415, %v2630, 0.0
      %v2640 = vadd.f32 %v2638, %v2639
      %v2641 = vsel %vm2415, %v2631, 0.0
      %v2642 = vadd.f32 %v2640, %v2641
      %v2643 = vsel %vm2415, %v2632, 0.0
      %v2644 = vadd.f32 %v2642, %v2643
      %v2645 = vsel %vm2415, %v2633, 0.0
      %v2646 = vadd.f32 %v2644, %v2645
      %v2647 = vsel %vm2415, %v2634, 0.0
      %v2648 = vadd.f32 %v2646, %v2647
      %v2649 = vsel %vm2415, %v2635, 0.0
      %v2650 = vadd.f32 %v2648, %v2649
      %2651 = vadd.xlane.f32.xlu0 %v2650
      %v2652 = vpop.xlane.xlu0 %2651
      %v2653 = vrot.slane %v2652, 4
      %v2654 = vadd.f32 %v2652, %v2653
      %v2655 = vrot.slane %v2654, 2
      %v2656 = vadd.f32 %v2654, %v2655
      %v2657 = vrot.slane %v2656, 1
      %v2658 = vadd.f32 %v2656, %v2657
      %s2659 = vtos %v2658
      %v2660 = vstv %s2627
      %v2661 = vrcp.pop %v2660
      %s2662 = vtos %v2661
      %s2663 = smul.f32 %s2659, %s2662
      %s2664 = scalar_lea.smem [#allocation18], 0
      %2665 = sst [smem:[%s2664]] %s2663
    $region77: #{tpu_custom_call.1} parent=1 // pred_fallthru
      _
    // Predicated region
    $region78: #{tpu_custom_call.1} parent=1 // pred_check
      _
    $region79: #{tpu_custom_call.1} parent=1 // pred_check_branch
      %2667 = sbr.rel (0) target = $region81
    $region80: #{tpu_custom_call.1} parent=1 // pred_region
      %s2669 = ssub.s32 128, 128
      %2670 = vsyncadd [#allocation9], %s2669
      %s2672 = sshll.u32 [#allocation17], 4
      %s2673 = int_to_ptr.vmem [resolvable:$true] %s2672
      %2675 = dma.vmem_to_hbm [thread:$0]  %s2673, 128, %s12, [#allocation9]
    $region81: #{tpu_custom_call.1} parent=1 // pred_fallthru
      _
    // Predicated region
    $region82: #{tpu_custom_call.1} parent=1 // pred_check
      _
    $region83: #{tpu_custom_call.1} parent=1 // pred_check_branch
      %2677 = sbr.rel (0) target = $region85
    $region84: #{tpu_custom_call.1} parent=1 // pred_region
      %s2679 = ssub.s32 16, 16
      %2680 = vsyncadd [#allocation10], %s2679
      %2683 = dma.smem_to_hbm [#allocation18], 16, %s13, [#allocation10]
    $region85: #{tpu_custom_call.1} parent=1 // pred_fallthru
      _
    // Predicated region
    $region86: #{tpu_custom_call.1} parent=1 // pred_check
      _
    $region87: #{tpu_custom_call.1} parent=1 // pred_check_branch
      %2685 = sbr.rel (0) target = $region89
    $region88: #{tpu_custom_call.1} parent=1 // pred_region
      %2686 = dma.done [#allocation9], 128
    $region89: #{tpu_custom_call.1} parent=1 // pred_fallthru
      _
    // Predicated region
    $region90: #{tpu_custom_call.1} parent=1 // pred_check
      _
    $region91: #{tpu_custom_call.1} parent=1 // pred_check_branch
      %2688 = sbr.rel (0) target = $region93
    $region92: #{tpu_custom_call.1} parent=1 // pred_region
      %2689 = dma.done [#allocation10], 16
    $region93: #{tpu_custom_call.1} parent=1 // pred_fallthru
      _
    %2690 = sfence
    %2691 = vsyncpa [#allocation8], 1
    %2692 = vsyncpa [#allocation12], 1
    %2693 = vsyncpa [#allocation15], 1
    %2694 = vsyncpa [#allocation9], 1
    %2695 = vsyncpa [#allocation10], 1

// kernel: tpu_custom_call.1
$region0: #{tpu_custom_call.1}
  #allocation0 [shape = 'u32[]', space=smem, size = 0x4, offset = 0x4, fixed_abs, tag = 'smem constant byte address 0x4 - core index']
  #allocation1 [shape = 'u32[144,128]{1,0:T(1,128)}', space=vmem, size = 0x12000, scoped, tag = 'internal scratch']
  #allocation2 [shape = 'f32[64,384]{1,0:T(8,128)}', space=vmem, size = 0x18000, scoped, tag = 'scratch operand']
  #allocation3 [shape = 'f32[64,128]{1,0:T(8,128)}', space=vmem, size = 0x8000, scoped, tag = 'scratch operand']
  #allocation4 [shape = 'f32[64,1]{1,0:T(8,128)}', space=vmem, size = 0x8000, scoped, tag = 'scratch operand']
  #allocation5 [shape = 'f32[64,1]{1,0:T(8,128)}', space=vmem, size = 0x8000, scoped, tag = 'scratch operand']
  #allocation6 [shape = 'f32[64,1]{1,0:T(8,128)}', space=vmem, size = 0x8000, scoped, tag = 'scratch operand']
  %s0 = inlined_call_operand.hbm [shape: bf16[64,128], index: 0, kind: input, shape index: {}]
  %s1 = inlined_call_operand.vmem [shape: f32[8,128], index: 1, kind: input, shape index: {}]
  %s2 = inlined_call_operand.vmem [shape: f32[64,1], index: 2, kind: input, shape index: {}]
  %s3 = inlined_call_operand.vmem [shape: s32[64,1], index: 3, kind: input, shape index: {}]
  %s4 = inlined_call_operand.vmem [shape: f32[128,128], index: 4, kind: input, shape index: {}]
  %s5 = inlined_call_operand.hbm [shape: f32[1,128], index: 5, kind: input, shape index: {}]
  %s6 = inlined_call_operand.hbm [shape: bf16[128,384], index: 6, kind: input, shape index: {}]
  %s7 = inlined_call_operand.vmem [shape: f32[1,384], index: 7, kind: input, shape index: {}]
  %s8 = inlined_call_operand.hbm [shape: f32[128,384], index: 8, kind: input, shape index: {}]
  %s9 = inlined_call_operand.vmem [shape: f32[1,384], index: 9, kind: input, shape index: {}]
  %s10 = inlined_call_operand.hbm [shape: bf16[128,128], index: 10, kind: input, shape index: {}]
  %s11 = inlined_call_operand.vmem [shape: f32[1,128], index: 11, kind: input, shape index: {}]
  %s12 = inlined_call_operand.hbm [shape: f32[8,128], index: 12, kind: output, shape index: {0}]
  %s13 = inlined_call_operand.hbm [shape: f32[1,1], index: 13, kind: output, shape index: {1}]
  %14 = xla_tuple %s12, %s13
  %s15 = sld [smem:[#allocation0]]
  $region94: #{tpu_custom_call.1} parent=0
    _
  %s17 = ssub.s32 1, %s15
  %s18 = scalar_select 0, %s17, %s15
  $region1: #{tpu_custom_call.1} parent=0
    #allocation7 [shape = 'u8[16384]{0}', space=vmem, size = 0x4000, scoped, tag = 'input window, operand 0, single buffered']
    #allocation8 [shape = 's32[1]{0}', space=sflag, size = 0x4, scoped, tag = 'scoped memory for tpu_custom_call.1']
    #allocation9 [shape = 's32[1]{0}', space=sflag, size = 0x4, scoped, tag = 'scoped memory for tpu_custom_call.1']
    #allocation10 [shape = 's32[1]{0}', space=sflag, size = 0x4, scoped, tag = 'scoped memory for tpu_custom_call.1']
    #allocation11 [shape = 'u8[512]{0}', space=vmem, size = 0x400, scoped, tag = 'input window, operand 5, single buffered']
    #allocation12 [shape = 's32[1]{0}', space=sflag, size = 0x4, scoped, tag = 'scoped memory for tpu_custom_call.1']
    #allocation13 [shape = 'u8[98304]{0}', space=vmem, size = 0x18000, scoped, tag = 'input window, operand 6, single buffered']
    #allocation14 [shape = 'u8[196608]{0}', space=vmem, size = 0x30000, scoped, tag = 'input window, operand 8, single buffered']
    #allocation15 [shape = 's32[1]{0}', space=sflag, size = 0x4, scoped, tag = 'scoped memory for tpu_custom_call.1']
    #allocation16 [shape = 'u8[32768]{0}', space=vmem, size = 0x8000, scoped, tag = 'input window, operand 10, single buffered']
    #allocation17 [shape = 'u8[4096]{0}', space=vmem, size = 0x1000, scoped, tag = 'output window, operand 0, single buffered']
    #allocation18 [shape = 'u8[512]{0}', space=smem, size = 0x200, scoped, tag = 'output window, operand 1, single buffered']
    %19 = vsyncpa [#allocation8], 0
    %20 = vsyncpa [#allocation12], 0
    %21 = vsyncpa [#allocation15], 0
    %22 = vsyncpa [#allocation9], 0
    %23 = vsyncpa [#allocation10], 0
    // Predicated region
    $region2: #{tpu_custom_call.1} parent=1 // pred_check
      _
    $region3: #{tpu_custom_call.1} parent=1 // pred_check_branch
      %25 = sbr.rel (0) target = $region5
    $region4: #{tpu_custom_call.1} parent=1 // pred_region
      %s27 = ssub.s32 512, 512
      %28 = vsyncadd [#allocation8], %s27
      %s29 = sshll.u32 [#allocation7], 4
      %s30 = int_to_ptr.vmem [resolvable:$true] %s29
      %35 = dma.hbm_to_vmem [thread:$0]  %s0, 512, %s30, [#allocation8], 64, 64, 4
    $region5: #{tpu_custom_call.1} parent=1 // pred_fallthru
      _
    // Predicated region
    $region6: #{tpu_custom_call.1} parent=1 // pred_check
      _
    $region7: #{tpu_custom_call.1} parent=1 // pred_check_branch
      %37 = sbr.rel (0) target = $region9
    $region8: #{tpu_custom_call.1} parent=1 // pred_region
      _
    $region9: #{tpu_custom_call.1} parent=1 // pred_fallthru
      _
    // Predicated region
    $region10: #{tpu_custom_call.1} parent=1 // pred_check
      _
    $region11: #{tpu_custom_call.1} parent=1 // pred_check_branch
      %39 = sbr.rel (0) target = $region13
    $region12: #{tpu_custom_call.1} parent=1 // pred_region
      _
    $region13: #{tpu_custom_call.1} parent=1 // pred_fallthru
      _
    // Predicated region
    $region14: #{tpu_custom_call.1} parent=1 // pred_check
      _
    $region15: #{tpu_custom_call.1} parent=1 // pred_check_branch
      %41 = sbr.rel (0) target = $region17
    $region16: #{tpu_custom_call.1} parent=1 // pred_region
      _
    $region17: #{tpu_custom_call.1} parent=1 // pred_fallthru
      _
    // Predicated region
    $region18: #{tpu_custom_call.1} parent=1 // pred_check
      _
    $region19: #{tpu_custom_call.1} parent=1 // pred_check_branch
      %43 = sbr.rel (0) target = $region21
    $region20: #{tpu_custom_call.1} parent=1 // pred_region
      _
    $region21: #{tpu_custom_call.1} parent=1 // pred_fallthru
      _
    // Predicated region
    $region22: #{tpu_custom_call.1} parent=1 // pred_check
      _
    $region23: #{tpu_custom_call.1} parent=1 // pred_check_branch
      %45 = sbr.rel (0) target = $region25
    $region24: #{tpu_custom_call.1} parent=1 // pred_region
      %s47 = ssub.s32 16, 16
      %48 = vsyncadd [#allocation12], %s47
      %s50 = sshll.u32 [#allocation11], 4
      %s51 = int_to_ptr.vmem [resolvable:$true] %s50
      %53 = dma.hbm_to_vmem [thread:$0]  %s5, 16, %s51, [#allocation12]
    $region25: #{tpu_custom_call.1} parent=1 // pred_fallthru
      _
    // Predicated region
    $region26: #{tpu_custom_call.1} parent=1 // pred_check
      _
    $region27: #{tpu_custom_call.1} parent=1 // pred_check_branch
      %55 = sbr.rel (0) target = $region29
    $region28: #{tpu_custom_call.1} parent=1 // pred_region
      %s57 = ssub.s32 3072, 3072
      %58 = vsyncadd [#allocation12], %s57
      %s59 = sshll.u32 [#allocation13], 4
      %s60 = int_to_ptr.vmem [resolvable:$true] %s59
      %65 = dma.hbm_to_vmem [thread:$0]  %s6, 3072, %s60, [#allocation12], 192, 192, 12
    $region29: #{tpu_custom_call.1} parent=1 // pred_fallthru
      _
    // Predicated region
    $region30: #{tpu_custom_call.1} parent=1 // pred_check
      _
    $region31: #{tpu_custom_call.1} parent=1 // pred_check_branch
      %67 = sbr.rel (0) target = $region33
    $region32: #{tpu_custom_call.1} parent=1 // pred_region
      _
    $region33: #{tpu_custom_call.1} parent=1 // pred_fallthru
      _
    // Predicated region
    $region34: #{tpu_custom_call.1} parent=1 // pred_check
      _
    $region35: #{tpu_custom_call.1} parent=1 // pred_check_branch
      %69 = sbr.rel (0) target = $region37
    $region36: #{tpu_custom_call.1} parent=1 // pred_region
      %s71 = ssub.s32 6144, 6144
      %72 = vsyncadd [#allocation15], %s71
      %s73 = sshll.u32 [#allocation14], 4
      %s74 = int_to_ptr.vmem [resolvable:$true] %s73
      %79 = dma.hbm_to_vmem [thread:$0]  %s8, 6144, %s74, [#allocation15], 384, 384, 24
    $region37: #{tpu_custom_call.1} parent=1 // pred_fallthru
      _
    // Predicated region
    $region38: #{tpu_custom_call.1} parent=1 // pred_check
      _
    $region39: #{tpu_custom_call.1} parent=1 // pred_check_branch
      %81 = sbr.rel (0) target = $region41
    $region40: #{tpu_custom_call.1} parent=1 // pred_region
      _
    $region41: #{tpu_custom_call.1} parent=1 // pred_fallthru
      _
    // Predicated region
    $region42: #{tpu_custom_call.1} parent=1 // pred_check
      _
    $region43: #{tpu_custom_call.1} parent=1 // pred_check_branch
      %83 = sbr.rel (0) target = $region45
    $region44: #{tpu_custom_call.1} parent=1 // pred_region
      %s85 = ssub.s32 1024, 1024
      %86 = vsyncadd [#allocation15], %s85
      %s87 = sshll.u32 [#allocation16], 4
      %s88 = int_to_ptr.vmem [resolvable:$true] %s87
      %93 = dma.hbm_to_vmem [thread:$0]  %s10, 1024, %s88, [#allocation15], 64, 64, 4
    $region45: #{tpu_custom_call.1} parent=1 // pred_fallthru
      _
    // Predicated region
    $region46: #{tpu_custom_call.1} parent=1 // pred_check
      _
    $region47: #{tpu_custom_call.1} parent=1 // pred_check_branch
      %95 = sbr.rel (0) target = $region49
    $region48: #{tpu_custom_call.1} parent=1 // pred_region
      _
    $region49: #{tpu_custom_call.1} parent=1 // pred_fallthru
      _
    // Predicated region
    $region50: #{tpu_custom_call.1} parent=1 // pred_check
      _
    $region51: #{tpu_custom_call.1} parent=1 // pred_check_branch
      %97 = sbr.rel (0) target = $region53
    $region52: #{tpu_custom_call.1} parent=1 // pred_region
      %98 = dma.done [#allocation8], 512
    $region53: #{tpu_custom_call.1} parent=1 // pred_fallthru
      _
    // Predicated region
    $region54: #{tpu_custom_call.1} parent=1 // pred_check
      _
    $region55: #{tpu_custom_call.1} parent=1 // pred_check_branch
      %100 = sbr.rel (0) target = $region57
    $region56: #{tpu_custom_call.1} parent=1 // pred_region
      %101 = dma.done [#allocation12], 16
    $region57: #{tpu_custom_call.1} parent=1 // pred_fallthru
      _
    // Predicated region
    $region58: #{tpu_custom_call.1} parent=1 // pred_check
      _
    $region59: #{tpu_custom_call.1} parent=1 // pred_check_branch
      %103 = sbr.rel (0) target = $region61
    $region60: #{tpu_custom_call.1} parent=1 // pred_region
      %104 = dma.done [#allocation12], 3072
    $region61: #{tpu_custom_call.1} parent=1 // pred_fallthru
      _
    // Predicated region
    $region62: #{tpu_custom_call.1} parent=1 // pred_check
      _
    $region63: #{tpu_custom_call.1} parent=1 // pred_check_branch
      %106 = sbr.rel (0) target = $region65
    $region64: #{tpu_custom_call.1} parent=1 // pred_region
      %107 = dma.done [#allocation15], 6144
    $region65: #{tpu_custom_call.1} parent=1 // pred_fallthru
      _
    // Predicated region
    $region66: #{tpu_custom_call.1} parent=1 // pred_check
      _
    $region67: #{tpu_custom_call.1} parent=1 // pred_check_branch
      %109 = sbr.rel (0) target = $region69
    $region68: #{tpu_custom_call.1} parent=1 // pred_region
      %110 = dma.done [#allocation15], 1024
    $region69: #{tpu_custom_call.1} parent=1 // pred_fallthru
      _
    %p112 = scmp.eq.s32.totalorder 0, 0
    // Predicated region
    $region70: #{tpu_custom_call.1} parent=1 // pred_check
      %p113 = pneg %p112
    $region71: #{tpu_custom_call.1} parent=1 // pred_check_branch
      %115 = sbr.rel (%p113) target = $region73
    $region72: #{tpu_custom_call.1} parent=1 // pred_region
      %v116 = vld [vmem:[#allocation7] sm:$0xf]
      %v117 = vld [vmem:[#allocation7 + $0x4] sm:$0xf]
      %v118 = vld [vmem:[#allocation7 + $0x8] sm:$0xf]
      %v119 = vld [vmem:[#allocation7 + $0xc] sm:$0xf]
      %v120 = vld [vmem:[#allocation7 + $0x10] sm:$0xf]
      %v121 = vld [vmem:[#allocation7 + $0x14] sm:$0xf]
      %v122 = vld [vmem:[#allocation7 + $0x18] sm:$0xf]
      %v123 = vld [vmem:[#allocation7 + $0x1c] sm:$0xf]
      %v124 = vld [vmem:[#allocation13] sm:$0xff]
      %v125 = vld [vmem:[#allocation13 + $0x8] sm:$0xf]
      %v126 = vld [vmem:[#allocation13 + $0xc] sm:$0xff]
      %v127 = vld [vmem:[#allocation13 + $0x14] sm:$0xf]
      %v128 = vld [vmem:[#allocation13 + $0x18] sm:$0xff]
      %v129 = vld [vmem:[#allocation13 + $0x20] sm:$0xf]
      %v130 = vld [vmem:[#allocation13 + $0x24] sm:$0xff]
      %v131 = vld [vmem:[#allocation13 + $0x2c] sm:$0xf]
      %v132 = vld [vmem:[#allocation13 + $0x30] sm:$0xff]
      %v133 = vld [vmem:[#allocation13 + $0x38] sm:$0xf]
      %v134 = vld [vmem:[#allocation13 + $0x3c] sm:$0xff]
      %v135 = vld [vmem:[#allocation13 + $0x44] sm:$0xf]
      %v136 = vld [vmem:[#allocation13 + $0x48] sm:$0xff]
      %v137 = vld [vmem:[#allocation13 + $0x50] sm:$0xf]
      %v138 = vld [vmem:[#allocation13 + $0x54] sm:$0xff]
      %v139 = vld [vmem:[#allocation13 + $0x5c] sm:$0xf]
      %v140 = vld [vmem:[#allocation13 + $0x60] sm:$0xff]
      %v141 = vld [vmem:[#allocation13 + $0x68] sm:$0xf]
      %v142 = vld [vmem:[#allocation13 + $0x6c] sm:$0xff]
      %v143 = vld [vmem:[#allocation13 + $0x74] sm:$0xf]
      %v144 = vld [vmem:[#allocation13 + $0x78] sm:$0xff]
      %v145 = vld [vmem:[#allocation13 + $0x80] sm:$0xf]
      %v146 = vld [vmem:[#allocation13 + $0x84] sm:$0xff]
      %v147 = vld [vmem:[#allocation13 + $0x8c] sm:$0xf]
      %v148 = vld [vmem:[#allocation13 + $0x90] sm:$0xff]
      %v149 = vld [vmem:[#allocation13 + $0x98] sm:$0xf]
      %v150 = vld [vmem:[#allocation13 + $0x9c] sm:$0xff]
      %v151 = vld [vmem:[#allocation13 + $0xa4] sm:$0xf]
      %v152 = vld [vmem:[#allocation13 + $0xa8] sm:$0xff]
      %v153 = vld [vmem:[#allocation13 + $0xb0] sm:$0xf]
      %v154 = vld [vmem:[#allocation13 + $0xb4] sm:$0xff]
      %v155 = vld [vmem:[#allocation13 + $0xbc] sm:$0xf]
      %v156 = vld [vmem:[%s7] sm:$0x7]
      %v158 = vlaneseq
      %v159 = vshrl.u32 %v158, 7
      %v160 = vsub.s32 0, %v159
      %v161 = vrot.slane %v156, %v160
      %v162 = vlaneseq
      %v163 = vshrl.u32 %v162, 7
      %v164 = vsub.s32 1, %v163
      %v165 = vrot.slane %v156, %v164
      %v166 = vlaneseq
      %v167 = vshrl.u32 %v166, 7
      %v168 = vsub.s32 2, %v167
      %v169 = vrot.slane %v156, %v168
      %v181 = vunpack.c.l.b16 %v116
      %v182 = vunpack.c.l.b16 %v117
      %v183 = vunpack.c.l.b16 %v118
      %v184 = vunpack.c.l.b16 %v119
      %v185 = vunpack.c.l.b16 %v120
      %v186 = vunpack.c.l.b16 %v121
      %v187 = vunpack.c.l.b16 %v122
      %v188 = vunpack.c.l.b16 %v123
      %v189 = vpack.c.b16 %v182, %v181
      %v190 = vpack.c.b16 %v184, %v183
      %v191 = vpack.c.b16 %v186, %v185
      %v192 = vpack.c.b16 %v188, %v187
      %v229 = vunpack.c.l.b16 %v124
      %v230 = vunpack.c.h.b16 %v124
      %v231 = vunpack.c.l.b16 %v125
      %v232 = vunpack.c.l.b16 %v126
      %v233 = vunpack.c.h.b16 %v126
      %v234 = vunpack.c.l.b16 %v127
      %v235 = vunpack.c.l.b16 %v128
      %v236 = vunpack.c.h.b16 %v128
      %v237 = vunpack.c.l.b16 %v129
      %v238 = vunpack.c.l.b16 %v130
      %v239 = vunpack.c.h.b16 %v130
      %v240 = vunpack.c.l.b16 %v131
      %v241 = vunpack.c.l.b16 %v132
      %v242 = vunpack.c.h.b16 %v132
      %v243 = vunpack.c.l.b16 %v133
      %v244 = vunpack.c.l.b16 %v134
      %v245 = vunpack.c.h.b16 %v134
      %v246 = vunpack.c.l.b16 %v135
      %v247 = vunpack.c.l.b16 %v136
      %v248 = vunpack.c.h.b16 %v136
      %v249 = vunpack.c.l.b16 %v137
      %v250 = vunpack.c.l.b16 %v138
      %v251 = vunpack.c.h.b16 %v138
      %v252 = vunpack.c.l.b16 %v139
      %v253 = vunpack.c.l.b16 %v140
      %v254 = vunpack.c.h.b16 %v140
      %v255 = vunpack.c.l.b16 %v141
      %v256 = vunpack.c.l.b16 %v142
      %v257 = vunpack.c.h.b16 %v142
      %v258 = vunpack.c.l.b16 %v143
      %v259 = vunpack.c.l.b16 %v144
      %v260 = vunpack.c.h.b16 %v144
      %v261 = vunpack.c.l.b16 %v145
      %v262 = vunpack.c.l.b16 %v146
      %v263 = vunpack.c.h.b16 %v146
      %v264 = vunpack.c.l.b16 %v147
      %v265 = vunpack.c.l.b16 %v148
      %v266 = vunpack.c.h.b16 %v148
      %v267 = vunpack.c.l.b16 %v149
      %v268 = vunpack.c.l.b16 %v150
      %v269 = vunpack.c.h.b16 %v150
      %v270 = vunpack.c.l.b16 %v151
      %v271 = vunpack.c.l.b16 %v152
      %v272 = vunpack.c.h.b16 %v152
      %v273 = vunpack.c.l.b16 %v153
      %v274 = vunpack.c.l.b16 %v154
      %v275 = vunpack.c.h.b16 %v154
      %v276 = vunpack.c.l.b16 %v155
      %v277 = vpack.c.b16 %v232, %v229
      %v278 = vpack.c.b16 %v233, %v230
      %v279 = vpack.c.b16 %v234, %v231
      %v280 = vpack.c.b16 %v238, %v235
      %v281 = vpack.c.b16 %v239, %v236
      %v282 = vpack.c.b16 %v240, %v237
      %v283 = vpack.c.b16 %v244, %v241
      %v284 = vpack.c.b16 %v245, %v242
      %v285 = vpack.c.b16 %v246, %v243
      %v286 = vpack.c.b16 %v250, %v247
      %v287 = vpack.c.b16 %v251, %v248
      %v288 = vpack.c.b16 %v252, %v249
      %v289 = vpack.c.b16 %v256, %v253
      %v290 = vpack.c.b16 %v257, %v254
      %v291 = vpack.c.b16 %v258, %v255
      %v292 = vpack.c.b16 %v262, %v259
      %v293 = vpack.c.b16 %v263, %v260
      %v294 = vpack.c.b16 %v264, %v261
      %v295 = vpack.c.b16 %v268, %v265
      %v296 = vpack.c.b16 %v269, %v266
      %v297 = vpack.c.b16 %v270, %v267
      %v298 = vpack.c.b16 %v274, %v271
      %v299 = vpack.c.b16 %v275, %v272
      %v300 = vpack.c.b16 %v276, %v273
      %325 = vmatprep.subr.bf16.mxu0 %v299
      %326 = vmatpush1.bf16.msra.mxu0 %v298
      %327 = vmatprep.subr.bf16.mxu0 %v296
      %328 = vmatpush1.bf16.msra.mxu0 %v295
      %329 = vmatprep.subr.bf16.mxu0 %v293
      %330 = vmatpush1.bf16.msra.mxu0 %v292
      %331 = vmatprep.subr.bf16.mxu0 %v290
      %332 = vmatpush1.bf16.msra.mxu0 %v289
      %333 = vmatprep.subr.bf16.mxu0 %v287
      %334 = vmatpush1.bf16.msra.mxu0 %v286
      %335 = vmatprep.subr.bf16.mxu0 %v284
      %336 = vmatpush1.bf16.msra.mxu0 %v283
      %337 = vmatprep.subr.bf16.mxu0 %v281
      %338 = vmatpush1.bf16.msra.mxu0 %v280
      %339 = vmatprep.subr.bf16.mxu0 %v278
      %340 = vmatpush1.bf16.msra.mxu0 %v277
      %341 = vmatprep.subr.bf16.mxu0 0
      %342 = vmatpush2.bf16.msra.mxu0 0
      %343 = vmatprep.subr.bf16.mxu0 0
      %344 = vmatpush2.bf16.msra.mxu0 0
      %345 = vmatprep.subr.bf16.mxu0 0
      %346 = vmatpush2.bf16.msra.mxu0 0
      %347 = vmatprep.subr.bf16.mxu0 0
      %348 = vmatpush2.bf16.msra.mxu0 0
      %349 = vmatprep.subr.bf16.mxu0 0
      %350 = vmatpush2.bf16.msra.mxu0 0
      %351 = vmatprep.subr.bf16.mxu0 0
      %352 = vmatpush2.bf16.msra.mxu0 0
      %353 = vmatprep.subr.bf16.mxu0 0
      %354 = vmatpush2.bf16.msra.mxu0 0
      %355 = vmatprep.subr.bf16.mxu0 0
      %356 = vmatpush2.bf16.msra.mxu0 0
      %357 = vmatprep.mubr.bf16.mxu0 0
      %358 = vmatmul.mubr.bf16.gmra.mxu0 %v189
      %v359 = vpop.f32.mrf.mxu0
      %v360 = vadd.f32 %v161, %v359
      %v361 = vpop.f32.mrf.mxu0
      %v362 = vadd.f32 %v165, %v361
      %v363 = vpop.f32.mrf.mxu0
      %v364 = vadd.f32 %v161, %v363
      %v365 = vpop.f32.mrf.mxu0
      %v366 = vadd.f32 %v165, %v365
      %367 = vmatprep.mubr.bf16.mxu0 0
      %368 = vmatmul.mubr.bf16.gmra.mxu0 %v190
      %v369 = vpop.f32.mrf.mxu0
      %v370 = vadd.f32 %v161, %v369
      %v371 = vpop.f32.mrf.mxu0
      %v372 = vadd.f32 %v165, %v371
      %v373 = vpop.f32.mrf.mxu0
      %v374 = vadd.f32 %v161, %v373
      %v375 = vpop.f32.mrf.mxu0
      %v376 = vadd.f32 %v165, %v375
      %377 = vmatprep.mubr.bf16.mxu0 0
      %378 = vmatmul.mubr.bf16.gmra.mxu0 %v191
      %v379 = vpop.f32.mrf.mxu0
      %v380 = vadd.f32 %v161, %v379
      %v381 = vpop.f32.mrf.mxu0
      %v382 = vadd.f32 %v165, %v381
      %v383 = vpop.f32.mrf.mxu0
      %v384 = vadd.f32 %v161, %v383
      %v385 = vpop.f32.mrf.mxu0
      %v386 = vadd.f32 %v165, %v385
      %387 = vmatprep.mubr.bf16.mxu0 0
      %388 = vmatmul.mubr.bf16.gmra.mxu0 %v192
      %v389 = vpop.f32.mrf.mxu0
      %v390 = vadd.f32 %v161, %v389
      %v391 = vpop.f32.mrf.mxu0
      %v392 = vadd.f32 %v165, %v391
      %v393 = vpop.f32.mrf.mxu0
      %v394 = vadd.f32 %v161, %v393
      %v395 = vpop.f32.mrf.mxu0
      %v396 = vadd.f32 %v165, %v395
      %397 = vdwg.mxu0
      %398 = vmatprep.subr.bf16.mxu0 0
      %399 = vmatpush1.bf16.msra.mxu0 %v300
      %400 = vmatprep.subr.bf16.mxu0 0
      %401 = vmatpush1.bf16.msra.mxu0 %v297
      %402 = vmatprep.subr.bf16.mxu0 0
      %403 = vmatpush1.bf16.msra.mxu0 %v294
      %404 = vmatprep.subr.bf16.mxu0 0
      %405 = vmatpush1.bf16.msra.mxu0 %v291
      %406 = vmatprep.subr.bf16.mxu0 0
      %407 = vmatpush1.bf16.msra.mxu0 %v288
      %408 = vmatprep.subr.bf16.mxu0 0
      %409 = vmatpush1.bf16.msra.mxu0 %v285
      %410 = vmatprep.subr.bf16.mxu0 0
      %411 = vmatpush1.bf16.msra.mxu0 %v282
      %412 = vmatprep.subr.bf16.mxu0 0
      %413 = vmatpush1.bf16.msra.mxu0 %v279
      %414 = vmatprep.subr.bf16.mxu0 0
      %415 = vmatpush2.bf16.msra.mxu0 0
      %416 = vmatprep.subr.bf16.mxu0 0
      %417 = vmatpush2.bf16.msra.mxu0 0
      %418 = vmatprep.subr.bf16.mxu0 0
      %419 = vmatpush2.bf16.msra.mxu0 0
      %420 = vmatprep.subr.bf16.mxu0 0
      %421 = vmatpush2.bf16.msra.mxu0 0
      %422 = vmatprep.subr.bf16.mxu0 0
      %423 = vmatpush2.bf16.msra.mxu0 0
      %424 = vmatprep.subr.bf16.mxu0 0
      %425 = vmatpush2.bf16.msra.mxu0 0
      %426 = vmatprep.subr.bf16.mxu0 0
      %427 = vmatpush2.bf16.msra.mxu0 0
      %428 = vmatprep.subr.bf16.mxu0 0
      %429 = vmatpush2.bf16.msra.mxu0 0
      %430 = vmatprep.mubr.bf16.mxu0 0
      %431 = vmatmul.mubr.bf16.gmra.mxu0 %v189
      %v432 = vpop.f32.mrf.mxu0
      %v433 = vadd.f32 %v169, %v432
      %v434 = vpop.f32.mrf.mxu0
      %v435 = vpop.f32.mrf.mxu0
      %v436 = vadd.f32 %v169, %v435
      %v437 = vpop.f32.mrf.mxu0
      %438 = vmatprep.mubr.bf16.mxu0 0
      %439 = vmatmul.mubr.bf16.gmra.mxu0 %v190
      %v440 = vpop.f32.mrf.mxu0
      %v441 = vadd.f32 %v169, %v440
      %v442 = vpop.f32.mrf.mxu0
      %v443 = vpop.f32.mrf.mxu0
      %v444 = vadd.f32 %v169, %v443
      %v445 = vpop.f32.mrf.mxu0
      %446 = vmatprep.mubr.bf16.mxu0 0
      %447 = vmatmul.mubr.bf16.gmra.mxu0 %v191
      %v448 = vpop.f32.mrf.mxu0
      %v449 = vadd.f32 %v169, %v448
      %v450 = vpop.f32.mrf.mxu0
      %v451 = vpop.f32.mrf.mxu0
      %v452 = vadd.f32 %v169, %v451
      %v453 = vpop.f32.mrf.mxu0
      %454 = vmatprep.mubr.bf16.mxu0 0
      %455 = vmatmul.mubr.bf16.gmra.mxu0 %v192
      %v456 = vpop.f32.mrf.mxu0
      %v457 = vadd.f32 %v169, %v456
      %v458 = vpop.f32.mrf.mxu0
      %v459 = vpop.f32.mrf.mxu0
      %v460 = vadd.f32 %v169, %v459
      %v461 = vpop.f32.mrf.mxu0
      %462 = vdwg.mxu0
      %463 = vst [vmem:[#allocation2] sm:$0xff] %v360
      %464 = vst [vmem:[#allocation2 + $0x8] sm:$0xff] %v362
      %465 = vst [vmem:[#allocation2 + $0x10] sm:$0xff] %v433
      %466 = vst [vmem:[#allocation2 + $0x18] sm:$0xff] %v364
      %467 = vst [vmem:[#allocation2 + $0x20] sm:$0xff] %v366
      %468 = vst [vmem:[#allocation2 + $0x28] sm:$0xff] %v436
      %469 = vst [vmem:[#allocation2 + $0x30] sm:$0xff] %v370
      %470 = vst [vmem:[#allocation2 + $0x38] sm:$0xff] %v372
      %471 = vst [vmem:[#allocation2 + $0x40] sm:$0xff] %v441
      %472 = vst [vmem:[#allocation2 + $0x48] sm:$0xff] %v374
      %473 = vst [vmem:[#allocation2 + $0x50] sm:$0xff] %v376
      %474 = vst [vmem:[#allocation2 + $0x58] sm:$0xff] %v444
      %475 = vst [vmem:[#allocation2 + $0x60] sm:$0xff] %v380
      %476 = vst [vmem:[#allocation2 + $0x68] sm:$0xff] %v382
      %477 = vst [vmem:[#allocation2 + $0x70] sm:$0xff] %v449
      %478 = vst [vmem:[#allocation2 + $0x78] sm:$0xff] %v384
      %479 = vst [vmem:[#allocation2 + $0x80] sm:$0xff] %v386
      %480 = vst [vmem:[#allocation2 + $0x88] sm:$0xff] %v452
      %481 = vst [vmem:[#allocation2 + $0x90] sm:$0xff] %v390
      %482 = vst [vmem:[#allocation2 + $0x98] sm:$0xff] %v392
      %483 = vst [vmem:[#allocation2 + $0xa0] sm:$0xff] %v457
      %484 = vst [vmem:[#allocation2 + $0xa8] sm:$0xff] %v394
      %485 = vst [vmem:[#allocation2 + $0xb0] sm:$0xff] %v396
      %486 = vst [vmem:[#allocation2 + $0xb8] sm:$0xff] %v460
      %v487 = vld [vmem:[%s1] sm:$0xff]
      %v488 = vld [vmem:[%s4] sm:$0xff]
      %v489 = vld [vmem:[%s4 + $0x8] sm:$0xff]
      %v490 = vld [vmem:[%s4 + $0x10] sm:$0xff]
      %v491 = vld [vmem:[%s4 + $0x18] sm:$0xff]
      %v492 = vld [vmem:[%s4 + $0x20] sm:$0xff]
      %v493 = vld [vmem:[%s4 + $0x28] sm:$0xff]
      %v494 = vld [vmem:[%s4 + $0x30] sm:$0xff]
      %v495 = vld [vmem:[%s4 + $0x38] sm:$0xff]
      %v496 = vld [vmem:[%s4 + $0x40] sm:$0xff]
      %v497 = vld [vmem:[%s4 + $0x48] sm:$0xff]
      %v498 = vld [vmem:[%s4 + $0x50] sm:$0xff]
      %v499 = vld [vmem:[%s4 + $0x58] sm:$0xff]
      %v500 = vld [vmem:[%s4 + $0x60] sm:$0xff]
      %v501 = vld [vmem:[%s4 + $0x68] sm:$0xff]
      %v502 = vld [vmem:[%s4 + $0x70] sm:$0xff]
      %v503 = vld [vmem:[%s4 + $0x78] sm:$0xff]
      %v504 = vld [vmem:[#allocation11] sm:$0x1]
      %v506 = vlaneseq
      %v507 = vshrl.u32 %v506, 7
      %v508 = vsub.s32 0, %v507
      %v509 = vrot.slane %v504, %v508
      %511 = vmatprep.subr.mxu0 0.0
      %512 = vmatpush1.msra.mxu0 %v503
      %513 = vmatprep.subr.mxu0 0.0
      %514 = vmatpush1.msra.mxu0 %v502
      %515 = vmatprep.subr.mxu0 0.0
      %516 = vmatpush1.msra.mxu0 %v501
      %517 = vmatprep.subr.mxu0 0.0
      %518 = vmatpush1.msra.mxu0 %v500
      %519 = vmatprep.subr.mxu0 0.0
      %520 = vmatpush1.msra.mxu0 %v499
      %521 = vmatprep.subr.mxu0 0.0
      %522 = vmatpush1.msra.mxu0 %v498
      %523 = vmatprep.subr.mxu0 0.0
      %524 = vmatpush1.msra.mxu0 %v497
      %525 = vmatprep.subr.mxu0 0.0
      %526 = vmatpush1.msra.mxu0 %v496
      %527 = vmatprep.subr.mxu0 0.0
      %528 = vmatpush1.msra.mxu0 %v495
      %529 = vmatprep.subr.mxu0 0.0
      %530 = vmatpush1.msra.mxu0 %v494
      %531 = vmatprep.subr.mxu0 0.0
      %532 = vmatpush1.msra.mxu0 %v493
      %533 = vmatprep.subr.mxu0 0.0
      %534 = vmatpush1.msra.mxu0 %v492
      %535 = vmatprep.subr.mxu0 0.0
      %536 = vmatpush1.msra.mxu0 %v491
      %537 = vmatprep.subr.mxu0 0.0
      %538 = vmatpush1.msra.mxu0 %v490
      %539 = vmatprep.subr.mxu0 0.0
      %540 = vmatpush1.msra.mxu0 %v489
      %541 = vmatprep.subr.mxu0 0.0
      %542 = vmatpush1.msra.mxu0 %v488
      %543 = vmatprep.subr.mxu0 0.0
      %544 = vmatpush2.msra.mxu0 0.0
      %545 = vmatprep.subr.mxu0 0.0
      %546 = vmatpush2.msra.mxu0 0.0
      %547 = vmatprep.subr.mxu0 0.0
      %548 = vmatpush2.msra.mxu0 0.0
      %549 = vmatprep.subr.mxu0 0.0
      %550 = vmatpush2.msra.mxu0 0.0
      %551 = vmatprep.subr.mxu0 0.0
      %552 = vmatpush2.msra.mxu0 0.0
      %553 = vmatprep.subr.mxu0 0.0
      %554 = vmatpush2.msra.mxu0 0.0
      %555 = vmatprep.subr.mxu0 0.0
      %556 = vmatpush2.msra.mxu0 0.0
      %557 = vmatprep.subr.mxu0 0.0
      %558 = vmatpush2.msra.mxu0 0.0
      %559 = vmatprep.subr.mxu0 0.0
      %560 = vmatpush2.msra.mxu0 0.0
      %561 = vmatprep.subr.mxu0 0.0
      %562 = vmatpush2.msra.mxu0 0.0
      %563 = vmatprep.subr.mxu0 0.0
      %564 = vmatpush2.msra.mxu0 0.0
      %565 = vmatprep.subr.mxu0 0.0
      %566 = vmatpush2.msra.mxu0 0.0
      %567 = vmatprep.subr.mxu0 0.0
      %568 = vmatpush2.msra.mxu0 0.0
      %569 = vmatprep.subr.mxu0 0.0
      %570 = vmatpush2.msra.mxu0 0.0
      %571 = vmatprep.subr.mxu0 0.0
      %572 = vmatpush2.msra.mxu0 0.0
      %573 = vmatprep.subr.mxu0 0.0
      %574 = vmatpush2.msra.mxu0 0.0
      %575 = vmatprep.mubr.f32.mxu0 0.0
      %576 = vmatmul.mubr.f32.gmra.mxu0 %v487
      %v577 = vpop.f32.mrf.mxu0
      %v578 = vadd.f32 %v509, %v577
      %v579 = vpop.f32.mrf.mxu0
      %580 = vdwg.mxu0
      %581 = vst [vmem:[#allocation17] sm:$0xff] %v578
      %v582 = vld [vmem:[#allocation14] sm:$0xff]
      %v583 = vld [vmem:[#allocation14 + $0x8] sm:$0xff]
      %v584 = vld [vmem:[#allocation14 + $0x10] sm:$0xff]
      %v585 = vld [vmem:[#allocation14 + $0x18] sm:$0xff]
      %v586 = vld [vmem:[#allocation14 + $0x20] sm:$0xff]
      %v587 = vld [vmem:[#allocation14 + $0x28] sm:$0xff]
      %v588 = vld [vmem:[#allocation14 + $0x30] sm:$0xff]
      %v589 = vld [vmem:[#allocation14 + $0x38] sm:$0xff]
      %v590 = vld [vmem:[#allocation14 + $0x40] sm:$0xff]
      %v591 = vld [vmem:[#allocation14 + $0x48] sm:$0xff]
      %v592 = vld [vmem:[#allocation14 + $0x50] sm:$0xff]
      %v593 = vld [vmem:[#allocation14 + $0x58] sm:$0xff]
      %v594 = vld [vmem:[#allocation14 + $0x60] sm:$0xff]
      %v595 = vld [vmem:[#allocation14 + $0x68] sm:$0xff]
      %v596 = vld [vmem:[#allocation14 + $0x70] sm:$0xff]
      %v597 = vld [vmem:[#allocation14 + $0x78] sm:$0xff]
      %v598 = vld [vmem:[#allocation14 + $0x80] sm:$0xff]
      %v599 = vld [vmem:[#allocation14 + $0x88] sm:$0xff]
      %v600 = vld [vmem:[#allocation14 + $0x90] sm:$0xff]
      %v601 = vld [vmem:[#allocation14 + $0x98] sm:$0xff]
      %v602 = vld [vmem:[#allocation14 + $0xa0] sm:$0xff]
      %v603 = vld [vmem:[#allocation14 + $0xa8] sm:$0xff]
      %v604 = vld [vmem:[#allocation14 + $0xb0] sm:$0xff]
      %v605 = vld [vmem:[#allocation14 + $0xb8] sm:$0xff]
      %v606 = vld [vmem:[#allocation14 + $0xc0] sm:$0xff]
      %v607 = vld [vmem:[#allocation14 + $0xc8] sm:$0xff]
      %v608 = vld [vmem:[#allocation14 + $0xd0] sm:$0xff]
      %v609 = vld [vmem:[#allocation14 + $0xd8] sm:$0xff]
      %v610 = vld [vmem:[#allocation14 + $0xe0] sm:$0xff]
      %v611 = vld [vmem:[#allocation14 + $0xe8] sm:$0xff]
      %v612 = vld [vmem:[#allocation14 + $0xf0] sm:$0xff]
      %v613 = vld [vmem:[#allocation14 + $0xf8] sm:$0xff]
      %v614 = vld [vmem:[#allocation14 + $0x100] sm:$0xff]
      %v615 = vld [vmem:[#allocation14 + $0x108] sm:$0xff]
      %v616 = vld [vmem:[#allocation14 + $0x110] sm:$0xff]
      %v617 = vld [vmem:[#allocation14 + $0x118] sm:$0xff]
      %v618 = vld [vmem:[#allocation14 + $0x120] sm:$0xff]
      %v619 = vld [vmem:[#allocation14 + $0x128] sm:$0xff]
      %v620 = vld [vmem:[#allocation14 + $0x130] sm:$0xff]
      %v621 = vld [vmem:[#allocation14 + $0x138] sm:$0xff]
      %v622 = vld [vmem:[#allocation14 + $0x140] sm:$0xff]
      %v623 = vld [vmem:[#allocation14 + $0x148] sm:$0xff]
      %v624 = vld [vmem:[#allocation14 + $0x150] sm:$0xff]
      %v625 = vld [vmem:[#allocation14 + $0x158] sm:$0xff]
      %v626 = vld [vmem:[#allocation14 + $0x160] sm:$0xff]
      %v627 = vld [vmem:[#allocation14 + $0x168] sm:$0xff]
      %v628 = vld [vmem:[#allocation14 + $0x170] sm:$0xff]
      %v629 = vld [vmem:[#allocation14 + $0x178] sm:$0xff]
      %v630 = vld [vmem:[%s9] sm:$0x7]
      %s631 = smul.u32 0, 3
      %s632 = smul.addr %s631, 8
      %s633 = scalar_lea.vmem [#allocation2], %s632
      %v634 = vld [vmem:[%s633] sm:$0xff]
      %v635 = vld [vmem:[%s633 + $0x8] sm:$0xff]
      %v636 = vld [vmem:[%s633 + $0x10] sm:$0xff]
      %v638 = vlaneseq
      %v639 = vshrl.u32 %v638, 7
      %v640 = vsub.s32 0, %v639
      %v641 = vrot.slane %v630, %v640
      %v642 = vlaneseq
      %v643 = vshrl.u32 %v642, 7
      %v644 = vsub.s32 1, %v643
      %v645 = vrot.slane %v630, %v644
      %v646 = vlaneseq
      %v647 = vshrl.u32 %v646, 7
      %v648 = vsub.s32 2, %v647
      %v649 = vrot.slane %v630, %v648
      %653 = vmatprep.subr.mxu0 %v628
      %654 = vmatpush1.msra.mxu0 %v627
      %655 = vmatprep.subr.mxu0 %v625
      %656 = vmatpush1.msra.mxu0 %v624
      %657 = vmatprep.subr.mxu0 %v622
      %658 = vmatpush1.msra.mxu0 %v621
      %659 = vmatprep.subr.mxu0 %v619
      %660 = vmatpush1.msra.mxu0 %v618
      %661 = vmatprep.subr.mxu0 %v616
      %662 = vmatpush1.msra.mxu0 %v615
      %663 = vmatprep.subr.mxu0 %v613
      %664 = vmatpush1.msra.mxu0 %v612
      %665 = vmatprep.subr.mxu0 %v610
      %666 = vmatpush1.msra.mxu0 %v609
      %667 = vmatprep.subr.mxu0 %v607
      %668 = vmatpush1.msra.mxu0 %v606
      %669 = vmatprep.subr.mxu0 %v604
      %670 = vmatpush1.msra.mxu0 %v603
      %671 = vmatprep.subr.mxu0 %v601
      %672 = vmatpush1.msra.mxu0 %v600
      %673 = vmatprep.subr.mxu0 %v598
      %674 = vmatpush1.msra.mxu0 %v597
      %675 = vmatprep.subr.mxu0 %v595
      %676 = vmatpush1.msra.mxu0 %v594
      %677 = vmatprep.subr.mxu0 %v592
      %678 = vmatpush1.msra.mxu0 %v591
      %679 = vmatprep.subr.mxu0 %v589
      %680 = vmatpush1.msra.mxu0 %v588
      %681 = vmatprep.subr.mxu0 %v586
      %682 = vmatpush1.msra.mxu0 %v585
      %683 = vmatprep.subr.mxu0 %v583
      %684 = vmatpush1.msra.mxu0 %v582
      %685 = vmatprep.subr.mxu0 0.0
      %686 = vmatpush2.msra.mxu0 0.0
      %687 = vmatprep.subr.mxu0 0.0
      %688 = vmatpush2.msra.mxu0 0.0
      %689 = vmatprep.subr.mxu0 0.0
      %690 = vmatpush2.msra.mxu0 0.0
      %691 = vmatprep.subr.mxu0 0.0
      %692 = vmatpush2.msra.mxu0 0.0
      %693 = vmatprep.subr.mxu0 0.0
      %694 = vmatpush2.msra.mxu0 0.0
      %695 = vmatprep.subr.mxu0 0.0
      %696 = vmatpush2.msra.mxu0 0.0
      %697 = vmatprep.subr.mxu0 0.0
      %698 = vmatpush2.msra.mxu0 0.0
      %699 = vmatprep.subr.mxu0 0.0
      %700 = vmatpush2.msra.mxu0 0.0
      %701 = vmatprep.subr.mxu0 0.0
      %702 = vmatpush2.msra.mxu0 0.0
      %703 = vmatprep.subr.mxu0 0.0
      %704 = vmatpush2.msra.mxu0 0.0
      %705 = vmatprep.subr.mxu0 0.0
      %706 = vmatpush2.msra.mxu0 0.0
      %707 = vmatprep.subr.mxu0 0.0
      %708 = vmatpush2.msra.mxu0 0.0
      %709 = vmatprep.subr.mxu0 0.0
      %710 = vmatpush2.msra.mxu0 0.0
      %711 = vmatprep.subr.mxu0 0.0
      %712 = vmatpush2.msra.mxu0 0.0
      %713 = vmatprep.subr.mxu0 0.0
      %714 = vmatpush2.msra.mxu0 0.0
      %715 = vmatprep.subr.mxu0 0.0
      %716 = vmatpush2.msra.mxu0 0.0
      %717 = vmatprep.mubr.f32.mxu0 0.0
      %718 = vmatmul.mubr.f32.gmra.mxu0 %v578
      %v719 = vpop.f32.mrf.mxu0
      %v720 = vadd.f32 %v641, %v719
      %v721 = vpop.f32.mrf.mxu0
      %v722 = vadd.f32 %v645, %v721
      %723 = vdwg.mxu0
      %724 = vmatprep.subr.mxu0 0.0
      %725 = vmatpush1.msra.mxu0 %v629
      %726 = vmatprep.subr.mxu0 0.0
      %727 = vmatpush1.msra.mxu0 %v626
      %728 = vmatprep.subr.mxu0 0.0
      %729 = vmatpush1.msra.mxu0 %v623
      %730 = vmatprep.subr.mxu0 0.0
      %731 = vmatpush1.msra.mxu0 %v620
      %732 = vmatprep.subr.mxu0 0.0
      %733 = vmatpush1.msra.mxu0 %v617
      %734 = vmatprep.subr.mxu0 0.0
      %735 = vmatpush1.msra.mxu0 %v614
      %736 = vmatprep.subr.mxu0 0.0
      %737 = vmatpush1.msra.mxu0 %v611
      %738 = vmatprep.subr.mxu0 0.0
      %739 = vmatpush1.msra.mxu0 %v608
      %740 = vmatprep.subr.mxu0 0.0
      %741 = vmatpush1.msra.mxu0 %v605
      %742 = vmatprep.subr.mxu0 0.0
      %743 = vmatpush1.msra.mxu0 %v602
      %744 = vmatprep.subr.mxu0 0.0
      %745 = vmatpush1.msra.mxu0 %v599
      %746 = vmatprep.subr.mxu0 0.0
      %747 = vmatpush1.msra.mxu0 %v596
      %748 = vmatprep.subr.mxu0 0.0
      %749 = vmatpush1.msra.mxu0 %v593
      %750 = vmatprep.subr.mxu0 0.0
      %751 = vmatpush1.msra.mxu0 %v590
      %752 = vmatprep.subr.mxu0 0.0
      %753 = vmatpush1.msra.mxu0 %v587
      %754 = vmatprep.subr.mxu0 0.0
      %755 = vmatpush1.msra.mxu0 %v584
      %756 = vmatprep.subr.mxu0 0.0
      %757 = vmatpush2.msra.mxu0 0.0
      %758 = vmatprep.subr.mxu0 0.0
      %759 = vmatpush2.msra.mxu0 0.0
      %760 = vmatprep.subr.mxu0 0.0
      %761 = vmatpush2.msra.mxu0 0.0
      %762 = vmatprep.subr.mxu0 0.0
      %763 = vmatpush2.msra.mxu0 0.0
      %764 = vmatprep.subr.mxu0 0.0
      %765 = vmatpush2.msra.mxu0 0.0
      %766 = vmatprep.subr.mxu0 0.0
      %767 = vmatpush2.msra.mxu0 0.0
      %768 = vmatprep.subr.mxu0 0.0
      %769 = vmatpush2.msra.mxu0 0.0
      %770 = vmatprep.subr.mxu0 0.0
      %771 = vmatpush2.msra.mxu0 0.0
      %772 = vmatprep.subr.mxu0 0.0
      %773 = vmatpush2.msra.mxu0 0.0
      %774 = vmatprep.subr.mxu0 0.0
      %775 = vmatpush2.msra.mxu0 0.0
      %776 = vmatprep.subr.mxu0 0.0
      %777 = vmatpush2.msra.mxu0 0.0
      %778 = vmatprep.subr.mxu0 0.0
      %779 = vmatpush2.msra.mxu0 0.0
      %780 = vmatprep.subr.mxu0 0.0
      %781 = vmatpush2.msra.mxu0 0.0
      %782 = vmatprep.subr.mxu0 0.0
      %783 = vmatpush2.msra.mxu0 0.0
      %784 = vmatprep.subr.mxu0 0.0
      %785 = vmatpush2.msra.mxu0 0.0
      %786 = vmatprep.subr.mxu0 0.0
      %787 = vmatpush2.msra.mxu0 0.0
      %788 = vmatprep.mubr.f32.mxu0 0.0
      %789 = vmatmul.mubr.f32.gmra.mxu0 %v578
      %v790 = vpop.f32.mrf.mxu0
      %v791 = vadd.f32 %v649, %v790
      %v792 = vpop.f32.mrf.mxu0
      %793 = vdwg.mxu0
      %v794 = vadd.f32 %v634, %v720
      %v795 = vxor.u32 %v794, 2147483648
      %v796 = vmul.f32 %v795, 1.442695
      %v797 = vpow.pop %v796
      %v798 = vadd.f32 %v797, 1.0
      %v799 = vrcp.pop %v798
      %v800 = vmul.f32 1.0, %v799
      %v801 = vadd.f32 %v635, %v722
      %v802 = vxor.u32 %v801, 2147483648
      %v803 = vmul.f32 %v802, 1.442695
      %v804 = vpow.pop %v803
      %v805 = vadd.f32 %v804, 1.0
      %v806 = vrcp.pop %v805
      %v807 = vmul.f32 1.0, %v806
      %v808 = vmul.f32 %v800, %v791
      %v809 = vadd.f32 %v636, %v808
      %v810 = vtanh.pop %v809
      %v811 = vsub.f32 1.0, %v807
      %v812 = vmul.f32 %v811, %v810
      %v813 = vmul.f32 %v807, %v578
      %v814 = vadd.f32 %v812, %v813
      %v815 = vld [vmem:[%s2] sm:$0xff]
      %817 = vset.pattern.permute.xlu0 0
      %818 = vperm.xlu0 %817, %v815
      %v819 = vpop.permute.xlu0 %818
      %v821 = vmul.f32 %v814, %v819
      %822 = vst [vmem:[#allocation3] sm:$0xff] %v821
      %s823 = smul.u32 1, 3
      %s824 = smul.addr %s823, 8
      %s825 = scalar_lea.vmem [#allocation2], %s824
      %v826 = vld [vmem:[%s825] sm:$0xff]
      %v827 = vld [vmem:[%s825 + $0x8] sm:$0xff]
      %v828 = vld [vmem:[%s825 + $0x10] sm:$0xff]
      %829 = vmatprep.subr.mxu0 %v628
      %830 = vmatpush1.msra.mxu0 %v627
      %831 = vmatprep.subr.mxu0 %v625
      %832 = vmatpush1.msra.mxu0 %v624
      %833 = vmatprep.subr.mxu0 %v622
      %834 = vmatpush1.msra.mxu0 %v621
      %835 = vmatprep.subr.mxu0 %v619
      %836 = vmatpush1.msra.mxu0 %v618
      %837 = vmatprep.subr.mxu0 %v616
      %838 = vmatpush1.msra.mxu0 %v615
      %839 = vmatprep.subr.mxu0 %v613
      %840 = vmatpush1.msra.mxu0 %v612
      %841 = vmatprep.subr.mxu0 %v610
      %842 = vmatpush1.msra.mxu0 %v609
      %843 = vmatprep.subr.mxu0 %v607
      %844 = vmatpush1.msra.mxu0 %v606
      %845 = vmatprep.subr.mxu0 %v604
      %846 = vmatpush1.msra.mxu0 %v603
      %847 = vmatprep.subr.mxu0 %v601
      %848 = vmatpush1.msra.mxu0 %v600
      %849 = vmatprep.subr.mxu0 %v598
      %850 = vmatpush1.msra.mxu0 %v597
      %851 = vmatprep.subr.mxu0 %v595
      %852 = vmatpush1.msra.mxu0 %v594
      %853 = vmatprep.subr.mxu0 %v592
      %854 = vmatpush1.msra.mxu0 %v591
      %855 = vmatprep.subr.mxu0 %v589
      %856 = vmatpush1.msra.mxu0 %v588
      %857 = vmatprep.subr.mxu0 %v586
      %858 = vmatpush1.msra.mxu0 %v585
      %859 = vmatprep.subr.mxu0 %v583
      %860 = vmatpush1.msra.mxu0 %v582
      %861 = vmatprep.subr.mxu0 0.0
      %862 = vmatpush2.msra.mxu0 0.0
      %863 = vmatprep.subr.mxu0 0.0
      %864 = vmatpush2.msra.mxu0 0.0
      %865 = vmatprep.subr.mxu0 0.0
      %866 = vmatpush2.msra.mxu0 0.0
      %867 = vmatprep.subr.mxu0 0.0
      %868 = vmatpush2.msra.mxu0 0.0
      %869 = vmatprep.subr.mxu0 0.0
      %870 = vmatpush2.msra.mxu0 0.0
      %871 = vmatprep.subr.mxu0 0.0
      %872 = vmatpush2.msra.mxu0 0.0
      %873 = vmatprep.subr.mxu0 0.0
      %874 = vmatpush2.msra.mxu0 0.0
      %875 = vmatprep.subr.mxu0 0.0
      %876 = vmatpush2.msra.mxu0 0.0
      %877 = vmatprep.subr.mxu0 0.0
      %878 = vmatpush2.msra.mxu0 0.0
      %879 = vmatprep.subr.mxu0 0.0
      %880 = vmatpush2.msra.mxu0 0.0
      %881 = vmatprep.subr.mxu0 0.0
      %882 = vmatpush2.msra.mxu0 0.0
      %883 = vmatprep.subr.mxu0 0.0
      %884 = vmatpush2.msra.mxu0 0.0
      %885 = vmatprep.subr.mxu0 0.0
      %886 = vmatpush2.msra.mxu0 0.0
      %887 = vmatprep.subr.mxu0 0.0
      %888 = vmatpush2.msra.mxu0 0.0
      %889 = vmatprep.subr.mxu0 0.0
      %890 = vmatpush2.msra.mxu0 0.0
      %891 = vmatprep.subr.mxu0 0.0
      %892 = vmatpush2.msra.mxu0 0.0
      %893 = vmatprep.mubr.f32.mxu0 0.0
      %894 = vmatmul.mubr.f32.gmra.mxu0 %v814
      %v895 = vpop.f32.mrf.mxu0
      %v896 = vadd.f32 %v641, %v895
      %v897 = vpop.f32.mrf.mxu0
      %v898 = vadd.f32 %v645, %v897
      %899 = vdwg.mxu0
      %900 = vmatprep.subr.mxu0 0.0
      %901 = vmatpush1.msra.mxu0 %v629
      %902 = vmatprep.subr.mxu0 0.0
      %903 = vmatpush1.msra.mxu0 %v626
      %904 = vmatprep.subr.mxu0 0.0
      %905 = vmatpush1.msra.mxu0 %v623
      %906 = vmatprep.subr.mxu0 0.0
      %907 = vmatpush1.msra.mxu0 %v620
      %908 = vmatprep.subr.mxu0 0.0
      %909 = vmatpush1.msra.mxu0 %v617
      %910 = vmatprep.subr.mxu0 0.0
      %911 = vmatpush1.msra.mxu0 %v614
      %912 = vmatprep.subr.mxu0 0.0
      %913 = vmatpush1.msra.mxu0 %v611
      %914 = vmatprep.subr.mxu0 0.0
      %915 = vmatpush1.msra.mxu0 %v608
      %916 = vmatprep.subr.mxu0 0.0
      %917 = vmatpush1.msra.mxu0 %v605
      %918 = vmatprep.subr.mxu0 0.0
      %919 = vmatpush1.msra.mxu0 %v602
      %920 = vmatprep.subr.mxu0 0.0
      %921 = vmatpush1.msra.mxu0 %v599
      %922 = vmatprep.subr.mxu0 0.0
      %923 = vmatpush1.msra.mxu0 %v596
      %924 = vmatprep.subr.mxu0 0.0
      %925 = vmatpush1.msra.mxu0 %v593
      %926 = vmatprep.subr.mxu0 0.0
      %927 = vmatpush1.msra.mxu0 %v590
      %928 = vmatprep.subr.mxu0 0.0
      %929 = vmatpush1.msra.mxu0 %v587
      %930 = vmatprep.subr.mxu0 0.0
      %931 = vmatpush1.msra.mxu0 %v584
      %932 = vmatprep.subr.mxu0 0.0
      %933 = vmatpush2.msra.mxu0 0.0
      %934 = vmatprep.subr.mxu0 0.0
      %935 = vmatpush2.msra.mxu0 0.0
      %936 = vmatprep.subr.mxu0 0.0
      %937 = vmatpush2.msra.mxu0 0.0
      %938 = vmatprep.subr.mxu0 0.0
      %939 = vmatpush2.msra.mxu0 0.0
      %940 = vmatprep.subr.mxu0 0.0
      %941 = vmatpush2.msra.mxu0 0.0
      %942 = vmatprep.subr.mxu0 0.0
      %943 = vmatpush2.msra.mxu0 0.0
      %944 = vmatprep.subr.mxu0 0.0
      %945 = vmatpush2.msra.mxu0 0.0
      %946 = vmatprep.subr.mxu0 0.0
      %947 = vmatpush2.msra.mxu0 0.0
      %948 = vmatprep.subr.mxu0 0.0
      %949 = vmatpush2.msra.mxu0 0.0
      %950 = vmatprep.subr.mxu0 0.0
      %951 = vmatpush2.msra.mxu0 0.0
      %952 = vmatprep.subr.mxu0 0.0
      %953 = vmatpush2.msra.mxu0 0.0
      %954 = vmatprep.subr.mxu0 0.0
      %955 = vmatpush2.msra.mxu0 0.0
      %956 = vmatprep.subr.mxu0 0.0
      %957 = vmatpush2.msra.mxu0 0.0
      %958 = vmatprep.subr.mxu0 0.0
      %959 = vmatpush2.msra.mxu0 0.0
      %960 = vmatprep.subr.mxu0 0.0
      %961 = vmatpush2.msra.mxu0 0.0
      %962 = vmatprep.subr.mxu0 0.0
      %963 = vmatpush2.msra.mxu0 0.0
      %964 = vmatprep.mubr.f32.mxu0 0.0
      %965 = vmatmul.mubr.f32.gmra.mxu0 %v814
      %v966 = vpop.f32.mrf.mxu0
      %v967 = vadd.f32 %v649, %v966
      %v968 = vpop.f32.mrf.mxu0
      %969 = vdwg.mxu0
      %v970 = vadd.f32 %v826, %v896
      %v971 = vxor.u32 %v970, 2147483648
      %v972 = vmul.f32 %v971, 1.442695
      %v973 = vpow.pop %v972
      %v974 = vadd.f32 %v973, 1.0
      %v975 = vrcp.pop %v974
      %v976 = vmul.f32 1.0, %v975
      %v977 = vadd.f32 %v827, %v898
      %v978 = vxor.u32 %v977, 2147483648
      %v979 = vmul.f32 %v978, 1.442695
      %v980 = vpow.pop %v979
      %v981 = vadd.f32 %v980, 1.0
      %v982 = vrcp.pop %v981
      %v983 = vmul.f32 1.0, %v982
      %v984 = vmul.f32 %v976, %v967
      %v985 = vadd.f32 %v828, %v984
      %v986 = vtanh.pop %v985
      %v987 = vsub.f32 1.0, %v983
      %v988 = vmul.f32 %v987, %v986
      %v989 = vmul.f32 %v983, %v814
      %v990 = vadd.f32 %v988, %v989
      %s991 = scalar_lea.vmem %s2, 8
      %v992 = vld [vmem:[%s991] sm:$0xff]
      %994 = vset.pattern.permute.xlu0 0
      %995 = vperm.xlu0 %994, %v992
      %v996 = vpop.permute.xlu0 %995
      %v998 = vmul.f32 %v990, %v996
      %s999 = scalar_lea.vmem [#allocation3], 8
      %1000 = vst [vmem:[%s999] sm:$0xff] %v998
      %s1001 = smul.u32 2, 3
      %s1002 = smul.addr %s1001, 8
      %s1003 = scalar_lea.vmem [#allocation2], %s1002
      %v1004 = vld [vmem:[%s1003] sm:$0xff]
      %v1005 = vld [vmem:[%s1003 + $0x8] sm:$0xff]
      %v1006 = vld [vmem:[%s1003 + $0x10] sm:$0xff]
      %1007 = vmatprep.subr.mxu0 %v628
      %1008 = vmatpush1.msra.mxu0 %v627
      %1009 = vmatprep.subr.mxu0 %v625
      %1010 = vmatpush1.msra.mxu0 %v624
      %1011 = vmatprep.subr.mxu0 %v622
      %1012 = vmatpush1.msra.mxu0 %v621
      %1013 = vmatprep.subr.mxu0 %v619
      %1014 = vmatpush1.msra.mxu0 %v618
      %1015 = vmatprep.subr.mxu0 %v616
      %1016 = vmatpush1.msra.mxu0 %v615
      %1017 = vmatprep.subr.mxu0 %v613
      %1018 = vmatpush1.msra.mxu0 %v612
      %1019 = vmatprep.subr.mxu0 %v610
      %1020 = vmatpush1.msra.mxu0 %v609
      %1021 = vmatprep.subr.mxu0 %v607
      %1022 = vmatpush1.msra.mxu0 %v606
      %1023 = vmatprep.subr.mxu0 %v604
      %1024 = vmatpush1.msra.mxu0 %v603
      %1025 = vmatprep.subr.mxu0 %v601
      %1026 = vmatpush1.msra.mxu0 %v600
      %1027 = vmatprep.subr.mxu0 %v598
      %1028 = vmatpush1.msra.mxu0 %v597
      %1029 = vmatprep.subr.mxu0 %v595
      %1030 = vmatpush1.msra.mxu0 %v594
      %1031 = vmatprep.subr.mxu0 %v592
      %1032 = vmatpush1.msra.mxu0 %v591
      %1033 = vmatprep.subr.mxu0 %v589
      %1034 = vmatpush1.msra.mxu0 %v588
      %1035 = vmatprep.subr.mxu0 %v586
      %1036 = vmatpush1.msra.mxu0 %v585
      %1037 = vmatprep.subr.mxu0 %v583
      %1038 = vmatpush1.msra.mxu0 %v582
      %1039 = vmatprep.subr.mxu0 0.0
      %1040 = vmatpush2.msra.mxu0 0.0
      %1041 = vmatprep.subr.mxu0 0.0
      %1042 = vmatpush2.msra.mxu0 0.0
      %1043 = vmatprep.subr.mxu0 0.0
      %1044 = vmatpush2.msra.mxu0 0.0
      %1045 = vmatprep.subr.mxu0 0.0
      %1046 = vmatpush2.msra.mxu0 0.0
      %1047 = vmatprep.subr.mxu0 0.0
      %1048 = vmatpush2.msra.mxu0 0.0
      %1049 = vmatprep.subr.mxu0 0.0
      %1050 = vmatpush2.msra.mxu0 0.0
      %1051 = vmatprep.subr.mxu0 0.0
      %1052 = vmatpush2.msra.mxu0 0.0
      %1053 = vmatprep.subr.mxu0 0.0
      %1054 = vmatpush2.msra.mxu0 0.0
      %1055 = vmatprep.subr.mxu0 0.0
      %1056 = vmatpush2.msra.mxu0 0.0
      %1057 = vmatprep.subr.mxu0 0.0
      %1058 = vmatpush2.msra.mxu0 0.0
      %1059 = vmatprep.subr.mxu0 0.0
      %1060 = vmatpush2.msra.mxu0 0.0
      %1061 = vmatprep.subr.mxu0 0.0
      %1062 = vmatpush2.msra.mxu0 0.0
      %1063 = vmatprep.subr.mxu0 0.0
      %1064 = vmatpush2.msra.mxu0 0.0
      %1065 = vmatprep.subr.mxu0 0.0
      %1066 = vmatpush2.msra.mxu0 0.0
      %1067 = vmatprep.subr.mxu0 0.0
      %1068 = vmatpush2.msra.mxu0 0.0
      %1069 = vmatprep.subr.mxu0 0.0
      %1070 = vmatpush2.msra.mxu0 0.0
      %1071 = vmatprep.mubr.f32.mxu0 0.0
      %1072 = vmatmul.mubr.f32.gmra.mxu0 %v990
      %v1073 = vpop.f32.mrf.mxu0
      %v1074 = vadd.f32 %v641, %v1073
      %v1075 = vpop.f32.mrf.mxu0
      %v1076 = vadd.f32 %v645, %v1075
      %1077 = vdwg.mxu0
      %1078 = vmatprep.subr.mxu0 0.0
      %1079 = vmatpush1.msra.mxu0 %v629
      %1080 = vmatprep.subr.mxu0 0.0
      %1081 = vmatpush1.msra.mxu0 %v626
      %1082 = vmatprep.subr.mxu0 0.0
      %1083 = vmatpush1.msra.mxu0 %v623
      %1084 = vmatprep.subr.mxu0 0.0
      %1085 = vmatpush1.msra.mxu0 %v620
      %1086 = vmatprep.subr.mxu0 0.0
      %1087 = vmatpush1.msra.mxu0 %v617
      %1088 = vmatprep.subr.mxu0 0.0
      %1089 = vmatpush1.msra.mxu0 %v614
      %1090 = vmatprep.subr.mxu0 0.0
      %1091 = vmatpush1.msra.mxu0 %v611
      %1092 = vmatprep.subr.mxu0 0.0
      %1093 = vmatpush1.msra.mxu0 %v608
      %1094 = vmatprep.subr.mxu0 0.0
      %1095 = vmatpush1.msra.mxu0 %v605
      %1096 = vmatprep.subr.mxu0 0.0
      %1097 = vmatpush1.msra.mxu0 %v602
      %1098 = vmatprep.subr.mxu0 0.0
      %1099 = vmatpush1.msra.mxu0 %v599
      %1100 = vmatprep.subr.mxu0 0.0
      %1101 = vmatpush1.msra.mxu0 %v596
      %1102 = vmatprep.subr.mxu0 0.0
      %1103 = vmatpush1.msra.mxu0 %v593
      %1104 = vmatprep.subr.mxu0 0.0
      %1105 = vmatpush1.msra.mxu0 %v590
      %1106 = vmatprep.subr.mxu0 0.0
      %1107 = vmatpush1.msra.mxu0 %v587
      %1108 = vmatprep.subr.mxu0 0.0
      %1109 = vmatpush1.msra.mxu0 %v584
      %1110 = vmatprep.subr.mxu0 0.0
      %1111 = vmatpush2.msra.mxu0 0.0
      %1112 = vmatprep.subr.mxu0 0.0
      %1113 = vmatpush2.msra.mxu0 0.0
      %1114 = vmatprep.subr.mxu0 0.0
      %1115 = vmatpush2.msra.mxu0 0.0
      %1116 = vmatprep.subr.mxu0 0.0
      %1117 = vmatpush2.msra.mxu0 0.0
      %1118 = vmatprep.subr.mxu0 0.0
      %1119 = vmatpush2.msra.mxu0 0.0
      %1120 = vmatprep.subr.mxu0 0.0
      %1121 = vmatpush2.msra.mxu0 0.0
      %1122 = vmatprep.subr.mxu0 0.0
      %1123 = vmatpush2.msra.mxu0 0.0
      %1124 = vmatprep.subr.mxu0 0.0
      %1125 = vmatpush2.msra.mxu0 0.0
      %1126 = vmatprep.subr.mxu0 0.0
      %1127 = vmatpush2.msra.mxu0 0.0
      %1128 = vmatprep.subr.mxu0 0.0
      %1129 = vmatpush2.msra.mxu0 0.0
      %1130 = vmatprep.subr.mxu0 0.0
      %1131 = vmatpush2.msra.mxu0 0.0
      %1132 = vmatprep.subr.mxu0 0.0
      %1133 = vmatpush2.msra.mxu0 0.0
      %1134 = vmatprep.subr.mxu0 0.0
      %1135 = vmatpush2.msra.mxu0 0.0
      %1136 = vmatprep.subr.mxu0 0.0
      %1137 = vmatpush2.msra.mxu0 0.0
      %1138 = vmatprep.subr.mxu0 0.0
      %1139 = vmatpush2.msra.mxu0 0.0
      %1140 = vmatprep.subr.mxu0 0.0
      %1141 = vmatpush2.msra.mxu0 0.0
      %1142 = vmatprep.mubr.f32.mxu0 0.0
      %1143 = vmatmul.mubr.f32.gmra.mxu0 %v990
      %v1144 = vpop.f32.mrf.mxu0
      %v1145 = vadd.f32 %v649, %v1144
      %v1146 = vpop.f32.mrf.mxu0
      %1147 = vdwg.mxu0
      %v1148 = vadd.f32 %v1004, %v1074
      %v1149 = vxor.u32 %v1148, 2147483648
      %v1150 = vmul.f32 %v1149, 1.442695
      %v1151 = vpow.pop %v1150
      %v1152 = vadd.f32 %v1151, 1.0
      %v1153 = vrcp.pop %v1152
      %v1154 = vmul.f32 1.0, %v1153
      %v1155 = vadd.f32 %v1005, %v1076
      %v1156 = vxor.u32 %v1155, 2147483648
      %v1157 = vmul.f32 %v1156, 1.442695
      %v1158 = vpow.pop %v1157
      %v1159 = vadd.f32 %v1158, 1.0
      %v1160 = vrcp.pop %v1159
      %v1161 = vmul.f32 1.0, %v1160
      %v1162 = vmul.f32 %v1154, %v1145
      %v1163 = vadd.f32 %v1006, %v1162
      %v1164 = vtanh.pop %v1163
      %v1165 = vsub.f32 1.0, %v1161
      %v1166 = vmul.f32 %v1165, %v1164
      %v1167 = vmul.f32 %v1161, %v990
      %v1168 = vadd.f32 %v1166, %v1167
      %s1169 = scalar_lea.vmem %s2, 16
      %v1170 = vld [vmem:[%s1169] sm:$0xff]
      %1172 = vset.pattern.permute.xlu0 0
      %1173 = vperm.xlu0 %1172, %v1170
      %v1174 = vpop.permute.xlu0 %1173
      %v1176 = vmul.f32 %v1168, %v1174
      %s1177 = scalar_lea.vmem [#allocation3], 16
      %1178 = vst [vmem:[%s1177] sm:$0xff] %v1176
      %s1179 = smul.u32 3, 3
      %s1180 = smul.addr %s1179, 8
      %s1181 = scalar_lea.vmem [#allocation2], %s1180
      %v1182 = vld [vmem:[%s1181] sm:$0xff]
      %v1183 = vld [vmem:[%s1181 + $0x8] sm:$0xff]
      %v1184 = vld [vmem:[%s1181 + $0x10] sm:$0xff]
      %1185 = vmatprep.subr.mxu0 %v628
      %1186 = vmatpush1.msra.mxu0 %v627
      %1187 = vmatprep.subr.mxu0 %v625
      %1188 = vmatpush1.msra.mxu0 %v624
      %1189 = vmatprep.subr.mxu0 %v622
      %1190 = vmatpush1.msra.mxu0 %v621
      %1191 = vmatprep.subr.mxu0 %v619
      %1192 = vmatpush1.msra.mxu0 %v618
      %1193 = vmatprep.subr.mxu0 %v616
      %1194 = vmatpush1.msra.mxu0 %v615
      %1195 = vmatprep.subr.mxu0 %v613
      %1196 = vmatpush1.msra.mxu0 %v612
      %1197 = vmatprep.subr.mxu0 %v610
      %1198 = vmatpush1.msra.mxu0 %v609
      %1199 = vmatprep.subr.mxu0 %v607
      %1200 = vmatpush1.msra.mxu0 %v606
      %1201 = vmatprep.subr.mxu0 %v604
      %1202 = vmatpush1.msra.mxu0 %v603
      %1203 = vmatprep.subr.mxu0 %v601
      %1204 = vmatpush1.msra.mxu0 %v600
      %1205 = vmatprep.subr.mxu0 %v598
      %1206 = vmatpush1.msra.mxu0 %v597
      %1207 = vmatprep.subr.mxu0 %v595
      %1208 = vmatpush1.msra.mxu0 %v594
      %1209 = vmatprep.subr.mxu0 %v592
      %1210 = vmatpush1.msra.mxu0 %v591
      %1211 = vmatprep.subr.mxu0 %v589
      %1212 = vmatpush1.msra.mxu0 %v588
      %1213 = vmatprep.subr.mxu0 %v586
      %1214 = vmatpush1.msra.mxu0 %v585
      %1215 = vmatprep.subr.mxu0 %v583
      %1216 = vmatpush1.msra.mxu0 %v582
      %1217 = vmatprep.subr.mxu0 0.0
      %1218 = vmatpush2.msra.mxu0 0.0
      %1219 = vmatprep.subr.mxu0 0.0
      %1220 = vmatpush2.msra.mxu0 0.0
      %1221 = vmatprep.subr.mxu0 0.0
      %1222 = vmatpush2.msra.mxu0 0.0
      %1223 = vmatprep.subr.mxu0 0.0
      %1224 = vmatpush2.msra.mxu0 0.0
      %1225 = vmatprep.subr.mxu0 0.0
      %1226 = vmatpush2.msra.mxu0 0.0
      %1227 = vmatprep.subr.mxu0 0.0
      %1228 = vmatpush2.msra.mxu0 0.0
      %1229 = vmatprep.subr.mxu0 0.0
      %1230 = vmatpush2.msra.mxu0 0.0
      %1231 = vmatprep.subr.mxu0 0.0
      %1232 = vmatpush2.msra.mxu0 0.0
      %1233 = vmatprep.subr.mxu0 0.0
      %1234 = vmatpush2.msra.mxu0 0.0
      %1235 = vmatprep.subr.mxu0 0.0
      %1236 = vmatpush2.msra.mxu0 0.0
      %1237 = vmatprep.subr.mxu0 0.0
      %1238 = vmatpush2.msra.mxu0 0.0
      %1239 = vmatprep.subr.mxu0 0.0
      %1240 = vmatpush2.msra.mxu0 0.0
      %1241 = vmatprep.subr.mxu0 0.0
      %1242 = vmatpush2.msra.mxu0 0.0
      %1243 = vmatprep.subr.mxu0 0.0
      %1244 = vmatpush2.msra.mxu0 0.0
      %1245 = vmatprep.subr.mxu0 0.0
      %1246 = vmatpush2.msra.mxu0 0.0
      %1247 = vmatprep.subr.mxu0 0.0
      %1248 = vmatpush2.msra.mxu0 0.0
      %1249 = vmatprep.mubr.f32.mxu0 0.0
      %1250 = vmatmul.mubr.f32.gmra.mxu0 %v1168
      %v1251 = vpop.f32.mrf.mxu0
      %v1252 = vadd.f32 %v641, %v1251
      %v1253 = vpop.f32.mrf.mxu0
      %v1254 = vadd.f32 %v645, %v1253
      %1255 = vdwg.mxu0
      %1256 = vmatprep.subr.mxu0 0.0
      %1257 = vmatpush1.msra.mxu0 %v629
      %1258 = vmatprep.subr.mxu0 0.0
      %1259 = vmatpush1.msra.mxu0 %v626
      %1260 = vmatprep.subr.mxu0 0.0
      %1261 = vmatpush1.msra.mxu0 %v623
      %1262 = vmatprep.subr.mxu0 0.0
      %1263 = vmatpush1.msra.mxu0 %v620
      %1264 = vmatprep.subr.mxu0 0.0
      %1265 = vmatpush1.msra.mxu0 %v617
      %1266 = vmatprep.subr.mxu0 0.0
      %1267 = vmatpush1.msra.mxu0 %v614
      %1268 = vmatprep.subr.mxu0 0.0
      %1269 = vmatpush1.msra.mxu0 %v611
      %1270 = vmatprep.subr.mxu0 0.0
      %1271 = vmatpush1.msra.mxu0 %v608
      %1272 = vmatprep.subr.mxu0 0.0
      %1273 = vmatpush1.msra.mxu0 %v605
      %1274 = vmatprep.subr.mxu0 0.0
      %1275 = vmatpush1.msra.mxu0 %v602
      %1276 = vmatprep.subr.mxu0 0.0
      %1277 = vmatpush1.msra.mxu0 %v599
      %1278 = vmatprep.subr.mxu0 0.0
      %1279 = vmatpush1.msra.mxu0 %v596
      %1280 = vmatprep.subr.mxu0 0.0
      %1281 = vmatpush1.msra.mxu0 %v593
      %1282 = vmatprep.subr.mxu0 0.0
      %1283 = vmatpush1.msra.mxu0 %v590
      %1284 = vmatprep.subr.mxu0 0.0
      %1285 = vmatpush1.msra.mxu0 %v587
      %1286 = vmatprep.subr.mxu0 0.0
      %1287 = vmatpush1.msra.mxu0 %v584
      %1288 = vmatprep.subr.mxu0 0.0
      %1289 = vmatpush2.msra.mxu0 0.0
      %1290 = vmatprep.subr.mxu0 0.0
      %1291 = vmatpush2.msra.mxu0 0.0
      %1292 = vmatprep.subr.mxu0 0.0
      %1293 = vmatpush2.msra.mxu0 0.0
      %1294 = vmatprep.subr.mxu0 0.0
      %1295 = vmatpush2.msra.mxu0 0.0
      %1296 = vmatprep.subr.mxu0 0.0
      %1297 = vmatpush2.msra.mxu0 0.0
      %1298 = vmatprep.subr.mxu0 0.0
      %1299 = vmatpush2.msra.mxu0 0.0
      %1300 = vmatprep.subr.mxu0 0.0
      %1301 = vmatpush2.msra.mxu0 0.0
      %1302 = vmatprep.subr.mxu0 0.0
      %1303 = vmatpush2.msra.mxu0 0.0
      %1304 = vmatprep.subr.mxu0 0.0
      %1305 = vmatpush2.msra.mxu0 0.0
      %1306 = vmatprep.subr.mxu0 0.0
      %1307 = vmatpush2.msra.mxu0 0.0
      %1308 = vmatprep.subr.mxu0 0.0
      %1309 = vmatpush2.msra.mxu0 0.0
      %1310 = vmatprep.subr.mxu0 0.0
      %1311 = vmatpush2.msra.mxu0 0.0
      %1312 = vmatprep.subr.mxu0 0.0
      %1313 = vmatpush2.msra.mxu0 0.0
      %1314 = vmatprep.subr.mxu0 0.0
      %1315 = vmatpush2.msra.mxu0 0.0
      %1316 = vmatprep.subr.mxu0 0.0
      %1317 = vmatpush2.msra.mxu0 0.0
      %1318 = vmatprep.subr.mxu0 0.0
      %1319 = vmatpush2.msra.mxu0 0.0
      %1320 = vmatprep.mubr.f32.mxu0 0.0
      %1321 = vmatmul.mubr.f32.gmra.mxu0 %v1168
      %v1322 = vpop.f32.mrf.mxu0
      %v1323 = vadd.f32 %v649, %v1322
      %v1324 = vpop.f32.mrf.mxu0
      %1325 = vdwg.mxu0
      %v1326 = vadd.f32 %v1182, %v1252
      %v1327 = vxor.u32 %v1326, 2147483648
      %v1328 = vmul.f32 %v1327, 1.442695
      %v1329 = vpow.pop %v1328
      %v1330 = vadd.f32 %v1329, 1.0
      %v1331 = vrcp.pop %v1330
      %v1332 = vmul.f32 1.0, %v1331
      %v1333 = vadd.f32 %v1183, %v1254
      %v1334 = vxor.u32 %v1333, 2147483648
      %v1335 = vmul.f32 %v1334, 1.442695
      %v1336 = vpow.pop %v1335
      %v1337 = vadd.f32 %v1336, 1.0
      %v1338 = vrcp.pop %v1337
      %v1339 = vmul.f32 1.0, %v1338
      %v1340 = vmul.f32 %v1332, %v1323
      %v1341 = vadd.f32 %v1184, %v1340
      %v1342 = vtanh.pop %v1341
      %v1343 = vsub.f32 1.0, %v1339
      %v1344 = vmul.f32 %v1343, %v1342
      %v1345 = vmul.f32 %v1339, %v1168
      %v1346 = vadd.f32 %v1344, %v1345
      %s1347 = scalar_lea.vmem %s2, 24
      %v1348 = vld [vmem:[%s1347] sm:$0xff]
      %1350 = vset.pattern.permute.xlu0 0
      %1351 = vperm.xlu0 %1350, %v1348
      %v1352 = vpop.permute.xlu0 %1351
      %v1354 = vmul.f32 %v1346, %v1352
      %s1355 = scalar_lea.vmem [#allocation3], 24
      %1356 = vst [vmem:[%s1355] sm:$0xff] %v1354
      %s1357 = smul.u32 4, 3
      %s1358 = smul.addr %s1357, 8
      %s1359 = scalar_lea.vmem [#allocation2], %s1358
      %v1360 = vld [vmem:[%s1359] sm:$0xff]
      %v1361 = vld [vmem:[%s1359 + $0x8] sm:$0xff]
      %v1362 = vld [vmem:[%s1359 + $0x10] sm:$0xff]
      %1363 = vmatprep.subr.mxu0 %v628
      %1364 = vmatpush1.msra.mxu0 %v627
      %1365 = vmatprep.subr.mxu0 %v625
      %1366 = vmatpush1.msra.mxu0 %v624
      %1367 = vmatprep.subr.mxu0 %v622
      %1368 = vmatpush1.msra.mxu0 %v621
      %1369 = vmatprep.subr.mxu0 %v619
      %1370 = vmatpush1.msra.mxu0 %v618
      %1371 = vmatprep.subr.mxu0 %v616
      %1372 = vmatpush1.msra.mxu0 %v615
      %1373 = vmatprep.subr.mxu0 %v613
      %1374 = vmatpush1.msra.mxu0 %v612
      %1375 = vmatprep.subr.mxu0 %v610
      %1376 = vmatpush1.msra.mxu0 %v609
      %1377 = vmatprep.subr.mxu0 %v607
      %1378 = vmatpush1.msra.mxu0 %v606
      %1379 = vmatprep.subr.mxu0 %v604
      %1380 = vmatpush1.msra.mxu0 %v603
      %1381 = vmatprep.subr.mxu0 %v601
      %1382 = vmatpush1.msra.mxu0 %v600
      %1383 = vmatprep.subr.mxu0 %v598
      %1384 = vmatpush1.msra.mxu0 %v597
      %1385 = vmatprep.subr.mxu0 %v595
      %1386 = vmatpush1.msra.mxu0 %v594
      %1387 = vmatprep.subr.mxu0 %v592
      %1388 = vmatpush1.msra.mxu0 %v591
      %1389 = vmatprep.subr.mxu0 %v589
      %1390 = vmatpush1.msra.mxu0 %v588
      %1391 = vmatprep.subr.mxu0 %v586
      %1392 = vmatpush1.msra.mxu0 %v585
      %1393 = vmatprep.subr.mxu0 %v583
      %1394 = vmatpush1.msra.mxu0 %v582
      %1395 = vmatprep.subr.mxu0 0.0
      %1396 = vmatpush2.msra.mxu0 0.0
      %1397 = vmatprep.subr.mxu0 0.0
      %1398 = vmatpush2.msra.mxu0 0.0
      %1399 = vmatprep.subr.mxu0 0.0
      %1400 = vmatpush2.msra.mxu0 0.0
      %1401 = vmatprep.subr.mxu0 0.0
      %1402 = vmatpush2.msra.mxu0 0.0
      %1403 = vmatprep.subr.mxu0 0.0
      %1404 = vmatpush2.msra.mxu0 0.0
      %1405 = vmatprep.subr.mxu0 0.0
      %1406 = vmatpush2.msra.mxu0 0.0
      %1407 = vmatprep.subr.mxu0 0.0
      %1408 = vmatpush2.msra.mxu0 0.0
      %1409 = vmatprep.subr.mxu0 0.0
      %1410 = vmatpush2.msra.mxu0 0.0
      %1411 = vmatprep.subr.mxu0 0.0
      %1412 = vmatpush2.msra.mxu0 0.0
      %1413 = vmatprep.subr.mxu0 0.0
      %1414 = vmatpush2.msra.mxu0 0.0
      %1415 = vmatprep.subr.mxu0 0.0
      %1416 = vmatpush2.msra.mxu0 0.0
      %1417 = vmatprep.subr.mxu0 0.0
      %1418 = vmatpush2.msra.mxu0 0.0
      %1419 = vmatprep.subr.mxu0 0.0
      %1420 = vmatpush2.msra.mxu0 0.0
      %1421 = vmatprep.subr.mxu0 0.0
      %1422 = vmatpush2.msra.mxu0 0.0
      %1423 = vmatprep.subr.mxu0 0.0
      %1424 = vmatpush2.msra.mxu0 0.0
      %1425 = vmatprep.subr.mxu0 0.0
      %1426 = vmatpush2.msra.mxu0 0.0
      %1427 = vmatprep.mubr.f32.mxu0 0.0
      %1428 = vmatmul.mubr.f32.gmra.mxu0 %v1346
      %v1429 = vpop.f32.mrf.mxu0
      %v1430 = vadd.f32 %v641, %v1429
      %v1431 = vpop.f32.mrf.mxu0
      %v1432 = vadd.f32 %v645, %v1431
      %1433 = vdwg.mxu0
      %1434 = vmatprep.subr.mxu0 0.0
      %1435 = vmatpush1.msra.mxu0 %v629
      %1436 = vmatprep.subr.mxu0 0.0
      %1437 = vmatpush1.msra.mxu0 %v626
      %1438 = vmatprep.subr.mxu0 0.0
      %1439 = vmatpush1.msra.mxu0 %v623
      %1440 = vmatprep.subr.mxu0 0.0
      %1441 = vmatpush1.msra.mxu0 %v620
      %1442 = vmatprep.subr.mxu0 0.0
      %1443 = vmatpush1.msra.mxu0 %v617
      %1444 = vmatprep.subr.mxu0 0.0
      %1445 = vmatpush1.msra.mxu0 %v614
      %1446 = vmatprep.subr.mxu0 0.0
      %1447 = vmatpush1.msra.mxu0 %v611
      %1448 = vmatprep.subr.mxu0 0.0
      %1449 = vmatpush1.msra.mxu0 %v608
      %1450 = vmatprep.subr.mxu0 0.0
      %1451 = vmatpush1.msra.mxu0 %v605
      %1452 = vmatprep.subr.mxu0 0.0
      %1453 = vmatpush1.msra.mxu0 %v602
      %1454 = vmatprep.subr.mxu0 0.0
      %1455 = vmatpush1.msra.mxu0 %v599
      %1456 = vmatprep.subr.mxu0 0.0
      %1457 = vmatpush1.msra.mxu0 %v596
      %1458 = vmatprep.subr.mxu0 0.0
      %1459 = vmatpush1.msra.mxu0 %v593
      %1460 = vmatprep.subr.mxu0 0.0
      %1461 = vmatpush1.msra.mxu0 %v590
      %1462 = vmatprep.subr.mxu0 0.0
      %1463 = vmatpush1.msra.mxu0 %v587
      %1464 = vmatprep.subr.mxu0 0.0
      %1465 = vmatpush1.msra.mxu0 %v584
      %1466 = vmatprep.subr.mxu0 0.0
      %1467 = vmatpush2.msra.mxu0 0.0
      %1468 = vmatprep.subr.mxu0 0.0
      %1469 = vmatpush2.msra.mxu0 0.0
      %1470 = vmatprep.subr.mxu0 0.0
      %1471 = vmatpush2.msra.mxu0 0.0
      %1472 = vmatprep.subr.mxu0 0.0
      %1473 = vmatpush2.msra.mxu0 0.0
      %1474 = vmatprep.subr.mxu0 0.0
      %1475 = vmatpush2.msra.mxu0 0.0
      %1476 = vmatprep.subr.mxu0 0.0
      %1477 = vmatpush2.msra.mxu0 0.0
      %1478 = vmatprep.subr.mxu0 0.0
      %1479 = vmatpush2.msra.mxu0 0.0
      %1480 = vmatprep.subr.mxu0 0.0
      %1481 = vmatpush2.msra.mxu0 0.0
      %1482 = vmatprep.subr.mxu0 0.0
      %1483 = vmatpush2.msra.mxu0 0.0
      %1484 = vmatprep.subr.mxu0 0.0
      %1485 = vmatpush2.msra.mxu0 0.0
      %1486 = vmatprep.subr.mxu0 0.0
      %1487 = vmatpush2.msra.mxu0 0.0
      %1488 = vmatprep.subr.mxu0 0.0
      %1489 = vmatpush2.msra.mxu0 0.0
      %1490 = vmatprep.subr.mxu0 0.0
      %1491 = vmatpush2.msra.mxu0 0.0
      %1492 = vmatprep.subr.mxu0 0.0
      %1493 = vmatpush2.msra.mxu0 0.0
      %1494 = vmatprep.subr.mxu0 0.0
      %1495 = vmatpush2.msra.mxu0 0.0
      %1496 = vmatprep.subr.mxu0 0.0
      %1497 = vmatpush2.msra.mxu0 0.0
      %1498 = vmatprep.mubr.f32.mxu0 0.0
      %1499 = vmatmul.mubr.f32.gmra.mxu0 %v1346
      %v1500 = vpop.f32.mrf.mxu0
      %v1501 = vadd.f32 %v649, %v1500
      %v1502 = vpop.f32.mrf.mxu0
      %1503 = vdwg.mxu0
      %v1504 = vadd.f32 %v1360, %v1430
      %v1505 = vxor.u32 %v1504, 2147483648
      %v1506 = vmul.f32 %v1505, 1.442695
      %v1507 = vpow.pop %v1506
      %v1508 = vadd.f32 %v1507, 1.0
      %v1509 = vrcp.pop %v1508
      %v1510 = vmul.f32 1.0, %v1509
      %v1511 = vadd.f32 %v1361, %v1432
      %v1512 = vxor.u32 %v1511, 2147483648
      %v1513 = vmul.f32 %v1512, 1.442695
      %v1514 = vpow.pop %v1513
      %v1515 = vadd.f32 %v1514, 1.0
      %v1516 = vrcp.pop %v1515
      %v1517 = vmul.f32 1.0, %v1516
      %v1518 = vmul.f32 %v1510, %v1501
      %v1519 = vadd.f32 %v1362, %v1518
      %v1520 = vtanh.pop %v1519
      %v1521 = vsub.f32 1.0, %v1517
      %v1522 = vmul.f32 %v1521, %v1520
      %v1523 = vmul.f32 %v1517, %v1346
      %v1524 = vadd.f32 %v1522, %v1523
      %s1525 = scalar_lea.vmem %s2, 32
      %v1526 = vld [vmem:[%s1525] sm:$0xff]
      %1528 = vset.pattern.permute.xlu0 0
      %1529 = vperm.xlu0 %1528, %v1526
      %v1530 = vpop.permute.xlu0 %1529
      %v1532 = vmul.f32 %v1524, %v1530
      %s1533 = scalar_lea.vmem [#allocation3], 32
      %1534 = vst [vmem:[%s1533] sm:$0xff] %v1532
      %s1535 = smul.u32 5, 3
      %s1536 = smul.addr %s1535, 8
      %s1537 = scalar_lea.vmem [#allocation2], %s1536
      %v1538 = vld [vmem:[%s1537] sm:$0xff]
      %v1539 = vld [vmem:[%s1537 + $0x8] sm:$0xff]
      %v1540 = vld [vmem:[%s1537 + $0x10] sm:$0xff]
      %1541 = vmatprep.subr.mxu0 %v628
      %1542 = vmatpush1.msra.mxu0 %v627
      %1543 = vmatprep.subr.mxu0 %v625
      %1544 = vmatpush1.msra.mxu0 %v624
      %1545 = vmatprep.subr.mxu0 %v622
      %1546 = vmatpush1.msra.mxu0 %v621
      %1547 = vmatprep.subr.mxu0 %v619
      %1548 = vmatpush1.msra.mxu0 %v618
      %1549 = vmatprep.subr.mxu0 %v616
      %1550 = vmatpush1.msra.mxu0 %v615
      %1551 = vmatprep.subr.mxu0 %v613
      %1552 = vmatpush1.msra.mxu0 %v612
      %1553 = vmatprep.subr.mxu0 %v610
      %1554 = vmatpush1.msra.mxu0 %v609
      %1555 = vmatprep.subr.mxu0 %v607
      %1556 = vmatpush1.msra.mxu0 %v606
      %1557 = vmatprep.subr.mxu0 %v604
      %1558 = vmatpush1.msra.mxu0 %v603
      %1559 = vmatprep.subr.mxu0 %v601
      %1560 = vmatpush1.msra.mxu0 %v600
      %1561 = vmatprep.subr.mxu0 %v598
      %1562 = vmatpush1.msra.mxu0 %v597
      %1563 = vmatprep.subr.mxu0 %v595
      %1564 = vmatpush1.msra.mxu0 %v594
      %1565 = vmatprep.subr.mxu0 %v592
      %1566 = vmatpush1.msra.mxu0 %v591
      %1567 = vmatprep.subr.mxu0 %v589
      %1568 = vmatpush1.msra.mxu0 %v588
      %1569 = vmatprep.subr.mxu0 %v586
      %1570 = vmatpush1.msra.mxu0 %v585
      %1571 = vmatprep.subr.mxu0 %v583
      %1572 = vmatpush1.msra.mxu0 %v582
      %1573 = vmatprep.subr.mxu0 0.0
      %1574 = vmatpush2.msra.mxu0 0.0
      %1575 = vmatprep.subr.mxu0 0.0
      %1576 = vmatpush2.msra.mxu0 0.0
      %1577 = vmatprep.subr.mxu0 0.0
      %1578 = vmatpush2.msra.mxu0 0.0
      %1579 = vmatprep.subr.mxu0 0.0
      %1580 = vmatpush2.msra.mxu0 0.0
      %1581 = vmatprep.subr.mxu0 0.0
      %1582 = vmatpush2.msra.mxu0 0.0
      %1583 = vmatprep.subr.mxu0 0.0
      %1584 = vmatpush2.msra.mxu0 0.0
      %1585 = vmatprep.subr.mxu0 0.0
      %1586 = vmatpush2.msra.mxu0 0.0
      %1587 = vmatprep.subr.mxu0 0.0
      %1588 = vmatpush2.msra.mxu0 0.0
      %1589 = vmatprep.subr.mxu0 0.0
      %1590 = vmatpush2.msra.mxu0 0.0
      %1591 = vmatprep.subr.mxu0 0.0
      %1592 = vmatpush2.msra.mxu0 0.0
      %1593 = vmatprep.subr.mxu0 0.0
      %1594 = vmatpush2.msra.mxu0 0.0
      %1595 = vmatprep.subr.mxu0 0.0
      %1596 = vmatpush2.msra.mxu0 0.0
      %1597 = vmatprep.subr.mxu0 0.0
      %1598 = vmatpush2.msra.mxu0 0.0
      %1599 = vmatprep.subr.mxu0 0.0
      %1600 = vmatpush2.msra.mxu0 0.0
      %1601 = vmatprep.subr.mxu0 0.0
      %1602 = vmatpush2.msra.mxu0 0.0
      %1603 = vmatprep.subr.mxu0 0.0
      %1604 = vmatpush2.msra.mxu0 0.0
      %1605 = vmatprep.mubr.f32.mxu0 0.0
      %1606 = vmatmul.mubr.f32.gmra.mxu0 %v1524
      %v1607 = vpop.f32.mrf.mxu0
      %v1608 = vadd.f32 %v641, %v1607
      %v1609 = vpop.f32.mrf.mxu0
      %v1610 = vadd.f32 %v645, %v1609
      %1611 = vdwg.mxu0
      %1612 = vmatprep.subr.mxu0 0.0
      %1613 = vmatpush1.msra.mxu0 %v629
      %1614 = vmatprep.subr.mxu0 0.0
      %1615 = vmatpush1.msra.mxu0 %v626
      %1616 = vmatprep.subr.mxu0 0.0
      %1617 = vmatpush1.msra.mxu0 %v623
      %1618 = vmatprep.subr.mxu0 0.0
      %1619 = vmatpush1.msra.mxu0 %v620
      %1620 = vmatprep.subr.mxu0 0.0
      %1621 = vmatpush1.msra.mxu0 %v617
      %1622 = vmatprep.subr.mxu0 0.0
      %1623 = vmatpush1.msra.mxu0 %v614
      %1624 = vmatprep.subr.mxu0 0.0
      %1625 = vmatpush1.msra.mxu0 %v611
      %1626 = vmatprep.subr.mxu0 0.0
      %1627 = vmatpush1.msra.mxu0 %v608
      %1628 = vmatprep.subr.mxu0 0.0
      %1629 = vmatpush1.msra.mxu0 %v605
      %1630 = vmatprep.subr.mxu0 0.0
      %1631 = vmatpush1.msra.mxu0 %v602
      %1632 = vmatprep.subr.mxu0 0.0
      %1633 = vmatpush1.msra.mxu0 %v599
      %1634 = vmatprep.subr.mxu0 0.0
      %1635 = vmatpush1.msra.mxu0 %v596
      %1636 = vmatprep.subr.mxu0 0.0
      %1637 = vmatpush1.msra.mxu0 %v593
      %1638 = vmatprep.subr.mxu0 0.0
      %1639 = vmatpush1.msra.mxu0 %v590
      %1640 = vmatprep.subr.mxu0 0.0
      %1641 = vmatpush1.msra.mxu0 %v587
      %1642 = vmatprep.subr.mxu0 0.0
      %1643 = vmatpush1.msra.mxu0 %v584
      %1644 = vmatprep.subr.mxu0 0.0
      %1645 = vmatpush2.msra.mxu0 0.0
      %1646 = vmatprep.subr.mxu0 0.0
      %1647 = vmatpush2.msra.mxu0 0.0
      %1648 = vmatprep.subr.mxu0 0.0
      %1649 = vmatpush2.msra.mxu0 0.0
      %1650 = vmatprep.subr.mxu0 0.0
      %1651 = vmatpush2.msra.mxu0 0.0
      %1652 = vmatprep.subr.mxu0 0.0
      %1653 = vmatpush2.msra.mxu0 0.0
      %1654 = vmatprep.subr.mxu0 0.0
      %1655 = vmatpush2.msra.mxu0 0.0
      %1656 = vmatprep.subr.mxu0 0.0
      %1657 = vmatpush2.msra.mxu0 0.0
      %1658 = vmatprep.subr.mxu0 0.0
      %1659 = vmatpush2.msra.mxu0 0.0
      %1660 = vmatprep.subr.mxu0 0.0
      %1661 = vmatpush2.msra.mxu0 0.0
      %1662 = vmatprep.subr.mxu0 0.0
      %1663 = vmatpush2.msra.mxu0 0.0
      %1664 = vmatprep.subr.mxu0 0.0
      %1665 = vmatpush2.msra.mxu0 0.0
      %1666 = vmatprep.subr.mxu0 0.0
      %1667 = vmatpush2.msra.mxu0 0.0
      %1668 = vmatprep.subr.mxu0 0.0
      %1669 = vmatpush2.msra.mxu0 0.0
      %1670 = vmatprep.subr.mxu0 0.0
      %1671 = vmatpush2.msra.mxu0 0.0
      %1672 = vmatprep.subr.mxu0 0.0
      %1673 = vmatpush2.msra.mxu0 0.0
      %1674 = vmatprep.subr.mxu0 0.0
      %1675 = vmatpush2.msra.mxu0 0.0
      %1676 = vmatprep.mubr.f32.mxu0 0.0
      %1677 = vmatmul.mubr.f32.gmra.mxu0 %v1524
      %v1678 = vpop.f32.mrf.mxu0
      %v1679 = vadd.f32 %v649, %v1678
      %v1680 = vpop.f32.mrf.mxu0
      %1681 = vdwg.mxu0
      %v1682 = vadd.f32 %v1538, %v1608
      %v1683 = vxor.u32 %v1682, 2147483648
      %v1684 = vmul.f32 %v1683, 1.442695
      %v1685 = vpow.pop %v1684
      %v1686 = vadd.f32 %v1685, 1.0
      %v1687 = vrcp.pop %v1686
      %v1688 = vmul.f32 1.0, %v1687
      %v1689 = vadd.f32 %v1539, %v1610
      %v1690 = vxor.u32 %v1689, 2147483648
      %v1691 = vmul.f32 %v1690, 1.442695
      %v1692 = vpow.pop %v1691
      %v1693 = vadd.f32 %v1692, 1.0
      %v1694 = vrcp.pop %v1693
      %v1695 = vmul.f32 1.0, %v1694
      %v1696 = vmul.f32 %v1688, %v1679
      %v1697 = vadd.f32 %v1540, %v1696
      %v1698 = vtanh.pop %v1697
      %v1699 = vsub.f32 1.0, %v1695
      %v1700 = vmul.f32 %v1699, %v1698
      %v1701 = vmul.f32 %v1695, %v1524
      %v1702 = vadd.f32 %v1700, %v1701
      %s1703 = scalar_lea.vmem %s2, 40
      %v1704 = vld [vmem:[%s1703] sm:$0xff]
      %1706 = vset.pattern.permute.xlu0 0
      %1707 = vperm.xlu0 %1706, %v1704
      %v1708 = vpop.permute.xlu0 %1707
      %v1710 = vmul.f32 %v1702, %v1708
      %s1711 = scalar_lea.vmem [#allocation3], 40
      %1712 = vst [vmem:[%s1711] sm:$0xff] %v1710
      %s1713 = smul.u32 6, 3
      %s1714 = smul.addr %s1713, 8
      %s1715 = scalar_lea.vmem [#allocation2], %s1714
      %v1716 = vld [vmem:[%s1715] sm:$0xff]
      %v1717 = vld [vmem:[%s1715 + $0x8] sm:$0xff]
      %v1718 = vld [vmem:[%s1715 + $0x10] sm:$0xff]
      %1719 = vmatprep.subr.mxu0 %v628
      %1720 = vmatpush1.msra.mxu0 %v627
      %1721 = vmatprep.subr.mxu0 %v625
      %1722 = vmatpush1.msra.mxu0 %v624
      %1723 = vmatprep.subr.mxu0 %v622
      %1724 = vmatpush1.msra.mxu0 %v621
      %1725 = vmatprep.subr.mxu0 %v619
      %1726 = vmatpush1.msra.mxu0 %v618
      %1727 = vmatprep.subr.mxu0 %v616
      %1728 = vmatpush1.msra.mxu0 %v615
      %1729 = vmatprep.subr.mxu0 %v613
      %1730 = vmatpush1.msra.mxu0 %v612
      %1731 = vmatprep.subr.mxu0 %v610
      %1732 = vmatpush1.msra.mxu0 %v609
      %1733 = vmatprep.subr.mxu0 %v607
      %1734 = vmatpush1.msra.mxu0 %v606
      %1735 = vmatprep.subr.mxu0 %v604
      %1736 = vmatpush1.msra.mxu0 %v603
      %1737 = vmatprep.subr.mxu0 %v601
      %1738 = vmatpush1.msra.mxu0 %v600
      %1739 = vmatprep.subr.mxu0 %v598
      %1740 = vmatpush1.msra.mxu0 %v597
      %1741 = vmatprep.subr.mxu0 %v595
      %1742 = vmatpush1.msra.mxu0 %v594
      %1743 = vmatprep.subr.mxu0 %v592
      %1744 = vmatpush1.msra.mxu0 %v591
      %1745 = vmatprep.subr.mxu0 %v589
      %1746 = vmatpush1.msra.mxu0 %v588
      %1747 = vmatprep.subr.mxu0 %v586
      %1748 = vmatpush1.msra.mxu0 %v585
      %1749 = vmatprep.subr.mxu0 %v583
      %1750 = vmatpush1.msra.mxu0 %v582
      %1751 = vmatprep.subr.mxu0 0.0
      %1752 = vmatpush2.msra.mxu0 0.0
      %1753 = vmatprep.subr.mxu0 0.0
      %1754 = vmatpush2.msra.mxu0 0.0
      %1755 = vmatprep.subr.mxu0 0.0
      %1756 = vmatpush2.msra.mxu0 0.0
      %1757 = vmatprep.subr.mxu0 0.0
      %1758 = vmatpush2.msra.mxu0 0.0
      %1759 = vmatprep.subr.mxu0 0.0
      %1760 = vmatpush2.msra.mxu0 0.0
      %1761 = vmatprep.subr.mxu0 0.0
      %1762 = vmatpush2.msra.mxu0 0.0
      %1763 = vmatprep.subr.mxu0 0.0
      %1764 = vmatpush2.msra.mxu0 0.0
      %1765 = vmatprep.subr.mxu0 0.0
      %1766 = vmatpush2.msra.mxu0 0.0
      %1767 = vmatprep.subr.mxu0 0.0
      %1768 = vmatpush2.msra.mxu0 0.0
      %1769 = vmatprep.subr.mxu0 0.0
      %1770 = vmatpush2.msra.mxu0 0.0
      %1771 = vmatprep.subr.mxu0 0.0
      %1772 = vmatpush2.msra.mxu0 0.0
      %1773 = vmatprep.subr.mxu0 0.0
      %1774 = vmatpush2.msra.mxu0 0.0
      %1775 = vmatprep.subr.mxu0 0.0
      %1776 = vmatpush2.msra.mxu0 0.0
      %1777 = vmatprep.subr.mxu0 0.0
      %1778 = vmatpush2.msra.mxu0 0.0
      %1779 = vmatprep.subr.mxu0 0.0
      %1780 = vmatpush2.msra.mxu0 0.0
      %1781 = vmatprep.subr.mxu0 0.0
      %1782 = vmatpush2.msra.mxu0 0.0
      %1783 = vmatprep.mubr.f32.mxu0 0.0
      %1784 = vmatmul.mubr.f32.gmra.mxu0 %v1702
      %v1785 = vpop.f32.mrf.mxu0
      %v1786 = vadd.f32 %v641, %v1785
      %v1787 = vpop.f32.mrf.mxu0
      %v1788 = vadd.f32 %v645, %v1787
      %1789 = vdwg.mxu0
      %1790 = vmatprep.subr.mxu0 0.0
      %1791 = vmatpush1.msra.mxu0 %v629
      %1792 = vmatprep.subr.mxu0 0.0
      %1793 = vmatpush1.msra.mxu0 %v626
      %1794 = vmatprep.subr.mxu0 0.0
      %1795 = vmatpush1.msra.mxu0 %v623
      %1796 = vmatprep.subr.mxu0 0.0
      %1797 = vmatpush1.msra.mxu0 %v620
      %1798 = vmatprep.subr.mxu0 0.0
      %1799 = vmatpush1.msra.mxu0 %v617
      %1800 = vmatprep.subr.mxu0 0.0
      %1801 = vmatpush1.msra.mxu0 %v614
      %1802 = vmatprep.subr.mxu0 0.0
      %1803 = vmatpush1.msra.mxu0 %v611
      %1804 = vmatprep.subr.mxu0 0.0
      %1805 = vmatpush1.msra.mxu0 %v608
      %1806 = vmatprep.subr.mxu0 0.0
      %1807 = vmatpush1.msra.mxu0 %v605
      %1808 = vmatprep.subr.mxu0 0.0
      %1809 = vmatpush1.msra.mxu0 %v602
      %1810 = vmatprep.subr.mxu0 0.0
      %1811 = vmatpush1.msra.mxu0 %v599
      %1812 = vmatprep.subr.mxu0 0.0
      %1813 = vmatpush1.msra.mxu0 %v596
      %1814 = vmatprep.subr.mxu0 0.0
      %1815 = vmatpush1.msra.mxu0 %v593
      %1816 = vmatprep.subr.mxu0 0.0
      %1817 = vmatpush1.msra.mxu0 %v590
      %1818 = vmatprep.subr.mxu0 0.0
      %1819 = vmatpush1.msra.mxu0 %v587
      %1820 = vmatprep.subr.mxu0 0.0
      %1821 = vmatpush1.msra.mxu0 %v584
      %1822 = vmatprep.subr.mxu0 0.0
      %1823 = vmatpush2.msra.mxu0 0.0
      %1824 = vmatprep.subr.mxu0 0.0
      %1825 = vmatpush2.msra.mxu0 0.0
      %1826 = vmatprep.subr.mxu0 0.0
      %1827 = vmatpush2.msra.mxu0 0.0
      %1828 = vmatprep.subr.mxu0 0.0
      %1829 = vmatpush2.msra.mxu0 0.0
      %1830 = vmatprep.subr.mxu0 0.0
      %1831 = vmatpush2.msra.mxu0 0.0
      %1832 = vmatprep.subr.mxu0 0.0
      %1833 = vmatpush2.msra.mxu0 0.0
      %1834 = vmatprep.subr.mxu0 0.0
      %1835 = vmatpush2.msra.mxu0 0.0
      %1836 = vmatprep.subr.mxu0 0.0
      %1837 = vmatpush2.msra.mxu0 0.0
      %1838 = vmatprep.subr.mxu0 0.0
      %1839 = vmatpush2.msra.mxu0 0.0
      %1840 = vmatprep.subr.mxu0 0.0
      %1841 = vmatpush2.msra.mxu0 0.0
      %1842 = vmatprep.subr.mxu0 0.0
      %1843 = vmatpush2.msra.mxu0 0.0
      %1844 = vmatprep.subr.mxu0 0.0
      %1845 = vmatpush2.msra.mxu0 0.0
      %1846 = vmatprep.subr.mxu0 0.0
      %1847 = vmatpush2.msra.mxu0 0.0
      %1848 = vmatprep.subr.mxu0 0.0
      %1849 = vmatpush2.msra.mxu0 0.0
      %1850 = vmatprep.subr.mxu0 0.0
      %1851 = vmatpush2.msra.mxu0 0.0
      %1852 = vmatprep.subr.mxu0 0.0
      %1853 = vmatpush2.msra.mxu0 0.0
      %1854 = vmatprep.mubr.f32.mxu0 0.0
      %1855 = vmatmul.mubr.f32.gmra.mxu0 %v1702
      %v1856 = vpop.f32.mrf.mxu0
      %v1857 = vadd.f32 %v649, %v1856
      %v1858 = vpop.f32.mrf.mxu0
      %1859 = vdwg.mxu0
      %v1860 = vadd.f32 %v1716, %v1786
      %v1861 = vxor.u32 %v1860, 2147483648
      %v1862 = vmul.f32 %v1861, 1.442695
      %v1863 = vpow.pop %v1862
      %v1864 = vadd.f32 %v1863, 1.0
      %v1865 = vrcp.pop %v1864
      %v1866 = vmul.f32 1.0, %v1865
      %v1867 = vadd.f32 %v1717, %v1788
      %v1868 = vxor.u32 %v1867, 2147483648
      %v1869 = vmul.f32 %v1868, 1.442695
      %v1870 = vpow.pop %v1869
      %v1871 = vadd.f32 %v1870, 1.0
      %v1872 = vrcp.pop %v1871
      %v1873 = vmul.f32 1.0, %v1872
      %v1874 = vmul.f32 %v1866, %v1857
      %v1875 = vadd.f32 %v1718, %v1874
      %v1876 = vtanh.pop %v1875
      %v1877 = vsub.f32 1.0, %v1873
      %v1878 = vmul.f32 %v1877, %v1876
      %v1879 = vmul.f32 %v1873, %v1702
      %v1880 = vadd.f32 %v1878, %v1879
      %s1881 = scalar_lea.vmem %s2, 48
      %v1882 = vld [vmem:[%s1881] sm:$0xff]
      %1884 = vset.pattern.permute.xlu0 0
      %1885 = vperm.xlu0 %1884, %v1882
      %v1886 = vpop.permute.xlu0 %1885
      %v1888 = vmul.f32 %v1880, %v1886
      %s1889 = scalar_lea.vmem [#allocation3], 48
      %1890 = vst [vmem:[%s1889] sm:$0xff] %v1888
      %s1891 = smul.u32 7, 3
      %s1892 = smul.addr %s1891, 8
      %s1893 = scalar_lea.vmem [#allocation2], %s1892
      %v1894 = vld [vmem:[%s1893] sm:$0xff]
      %v1895 = vld [vmem:[%s1893 + $0x8] sm:$0xff]
      %v1896 = vld [vmem:[%s1893 + $0x10] sm:$0xff]
      %1897 = vmatprep.subr.mxu0 %v628
      %1898 = vmatpush1.msra.mxu0 %v627
      %1899 = vmatprep.subr.mxu0 %v625
      %1900 = vmatpush1.msra.mxu0 %v624
      %1901 = vmatprep.subr.mxu0 %v622
      %1902 = vmatpush1.msra.mxu0 %v621
      %1903 = vmatprep.subr.mxu0 %v619
      %1904 = vmatpush1.msra.mxu0 %v618
      %1905 = vmatprep.subr.mxu0 %v616
      %1906 = vmatpush1.msra.mxu0 %v615
      %1907 = vmatprep.subr.mxu0 %v613
      %1908 = vmatpush1.msra.mxu0 %v612
      %1909 = vmatprep.subr.mxu0 %v610
      %1910 = vmatpush1.msra.mxu0 %v609
      %1911 = vmatprep.subr.mxu0 %v607
      %1912 = vmatpush1.msra.mxu0 %v606
      %1913 = vmatprep.subr.mxu0 %v604
      %1914 = vmatpush1.msra.mxu0 %v603
      %1915 = vmatprep.subr.mxu0 %v601
      %1916 = vmatpush1.msra.mxu0 %v600
      %1917 = vmatprep.subr.mxu0 %v598
      %1918 = vmatpush1.msra.mxu0 %v597
      %1919 = vmatprep.subr.mxu0 %v595
      %1920 = vmatpush1.msra.mxu0 %v594
      %1921 = vmatprep.subr.mxu0 %v592
      %1922 = vmatpush1.msra.mxu0 %v591
      %1923 = vmatprep.subr.mxu0 %v589
      %1924 = vmatpush1.msra.mxu0 %v588
      %1925 = vmatprep.subr.mxu0 %v586
      %1926 = vmatpush1.msra.mxu0 %v585
      %1927 = vmatprep.subr.mxu0 %v583
      %1928 = vmatpush1.msra.mxu0 %v582
      %1929 = vmatprep.subr.mxu0 0.0
      %1930 = vmatpush2.msra.mxu0 0.0
      %1931 = vmatprep.subr.mxu0 0.0
      %1932 = vmatpush2.msra.mxu0 0.0
      %1933 = vmatprep.subr.mxu0 0.0
      %1934 = vmatpush2.msra.mxu0 0.0
      %1935 = vmatprep.subr.mxu0 0.0
      %1936 = vmatpush2.msra.mxu0 0.0
      %1937 = vmatprep.subr.mxu0 0.0
      %1938 = vmatpush2.msra.mxu0 0.0
      %1939 = vmatprep.subr.mxu0 0.0
      %1940 = vmatpush2.msra.mxu0 0.0
      %1941 = vmatprep.subr.mxu0 0.0
      %1942 = vmatpush2.msra.mxu0 0.0
      %1943 = vmatprep.subr.mxu0 0.0
      %1944 = vmatpush2.msra.mxu0 0.0
      %1945 = vmatprep.subr.mxu0 0.0
      %1946 = vmatpush2.msra.mxu0 0.0
      %1947 = vmatprep.subr.mxu0 0.0
      %1948 = vmatpush2.msra.mxu0 0.0
      %1949 = vmatprep.subr.mxu0 0.0
      %1950 = vmatpush2.msra.mxu0 0.0
      %1951 = vmatprep.subr.mxu0 0.0
      %1952 = vmatpush2.msra.mxu0 0.0
      %1953 = vmatprep.subr.mxu0 0.0
      %1954 = vmatpush2.msra.mxu0 0.0
      %1955 = vmatprep.subr.mxu0 0.0
      %1956 = vmatpush2.msra.mxu0 0.0
      %1957 = vmatprep.subr.mxu0 0.0
      %1958 = vmatpush2.msra.mxu0 0.0
      %1959 = vmatprep.subr.mxu0 0.0
      %1960 = vmatpush2.msra.mxu0 0.0
      %1961 = vmatprep.mubr.f32.mxu0 0.0
      %1962 = vmatmul.mubr.f32.gmra.mxu0 %v1880
      %v1963 = vpop.f32.mrf.mxu0
      %v1964 = vadd.f32 %v641, %v1963
      %v1965 = vpop.f32.mrf.mxu0
      %v1966 = vadd.f32 %v645, %v1965
      %1967 = vdwg.mxu0
      %1968 = vmatprep.subr.mxu0 0.0
      %1969 = vmatpush1.msra.mxu0 %v629
      %1970 = vmatprep.subr.mxu0 0.0
      %1971 = vmatpush1.msra.mxu0 %v626
      %1972 = vmatprep.subr.mxu0 0.0
      %1973 = vmatpush1.msra.mxu0 %v623
      %1974 = vmatprep.subr.mxu0 0.0
      %1975 = vmatpush1.msra.mxu0 %v620
      %1976 = vmatprep.subr.mxu0 0.0
      %1977 = vmatpush1.msra.mxu0 %v617
      %1978 = vmatprep.subr.mxu0 0.0
      %1979 = vmatpush1.msra.mxu0 %v614
      %1980 = vmatprep.subr.mxu0 0.0
      %1981 = vmatpush1.msra.mxu0 %v611
      %1982 = vmatprep.subr.mxu0 0.0
      %1983 = vmatpush1.msra.mxu0 %v608
      %1984 = vmatprep.subr.mxu0 0.0
      %1985 = vmatpush1.msra.mxu0 %v605
      %1986 = vmatprep.subr.mxu0 0.0
      %1987 = vmatpush1.msra.mxu0 %v602
      %1988 = vmatprep.subr.mxu0 0.0
      %1989 = vmatpush1.msra.mxu0 %v599
      %1990 = vmatprep.subr.mxu0 0.0
      %1991 = vmatpush1.msra.mxu0 %v596
      %1992 = vmatprep.subr.mxu0 0.0
      %1993 = vmatpush1.msra.mxu0 %v593
      %1994 = vmatprep.subr.mxu0 0.0
      %1995 = vmatpush1.msra.mxu0 %v590
      %1996 = vmatprep.subr.mxu0 0.0
      %1997 = vmatpush1.msra.mxu0 %v587
      %1998 = vmatprep.subr.mxu0 0.0
      %1999 = vmatpush1.msra.mxu0 %v584
      %2000 = vmatprep.subr.mxu0 0.0
      %2001 = vmatpush2.msra.mxu0 0.0
      %2002 = vmatprep.subr.mxu0 0.0
      %2003 = vmatpush2.msra.mxu0 0.0
      %2004 = vmatprep.subr.mxu0 0.0
      %2005 = vmatpush2.msra.mxu0 0.0
      %2006 = vmatprep.subr.mxu0 0.0
      %2007 = vmatpush2.msra.mxu0 0.0
      %2008 = vmatprep.subr.mxu0 0.0
      %2009 = vmatpush2.msra.mxu0 0.0
      %2010 = vmatprep.subr.mxu0 0.0
      %2011 = vmatpush2.msra.mxu0 0.0
      %2012 = vmatprep.subr.mxu0 0.0
      %2013 = vmatpush2.msra.mxu0 0.0
      %2014 = vmatprep.subr.mxu0 0.0
      %2015 = vmatpush2.msra.mxu0 0.0
      %2016 = vmatprep.subr.mxu0 0.0
      %2017 = vmatpush2.msra.mxu0 0.0
      %2018 = vmatprep.subr.mxu0 0.0
      %2019 = vmatpush2.msra.mxu0 0.0
      %2020 = vmatprep.subr.mxu0 0.0
      %2021 = vmatpush2.msra.mxu0 0.0
      %2022 = vmatprep.subr.mxu0 0.0
      %2023 = vmatpush2.msra.mxu0 0.0
      %2024 = vmatprep.subr.mxu0 0.0
      %2025 = vmatpush2.msra.mxu0 0.0
      %2026 = vmatprep.subr.mxu0 0.0
      %2027 = vmatpush2.msra.mxu0 0.0
      %2028 = vmatprep.subr.mxu0 0.0
      %2029 = vmatpush2.msra.mxu0 0.0
      %2030 = vmatprep.subr.mxu0 0.0
      %2031 = vmatpush2.msra.mxu0 0.0
      %2032 = vmatprep.mubr.f32.mxu0 0.0
      %2033 = vmatmul.mubr.f32.gmra.mxu0 %v1880
      %v2034 = vpop.f32.mrf.mxu0
      %v2035 = vadd.f32 %v649, %v2034
      %v2036 = vpop.f32.mrf.mxu0
      %2037 = vdwg.mxu0
      %v2038 = vadd.f32 %v1894, %v1964
      %v2039 = vxor.u32 %v2038, 2147483648
      %v2040 = vmul.f32 %v2039, 1.442695
      %v2041 = vpow.pop %v2040
      %v2042 = vadd.f32 %v2041, 1.0
      %v2043 = vrcp.pop %v2042
      %v2044 = vmul.f32 1.0, %v2043
      %v2045 = vadd.f32 %v1895, %v1966
      %v2046 = vxor.u32 %v2045, 2147483648
      %v2047 = vmul.f32 %v2046, 1.442695
      %v2048 = vpow.pop %v2047
      %v2049 = vadd.f32 %v2048, 1.0
      %v2050 = vrcp.pop %v2049
      %v2051 = vmul.f32 1.0, %v2050
      %v2052 = vmul.f32 %v2044, %v2035
      %v2053 = vadd.f32 %v1896, %v2052
      %v2054 = vtanh.pop %v2053
      %v2055 = vsub.f32 1.0, %v2051
      %v2056 = vmul.f32 %v2055, %v2054
      %v2057 = vmul.f32 %v2051, %v1880
      %v2058 = vadd.f32 %v2056, %v2057
      %s2059 = scalar_lea.vmem %s2, 56
      %v2060 = vld [vmem:[%s2059] sm:$0xff]
      %2062 = vset.pattern.permute.xlu0 0
      %2063 = vperm.xlu0 %2062, %v2060
      %v2064 = vpop.permute.xlu0 %2063
      %v2066 = vmul.f32 %v2058, %v2064
      %s2067 = scalar_lea.vmem [#allocation3], 56
      %2068 = vst [vmem:[%s2067] sm:$0xff] %v2066
      %vm2069 = vcmask 7168
      %2070 = vst.msk [vmem:[#allocation4] sm:$0xff] %vm2069, -inf
      %2071 = vst.msk [vmem:[#allocation4 + $0x8] sm:$0xff] %vm2069, -inf
      %2072 = vst.msk [vmem:[#allocation4 + $0x10] sm:$0xff] %vm2069, -inf
      %2073 = vst.msk [vmem:[#allocation4 + $0x18] sm:$0xff] %vm2069, -inf
      %2074 = vst.msk [vmem:[#allocation4 + $0x20] sm:$0xff] %vm2069, -inf
      %2075 = vst.msk [vmem:[#allocation4 + $0x28] sm:$0xff] %vm2069, -inf
      %2076 = vst.msk [vmem:[#allocation4 + $0x30] sm:$0xff] %vm2069, -inf
      %2077 = vst.msk [vmem:[#allocation4 + $0x38] sm:$0xff] %vm2069, -inf
      %2078 = vst.msk [vmem:[#allocation5] sm:$0xff] %vm2069, 0.0
      %2079 = vst.msk [vmem:[#allocation5 + $0x8] sm:$0xff] %vm2069, 0.0
      %2080 = vst.msk [vmem:[#allocation5 + $0x10] sm:$0xff] %vm2069, 0.0
      %2081 = vst.msk [vmem:[#allocation5 + $0x18] sm:$0xff] %vm2069, 0.0
      %2082 = vst.msk [vmem:[#allocation5 + $0x20] sm:$0xff] %vm2069, 0.0
      %2083 = vst.msk [vmem:[#allocation5 + $0x28] sm:$0xff] %vm2069, 0.0
      %2084 = vst.msk [vmem:[#allocation5 + $0x30] sm:$0xff] %vm2069, 0.0
      %2085 = vst.msk [vmem:[#allocation5 + $0x38] sm:$0xff] %vm2069, 0.0
      %2086 = vst.msk [vmem:[#allocation6] sm:$0xff] %vm2069, 0.0
      %2087 = vst.msk [vmem:[#allocation6 + $0x8] sm:$0xff] %vm2069, 0.0
      %2088 = vst.msk [vmem:[#allocation6 + $0x10] sm:$0xff] %vm2069, 0.0
      %2089 = vst.msk [vmem:[#allocation6 + $0x18] sm:$0xff] %vm2069, 0.0
      %2090 = vst.msk [vmem:[#allocation6 + $0x20] sm:$0xff] %vm2069, 0.0
      %2091 = vst.msk [vmem:[#allocation6 + $0x28] sm:$0xff] %vm2069, 0.0
      %2092 = vst.msk [vmem:[#allocation6 + $0x30] sm:$0xff] %vm2069, 0.0
      %2093 = vst.msk [vmem:[#allocation6 + $0x38] sm:$0xff] %vm2069, 0.0
    $region73: #{tpu_custom_call.1} parent=1 // pred_fallthru
      _
    %v2094 = vld [vmem:[#allocation3] sm:$0xff]
    %v2095 = vld [vmem:[#allocation3 + $0x8] sm:$0xff]
    %v2096 = vld [vmem:[#allocation3 + $0x10] sm:$0xff]
    %v2097 = vld [vmem:[#allocation3 + $0x18] sm:$0xff]
    %v2098 = vld [vmem:[#allocation3 + $0x20] sm:$0xff]
    %v2099 = vld [vmem:[#allocation3 + $0x28] sm:$0xff]
    %v2100 = vld [vmem:[#allocation3 + $0x30] sm:$0xff]
    %v2101 = vld [vmem:[#allocation3 + $0x38] sm:$0xff]
    %v2102 = vpack.c.bf16 %v2095, %v2094
    %v2103 = vpack.c.bf16 %v2097, %v2096
    %v2104 = vpack.c.bf16 %v2099, %v2098
    %v2105 = vpack.c.bf16 %v2101, %v2100
    %v2106 = vld [vmem:[#allocation16] sm:$0xf]
    %v2107 = vld [vmem:[#allocation16 + $0x4] sm:$0xf]
    %v2108 = vld [vmem:[#allocation16 + $0x8] sm:$0xf]
    %v2109 = vld [vmem:[#allocation16 + $0xc] sm:$0xf]
    %v2110 = vld [vmem:[#allocation16 + $0x10] sm:$0xf]
    %v2111 = vld [vmem:[#allocation16 + $0x14] sm:$0xf]
    %v2112 = vld [vmem:[#allocation16 + $0x18] sm:$0xf]
    %v2113 = vld [vmem:[#allocation16 + $0x1c] sm:$0xf]
    %v2114 = vld [vmem:[#allocation16 + $0x20] sm:$0xf]
    %v2115 = vld [vmem:[#allocation16 + $0x24] sm:$0xf]
    %v2116 = vld [vmem:[#allocation16 + $0x28] sm:$0xf]
    %v2117 = vld [vmem:[#allocation16 + $0x2c] sm:$0xf]
    %v2118 = vld [vmem:[#allocation16 + $0x30] sm:$0xf]
    %v2119 = vld [vmem:[#allocation16 + $0x34] sm:$0xf]
    %v2120 = vld [vmem:[#allocation16 + $0x38] sm:$0xf]
    %v2121 = vld [vmem:[#allocation16 + $0x3c] sm:$0xf]
    %v2122 = vld [vmem:[%s11] sm:$0x1]
    %v2124 = vlaneseq
    %v2125 = vshrl.u32 %v2124, 7
    %v2126 = vsub.s32 0, %v2125
    %v2127 = vrot.slane %v2122, %v2126
    %v2145 = vunpack.c.l.b16 %v2106
    %v2146 = vunpack.c.l.b16 %v2107
    %v2147 = vunpack.c.l.b16 %v2108
    %v2148 = vunpack.c.l.b16 %v2109
    %v2149 = vunpack.c.l.b16 %v2110
    %v2150 = vunpack.c.l.b16 %v2111
    %v2151 = vunpack.c.l.b16 %v2112
    %v2152 = vunpack.c.l.b16 %v2113
    %v2153 = vunpack.c.l.b16 %v2114
    %v2154 = vunpack.c.l.b16 %v2115
    %v2155 = vunpack.c.l.b16 %v2116
    %v2156 = vunpack.c.l.b16 %v2117
    %v2157 = vunpack.c.l.b16 %v2118
    %v2158 = vunpack.c.l.b16 %v2119
    %v2159 = vunpack.c.l.b16 %v2120
    %v2160 = vunpack.c.l.b16 %v2121
    %v2161 = vpack.c.b16 %v2146, %v2145
    %v2162 = vpack.c.b16 %v2148, %v2147
    %v2163 = vpack.c.b16 %v2150, %v2149
    %v2164 = vpack.c.b16 %v2152, %v2151
    %v2165 = vpack.c.b16 %v2154, %v2153
    %v2166 = vpack.c.b16 %v2156, %v2155
    %v2167 = vpack.c.b16 %v2158, %v2157
    %v2168 = vpack.c.b16 %v2160, %v2159
    %2177 = vmatprep.subr.bf16.mxu0 0
    %2178 = vmatpush1.bf16.msra.mxu0 %v2168
    %2179 = vmatprep.subr.bf16.mxu0 0
    %2180 = vmatpush1.bf16.msra.mxu0 %v2167
    %2181 = vmatprep.subr.bf16.mxu0 0
    %2182 = vmatpush1.bf16.msra.mxu0 %v2166
    %2183 = vmatprep.subr.bf16.mxu0 0
    %2184 = vmatpush1.bf16.msra.mxu0 %v2165
    %2185 = vmatprep.subr.bf16.mxu0 0
    %2186 = vmatpush1.bf16.msra.mxu0 %v2164
    %2187 = vmatprep.subr.bf16.mxu0 0
    %2188 = vmatpush1.bf16.msra.mxu0 %v2163
    %2189 = vmatprep.subr.bf16.mxu0 0
    %2190 = vmatpush1.bf16.msra.mxu0 %v2162
    %2191 = vmatprep.subr.bf16.mxu0 0
    %2192 = vmatpush1.bf16.msra.mxu0 %v2161
    %2193 = vmatprep.subr.bf16.mxu0 0
    %2194 = vmatpush2.bf16.msra.mxu0 0
    %2195 = vmatprep.subr.bf16.mxu0 0
    %2196 = vmatpush2.bf16.msra.mxu0 0
    %2197 = vmatprep.subr.bf16.mxu0 0
    %2198 = vmatpush2.bf16.msra.mxu0 0
    %2199 = vmatprep.subr.bf16.mxu0 0
    %2200 = vmatpush2.bf16.msra.mxu0 0
    %2201 = vmatprep.subr.bf16.mxu0 0
    %2202 = vmatpush2.bf16.msra.mxu0 0
    %2203 = vmatprep.subr.bf16.mxu0 0
    %2204 = vmatpush2.bf16.msra.mxu0 0
    %2205 = vmatprep.subr.bf16.mxu0 0
    %2206 = vmatpush2.bf16.msra.mxu0 0
    %2207 = vmatprep.subr.bf16.mxu0 0
    %2208 = vmatpush2.bf16.msra.mxu0 0
    %2209 = vmatprep.mubr.bf16.mxu0 0
    %2210 = vmatmul.mubr.bf16.gmra.mxu0 %v2102
    %v2211 = vpop.f32.mrf.mxu0
    %v2212 = vadd.f32 %v2127, %v2211
    %v2213 = vpop.f32.mrf.mxu0
    %v2214 = vpop.f32.mrf.mxu0
    %v2215 = vadd.f32 %v2127, %v2214
    %v2216 = vpop.f32.mrf.mxu0
    %2217 = vmatprep.mubr.bf16.mxu0 0
    %2218 = vmatmul.mubr.bf16.gmra.mxu0 %v2103
    %v2219 = vpop.f32.mrf.mxu0
    %v2220 = vadd.f32 %v2127, %v2219
    %v2221 = vpop.f32.mrf.mxu0
    %v2222 = vpop.f32.mrf.mxu0
    %v2223 = vadd.f32 %v2127, %v2222
    %v2224 = vpop.f32.mrf.mxu0
    %2225 = vmatprep.mubr.bf16.mxu0 0
    %2226 = vmatmul.mubr.bf16.gmra.mxu0 %v2104
    %v2227 = vpop.f32.mrf.mxu0
    %v2228 = vadd.f32 %v2127, %v2227
    %v2229 = vpop.f32.mrf.mxu0
    %v2230 = vpop.f32.mrf.mxu0
    %v2231 = vadd.f32 %v2127, %v2230
    %v2232 = vpop.f32.mrf.mxu0
    %2233 = vmatprep.mubr.bf16.mxu0 0
    %2234 = vmatmul.mubr.bf16.gmra.mxu0 %v2105
    %v2235 = vpop.f32.mrf.mxu0
    %v2236 = vadd.f32 %v2127, %v2235
    %v2237 = vpop.f32.mrf.mxu0
    %v2238 = vpop.f32.mrf.mxu0
    %v2239 = vadd.f32 %v2127, %v2238
    %v2240 = vpop.f32.mrf.mxu0
    %2241 = vdwg.mxu0
    %v2242 = vlaneseq
    %v2243 = vand.u32 %v2242, 127
    %s2244 = smul.u32 0, 128
    %v2245 = vstv %s2244
    %v2246 = vadd.s32 %v2243, %v2245
    %v2247 = vld [vmem:[%s3] sm:$0xff]
    %v2248 = vld [vmem:[%s3 + $0x8] sm:$0xff]
    %v2249 = vld [vmem:[%s3 + $0x10] sm:$0xff]
    %v2250 = vld [vmem:[%s3 + $0x18] sm:$0xff]
    %v2251 = vld [vmem:[%s3 + $0x20] sm:$0xff]
    %v2252 = vld [vmem:[%s3 + $0x28] sm:$0xff]
    %v2253 = vld [vmem:[%s3 + $0x30] sm:$0xff]
    %v2254 = vld [vmem:[%s3 + $0x38] sm:$0xff]
    %v2255 = vld [vmem:[#allocation4] sm:$0xff]
    %v2256 = vld [vmem:[#allocation4 + $0x8] sm:$0xff]
    %v2257 = vld [vmem:[#allocation4 + $0x10] sm:$0xff]
    %v2258 = vld [vmem:[#allocation4 + $0x18] sm:$0xff]
    %v2259 = vld [vmem:[#allocation4 + $0x20] sm:$0xff]
    %v2260 = vld [vmem:[#allocation4 + $0x28] sm:$0xff]
    %v2261 = vld [vmem:[#allocation4 + $0x30] sm:$0xff]
    %v2262 = vld [vmem:[#allocation4 + $0x38] sm:$0xff]
    %2263 = vmax.xlane.f32.xlu0 %v2212
    %v2264 = vpop.xlane.xlu0 %2263
    %2265 = vmax.xlane.f32.xlu0 %v2215
    %v2266 = vpop.xlane.xlu0 %2265
    %2267 = vmax.xlane.f32.xlu0 %v2220
    %v2268 = vpop.xlane.xlu0 %2267
    %2269 = vmax.xlane.f32.xlu0 %v2223
    %v2270 = vpop.xlane.xlu0 %2269
    %2271 = vmax.xlane.f32.xlu0 %v2228
    %v2272 = vpop.xlane.xlu0 %2271
    %2273 = vmax.xlane.f32.xlu0 %v2231
    %v2274 = vpop.xlane.xlu0 %2273
    %2275 = vmax.xlane.f32.xlu0 %v2236
    %v2276 = vpop.xlane.xlu0 %2275
    %2277 = vmax.xlane.f32.xlu0 %v2239
    %v2278 = vpop.xlane.xlu0 %2277
    %v2279 = vmax.f32 %v2255, %v2264
    %v2280 = vmax.f32 %v2256, %v2266
    %v2281 = vmax.f32 %v2257, %v2268
    %v2282 = vmax.f32 %v2258, %v2270
    %v2283 = vmax.f32 %v2259, %v2272
    %v2284 = vmax.f32 %v2260, %v2274
    %v2285 = vmax.f32 %v2261, %v2276
    %v2286 = vmax.f32 %v2262, %v2278
    %v2287 = vld [vmem:[#allocation5] sm:$0xff]
    %v2288 = vld [vmem:[#allocation5 + $0x8] sm:$0xff]
    %v2289 = vld [vmem:[#allocation5 + $0x10] sm:$0xff]
    %v2290 = vld [vmem:[#allocation5 + $0x18] sm:$0xff]
    %v2291 = vld [vmem:[#allocation5 + $0x20] sm:$0xff]
    %v2292 = vld [vmem:[#allocation5 + $0x28] sm:$0xff]
    %v2293 = vld [vmem:[#allocation5 + $0x30] sm:$0xff]
    %v2294 = vld [vmem:[#allocation5 + $0x38] sm:$0xff]
    %v2295 = vsub.f32 %v2255, %v2279
    %v2296 = vsub.f32 %v2256, %v2280
    %v2297 = vsub.f32 %v2257, %v2281
    %v2298 = vsub.f32 %v2258, %v2282
    %v2299 = vsub.f32 %v2259, %v2283
    %v2300 = vsub.f32 %v2260, %v2284
    %v2301 = vsub.f32 %v2261, %v2285
    %v2302 = vsub.f32 %v2262, %v2286
    %v2303 = vmul.f32 %v2295, 1.442695
    %v2304 = vpow.pop %v2303
    %v2305 = vmul.f32 %v2296, 1.442695
    %v2306 = vpow.pop %v2305
    %v2307 = vmul.f32 %v2297, 1.442695
    %v2308 = vpow.pop %v2307
    %v2309 = vmul.f32 %v2298, 1.442695
    %v2310 = vpow.pop %v2309
    %v2311 = vmul.f32 %v2299, 1.442695
    %v2312 = vpow.pop %v2311
    %v2313 = vmul.f32 %v2300, 1.442695
    %v2314 = vpow.pop %v2313
    %v2315 = vmul.f32 %v2301, 1.442695
    %v2316 = vpow.pop %v2315
    %v2317 = vmul.f32 %v2302, 1.442695
    %v2318 = vpow.pop %v2317
    %v2319 = vmul.f32 %v2287, %v2304
    %v2320 = vmul.f32 %v2288, %v2306
    %v2321 = vmul.f32 %v2289, %v2308
    %v2322 = vmul.f32 %v2290, %v2310
    %v2323 = vmul.f32 %v2291, %v2312
    %v2324 = vmul.f32 %v2292, %v2314
    %v2325 = vmul.f32 %v2293, %v2316
    %v2326 = vmul.f32 %v2294, %v2318
    %2328 = vset.pattern.permute.xlu0 0
    %2329 = vperm.xlu0 %2328, %v2279
    %v2330 = vpop.permute.xlu0 %2329
    %2333 = vset.pattern.permute.xlu0 0
    %2334 = vperm.xlu0 %2333, %v2280
    %v2335 = vpop.permute.xlu0 %2334
    %2338 = vset.pattern.permute.xlu0 0
    %2339 = vperm.xlu0 %2338, %v2281
    %v2340 = vpop.permute.xlu0 %2339
    %2343 = vset.pattern.permute.xlu0 0
    %2344 = vperm.xlu0 %2343, %v2282
    %v2345 = vpop.permute.xlu0 %2344
    %2348 = vset.pattern.permute.xlu0 0
    %2349 = vperm.xlu0 %2348, %v2283
    %v2350 = vpop.permute.xlu0 %2349
    %2353 = vset.pattern.permute.xlu0 0
    %2354 = vperm.xlu0 %2353, %v2284
    %v2355 = vpop.permute.xlu0 %2354
    %2358 = vset.pattern.permute.xlu0 0
    %2359 = vperm.xlu0 %2358, %v2285
    %v2360 = vpop.permute.xlu0 %2359
    %2363 = vset.pattern.permute.xlu0 0
    %2364 = vperm.xlu0 %2363, %v2286
    %v2365 = vpop.permute.xlu0 %2364
    %v2367 = vsub.f32 %v2212, %v2330
    %v2368 = vsub.f32 %v2215, %v2335
    %v2369 = vsub.f32 %v2220, %v2340
    %v2370 = vsub.f32 %v2223, %v2345
    %v2371 = vsub.f32 %v2228, %v2350
    %v2372 = vsub.f32 %v2231, %v2355
    %v2373 = vsub.f32 %v2236, %v2360
    %v2374 = vsub.f32 %v2239, %v2365
    %v2375 = vmul.f32 %v2367, 1.442695
    %v2376 = vpow.pop %v2375
    %v2377 = vmul.f32 %v2368, 1.442695
    %v2378 = vpow.pop %v2377
    %v2379 = vmul.f32 %v2369, 1.442695
    %v2380 = vpow.pop %v2379
    %v2381 = vmul.f32 %v2370, 1.442695
    %v2382 = vpow.pop %v2381
    %v2383 = vmul.f32 %v2371, 1.442695
    %v2384 = vpow.pop %v2383
    %v2385 = vmul.f32 %v2372, 1.442695
    %v2386 = vpow.pop %v2385
    %v2387 = vmul.f32 %v2373, 1.442695
    %v2388 = vpow.pop %v2387
    %v2389 = vmul.f32 %v2374, 1.442695
    %v2390 = vpow.pop %v2389
    %2391 = vadd.xlane.f32.xlu0 %v2376
    %v2392 = vpop.xlane.xlu0 %2391
    %2393 = vadd.xlane.f32.xlu0 %v2378
    %v2394 = vpop.xlane.xlu0 %2393
    %2395 = vadd.xlane.f32.xlu0 %v2380
    %v2396 = vpop.xlane.xlu0 %2395
    %2397 = vadd.xlane.f32.xlu0 %v2382
    %v2398 = vpop.xlane.xlu0 %2397
    %2399 = vadd.xlane.f32.xlu0 %v2384
    %v2400 = vpop.xlane.xlu0 %2399
    %2401 = vadd.xlane.f32.xlu0 %v2386
    %v2402 = vpop.xlane.xlu0 %2401
    %2403 = vadd.xlane.f32.xlu0 %v2388
    %v2404 = vpop.xlane.xlu0 %2403
    %2405 = vadd.xlane.f32.xlu0 %v2390
    %v2406 = vpop.xlane.xlu0 %2405
    %v2407 = vadd.f32 %v2319, %v2392
    %v2408 = vadd.f32 %v2320, %v2394
    %v2409 = vadd.f32 %v2321, %v2396
    %v2410 = vadd.f32 %v2322, %v2398
    %v2411 = vadd.f32 %v2323, %v2400
    %v2412 = vadd.f32 %v2324, %v2402
    %v2413 = vadd.f32 %v2325, %v2404
    %v2414 = vadd.f32 %v2326, %v2406
    %vm2415 = vcmask 7168
    %2416 = vst.msk [vmem:[#allocation5] sm:$0xff] %vm2415, %v2407
    %2417 = vst.msk [vmem:[#allocation5 + $0x8] sm:$0xff] %vm2415, %v2408
    %2418 = vst.msk [vmem:[#allocation5 + $0x10] sm:$0xff] %vm2415, %v2409
    %2419 = vst.msk [vmem:[#allocation5 + $0x18] sm:$0xff] %vm2415, %v2410
    %2420 = vst.msk [vmem:[#allocation5 + $0x20] sm:$0xff] %vm2415, %v2411
    %2421 = vst.msk [vmem:[#allocation5 + $0x28] sm:$0xff] %vm2415, %v2412
    %2422 = vst.msk [vmem:[#allocation5 + $0x30] sm:$0xff] %vm2415, %v2413
    %2423 = vst.msk [vmem:[#allocation5 + $0x38] sm:$0xff] %vm2415, %v2414
    %v2424 = vld [vmem:[#allocation6] sm:$0xff]
    %v2425 = vld [vmem:[#allocation6 + $0x8] sm:$0xff]
    %v2426 = vld [vmem:[#allocation6 + $0x10] sm:$0xff]
    %v2427 = vld [vmem:[#allocation6 + $0x18] sm:$0xff]
    %v2428 = vld [vmem:[#allocation6 + $0x20] sm:$0xff]
    %v2429 = vld [vmem:[#allocation6 + $0x28] sm:$0xff]
    %v2430 = vld [vmem:[#allocation6 + $0x30] sm:$0xff]
    %v2431 = vld [vmem:[#allocation6 + $0x38] sm:$0xff]
    %2432 = vset.pattern.permute.xlu0 0
    %2433 = vperm.xlu0 %2432, %v2247
    %v2434 = vpop.permute.xlu0 %2433
    %2435 = vset.pattern.permute.xlu0 0
    %2436 = vperm.xlu0 %2435, %v2248
    %v2437 = vpop.permute.xlu0 %2436
    %2438 = vset.pattern.permute.xlu0 0
    %2439 = vperm.xlu0 %2438, %v2249
    %v2440 = vpop.permute.xlu0 %2439
    %2441 = vset.pattern.permute.xlu0 0
    %2442 = vperm.xlu0 %2441, %v2250
    %v2443 = vpop.permute.xlu0 %2442
    %2444 = vset.pattern.permute.xlu0 0
    %2445 = vperm.xlu0 %2444, %v2251
    %v2446 = vpop.permute.xlu0 %2445
    %2447 = vset.pattern.permute.xlu0 0
    %2448 = vperm.xlu0 %2447, %v2252
    %v2449 = vpop.permute.xlu0 %2448
    %2450 = vset.pattern.permute.xlu0 0
    %2451 = vperm.xlu0 %2450, %v2253
    %v2452 = vpop.permute.xlu0 %2451
    %2453 = vset.pattern.permute.xlu0 0
    %2454 = vperm.xlu0 %2453, %v2254
    %v2455 = vpop.permute.xlu0 %2454
    %vm2456 = vcmp.eq.s32.totalorder %v2246, %v2434
    %vm2457 = vcmp.eq.s32.totalorder %v2246, %v2437
    %vm2458 = vcmp.eq.s32.totalorder %v2246, %v2440
    %vm2459 = vcmp.eq.s32.totalorder %v2246, %v2443
    %vm2460 = vcmp.eq.s32.totalorder %v2246, %v2446
    %vm2461 = vcmp.eq.s32.totalorder %v2246, %v2449
    %vm2462 = vcmp.eq.s32.totalorder %v2246, %v2452
    %vm2463 = vcmp.eq.s32.totalorder %v2246, %v2455
    %v2464 = vsel %vm2456, %v2212, 0.0
    %v2465 = vsel %vm2457, %v2215, 0.0
    %v2466 = vsel %vm2458, %v2220, 0.0
    %v2467 = vsel %vm2459, %v2223, 0.0
    %v2468 = vsel %vm2460, %v2228, 0.0
    %v2469 = vsel %vm2461, %v2231, 0.0
    %v2470 = vsel %vm2462, %v2236, 0.0
    %v2471 = vsel %vm2463, %v2239, 0.0
    %2472 = vadd.xlane.f32.xlu0 %v2464
    %v2473 = vpop.xlane.xlu0 %2472
    %2474 = vadd.xlane.f32.xlu0 %v2465
    %v2475 = vpop.xlane.xlu0 %2474
    %2476 = vadd.xlane.f32.xlu0 %v2466
    %v2477 = vpop.xlane.xlu0 %2476
    %2478 = vadd.xlane.f32.xlu0 %v2467
    %v2479 = vpop.xlane.xlu0 %2478
    %2480 = vadd.xlane.f32.xlu0 %v2468
    %v2481 = vpop.xlane.xlu0 %2480
    %2482 = vadd.xlane.f32.xlu0 %v2469
    %v2483 = vpop.xlane.xlu0 %2482
    %2484 = vadd.xlane.f32.xlu0 %v2470
    %v2485 = vpop.xlane.xlu0 %2484
    %2486 = vadd.xlane.f32.xlu0 %v2471
    %v2487 = vpop.xlane.xlu0 %2486
    %v2488 = vadd.f32 %v2424, %v2473
    %v2489 = vadd.f32 %v2425, %v2475
    %v2490 = vadd.f32 %v2426, %v2477
    %v2491 = vadd.f32 %v2427, %v2479
    %v2492 = vadd.f32 %v2428, %v2481
    %v2493 = vadd.f32 %v2429, %v2483
    %v2494 = vadd.f32 %v2430, %v2485
    %v2495 = vadd.f32 %v2431, %v2487
    %2496 = vst.msk [vmem:[#allocation6] sm:$0xff] %vm2415, %v2488
    %2497 = vst.msk [vmem:[#allocation6 + $0x8] sm:$0xff] %vm2415, %v2489
    %2498 = vst.msk [vmem:[#allocation6 + $0x10] sm:$0xff] %vm2415, %v2490
    %2499 = vst.msk [vmem:[#allocation6 + $0x18] sm:$0xff] %vm2415, %v2491
    %2500 = vst.msk [vmem:[#allocation6 + $0x20] sm:$0xff] %vm2415, %v2492
    %2501 = vst.msk [vmem:[#allocation6 + $0x28] sm:$0xff] %vm2415, %v2493
    %2502 = vst.msk [vmem:[#allocation6 + $0x30] sm:$0xff] %vm2415, %v2494
    %2503 = vst.msk [vmem:[#allocation6 + $0x38] sm:$0xff] %vm2415, %v2495
    %2504 = vst.msk [vmem:[#allocation4] sm:$0xff] %vm2415, %v2279
    %2505 = vst.msk [vmem:[#allocation4 + $0x8] sm:$0xff] %vm2415, %v2280
    %2506 = vst.msk [vmem:[#allocation4 + $0x10] sm:$0xff] %vm2415, %v2281
    %2507 = vst.msk [vmem:[#allocation4 + $0x18] sm:$0xff] %vm2415, %v2282
    %2508 = vst.msk [vmem:[#allocation4 + $0x20] sm:$0xff] %vm2415, %v2283
    %2509 = vst.msk [vmem:[#allocation4 + $0x28] sm:$0xff] %vm2415, %v2284
    %2510 = vst.msk [vmem:[#allocation4 + $0x30] sm:$0xff] %vm2415, %v2285
    %2511 = vst.msk [vmem:[#allocation4 + $0x38] sm:$0xff] %vm2415, %v2286
    // Predicated region
    $region74: #{tpu_custom_call.1} parent=1 // pred_check
      %p2512 = pneg %p112
    $region75: #{tpu_custom_call.1} parent=1 // pred_check_branch
      %2514 = sbr.rel (%p2512) target = $region77
    $region76: #{tpu_custom_call.1} parent=1 // pred_region
      %v2515 = vld [vmem:[#allocation4] sm:$0xff]
      %v2516 = vld [vmem:[#allocation4 + $0x8] sm:$0xff]
      %v2517 = vld [vmem:[#allocation4 + $0x10] sm:$0xff]
      %v2518 = vld [vmem:[#allocation4 + $0x18] sm:$0xff]
      %v2519 = vld [vmem:[#allocation4 + $0x20] sm:$0xff]
      %v2520 = vld [vmem:[#allocation4 + $0x28] sm:$0xff]
      %v2521 = vld [vmem:[#allocation4 + $0x30] sm:$0xff]
      %v2522 = vld [vmem:[#allocation4 + $0x38] sm:$0xff]
      %v2523 = vld [vmem:[#allocation5] sm:$0xff]
      %v2524 = vld [vmem:[#allocation5 + $0x8] sm:$0xff]
      %v2525 = vld [vmem:[#allocation5 + $0x10] sm:$0xff]
      %v2526 = vld [vmem:[#allocation5 + $0x18] sm:$0xff]
      %v2527 = vld [vmem:[#allocation5 + $0x20] sm:$0xff]
      %v2528 = vld [vmem:[#allocation5 + $0x28] sm:$0xff]
      %v2529 = vld [vmem:[#allocation5 + $0x30] sm:$0xff]
      %v2530 = vld [vmem:[#allocation5 + $0x38] sm:$0xff]
      %v2531 = vlog2.pop %v2523
      %v2532 = vmul.f32 %v2531, 0.6931472
      %v2533 = vlog2.pop %v2524
      %v2534 = vmul.f32 %v2533, 0.6931472
      %v2535 = vlog2.pop %v2525
      %v2536 = vmul.f32 %v2535, 0.6931472
      %v2537 = vlog2.pop %v2526
      %v2538 = vmul.f32 %v2537, 0.6931472
      %v2539 = vlog2.pop %v2527
      %v2540 = vmul.f32 %v2539, 0.6931472
      %v2541 = vlog2.pop %v2528
      %v2542 = vmul.f32 %v2541, 0.6931472
      %v2543 = vlog2.pop %v2529
      %v2544 = vmul.f32 %v2543, 0.6931472
      %v2545 = vlog2.pop %v2530
      %v2546 = vmul.f32 %v2545, 0.6931472
      %v2547 = vadd.f32 %v2515, %v2532
      %v2548 = vadd.f32 %v2516, %v2534
      %v2549 = vadd.f32 %v2517, %v2536
      %v2550 = vadd.f32 %v2518, %v2538
      %v2551 = vadd.f32 %v2519, %v2540
      %v2552 = vadd.f32 %v2520, %v2542
      %v2553 = vadd.f32 %v2521, %v2544
      %v2554 = vadd.f32 %v2522, %v2546
      %v2555 = vld [vmem:[#allocation6] sm:$0xff]
      %v2556 = vld [vmem:[#allocation6 + $0x8] sm:$0xff]
      %v2557 = vld [vmem:[#allocation6 + $0x10] sm:$0xff]
      %v2558 = vld [vmem:[#allocation6 + $0x18] sm:$0xff]
      %v2559 = vld [vmem:[#allocation6 + $0x20] sm:$0xff]
      %v2560 = vld [vmem:[#allocation6 + $0x28] sm:$0xff]
      %v2561 = vld [vmem:[#allocation6 + $0x30] sm:$0xff]
      %v2562 = vld [vmem:[#allocation6 + $0x38] sm:$0xff]
      %v2563 = vsub.f32 %v2547, %v2555
      %v2564 = vsub.f32 %v2548, %v2556
      %v2565 = vsub.f32 %v2549, %v2557
      %v2566 = vsub.f32 %v2550, %v2558
      %v2567 = vsub.f32 %v2551, %v2559
      %v2568 = vsub.f32 %v2552, %v2560
      %v2569 = vsub.f32 %v2553, %v2561
      %v2570 = vsub.f32 %v2554, %v2562
      %v2571 = vld [vmem:[%s3] sm:$0xff]
      %v2572 = vld [vmem:[%s3 + $0x8] sm:$0xff]
      %v2573 = vld [vmem:[%s3 + $0x10] sm:$0xff]
      %v2574 = vld [vmem:[%s3 + $0x18] sm:$0xff]
      %v2575 = vld [vmem:[%s3 + $0x20] sm:$0xff]
      %v2576 = vld [vmem:[%s3 + $0x28] sm:$0xff]
      %v2577 = vld [vmem:[%s3 + $0x30] sm:$0xff]
      %v2578 = vld [vmem:[%s3 + $0x38] sm:$0xff]
      %vm2579 = vcmp.ne.s32.totalorder %v2571, 0
      %vm2580 = vcmp.ne.s32.totalorder %v2572, 0
      %vm2581 = vcmp.ne.s32.totalorder %v2573, 0
      %vm2582 = vcmp.ne.s32.totalorder %v2574, 0
      %vm2583 = vcmp.ne.s32.totalorder %v2575, 0
      %vm2584 = vcmp.ne.s32.totalorder %v2576, 0
      %vm2585 = vcmp.ne.s32.totalorder %v2577, 0
      %vm2586 = vcmp.ne.s32.totalorder %v2578, 0
      %v2587 = vsel %vm2579, 1, 0
      %v2588 = vsel %vm2580, 1, 0
      %v2589 = vsel %vm2581, 1, 0
      %v2590 = vsel %vm2582, 1, 0
      %v2591 = vsel %vm2583, 1, 0
      %v2592 = vsel %vm2584, 1, 0
      %v2593 = vsel %vm2585, 1, 0
      %v2594 = vsel %vm2586, 1, 0
      %v2595 = vcvt.s32.f32 %v2587
      %v2596 = vcvt.s32.f32 %v2588
      %v2597 = vcvt.s32.f32 %v2589
      %v2598 = vcvt.s32.f32 %v2590
      %v2599 = vcvt.s32.f32 %v2591
      %v2600 = vcvt.s32.f32 %v2592
      %v2601 = vcvt.s32.f32 %v2593
      %v2602 = vcvt.s32.f32 %v2594
      %v2603 = vsel %vm2415, %v2595, 0.0
      %v2604 = vsel %vm2415, %v2596, 0.0
      %v2605 = vadd.f32 %v2603, %v2604
      %v2606 = vsel %vm2415, %v2597, 0.0
      %v2607 = vadd.f32 %v2605, %v2606
      %v2608 = vsel %vm2415, %v2598, 0.0
      %v2609 = vadd.f32 %v2607, %v2608
      %v2610 = vsel %vm2415, %v2599, 0.0
      %v2611 = vadd.f32 %v2609, %v2610
      %v2612 = vsel %vm2415, %v2600, 0.0
      %v2613 = vadd.f32 %v2611, %v2612
      %v2614 = vsel %vm2415, %v2601, 0.0
      %v2615 = vadd.f32 %v2613, %v2614
      %v2616 = vsel %vm2415, %v2602, 0.0
      %v2617 = vadd.f32 %v2615, %v2616
      %2618 = vadd.xlane.f32.xlu0 %v2617
      %v2619 = vpop.xlane.xlu0 %2618
      %v2620 = vrot.slane %v2619, 4
      %v2621 = vadd.f32 %v2619, %v2620
      %v2622 = vrot.slane %v2621, 2
      %v2623 = vadd.f32 %v2621, %v2622
      %v2624 = vrot.slane %v2623, 1
      %v2625 = vadd.f32 %v2623, %v2624
      %s2626 = vtos %v2625
      %s2627 = smax.f32 %s2626, 1.0
      %v2628 = vmul.f32 %v2563, %v2595
      %v2629 = vmul.f32 %v2564, %v2596
      %v2630 = vmul.f32 %v2565, %v2597
      %v2631 = vmul.f32 %v2566, %v2598
      %v2632 = vmul.f32 %v2567, %v2599
      %v2633 = vmul.f32 %v2568, %v2600
      %v2634 = vmul.f32 %v2569, %v2601
      %v2635 = vmul.f32 %v2570, %v2602
      %v2636 = vsel %vm2415, %v2628, 0.0
      %v2637 = vsel %vm2415, %v2629, 0.0
      %v2638 = vadd.f32 %v2636, %v2637
      %v2639 = vsel %vm2415, %v2630, 0.0
      %v2640 = vadd.f32 %v2638, %v2639
      %v2641 = vsel %vm2415, %v2631, 0.0
      %v2642 = vadd.f32 %v2640, %v2641
      %v2643 = vsel %vm2415, %v2632, 0.0
      %v2644 = vadd.f32 %v2642, %v2643
      %v2645 = vsel %vm2415, %v2633, 0.0
      %v2646 = vadd.f32 %v2644, %v2645
      %v2647 = vsel %vm2415, %v2634, 0.0
      %v2648 = vadd.f32 %v2646, %v2647
      %v2649 = vsel %vm2415, %v2635, 0.0
      %v2650 = vadd.f32 %v2648, %v2649
      %2651 = vadd.xlane.f32.xlu0 %v2650
      %v2652 = vpop.xlane.xlu0 %2651
      %v2653 = vrot.slane %v2652, 4
      %v2654 = vadd.f32 %v2652, %v2653
      %v2655 = vrot.slane %v2654, 2
      %v2656 = vadd.f32 %v2654, %v2655
      %v2657 = vrot.slane %v2656, 1
      %v2658 = vadd.f32 %v2656, %v2657
      %s2659 = vtos %v2658
      %v2660 = vstv %s2627
      %v2661 = vrcp.pop %v2660
      %s2662 = vtos %v2661
      %s2663 = smul.f32 %s2659, %s2662
      %s2664 = scalar_lea.smem [#allocation18], 0
      %2665 = sst [smem:[%s2664]] %s2663
    $region77: #{tpu_custom_call.1} parent=1 // pred_fallthru
      _
    // Predicated region
    $region78: #{tpu_custom_call.1} parent=1 // pred_check
      _
    $region79: #{tpu_custom_call.1} parent=1 // pred_check_branch
      %2667 = sbr.rel (0) target = $region81
    $region80: #{tpu_custom_call.1} parent=1 // pred_region
      %s2669 = ssub.s32 128, 128
      %2670 = vsyncadd [#allocation9], %s2669
      %s2672 = sshll.u32 [#allocation17], 4
      %s2673 = int_to_ptr.vmem [resolvable:$true] %s2672
      %2675 = dma.vmem_to_hbm [thread:$0]  %s2673, 128, %s12, [#allocation9]
    $region81: #{tpu_custom_call.1} parent=1 // pred_fallthru
      _
    // Predicated region
    $region82: #{tpu_custom_call.1} parent=1 // pred_check
      _
    $region83: #{tpu_custom_call.1} parent=1 // pred_check_branch
      %2677 = sbr.rel (0) target = $region85
    $region84: #{tpu_custom_call.1} parent=1 // pred_region
      %s2679 = ssub.s32 16, 16
      %2680 = vsyncadd [#allocation10], %s2679
      %2683 = dma.smem_to_hbm [#allocation18], 16, %s13, [#allocation10]
    $region85: #{tpu_custom_call.1} parent=1 // pred_fallthru
      _
    // Predicated region
    $region86: #{tpu_custom_call.1} parent=1 // pred_check
      _
    $region87: #{tpu_custom_call.1} parent=1 // pred_check_branch
      %2685 = sbr.rel (0) target = $region89
    $region88: #{tpu_custom_call.1} parent=1 // pred_region
      %2686 = dma.done [#allocation9], 128
    $region89: #{tpu_custom_call.1} parent=1 // pred_fallthru
      _
    // Predicated region
    $region90: #{tpu_custom_call.1} parent=1 // pred_check
      _
    $region91: #{tpu_custom_call.1} parent=1 // pred_check_branch
      %2688 = sbr.rel (0) target = $region93
    $region92: #{tpu_custom_call.1} parent=1 // pred_region
      %2689 = dma.done [#allocation10], 16
    $region93: #{tpu_custom_call.1} parent=1 // pred_fallthru
      _
    %2690 = sfence
    %2691 = vsyncpa [#allocation8], 1
    %2692 = vsyncpa [#allocation12], 1
    %2693 = vsyncpa [#allocation15], 1
    %2694 = vsyncpa [#allocation9], 1
    %2695 = vsyncpa [#allocation10], 1

</llo_original>
